<compile_context>
chip_gen: v6e
topology: v6e:2x2x1
jax: 0.10.0
libtpu: 0.0.40
codegen_flags: <defaults>
</compile_context>

<pallas_src>
import jax
import jax.numpy as jnp
from jax import lax
from jax.experimental import pallas as pl
from jax.experimental.pallas import tpu as pltpu


# ------------------------------ config ------------------------------------

_CONV1 = dict(cout=64, cin=3, k=11, stride=4, pad=2)
_POOL1 = dict(k=3, s=2)
_CONV2 = dict(cout=192, cin=64, k=5, stride=1, pad=2)
_NUM_CLASSES = 10
_LANE = 128


def _round_up(x, m):
    return (x + m - 1) // m * m


def _pick_block_batch(n):
    """Largest batch block <= 8 that divides n while keeping >= 2 grid steps
    (so both TensorCores get work on v7x)."""
    for cand in (8, 4, 2):
        if n % cand == 0 and n // cand >= 2:
            return cand
    return 1


# --------------------------- fused Pallas kernel ----------------------------

def fused_forward(q, w1, b1, w2, b2, wl, bl, *, bblk, hp, wp, k2, pad2):
    """Fused conv1+ReLU+MaxPool + conv2+ReLU + global max-pool + Linear.

    q:  (G, 9, bblk*hp*wp, K1p) bf16 conv1 im2col patches, grouped by the
        3x3/2 pooling-window offset t, batch folded into the GEMM M dim.
    w1: (K1p, 128) bf16, b1: (1, 128) f32
    w2: (k2*k2*128, 256) bf16 rows ordered (ki, kj, cin), b2: (1, 256) f32
    wl: (256, 128) f32 (classes lane-padded),  bl: (1, 128) f32
    Returns (G, bblk, 128) f32 (slice [:, :, :10] outside).
    """
    g_steps, tt, m1, k1p = q.shape
    c1p = w1.shape[1]
    k2rows, c2p = w2.shape
    clsp = wl.shape[1]
    assert m1 == bblk * hp * wp
    assert k2rows == k2 * k2 * c1p

    wpad = wp + 2 * pad2                       # 11
    hpad = hp + 2 * pad2                       # 11
    # conv2 GEMM rows: flat padded frame positions m = ho*wpad + wo, ho<hp.
    mrows = _round_up((hp - 1) * wpad + wp, 8)                 # 80
    # flat-frame rows per image (covers padded map + deepest offset slice).
    xrows = _round_up(max(hpad * wpad, mrows + (k2 - 1) * (wpad + 1)), 8)  # 128

    def kernel(q_ref, w1_ref, b1_ref, w2_ref, b2_ref, wl_ref, bl_ref, o_ref,
               m_scr, h1_scr, xf_scr, patch_scr, g_scr):
        # ---- conv1: 9 pool-offset GEMMs, batch folded into M, max over t ----
        w1v = w1_ref[...]
        for t in range(tt):
            a = jnp.dot(q_ref[0, t], w1v, preferred_element_type=jnp.float32)
            if t == 0:
                m_scr[...] = a
            else:
                m_scr[...] = jnp.maximum(m_scr[...], a)
        # bias + ReLU hoisted out of the max (exact: bias const, ReLU monotone)
        h1_scr[...] = jnp.maximum(m_scr[...] + b1_ref[...], 0.0
                                  ).astype(jnp.bfloat16)

        # ---- scatter pooled rows into zero-padded flat frames (VMEM only) ----
        xf_scr[...] = jnp.zeros_like(xf_scr)
        for b in range(bblk):
            for po in range(hp):
                dst = (po + pad2) * wpad + pad2
                src = b * hp * wp + po * wp
                xf_scr[b, dst:dst + wp, :] = h1_scr[src:src + wp, :]

        # ---- conv2: staged im2col -> one GEMM; ReLU; global max pool --------
        w2v = w2_ref[...]
        b2v = b2_ref[...]
        for b in range(bblk):
            for ki in range(k2):
                for kj in range(k2):
                    col = (ki * k2 + kj) * c1p
                    d = ki * wpad + kj
                    patch_scr[:, col:col + c1p] = xf_scr[b, d:d + mrows, :]
            a2 = jnp.dot(patch_scr[...], w2v,
                         preferred_element_type=jnp.float32)     # (mrows, c2p)
            a2 = jnp.maximum(a2 + b2v, 0.0)
            gmax = None
            for ho in range(hp):                 # only the 49 valid rows
                rows = a2[ho * wpad: ho * wpad + wp, :]
                gmax = rows if gmax is None else jnp.maximum(gmax, rows)
            g_scr[b:b + 1, :] = jnp.max(gmax, axis=0, keepdims=True)

        # ---- classifier head (lane-padded to 128 classes, dense store) ------
        o_ref[0] = (jnp.dot(g_scr[...], wl_ref[...],
                            preferred_element_type=jnp.float32) + bl_ref[...])

    return pl.pallas_call(
        kernel,
        out_shape=jax.ShapeDtypeStruct((g_steps, bblk, clsp), jnp.float32),
        grid=(g_steps,),
        in_specs=[
            pl.BlockSpec((1, tt, m1, k1p), lambda g: (g, 0, 0, 0)),
            pl.BlockSpec((k1p, c1p), lambda g: (0, 0)),
            pl.BlockSpec((1, c1p), lambda g: (0, 0)),
            pl.BlockSpec((k2rows, c2p), lambda g: (0, 0)),
            pl.BlockSpec((1, c2p), lambda g: (0, 0)),
            pl.BlockSpec((c2p, clsp), lambda g: (0, 0)),
            pl.BlockSpec((1, clsp), lambda g: (0, 0)),
        ],
        out_specs=pl.BlockSpec((1, bblk, clsp), lambda g: (g, 0, 0)),
        scratch_shapes=[
            pltpu.VMEM((m1, c1p), jnp.float32),                 # conv1 max acc
            pltpu.VMEM((m1, c1p), jnp.bfloat16),                # pooled conv1
            pltpu.VMEM((bblk, xrows, c1p), jnp.bfloat16),       # padded frames
            pltpu.VMEM((mrows, k2 * k2 * c1p), jnp.bfloat16),   # conv2 im2col
            pltpu.VMEM((bblk, c2p), jnp.float32),               # gpool vectors
        ],
        compiler_params=pltpu.CompilerParams(
            dimension_semantics=("parallel",),
            vmem_limit_bytes=32 * 1024 * 1024),
    )(q, w1, b1, w2, b2, wl, bl)


# ------------------------------ glue (JAX) ----------------------------------

def _pool_grouped_patches(x_nhwc, *, kh, kw, stride, pad, pool_k, pool_s, k_pad):
    """NHWC im2col (column order ki,kj,cin), grouped by 3x3/2 pooling window.
    Returns (N, pool_k*pool_k, Hp*Wp, k_pad) bf16 and (Hp, Wp)."""
    n, h, w, c = x_nhwc.shape
    xp = jnp.pad(x_nhwc, ((0, 0), (pad, pad), (pad, pad), (0, 0)))
    ho = (h + 2 * pad - kh) // stride + 1
    wo = (w + 2 * pad - kw) // stride + 1
    cols = [xp[:, ki:ki + stride * ho:stride, kj:kj + stride * wo:stride, :]
            for ki in range(kh) for kj in range(kw)]
    p = jnp.concatenate(cols, axis=-1)                  # (N, Ho, Wo, kh*kw*C)
    hp = (ho - pool_k) // pool_s + 1
    wp = (wo - pool_k) // pool_s + 1
    wins = [p[:, di:di + pool_s * hp:pool_s, dj:dj + pool_s * wp:pool_s, :]
            for di in range(pool_k) for dj in range(pool_k)]
    q = jnp.stack(wins, axis=1).reshape(n, pool_k * pool_k, hp * wp, kh * kw * c)
    q = jnp.pad(q, ((0, 0), (0, 0), (0, 0), (0, k_pad - kh * kw * c)))
    return q.astype(jnp.bfloat16), hp, wp


def init_params(key):
    ks = jax.random.split(key, 6)
    return {
        # features[0]: Conv2d(3, 64, 11, stride=4, padding=2)
        "conv1_w": jax.random.normal(ks[0], (64, 3, 11, 11), jnp.float32) * 0.05,
        "conv1_b": jax.random.normal(ks[1], (64,), jnp.float32) * 0.05,
        # features[3]: Conv2d(64, 192, 5, padding=2)
        "conv2_w": jax.random.normal(ks[2], (192, 64, 5, 5), jnp.float32) * 0.05,
        "conv2_b": jax.random.normal(ks[3], (192,), jnp.float32) * 0.05,
        # last head: Linear(192 -> 10)  (PyTorch weight layout (out, in))
        "last_w": jax.random.normal(ks[4], (10, 192), jnp.float32) * 0.05,
        "last_b": jax.random.normal(ks[5], (10,), jnp.float32) * 0.05,
    }


def pack_params(params, *, num_classes=_NUM_CLASSES):
    """One-time repack of PyTorch-layout weights into lane-dense GEMM matrices."""
    w1 = params["conv1_w"]
    cout1, cin1, kh1, kw1 = w1.shape
    k1 = kh1 * kw1 * cin1
    k1p = _round_up(k1, _LANE)
    c1p = _round_up(cout1, _LANE)
    w1m = w1.transpose(0, 2, 3, 1).reshape(cout1, k1)        # rows (ki,kj,cin)
    w1m = jnp.pad(w1m, ((0, c1p - cout1), (0, k1p - k1))).T  # (K1p, 128)
    b1 = jnp.pad(params["conv1_b"], (0, c1p - cout1)).reshape(1, c1p)

    w2 = params["conv2_w"]
    cout2, cin2, kh2, kw2 = w2.shape
    c2p = _round_up(cout2, _LANE)
    w2p = jnp.pad(w2, ((0, c2p - cout2), (0, c1p - cin2), (0, 0), (0, 0)))
    w2m = w2p.transpose(2, 3, 1, 0).reshape(kh2 * kw2 * c1p, c2p)  # (3200, 256)
    b2 = jnp.pad(params["conv2_b"], (0, c2p - cout2)).reshape(1, c2p)

    clsp = _round_up(num_classes, _LANE)
    wl = jnp.pad(params["last_w"].T,
                 ((0, c2p - cout2), (0, clsp - num_classes)))       # (256, 128)
    bl = jnp.pad(params["last_b"], (0, clsp - num_classes)).reshape(1, clsp)
    return {"w1": w1m.astype(jnp.bfloat16), "b1": b1.astype(jnp.float32),
            "w2": w2m.astype(jnp.bfloat16), "b2": b2.astype(jnp.float32),
            "wl": wl.astype(jnp.float32), "bl": bl.astype(jnp.float32)}


def model_forward(packed, x, *, block_batch=None):
    """x: (N, 3, H, W) NCHW like PyTorch.  Returns (N, 10) f32."""
    n = x.shape[0]
    xh = jnp.transpose(x, (0, 2, 3, 1))      # NCHW -> NHWC once
    k1p = packed["w1"].shape[0]
    patches, hp, wp = _pool_grouped_patches(
        xh, kh=_CONV1["k"], kw=_CONV1["k"], stride=_CONV1["stride"],
        pad=_CONV1["pad"], pool_k=_POOL1["k"], pool_s=_POOL1["s"], k_pad=k1p)
    bblk = block_batch if block_batch is not None else _pick_block_batch(n)
    assert n % bblk == 0
    g = n // bblk
    tt = _POOL1["k"] * _POOL1["k"]
    q = patches.reshape(g, bblk, tt, hp * wp, k1p)
    q = q.transpose(0, 2, 1, 3, 4).reshape(g, tt, bblk * hp * wp, k1p)
    out = fused_forward(q, packed["w1"], packed["b1"], packed["w2"],
                        packed["b2"], packed["wl"], packed["bl"],
                        bblk=bblk, hp=hp, wp=wp,
                        k2=_CONV2["k"], pad2=_CONV2["pad"])
    return out.reshape(n, -1)[:, :_NUM_CLASSES]


def reference_forward(params, x):
    """Pure-JAX f32 reference of the same hooked path (for a sanity check)."""
    dn = ("NCHW", "OIHW", "NCHW")
    y = lax.conv_general_dilated(x, params["conv1_w"], (4, 4),
                                 [(2, 2), (2, 2)], dimension_numbers=dn)
    y = jnp.maximum(y + params["conv1_b"][None, :, None, None], 0.0)
    y = lax.reduce_window(y, -jnp.inf, lax.max, (1, 1, 3, 3), (1, 1, 2, 2),
                          "VALID")
    y = lax.conv_general_dilated(y, params["conv2_w"], (1, 1),
                                 [(2, 2), (2, 2)], dimension_numbers=dn)
    y = jnp.maximum(y + params["conv2_b"][None, :, None, None], 0.0)
    y = jnp.max(y, axis=(2, 3))                       # global max pool
    return y @ params["last_w"].T + params["last_b"]


if __name__ == "__main__":
    key = jax.random.PRNGKey(0)
    pkey, xkey = jax.random.split(key)
    params = init_params(pkey)
    packed = pack_params(params)
    x = jax.random.normal(xkey, (2, 3, 64, 64), jnp.float32)   # NCHW like PyTorch
    fwd = jax.jit(model_forward)
    out = jax.block_until_ready(fwd(packed, x))
    assert out.shape == (2, _NUM_CLASSES) and out.dtype == jnp.float32
    # numerical sanity check vs. f32 reference (kernel uses bf16 MXU, f32 acc)
    ref = jax.block_until_ready(jax.jit(reference_forward)(params, x))
    assert jnp.allclose(out, ref, rtol=1e-1, atol=1e-1), (
        "max abs err = %f" % float(jnp.max(jnp.abs(out - ref))))
    print("KERNEL_OK")
</pallas_src>

<mosaic_0001>
module attributes {stable_mosaic.version = 11 : i64} {
  func.func @kernel(%arg0: i32, %arg1: memref<1x9x49x384xbf16, #tpu.memory_space<vmem>>, %arg2: memref<384x128xbf16, #tpu.memory_space<vmem>>, %arg3: memref<1x128xf32, #tpu.memory_space<vmem>>, %arg4: memref<3200x256xbf16, #tpu.memory_space<vmem>>, %arg5: memref<1x256xf32, #tpu.memory_space<vmem>>, %arg6: memref<256x128xf32, #tpu.memory_space<vmem>>, %arg7: memref<1x128xf32, #tpu.memory_space<vmem>>, %arg8: memref<1x1x128xf32, #tpu.memory_space<vmem>>, %arg9: memref<49x128xf32, #tpu.memory_space<vmem>>, %arg10: memref<49x128xbf16, #tpu.memory_space<vmem>>, %arg11: memref<1x128x128xbf16, #tpu.memory_space<vmem>>, %arg12: memref<80x3200xbf16, #tpu.memory_space<vmem>>, %arg13: memref<1x256xf32, #tpu.memory_space<vmem>>) attributes {dimension_semantics = [#tpu.dimension_semantics<parallel>], iteration_bounds = array<i64: 2>, scalar_prefetch = 0 : i64, scratch_operands = 5 : i64, tpu.core_type = #tpu.core_type<tc>, window_params = [{transform_indices = @transform_0, window_bounds = array<i64: 1, 9, 49, 384>}, {pipeline_mode = #tpu.pipeline_mode<synchronous>, transform_indices = @transform_1, window_bounds = array<i64: 384, 128>}, {pipeline_mode = #tpu.pipeline_mode<synchronous>, transform_indices = @transform_2, window_bounds = array<i64: 1, 128>}, {pipeline_mode = #tpu.pipeline_mode<synchronous>, transform_indices = @transform_3, window_bounds = array<i64: 3200, 256>}, {pipeline_mode = #tpu.pipeline_mode<synchronous>, transform_indices = @transform_4, window_bounds = array<i64: 1, 256>}, {pipeline_mode = #tpu.pipeline_mode<synchronous>, transform_indices = @transform_5, window_bounds = array<i64: 256, 128>}, {pipeline_mode = #tpu.pipeline_mode<synchronous>, transform_indices = @transform_6, window_bounds = array<i64: 1, 128>}, {transform_indices = @transform_7, window_bounds = array<i64: 1, 1, 128>}]} {
    %c0 = arith.constant 0 : index
    %c0_0 = arith.constant 0 : index
    %0 = vector.load %arg2[%c0, %c0_0] : memref<384x128xbf16, #tpu.memory_space<vmem>>, vector<384x128xbf16>
    %c0_1 = arith.constant 0 : index
    %c0_2 = arith.constant 0 : index
    %c0_3 = arith.constant 0 : index
    %c0_4 = arith.constant 0 : index
    %1 = vector.load %arg1[%c0_1, %c0_2, %c0_3, %c0_4] : memref<1x9x49x384xbf16, #tpu.memory_space<vmem>>, vector<1x1x49x384xbf16>
    %2 = vector.shape_cast %1 : vector<1x1x49x384xbf16> to vector<49x384xbf16>
    %cst = arith.constant dense<0.000000e+00> : vector<49x128xf32>
    %3 = tpu.matmul %2, %0, %cst {dimension_numbers = #tpu.dot_dimension_numbers<[1], [0], [0], [1], [0, 0, 1, 1], [], []>} : vector<49x384xbf16>, vector<384x128xbf16>, vector<49x128xf32> -> vector<49x128xf32>
    %c0_5 = arith.constant 0 : index
    %c0_6 = arith.constant 0 : index
    %4 = vector.load %arg9[%c0_5, %c0_6] : memref<49x128xf32, #tpu.memory_space<vmem>>, vector<49x128xf32>
    tpu.vector_store %arg9[%c0_5, %c0_6], %3 {strides = array<i32>} : memref<49x128xf32, #tpu.memory_space<vmem>>, vector<49x128xf32>,
    %c0_7 = arith.constant 0 : index
    %c1 = arith.constant 1 : index
    %c0_8 = arith.constant 0 : index
    %c0_9 = arith.constant 0 : index
    %5 = vector.load %arg1[%c0_7, %c1, %c0_8, %c0_9] : memref<1x9x49x384xbf16, #tpu.memory_space<vmem>>, vector<1x1x49x384xbf16>
    %6 = vector.shape_cast %5 : vector<1x1x49x384xbf16> to vector<49x384xbf16>
    %cst_10 = arith.constant dense<0.000000e+00> : vector<49x128xf32>
    %7 = tpu.matmul %6, %0, %cst_10 {dimension_numbers = #tpu.dot_dimension_numbers<[1], [0], [0], [1], [0, 0, 1, 1], [], []>} : vector<49x384xbf16>, vector<384x128xbf16>, vector<49x128xf32> -> vector<49x128xf32>
    %c0_11 = arith.constant 0 : index
    %c0_12 = arith.constant 0 : index
    %8 = vector.load %arg9[%c0_11, %c0_12] : memref<49x128xf32, #tpu.memory_space<vmem>>, vector<49x128xf32>
    %9 = arith.maximumf %8, %7 : vector<49x128xf32>
    %c0_13 = arith.constant 0 : index
    %c0_14 = arith.constant 0 : index
    %10 = vector.load %arg9[%c0_13, %c0_14] : memref<49x128xf32, #tpu.memory_space<vmem>>, vector<49x128xf32>
    tpu.vector_store %arg9[%c0_13, %c0_14], %9 {strides = array<i32>} : memref<49x128xf32, #tpu.memory_space<vmem>>, vector<49x128xf32>,
    %c0_15 = arith.constant 0 : index
    %c2 = arith.constant 2 : index
    %c0_16 = arith.constant 0 : index
    %c0_17 = arith.constant 0 : index
    %11 = vector.load %arg1[%c0_15, %c2, %c0_16, %c0_17] : memref<1x9x49x384xbf16, #tpu.memory_space<vmem>>, vector<1x1x49x384xbf16>
    %12 = vector.shape_cast %11 : vector<1x1x49x384xbf16> to vector<49x384xbf16>
    %cst_18 = arith.constant dense<0.000000e+00> : vector<49x128xf32>
    %13 = tpu.matmul %12, %0, %cst_18 {dimension_numbers = #tpu.dot_dimension_numbers<[1], [0], [0], [1], [0, 0, 1, 1], [], []>} : vector<49x384xbf16>, vector<384x128xbf16>, vector<49x128xf32> -> vector<49x128xf32>
    %c0_19 = arith.constant 0 : index
    %c0_20 = arith.constant 0 : index
    %14 = vector.load %arg9[%c0_19, %c0_20] : memref<49x128xf32, #tpu.memory_space<vmem>>, vector<49x128xf32>
    %15 = arith.maximumf %14, %13 : vector<49x128xf32>
    %c0_21 = arith.constant 0 : index
    %c0_22 = arith.constant 0 : index
    %16 = vector.load %arg9[%c0_21, %c0_22] : memref<49x128xf32, #tpu.memory_space<vmem>>, vector<49x128xf32>
    tpu.vector_store %arg9[%c0_21, %c0_22], %15 {strides = array<i32>} : memref<49x128xf32, #tpu.memory_space<vmem>>, vector<49x128xf32>,
    %c0_23 = arith.constant 0 : index
    %c3 = arith.constant 3 : index
    %c0_24 = arith.constant 0 : index
    %c0_25 = arith.constant 0 : index
    %17 = vector.load %arg1[%c0_23, %c3, %c0_24, %c0_25] : memref<1x9x49x384xbf16, #tpu.memory_space<vmem>>, vector<1x1x49x384xbf16>
    %18 = vector.shape_cast %17 : vector<1x1x49x384xbf16> to vector<49x384xbf16>
    %cst_26 = arith.constant dense<0.000000e+00> : vector<49x128xf32>
    %19 = tpu.matmul %18, %0, %cst_26 {dimension_numbers = #tpu.dot_dimension_numbers<[1], [0], [0], [1], [0, 0, 1, 1], [], []>} : vector<49x384xbf16>, vector<384x128xbf16>, vector<49x128xf32> -> vector<49x128xf32>
    %c0_27 = arith.constant 0 : index
    %c0_28 = arith.constant 0 : index
    %20 = vector.load %arg9[%c0_27, %c0_28] : memref<49x128xf32, #tpu.memory_space<vmem>>, vector<49x128xf32>
    %21 = arith.maximumf %20, %19 : vector<49x128xf32>
    %c0_29 = arith.constant 0 : index
    %c0_30 = arith.constant 0 : index
    %22 = vector.load %arg9[%c0_29, %c0_30] : memref<49x128xf32, #tpu.memory_space<vmem>>, vector<49x128xf32>
    tpu.vector_store %arg9[%c0_29, %c0_30], %21 {strides = array<i32>} : memref<49x128xf32, #tpu.memory_space<vmem>>, vector<49x128xf32>,
    %c0_31 = arith.constant 0 : index
    %c4 = arith.constant 4 : index
    %c0_32 = arith.constant 0 : index
    %c0_33 = arith.constant 0 : index
    %23 = vector.load %arg1[%c0_31, %c4, %c0_32, %c0_33] : memref<1x9x49x384xbf16, #tpu.memory_space<vmem>>, vector<1x1x49x384xbf16>
    %24 = vector.shape_cast %23 : vector<1x1x49x384xbf16> to vector<49x384xbf16>
    %cst_34 = arith.constant dense<0.000000e+00> : vector<49x128xf32>
    %25 = tpu.matmul %24, %0, %cst_34 {dimension_numbers = #tpu.dot_dimension_numbers<[1], [0], [0], [1], [0, 0, 1, 1], [], []>} : vector<49x384xbf16>, vector<384x128xbf16>, vector<49x128xf32> -> vector<49x128xf32>
    %c0_35 = arith.constant 0 : index
    %c0_36 = arith.constant 0 : index
    %26 = vector.load %arg9[%c0_35, %c0_36] : memref<49x128xf32, #tpu.memory_space<vmem>>, vector<49x128xf32>
    %27 = arith.maximumf %26, %25 : vector<49x128xf32>
    %c0_37 = arith.constant 0 : index
    %c0_38 = arith.constant 0 : index
    %28 = vector.load %arg9[%c0_37, %c0_38] : memref<49x128xf32, #tpu.memory_space<vmem>>, vector<49x128xf32>
    tpu.vector_store %arg9[%c0_37, %c0_38], %27 {strides = array<i32>} : memref<49x128xf32, #tpu.memory_space<vmem>>, vector<49x128xf32>,
    %c0_39 = arith.constant 0 : index
    %c5 = arith.constant 5 : index
    %c0_40 = arith.constant 0 : index
    %c0_41 = arith.constant 0 : index
    %29 = vector.load %arg1[%c0_39, %c5, %c0_40, %c0_41] : memref<1x9x49x384xbf16, #tpu.memory_space<vmem>>, vector<1x1x49x384xbf16>
    %30 = vector.shape_cast %29 : vector<1x1x49x384xbf16> to vector<49x384xbf16>
    %cst_42 = arith.constant dense<0.000000e+00> : vector<49x128xf32>
    %31 = tpu.matmul %30, %0, %cst_42 {dimension_numbers = #tpu.dot_dimension_numbers<[1], [0], [0], [1], [0, 0, 1, 1], [], []>} : vector<49x384xbf16>, vector<384x128xbf16>, vector<49x128xf32> -> vector<49x128xf32>
    %c0_43 = arith.constant 0 : index
    %c0_44 = arith.constant 0 : index
    %32 = vector.load %arg9[%c0_43, %c0_44] : memref<49x128xf32, #tpu.memory_space<vmem>>, vector<49x128xf32>
    %33 = arith.maximumf %32, %31 : vector<49x128xf32>
    %c0_45 = arith.constant 0 : index
    %c0_46 = arith.constant 0 : index
    %34 = vector.load %arg9[%c0_45, %c0_46] : memref<49x128xf32, #tpu.memory_space<vmem>>, vector<49x128xf32>
    tpu.vector_store %arg9[%c0_45, %c0_46], %33 {strides = array<i32>} : memref<49x128xf32, #tpu.memory_space<vmem>>, vector<49x128xf32>,
    %c0_47 = arith.constant 0 : index
    %c6 = arith.constant 6 : index
    %c0_48 = arith.constant 0 : index
    %c0_49 = arith.constant 0 : index
    %35 = vector.load %arg1[%c0_47, %c6, %c0_48, %c0_49] : memref<1x9x49x384xbf16, #tpu.memory_space<vmem>>, vector<1x1x49x384xbf16>
    %36 = vector.shape_cast %35 : vector<1x1x49x384xbf16> to vector<49x384xbf16>
    %cst_50 = arith.constant dense<0.000000e+00> : vector<49x128xf32>
    %37 = tpu.matmul %36, %0, %cst_50 {dimension_numbers = #tpu.dot_dimension_numbers<[1], [0], [0], [1], [0, 0, 1, 1], [], []>} : vector<49x384xbf16>, vector<384x128xbf16>, vector<49x128xf32> -> vector<49x128xf32>
    %c0_51 = arith.constant 0 : index
    %c0_52 = arith.constant 0 : index
    %38 = vector.load %arg9[%c0_51, %c0_52] : memref<49x128xf32, #tpu.memory_space<vmem>>, vector<49x128xf32>
    %39 = arith.maximumf %38, %37 : vector<49x128xf32>
    %c0_53 = arith.constant 0 : index
    %c0_54 = arith.constant 0 : index
    %40 = vector.load %arg9[%c0_53, %c0_54] : memref<49x128xf32, #tpu.memory_space<vmem>>, vector<49x128xf32>
    tpu.vector_store %arg9[%c0_53, %c0_54], %39 {strides = array<i32>} : memref<49x128xf32, #tpu.memory_space<vmem>>, vector<49x128xf32>,
    %c0_55 = arith.constant 0 : index
    %c7 = arith.constant 7 : index
    %c0_56 = arith.constant 0 : index
    %c0_57 = arith.constant 0 : index
    %41 = vector.load %arg1[%c0_55, %c7, %c0_56, %c0_57] : memref<1x9x49x384xbf16, #tpu.memory_space<vmem>>, vector<1x1x49x384xbf16>
    %42 = vector.shape_cast %41 : vector<1x1x49x384xbf16> to vector<49x384xbf16>
    %cst_58 = arith.constant dense<0.000000e+00> : vector<49x128xf32>
    %43 = tpu.matmul %42, %0, %cst_58 {dimension_numbers = #tpu.dot_dimension_numbers<[1], [0], [0], [1], [0, 0, 1, 1], [], []>} : vector<49x384xbf16>, vector<384x128xbf16>, vector<49x128xf32> -> vector<49x128xf32>
    %c0_59 = arith.constant 0 : index
    %c0_60 = arith.constant 0 : index
    %44 = vector.load %arg9[%c0_59, %c0_60] : memref<49x128xf32, #tpu.memory_space<vmem>>, vector<49x128xf32>
    %45 = arith.maximumf %44, %43 : vector<49x128xf32>
    %c0_61 = arith.constant 0 : index
    %c0_62 = arith.constant 0 : index
    %46 = vector.load %arg9[%c0_61, %c0_62] : memref<49x128xf32, #tpu.memory_space<vmem>>, vector<49x128xf32>
    tpu.vector_store %arg9[%c0_61, %c0_62], %45 {strides = array<i32>} : memref<49x128xf32, #tpu.memory_space<vmem>>, vector<49x128xf32>,
    %c0_63 = arith.constant 0 : index
    %c8 = arith.constant 8 : index
    %c0_64 = arith.constant 0 : index
    %c0_65 = arith.constant 0 : index
    %47 = vector.load %arg1[%c0_63, %c8, %c0_64, %c0_65] : memref<1x9x49x384xbf16, #tpu.memory_space<vmem>>, vector<1x1x49x384xbf16>
    %48 = vector.shape_cast %47 : vector<1x1x49x384xbf16> to vector<49x384xbf16>
    %cst_66 = arith.constant dense<0.000000e+00> : vector<49x128xf32>
    %49 = tpu.matmul %48, %0, %cst_66 {dimension_numbers = #tpu.dot_dimension_numbers<[1], [0], [0], [1], [0, 0, 1, 1], [], []>} : vector<49x384xbf16>, vector<384x128xbf16>, vector<49x128xf32> -> vector<49x128xf32>
    %c0_67 = arith.constant 0 : index
    %c0_68 = arith.constant 0 : index
    %50 = vector.load %arg9[%c0_67, %c0_68] : memref<49x128xf32, #tpu.memory_space<vmem>>, vector<49x128xf32>
    %51 = arith.maximumf %50, %49 : vector<49x128xf32>
    %c0_69 = arith.constant 0 : index
    %c0_70 = arith.constant 0 : index
    %52 = vector.load %arg9[%c0_69, %c0_70] : memref<49x128xf32, #tpu.memory_space<vmem>>, vector<49x128xf32>
    tpu.vector_store %arg9[%c0_69, %c0_70], %51 {strides = array<i32>} : memref<49x128xf32, #tpu.memory_space<vmem>>, vector<49x128xf32>,
    %c0_71 = arith.constant 0 : index
    %c0_72 = arith.constant 0 : index
    %53 = vector.load %arg9[%c0_71, %c0_72] : memref<49x128xf32, #tpu.memory_space<vmem>>, vector<49x128xf32>
    %c0_73 = arith.constant 0 : index
    %c0_74 = arith.constant 0 : index
    %54 = vector.load %arg3[%c0_73, %c0_74] : memref<1x128xf32, #tpu.memory_space<vmem>>, vector<1x128xf32>
    %55 = vector.broadcast %54 : vector<1x128xf32> to vector<49x128xf32>
    %56 = arith.addf %53, %55 : vector<49x128xf32>
    %cst_75 = arith.constant 0.000000e+00 : f32
    %57 = vector.broadcast %cst_75 : f32 to vector<49x128xf32>
    %58 = arith.maximumf %56, %57 : vector<49x128xf32>
    %59 = arith.truncf %58 : vector<49x128xf32> to vector<49x128xbf16>
    %c0_76 = arith.constant 0 : index
    %c0_77 = arith.constant 0 : index
    %60 = vector.load %arg10[%c0_76, %c0_77] : memref<49x128xbf16, #tpu.memory_space<vmem>>, vector<49x128xbf16>
    tpu.vector_store %arg10[%c0_76, %c0_77], %59 {strides = array<i32>} : memref<49x128xbf16, #tpu.memory_space<vmem>>, vector<49x128xbf16>,
    %cst_78 = arith.constant 0.000000e+00 : bf16
    %61 = vector.broadcast %cst_78 : bf16 to vector<1x128x128xbf16>
    %c0_79 = arith.constant 0 : index
    %c0_80 = arith.constant 0 : index
    %c0_81 = arith.constant 0 : index
    %62 = vector.load %arg11[%c0_79, %c0_80, %c0_81] : memref<1x128x128xbf16, #tpu.memory_space<vmem>>, vector<1x128x128xbf16>
    tpu.vector_store %arg11[%c0_79, %c0_80, %c0_81], %61 {strides = array<i32>} : memref<1x128x128xbf16, #tpu.memory_space<vmem>>, vector<1x128x128xbf16>,
    %c0_82 = arith.constant 0 : index
    %c0_83 = arith.constant 0 : index
    %63 = vector.load %arg10[%c0_82, %c0_83] : memref<49x128xbf16, #tpu.memory_space<vmem>>, vector<7x128xbf16>
    %c0_84 = arith.constant 0 : index
    %c24 = arith.constant 24 : index
    %c0_85 = arith.constant 0 : index
    %64 = vector.load %arg11[%c0_84, %c24, %c0_85] : memref<1x128x128xbf16, #tpu.memory_space<vmem>>, vector<1x7x128xbf16>
    %65 = vector.shape_cast %64 : vector<1x7x128xbf16> to vector<7x128xbf16>
    %66 = vector.shape_cast %63 : vector<7x128xbf16> to vector<1x7x128xbf16>
    tpu.vector_store %arg11[%c0_84, %c24, %c0_85], %66 {strides = array<i32>} : memref<1x128x128xbf16, #tpu.memory_space<vmem>>, vector<1x7x128xbf16>,
    %c7_86 = arith.constant 7 : index
    %c0_87 = arith.constant 0 : index
    %67 = vector.load %arg10[%c7_86, %c0_87] : memref<49x128xbf16, #tpu.memory_space<vmem>>, vector<7x128xbf16>
    %c0_88 = arith.constant 0 : index
    %c35 = arith.constant 35 : index
    %c0_89 = arith.constant 0 : index
    %68 = vector.load %arg11[%c0_88, %c35, %c0_89] : memref<1x128x128xbf16, #tpu.memory_space<vmem>>, vector<1x7x128xbf16>
    %69 = vector.shape_cast %68 : vector<1x7x128xbf16> to vector<7x128xbf16>
    %70 = vector.shape_cast %67 : vector<7x128xbf16> to vector<1x7x128xbf16>
    tpu.vector_store %arg11[%c0_88, %c35, %c0_89], %70 {strides = array<i32>} : memref<1x128x128xbf16, #tpu.memory_space<vmem>>, vector<1x7x128xbf16>,
    %c14 = arith.constant 14 : index
    %c0_90 = arith.constant 0 : index
    %71 = vector.load %arg10[%c14, %c0_90] : memref<49x128xbf16, #tpu.memory_space<vmem>>, vector<7x128xbf16>
    %c0_91 = arith.constant 0 : index
    %c46 = arith.constant 46 : index
    %c0_92 = arith.constant 0 : index
    %72 = vector.load %arg11[%c0_91, %c46, %c0_92] : memref<1x128x128xbf16, #tpu.memory_space<vmem>>, vector<1x7x128xbf16>
    %73 = vector.shape_cast %72 : vector<1x7x128xbf16> to vector<7x128xbf16>
    %74 = vector.shape_cast %71 : vector<7x128xbf16> to vector<1x7x128xbf16>
    tpu.vector_store %arg11[%c0_91, %c46, %c0_92], %74 {strides = array<i32>} : memref<1x128x128xbf16, #tpu.memory_space<vmem>>, vector<1x7x128xbf16>,
    %c21 = arith.constant 21 : index
    %c0_93 = arith.constant 0 : index
    %75 = vector.load %arg10[%c21, %c0_93] : memref<49x128xbf16, #tpu.memory_space<vmem>>, vector<7x128xbf16>
    %c0_94 = arith.constant 0 : index
    %c57 = arith.constant 57 : index
    %c0_95 = arith.constant 0 : index
    %76 = vector.load %arg11[%c0_94, %c57, %c0_95] : memref<1x128x128xbf16, #tpu.memory_space<vmem>>, vector<1x7x128xbf16>
    %77 = vector.shape_cast %76 : vector<1x7x128xbf16> to vector<7x128xbf16>
    %78 = vector.shape_cast %75 : vector<7x128xbf16> to vector<1x7x128xbf16>
    tpu.vector_store %arg11[%c0_94, %c57, %c0_95], %78 {strides = array<i32>} : memref<1x128x128xbf16, #tpu.memory_space<vmem>>, vector<1x7x128xbf16>,
    %c28 = arith.constant 28 : index
    %c0_96 = arith.constant 0 : index
    %79 = vector.load %arg10[%c28, %c0_96] : memref<49x128xbf16, #tpu.memory_space<vmem>>, vector<7x128xbf16>
    %c0_97 = arith.constant 0 : index
    %c68 = arith.constant 68 : index
    %c0_98 = arith.constant 0 : index
    %80 = vector.load %arg11[%c0_97, %c68, %c0_98] : memref<1x128x128xbf16, #tpu.memory_space<vmem>>, vector<1x7x128xbf16>
    %81 = vector.shape_cast %80 : vector<1x7x128xbf16> to vector<7x128xbf16>
    %82 = vector.shape_cast %79 : vector<7x128xbf16> to vector<1x7x128xbf16>
    tpu.vector_store %arg11[%c0_97, %c68, %c0_98], %82 {strides = array<i32>} : memref<1x128x128xbf16, #tpu.memory_space<vmem>>, vector<1x7x128xbf16>,
    %c35_99 = arith.constant 35 : index
    %c0_100 = arith.constant 0 : index
    %83 = vector.load %arg10[%c35_99, %c0_100] : memref<49x128xbf16, #tpu.memory_space<vmem>>, vector<7x128xbf16>
    %c0_101 = arith.constant 0 : index
    %c79 = arith.constant 79 : index
    %c0_102 = arith.constant 0 : index
    %84 = vector.load %arg11[%c0_101, %c79, %c0_102] : memref<1x128x128xbf16, #tpu.memory_space<vmem>>, vector<1x7x128xbf16>
    %85 = vector.shape_cast %84 : vector<1x7x128xbf16> to vector<7x128xbf16>
    %86 = vector.shape_cast %83 : vector<7x128xbf16> to vector<1x7x128xbf16>
    tpu.vector_store %arg11[%c0_101, %c79, %c0_102], %86 {strides = array<i32>} : memref<1x128x128xbf16, #tpu.memory_space<vmem>>, vector<1x7x128xbf16>,
    %c42 = arith.constant 42 : index
    %c0_103 = arith.constant 0 : index
    %87 = vector.load %arg10[%c42, %c0_103] : memref<49x128xbf16, #tpu.memory_space<vmem>>, vector<7x128xbf16>
    %c0_104 = arith.constant 0 : index
    %c90 = arith.constant 90 : index
    %c0_105 = arith.constant 0 : index
    %88 = vector.load %arg11[%c0_104, %c90, %c0_105] : memref<1x128x128xbf16, #tpu.memory_space<vmem>>, vector<1x7x128xbf16>
    %89 = vector.shape_cast %88 : vector<1x7x128xbf16> to vector<7x128xbf16>
    %90 = vector.shape_cast %87 : vector<7x128xbf16> to vector<1x7x128xbf16>
    tpu.vector_store %arg11[%c0_104, %c90, %c0_105], %90 {strides = array<i32>} : memref<1x128x128xbf16, #tpu.memory_space<vmem>>, vector<1x7x128xbf16>,
    %c0_106 = arith.constant 0 : index
    %c0_107 = arith.constant 0 : index
    %91 = vector.load %arg4[%c0_106, %c0_107] : memref<3200x256xbf16, #tpu.memory_space<vmem>>, vector<3200x256xbf16>
    %c0_108 = arith.constant 0 : index
    %c0_109 = arith.constant 0 : index
    %92 = vector.load %arg5[%c0_108, %c0_109] : memref<1x256xf32, #tpu.memory_space<vmem>>, vector<1x256xf32>
    %c0_110 = arith.constant 0 : index
    %c0_111 = arith.constant 0 : index
    %c0_112 = arith.constant 0 : index
    %93 = vector.load %arg11[%c0_110, %c0_111, %c0_112] : memref<1x128x128xbf16, #tpu.memory_space<vmem>>, vector<1x80x128xbf16>
    %94 = vector.shape_cast %93 : vector<1x80x128xbf16> to vector<80x128xbf16>
    %c0_113 = arith.constant 0 : index
    %c0_114 = arith.constant 0 : index
    %95 = vector.load %arg12[%c0_113, %c0_114] : memref<80x3200xbf16, #tpu.memory_space<vmem>>, vector<80x128xbf16>
    tpu.vector_store %arg12[%c0_113, %c0_114], %94 {strides = array<i32>} : memref<80x3200xbf16, #tpu.memory_space<vmem>>, vector<80x128xbf16>,
    %c0_115 = arith.constant 0 : index
    %c1_116 = arith.constant 1 : index
    %c0_117 = arith.constant 0 : index
    %96 = vector.load %arg11[%c0_115, %c1_116, %c0_117] : memref<1x128x128xbf16, #tpu.memory_space<vmem>>, vector<1x80x128xbf16>
    %97 = vector.shape_cast %96 : vector<1x80x128xbf16> to vector<80x128xbf16>
    %c0_118 = arith.constant 0 : index
    %c128 = arith.constant 128 : index
    %98 = vector.load %arg12[%c0_118, %c128] : memref<80x3200xbf16, #tpu.memory_space<vmem>>, vector<80x128xbf16>
    tpu.vector_store %arg12[%c0_118, %c128], %97 {strides = array<i32>} : memref<80x3200xbf16, #tpu.memory_space<vmem>>, vector<80x128xbf16>,
    %c0_119 = arith.constant 0 : index
    %c2_120 = arith.constant 2 : index
    %c0_121 = arith.constant 0 : index
    %99 = vector.load %arg11[%c0_119, %c2_120, %c0_121] : memref<1x128x128xbf16, #tpu.memory_space<vmem>>, vector<1x80x128xbf16>
    %100 = vector.shape_cast %99 : vector<1x80x128xbf16> to vector<80x128xbf16>
    %c0_122 = arith.constant 0 : index
    %c256 = arith.constant 256 : index
    %101 = vector.load %arg12[%c0_122, %c256] : memref<80x3200xbf16, #tpu.memory_space<vmem>>, vector<80x128xbf16>
    tpu.vector_store %arg12[%c0_122, %c256], %100 {strides = array<i32>} : memref<80x3200xbf16, #tpu.memory_space<vmem>>, vector<80x128xbf16>,
    %c0_123 = arith.constant 0 : index
    %c3_124 = arith.constant 3 : index
    %c0_125 = arith.constant 0 : index
    %102 = vector.load %arg11[%c0_123, %c3_124, %c0_125] : memref<1x128x128xbf16, #tpu.memory_space<vmem>>, vector<1x80x128xbf16>
    %103 = vector.shape_cast %102 : vector<1x80x128xbf16> to vector<80x128xbf16>
    %c0_126 = arith.constant 0 : index
    %c384 = arith.constant 384 : index
    %104 = vector.load %arg12[%c0_126, %c384] : memref<80x3200xbf16, #tpu.memory_space<vmem>>, vector<80x128xbf16>
    tpu.vector_store %arg12[%c0_126, %c384], %103 {strides = array<i32>} : memref<80x3200xbf16, #tpu.memory_space<vmem>>, vector<80x128xbf16>,
    %c0_127 = arith.constant 0 : index
    %c4_128 = arith.constant 4 : index
    %c0_129 = arith.constant 0 : index
    %105 = vector.load %arg11[%c0_127, %c4_128, %c0_129] : memref<1x128x128xbf16, #tpu.memory_space<vmem>>, vector<1x80x128xbf16>
    %106 = vector.shape_cast %105 : vector<1x80x128xbf16> to vector<80x128xbf16>
    %c0_130 = arith.constant 0 : index
    %c512 = arith.constant 512 : index
    %107 = vector.load %arg12[%c0_130, %c512] : memref<80x3200xbf16, #tpu.memory_space<vmem>>, vector<80x128xbf16>
    tpu.vector_store %arg12[%c0_130, %c512], %106 {strides = array<i32>} : memref<80x3200xbf16, #tpu.memory_space<vmem>>, vector<80x128xbf16>,
    %c0_131 = arith.constant 0 : index
    %c11 = arith.constant 11 : index
    %c0_132 = arith.constant 0 : index
    %108 = vector.load %arg11[%c0_131, %c11, %c0_132] : memref<1x128x128xbf16, #tpu.memory_space<vmem>>, vector<1x80x128xbf16>
    %109 = vector.shape_cast %108 : vector<1x80x128xbf16> to vector<80x128xbf16>
    %c0_133 = arith.constant 0 : index
    %c640 = arith.constant 640 : index
    %110 = vector.load %arg12[%c0_133, %c640] : memref<80x3200xbf16, #tpu.memory_space<vmem>>, vector<80x128xbf16>
    tpu.vector_store %arg12[%c0_133, %c640], %109 {strides = array<i32>} : memref<80x3200xbf16, #tpu.memory_space<vmem>>, vector<80x128xbf16>,
    %c0_134 = arith.constant 0 : index
    %c12 = arith.constant 12 : index
    %c0_135 = arith.constant 0 : index
    %111 = vector.load %arg11[%c0_134, %c12, %c0_135] : memref<1x128x128xbf16, #tpu.memory_space<vmem>>, vector<1x80x128xbf16>
    %112 = vector.shape_cast %111 : vector<1x80x128xbf16> to vector<80x128xbf16>
    %c0_136 = arith.constant 0 : index
    %c768 = arith.constant 768 : index
    %113 = vector.load %arg12[%c0_136, %c768] : memref<80x3200xbf16, #tpu.memory_space<vmem>>, vector<80x128xbf16>
    tpu.vector_store %arg12[%c0_136, %c768], %112 {strides = array<i32>} : memref<80x3200xbf16, #tpu.memory_space<vmem>>, vector<80x128xbf16>,
    %c0_137 = arith.constant 0 : index
    %c13 = arith.constant 13 : index
    %c0_138 = arith.constant 0 : index
    %114 = vector.load %arg11[%c0_137, %c13, %c0_138] : memref<1x128x128xbf16, #tpu.memory_space<vmem>>, vector<1x80x128xbf16>
    %115 = vector.shape_cast %114 : vector<1x80x128xbf16> to vector<80x128xbf16>
    %c0_139 = arith.constant 0 : index
    %c896 = arith.constant 896 : index
    %116 = vector.load %arg12[%c0_139, %c896] : memref<80x3200xbf16, #tpu.memory_space<vmem>>, vector<80x128xbf16>
    tpu.vector_store %arg12[%c0_139, %c896], %115 {strides = array<i32>} : memref<80x3200xbf16, #tpu.memory_space<vmem>>, vector<80x128xbf16>,
    %c0_140 = arith.constant 0 : index
    %c14_141 = arith.constant 14 : index
    %c0_142 = arith.constant 0 : index
    %117 = vector.load %arg11[%c0_140, %c14_141, %c0_142] : memref<1x128x128xbf16, #tpu.memory_space<vmem>>, vector<1x80x128xbf16>
    %118 = vector.shape_cast %117 : vector<1x80x128xbf16> to vector<80x128xbf16>
    %c0_143 = arith.constant 0 : index
    %c1024 = arith.constant 1024 : index
    %119 = vector.load %arg12[%c0_143, %c1024] : memref<80x3200xbf16, #tpu.memory_space<vmem>>, vector<80x128xbf16>
    tpu.vector_store %arg12[%c0_143, %c1024], %118 {strides = array<i32>} : memref<80x3200xbf16, #tpu.memory_space<vmem>>, vector<80x128xbf16>,
    %c0_144 = arith.constant 0 : index
    %c15 = arith.constant 15 : index
    %c0_145 = arith.constant 0 : index
    %120 = vector.load %arg11[%c0_144, %c15, %c0_145] : memref<1x128x128xbf16, #tpu.memory_space<vmem>>, vector<1x80x128xbf16>
    %121 = vector.shape_cast %120 : vector<1x80x128xbf16> to vector<80x128xbf16>
    %c0_146 = arith.constant 0 : index
    %c1152 = arith.constant 1152 : index
    %122 = vector.load %arg12[%c0_146, %c1152] : memref<80x3200xbf16, #tpu.memory_space<vmem>>, vector<80x128xbf16>
    tpu.vector_store %arg12[%c0_146, %c1152], %121 {strides = array<i32>} : memref<80x3200xbf16, #tpu.memory_space<vmem>>, vector<80x128xbf16>,
    %c0_147 = arith.constant 0 : index
    %c22 = arith.constant 22 : index
    %c0_148 = arith.constant 0 : index
    %123 = vector.load %arg11[%c0_147, %c22, %c0_148] : memref<1x128x128xbf16, #tpu.memory_space<vmem>>, vector<1x80x128xbf16>
    %124 = vector.shape_cast %123 : vector<1x80x128xbf16> to vector<80x128xbf16>
    %c0_149 = arith.constant 0 : index
    %c1280 = arith.constant 1280 : index
    %125 = vector.load %arg12[%c0_149, %c1280] : memref<80x3200xbf16, #tpu.memory_space<vmem>>, vector<80x128xbf16>
    tpu.vector_store %arg12[%c0_149, %c1280], %124 {strides = array<i32>} : memref<80x3200xbf16, #tpu.memory_space<vmem>>, vector<80x128xbf16>,
    %c0_150 = arith.constant 0 : index
    %c23 = arith.constant 23 : index
    %c0_151 = arith.constant 0 : index
    %126 = vector.load %arg11[%c0_150, %c23, %c0_151] : memref<1x128x128xbf16, #tpu.memory_space<vmem>>, vector<1x80x128xbf16>
    %127 = vector.shape_cast %126 : vector<1x80x128xbf16> to vector<80x128xbf16>
    %c0_152 = arith.constant 0 : index
    %c1408 = arith.constant 1408 : index
    %128 = vector.load %arg12[%c0_152, %c1408] : memref<80x3200xbf16, #tpu.memory_space<vmem>>, vector<80x128xbf16>
    tpu.vector_store %arg12[%c0_152, %c1408], %127 {strides = array<i32>} : memref<80x3200xbf16, #tpu.memory_space<vmem>>, vector<80x128xbf16>,
    %c0_153 = arith.constant 0 : index
    %c24_154 = arith.constant 24 : index
    %c0_155 = arith.constant 0 : index
    %129 = vector.load %arg11[%c0_153, %c24_154, %c0_155] : memref<1x128x128xbf16, #tpu.memory_space<vmem>>, vector<1x80x128xbf16>
    %130 = vector.shape_cast %129 : vector<1x80x128xbf16> to vector<80x128xbf16>
    %c0_156 = arith.constant 0 : index
    %c1536 = arith.constant 1536 : index
    %131 = vector.load %arg12[%c0_156, %c1536] : memref<80x3200xbf16, #tpu.memory_space<vmem>>, vector<80x128xbf16>
    tpu.vector_store %arg12[%c0_156, %c1536], %130 {strides = array<i32>} : memref<80x3200xbf16, #tpu.memory_space<vmem>>, vector<80x128xbf16>,
    %c0_157 = arith.constant 0 : index
    %c25 = arith.constant 25 : index
    %c0_158 = arith.constant 0 : index
    %132 = vector.load %arg11[%c0_157, %c25, %c0_158] : memref<1x128x128xbf16, #tpu.memory_space<vmem>>, vector<1x80x128xbf16>
    %133 = vector.shape_cast %132 : vector<1x80x128xbf16> to vector<80x128xbf16>
    %c0_159 = arith.constant 0 : index
    %c1664 = arith.constant 1664 : index
    %134 = vector.load %arg12[%c0_159, %c1664] : memref<80x3200xbf16, #tpu.memory_space<vmem>>, vector<80x128xbf16>
    tpu.vector_store %arg12[%c0_159, %c1664], %133 {strides = array<i32>} : memref<80x3200xbf16, #tpu.memory_space<vmem>>, vector<80x128xbf16>,
    %c0_160 = arith.constant 0 : index
    %c26 = arith.constant 26 : index
    %c0_161 = arith.constant 0 : index
    %135 = vector.load %arg11[%c0_160, %c26, %c0_161] : memref<1x128x128xbf16, #tpu.memory_space<vmem>>, vector<1x80x128xbf16>
    %136 = vector.shape_cast %135 : vector<1x80x128xbf16> to vector<80x128xbf16>
    %c0_162 = arith.constant 0 : index
    %c1792 = arith.constant 1792 : index
    %137 = vector.load %arg12[%c0_162, %c1792] : memref<80x3200xbf16, #tpu.memory_space<vmem>>, vector<80x128xbf16>
    tpu.vector_store %arg12[%c0_162, %c1792], %136 {strides = array<i32>} : memref<80x3200xbf16, #tpu.memory_space<vmem>>, vector<80x128xbf16>,
    %c0_163 = arith.constant 0 : index
    %c33 = arith.constant 33 : index
    %c0_164 = arith.constant 0 : index
    %138 = vector.load %arg11[%c0_163, %c33, %c0_164] : memref<1x128x128xbf16, #tpu.memory_space<vmem>>, vector<1x80x128xbf16>
    %139 = vector.shape_cast %138 : vector<1x80x128xbf16> to vector<80x128xbf16>
    %c0_165 = arith.constant 0 : index
    %c1920 = arith.constant 1920 : index
    %140 = vector.load %arg12[%c0_165, %c1920] : memref<80x3200xbf16, #tpu.memory_space<vmem>>, vector<80x128xbf16>
    tpu.vector_store %arg12[%c0_165, %c1920], %139 {strides = array<i32>} : memref<80x3200xbf16, #tpu.memory_space<vmem>>, vector<80x128xbf16>,
    %c0_166 = arith.constant 0 : index
    %c34 = arith.constant 34 : index
    %c0_167 = arith.constant 0 : index
    %141 = vector.load %arg11[%c0_166, %c34, %c0_167] : memref<1x128x128xbf16, #tpu.memory_space<vmem>>, vector<1x80x128xbf16>
    %142 = vector.shape_cast %141 : vector<1x80x128xbf16> to vector<80x128xbf16>
    %c0_168 = arith.constant 0 : index
    %c2048 = arith.constant 2048 : index
    %143 = vector.load %arg12[%c0_168, %c2048] : memref<80x3200xbf16, #tpu.memory_space<vmem>>, vector<80x128xbf16>
    tpu.vector_store %arg12[%c0_168, %c2048], %142 {strides = array<i32>} : memref<80x3200xbf16, #tpu.memory_space<vmem>>, vector<80x128xbf16>,
    %c0_169 = arith.constant 0 : index
    %c35_170 = arith.constant 35 : index
    %c0_171 = arith.constant 0 : index
    %144 = vector.load %arg11[%c0_169, %c35_170, %c0_171] : memref<1x128x128xbf16, #tpu.memory_space<vmem>>, vector<1x80x128xbf16>
    %145 = vector.shape_cast %144 : vector<1x80x128xbf16> to vector<80x128xbf16>
    %c0_172 = arith.constant 0 : index
    %c2176 = arith.constant 2176 : index
    %146 = vector.load %arg12[%c0_172, %c2176] : memref<80x3200xbf16, #tpu.memory_space<vmem>>, vector<80x128xbf16>
    tpu.vector_store %arg12[%c0_172, %c2176], %145 {strides = array<i32>} : memref<80x3200xbf16, #tpu.memory_space<vmem>>, vector<80x128xbf16>,
    %c0_173 = arith.constant 0 : index
    %c36 = arith.constant 36 : index
    %c0_174 = arith.constant 0 : index
    %147 = vector.load %arg11[%c0_173, %c36, %c0_174] : memref<1x128x128xbf16, #tpu.memory_space<vmem>>, vector<1x80x128xbf16>
    %148 = vector.shape_cast %147 : vector<1x80x128xbf16> to vector<80x128xbf16>
    %c0_175 = arith.constant 0 : index
    %c2304 = arith.constant 2304 : index
    %149 = vector.load %arg12[%c0_175, %c2304] : memref<80x3200xbf16, #tpu.memory_space<vmem>>, vector<80x128xbf16>
    tpu.vector_store %arg12[%c0_175, %c2304], %148 {strides = array<i32>} : memref<80x3200xbf16, #tpu.memory_space<vmem>>, vector<80x128xbf16>,
    %c0_176 = arith.constant 0 : index
    %c37 = arith.constant 37 : index
    %c0_177 = arith.constant 0 : index
    %150 = vector.load %arg11[%c0_176, %c37, %c0_177] : memref<1x128x128xbf16, #tpu.memory_space<vmem>>, vector<1x80x128xbf16>
    %151 = vector.shape_cast %150 : vector<1x80x128xbf16> to vector<80x128xbf16>
    %c0_178 = arith.constant 0 : index
    %c2432 = arith.constant 2432 : index
    %152 = vector.load %arg12[%c0_178, %c2432] : memref<80x3200xbf16, #tpu.memory_space<vmem>>, vector<80x128xbf16>
    tpu.vector_store %arg12[%c0_178, %c2432], %151 {strides = array<i32>} : memref<80x3200xbf16, #tpu.memory_space<vmem>>, vector<80x128xbf16>,
    %c0_179 = arith.constant 0 : index
    %c44 = arith.constant 44 : index
    %c0_180 = arith.constant 0 : index
    %153 = vector.load %arg11[%c0_179, %c44, %c0_180] : memref<1x128x128xbf16, #tpu.memory_space<vmem>>, vector<1x80x128xbf16>
    %154 = vector.shape_cast %153 : vector<1x80x128xbf16> to vector<80x128xbf16>
    %c0_181 = arith.constant 0 : index
    %c2560 = arith.constant 2560 : index
    %155 = vector.load %arg12[%c0_181, %c2560] : memref<80x3200xbf16, #tpu.memory_space<vmem>>, vector<80x128xbf16>
    tpu.vector_store %arg12[%c0_181, %c2560], %154 {strides = array<i32>} : memref<80x3200xbf16, #tpu.memory_space<vmem>>, vector<80x128xbf16>,
    %c0_182 = arith.constant 0 : index
    %c45 = arith.constant 45 : index
    %c0_183 = arith.constant 0 : index
    %156 = vector.load %arg11[%c0_182, %c45, %c0_183] : memref<1x128x128xbf16, #tpu.memory_space<vmem>>, vector<1x80x128xbf16>
    %157 = vector.shape_cast %156 : vector<1x80x128xbf16> to vector<80x128xbf16>
    %c0_184 = arith.constant 0 : index
    %c2688 = arith.constant 2688 : index
    %158 = vector.load %arg12[%c0_184, %c2688] : memref<80x3200xbf16, #tpu.memory_space<vmem>>, vector<80x128xbf16>
    tpu.vector_store %arg12[%c0_184, %c2688], %157 {strides = array<i32>} : memref<80x3200xbf16, #tpu.memory_space<vmem>>, vector<80x128xbf16>,
    %c0_185 = arith.constant 0 : index
    %c46_186 = arith.constant 46 : index
    %c0_187 = arith.constant 0 : index
    %159 = vector.load %arg11[%c0_185, %c46_186, %c0_187] : memref<1x128x128xbf16, #tpu.memory_space<vmem>>, vector<1x80x128xbf16>
    %160 = vector.shape_cast %159 : vector<1x80x128xbf16> to vector<80x128xbf16>
    %c0_188 = arith.constant 0 : index
    %c2816 = arith.constant 2816 : index
    %161 = vector.load %arg12[%c0_188, %c2816] : memref<80x3200xbf16, #tpu.memory_space<vmem>>, vector<80x128xbf16>
    tpu.vector_store %arg12[%c0_188, %c2816], %160 {strides = array<i32>} : memref<80x3200xbf16, #tpu.memory_space<vmem>>, vector<80x128xbf16>,
    %c0_189 = arith.constant 0 : index
    %c47 = arith.constant 47 : index
    %c0_190 = arith.constant 0 : index
    %162 = vector.load %arg11[%c0_189, %c47, %c0_190] : memref<1x128x128xbf16, #tpu.memory_space<vmem>>, vector<1x80x128xbf16>
    %163 = vector.shape_cast %162 : vector<1x80x128xbf16> to vector<80x128xbf16>
    %c0_191 = arith.constant 0 : index
    %c2944 = arith.constant 2944 : index
    %164 = vector.load %arg12[%c0_191, %c2944] : memref<80x3200xbf16, #tpu.memory_space<vmem>>, vector<80x128xbf16>
    tpu.vector_store %arg12[%c0_191, %c2944], %163 {strides = array<i32>} : memref<80x3200xbf16, #tpu.memory_space<vmem>>, vector<80x128xbf16>,
    %c0_192 = arith.constant 0 : index
    %c48 = arith.constant 48 : index
    %c0_193 = arith.constant 0 : index
    %165 = vector.load %arg11[%c0_192, %c48, %c0_193] : memref<1x128x128xbf16, #tpu.memory_space<vmem>>, vector<1x80x128xbf16>
    %166 = vector.shape_cast %165 : vector<1x80x128xbf16> to vector<80x128xbf16>
    %c0_194 = arith.constant 0 : index
    %c3072 = arith.constant 3072 : index
    %167 = vector.load %arg12[%c0_194, %c3072] : memref<80x3200xbf16, #tpu.memory_space<vmem>>, vector<80x128xbf16>
    tpu.vector_store %arg12[%c0_194, %c3072], %166 {strides = array<i32>} : memref<80x3200xbf16, #tpu.memory_space<vmem>>, vector<80x128xbf16>,
    %c0_195 = arith.constant 0 : index
    %c0_196 = arith.constant 0 : index
    %168 = vector.load %arg12[%c0_195, %c0_196] : memref<80x3200xbf16, #tpu.memory_space<vmem>>, vector<80x3200xbf16>
    %cst_197 = arith.constant dense<0.000000e+00> : vector<80x256xf32>
    %169 = tpu.matmul %168, %91, %cst_197 {dimension_numbers = #tpu.dot_dimension_numbers<[1], [0], [0], [1], [0, 0, 1, 1], [], []>} : vector<80x3200xbf16>, vector<3200x256xbf16>, vector<80x256xf32> -> vector<80x256xf32>
    %170 = vector.broadcast %92 : vector<1x256xf32> to vector<80x256xf32>
    %171 = arith.addf %169, %170 : vector<80x256xf32>
    %cst_198 = arith.constant 0.000000e+00 : f32
    %172 = vector.broadcast %cst_198 : f32 to vector<80x256xf32>
    %173 = arith.maximumf %171, %172 : vector<80x256xf32>
    %174 = vector.extract_strided_slice %173 {offsets = [0, 0], sizes = [7, 256], strides = [1, 1]} : vector<80x256xf32> to vector<7x256xf32>
    %175 = vector.extract_strided_slice %173 {offsets = [11, 0], sizes = [7, 256], strides = [1, 1]} : vector<80x256xf32> to vector<7x256xf32>
    %176 = arith.maximumf %174, %175 : vector<7x256xf32>
    %177 = vector.extract_strided_slice %173 {offsets = [22, 0], sizes = [7, 256], strides = [1, 1]} : vector<80x256xf32> to vector<7x256xf32>
    %178 = arith.maximumf %176, %177 : vector<7x256xf32>
    %179 = vector.extract_strided_slice %173 {offsets = [33, 0], sizes = [7, 256], strides = [1, 1]} : vector<80x256xf32> to vector<7x256xf32>
    %180 = arith.maximumf %178, %179 : vector<7x256xf32>
    %181 = vector.extract_strided_slice %173 {offsets = [44, 0], sizes = [7, 256], strides = [1, 1]} : vector<80x256xf32> to vector<7x256xf32>
    %182 = arith.maximumf %180, %181 : vector<7x256xf32>
    %183 = vector.extract_strided_slice %173 {offsets = [55, 0], sizes = [7, 256], strides = [1, 1]} : vector<80x256xf32> to vector<7x256xf32>
    %184 = arith.maximumf %182, %183 : vector<7x256xf32>
    %185 = vector.extract_strided_slice %173 {offsets = [66, 0], sizes = [7, 256], strides = [1, 1]} : vector<80x256xf32> to vector<7x256xf32>
    %186 = arith.maximumf %184, %185 : vector<7x256xf32>
    %cst_199 = arith.constant dense<0xFF800000> : vector<256xf32>
    %187 = vector.multi_reduction <maximumf>, %186, %cst_199 [0] : vector<7x256xf32> to vector<256xf32>
    %188 = vector.shape_cast %187 : vector<256xf32> to vector<1x256xf32>
    %c0_200 = arith.constant 0 : index
    %c0_201 = arith.constant 0 : index
    %189 = vector.load %arg13[%c0_200, %c0_201] : memref<1x256xf32, #tpu.memory_space<vmem>>, vector<1x256xf32>
    tpu.vector_store %arg13[%c0_200, %c0_201], %188 {strides = array<i32>} : memref<1x256xf32, #tpu.memory_space<vmem>>, vector<1x256xf32>,
    %c0_202 = arith.constant 0 : index
    %c0_203 = arith.constant 0 : index
    %190 = vector.load %arg13[%c0_202, %c0_203] : memref<1x256xf32, #tpu.memory_space<vmem>>, vector<1x256xf32>
    %c0_204 = arith.constant 0 : index
    %c0_205 = arith.constant 0 : index
    %191 = vector.load %arg6[%c0_204, %c0_205] : memref<256x128xf32, #tpu.memory_space<vmem>>, vector<256x128xf32>
    %cst_206 = arith.constant dense<0.000000e+00> : vector<1x128xf32>
    %192 = tpu.matmul %190, %191, %cst_206 {dimension_numbers = #tpu.dot_dimension_numbers<[1], [0], [0], [1], [0, 0, 1, 1], [], []>} : vector<1x256xf32>, vector<256x128xf32>, vector<1x128xf32> -> vector<1x128xf32>
    %c0_207 = arith.constant 0 : index
    %c0_208 = arith.constant 0 : index
    %193 = vector.load %arg7[%c0_207, %c0_208] : memref<1x128xf32, #tpu.memory_space<vmem>>, vector<1x128xf32>
    %194 = arith.addf %192, %193 : vector<1x128xf32>
    %c0_209 = arith.constant 0 : index
    %c0_210 = arith.constant 0 : index
    %c0_211 = arith.constant 0 : index
    %195 = vector.load %arg8[%c0_209, %c0_210, %c0_211] : memref<1x1x128xf32, #tpu.memory_space<vmem>>, vector<1x1x128xf32>
    %196 = vector.shape_cast %195 : vector<1x1x128xf32> to vector<1x128xf32>
    %197 = vector.shape_cast %194 : vector<1x128xf32> to vector<1x1x128xf32>
    tpu.vector_store %arg8[%c0_209, %c0_210, %c0_211], %197 {strides = array<i32>} : memref<1x1x128xf32, #tpu.memory_space<vmem>>, vector<1x1x128xf32>,
    return
  }
  func.func @transform_0(%arg0: i32) -> (i32, i32, i32, i32) {
    %c0_i32 = arith.constant 0 : i32
    %c0_i32_0 = arith.constant 0 : i32
    %c0_i32_1 = arith.constant 0 : i32
    %c0_i32_2 = arith.constant 0 : i32
    return %arg0, %c0_i32, %c0_i32_0, %c0_i32_1 : i32, i32, i32, i32
  }
  func.func @transform_1(%arg0: i32) -> (i32, i32) {
    %c0_i32 = arith.constant 0 : i32
    %c0_i32_0 = arith.constant 0 : i32
    %c0_i32_1 = arith.constant 0 : i32
    return %c0_i32, %c0_i32_0 : i32, i32
  }
  func.func @transform_2(%arg0: i32) -> (i32, i32) {
    %c0_i32 = arith.constant 0 : i32
    %c0_i32_0 = arith.constant 0 : i32
    %c0_i32_1 = arith.constant 0 : i32
    return %c0_i32, %c0_i32_0 : i32, i32
  }
  func.func @transform_3(%arg0: i32) -> (i32, i32) {
    %c0_i32 = arith.constant 0 : i32
    %c0_i32_0 = arith.constant 0 : i32
    %c0_i32_1 = arith.constant 0 : i32
    return %c0_i32, %c0_i32_0 : i32, i32
  }
  func.func @transform_4(%arg0: i32) -> (i32, i32) {
    %c0_i32 = arith.constant 0 : i32
    %c0_i32_0 = arith.constant 0 : i32
    %c0_i32_1 = arith.constant 0 : i32
    return %c0_i32, %c0_i32_0 : i32, i32
  }
  func.func @transform_5(%arg0: i32) -> (i32, i32) {
    %c0_i32 = arith.constant 0 : i32
    %c0_i32_0 = arith.constant 0 : i32
    %c0_i32_1 = arith.constant 0 : i32
    return %c0_i32, %c0_i32_0 : i32, i32
  }
  func.func @transform_6(%arg0: i32) -> (i32, i32) {
    %c0_i32 = arith.constant 0 : i32
    %c0_i32_0 = arith.constant 0 : i32
    %c0_i32_1 = arith.constant 0 : i32
    return %c0_i32, %c0_i32_0 : i32, i32
  }
  func.func @transform_7(%arg0: i32) -> (i32, i32, i32) {
    %c0_i32 = arith.constant 0 : i32
    %c0_i32_0 = arith.constant 0 : i32
    %c0_i32_1 = arith.constant 0 : i32
    return %arg0, %c0_i32, %c0_i32_0 : i32, i32, i32
  }
}

</mosaic_0001>

<llo_original>
// kernel: model_forward.1
$region0: #{model_forward.1}
  #allocation0 [shape = 'u32[]', space=smem, size = 0x4, offset = 0x4, fixed_abs, tag = 'smem constant byte address 0x4 - core index']
  #allocation1 [shape = 'u32[144,128]{1,0:T(1,128)}', space=vmem, size = 0x12000, scoped, tag = 'internal scratch']
  #allocation2 [shape = 'f32[49,128]{1,0:T(8,128)}', space=vmem, size = 0x7000, scoped, tag = 'scratch operand']
  #allocation3 [shape = 'bf16[49,128]{1,0:T(8,128)(2,1)}', space=vmem, size = 0x3800, scoped, tag = 'scratch operand']
  #allocation4 [shape = 'bf16[1,128,128]{2,1,0:T(8,128)(2,1)}', space=vmem, size = 0x8000, scoped, tag = 'scratch operand']
  #allocation5 [shape = 'bf16[80,3200]{1,0:T(8,128)(2,1)}', space=vmem, size = 0x7d000, scoped, tag = 'scratch operand']
  #allocation6 [shape = 'f32[1,256]{1,0:T(1,128)}', space=vmem, size = 0x400, scoped, tag = 'scratch operand']
  %s0 = inlined_call_operand.vmem [shape: bf16[2,9,49,384], index: 0, kind: input, shape index: {}]
  %s1 = inlined_call_operand.vmem [shape: bf16[384,128], index: 1, kind: input, shape index: {}]
  %s2 = inlined_call_operand.vmem [shape: f32[1,128], index: 2, kind: input, shape index: {}]
  %s3 = inlined_call_operand.vmem [shape: bf16[3200,256], index: 3, kind: input, shape index: {}]
  %s4 = inlined_call_operand.vmem [shape: f32[1,256], index: 4, kind: input, shape index: {}]
  %s5 = inlined_call_operand.vmem [shape: f32[256,128], index: 5, kind: input, shape index: {}]
  %s6 = inlined_call_operand.vmem [shape: f32[1,128], index: 6, kind: input, shape index: {}]
  %s7 = inlined_call_operand.hbm [shape: f32[2,1,128], index: 7, kind: output, shape index: {}]
  %s8 = sld [smem:[#allocation0]]
  $region61: #{model_forward.1} parent=0
    _
  %s10 = ssub.s32 1, %s8
  %s11 = scalar_select 0, %s10, %s8
  $region1: #{model_forward.1} parent=0
    #allocation7 [shape = 'u8[1024]{0}', space=vmem, size = 0x400, scoped, tag = 'output window, operand 0']
    #allocation8 [shape = 's32[2]{0}', space=sflag, size = 0x8, scoped, tag = 'scoped memory for model_forward.1']
    %12 = vsyncpa [#allocation8], 0
    %s13 = scalar_lea.sflag [#allocation8], 1
    %14 = vsyncpa %s13, 0
    loop: start=0, step=1, limit=4
    $region2: #{model_forward.1} parent=1 // loop_pre_header
      _
    $region3: #{model_forward.1} parent=1 // loop_header
      %s16 = sphi 0, %s20
      %p17 = scmp.ge.s32.totalorder %s16, 4
      %s26 = sphi 0, %s28
      %s29 = sphi 0, %s26
      %s30 = sphi 0, %s29
      %s46 = sphi 0, %s30
      %s50 = sphi 0, %s50
      %s52 = sphi 0, %s50
      %s53 = sphi 0, %s52
      %s67 = sphi 0, %s53
      %s71 = sphi 0, %s71
      %s73 = sphi 0, %s71
      %s74 = sphi 0, %s73
      %s88 = sphi 0, %s74
      %s92 = sphi 0, %s92
      %s94 = sphi 0, %s92
      %s95 = sphi 0, %s94
      %s109 = sphi 0, %s95
      %s113 = sphi 0, %s113
      %s115 = sphi 0, %s113
      %s116 = sphi 0, %s115
      %s130 = sphi 0, %s116
      %s134 = sphi 0, %s134
      %s136 = sphi 0, %s134
      %s137 = sphi 0, %s136
      %s151 = sphi 0, %s137
      %s155 = sphi 0, %s155
      %s157 = sphi 0, %s155
      %s158 = sphi 0, %s157
      %s172 = sphi 0, %s158
      %s178 = sphi 0, %s180
      %s181 = sphi 0, %s178
      %s182 = sphi 0, %s181
      %s198 = sphi 0, %s182
    $region4: #{model_forward.1} parent=1 // loop_header_branch
      %19 = sbr.rel (%p17) target = $region8
    $region5: #{model_forward.1} parent=1 // loop_body
      %s21 = ssub.s32 %s16, 1
      %s22 = ssub.s32 %s16, 2
      %s23 = sadd.s32 %s16, 1
      %s24 = ssub.s32 %s16, %s23
      %p25 = scmp.eq.s32.totalorder %s24, 0
      %s27 = sadd.s32 %s26, 1
      %s28 = scalar_select %p25, %s26, %s27
      %p31 = pneg %p25
      %p32 = scmp.eq.s32.totalorder %s16, 1
      %p33 = por %p31, %p32
      %p34 = scmp.ne.s32.totalorder %s26, %s29
      %p35 = scmp.eq.s32.totalorder %s16, 0
      %p36 = por %p34, %p35
      %p37 = scmp.ne.s32.totalorder %s26, %s29
      %p38 = scmp.eq.s32.totalorder %s21, 1
      %p39 = por %p37, %p38
      %p40 = scmp.ne.s32.totalorder %s29, %s30
      %p41 = scmp.eq.s32.totalorder %s21, 0
      %p42 = por %p40, %p41
      %p43 = scmp.ne.s32.totalorder %s29, %s30
      %p44 = scmp.eq.s32.totalorder %s22, 1
      %p45 = por %p43, %p44
      %p47 = scmp.ne.s32.totalorder %s30, %s46
      %p48 = scmp.eq.s32.totalorder %s22, 0
      %p49 = por %p47, %p48
      %s51 = sadd.s32 %s50, 1
      %p54 = scmp.eq.s32.totalorder %s16, 1
      %p55 = scmp.ne.s32.totalorder %s50, %s52
      %p56 = scmp.eq.s32.totalorder %s16, 0
      %p57 = por %p55, %p56
      %p58 = scmp.ne.s32.totalorder %s50, %s52
      %p59 = scmp.eq.s32.totalorder %s21, 1
      %p60 = por %p58, %p59
      %p61 = scmp.ne.s32.totalorder %s52, %s53
      %p62 = scmp.eq.s32.totalorder %s21, 0
      %p63 = por %p61, %p62
      %p64 = scmp.ne.s32.totalorder %s52, %s53
      %p65 = scmp.eq.s32.totalorder %s22, 1
      %p66 = por %p64, %p65
      %p68 = scmp.ne.s32.totalorder %s53, %s67
      %p69 = scmp.eq.s32.totalorder %s22, 0
      %p70 = por %p68, %p69
      %s72 = sadd.s32 %s71, 1
      %p75 = scmp.eq.s32.totalorder %s16, 1
      %p76 = scmp.ne.s32.totalorder %s71, %s73
      %p77 = scmp.eq.s32.totalorder %s16, 0
      %p78 = por %p76, %p77
      %p79 = scmp.ne.s32.totalorder %s71, %s73
      %p80 = scmp.eq.s32.totalorder %s21, 1
      %p81 = por %p79, %p80
      %p82 = scmp.ne.s32.totalorder %s73, %s74
      %p83 = scmp.eq.s32.totalorder %s21, 0
      %p84 = por %p82, %p83
      %p85 = scmp.ne.s32.totalorder %s73, %s74
      %p86 = scmp.eq.s32.totalorder %s22, 1
      %p87 = por %p85, %p86
      %p89 = scmp.ne.s32.totalorder %s74, %s88
      %p90 = scmp.eq.s32.totalorder %s22, 0
      %p91 = por %p89, %p90
      %s93 = sadd.s32 %s92, 1
      %p96 = scmp.eq.s32.totalorder %s16, 1
      %p97 = scmp.ne.s32.totalorder %s92, %s94
      %p98 = scmp.eq.s32.totalorder %s16, 0
      %p99 = por %p97, %p98
      %p100 = scmp.ne.s32.totalorder %s92, %s94
      %p101 = scmp.eq.s32.totalorder %s21, 1
      %p102 = por %p100, %p101
      %p103 = scmp.ne.s32.totalorder %s94, %s95
      %p104 = scmp.eq.s32.totalorder %s21, 0
      %p105 = por %p103, %p104
      %p106 = scmp.ne.s32.totalorder %s94, %s95
      %p107 = scmp.eq.s32.totalorder %s22, 1
      %p108 = por %p106, %p107
      %p110 = scmp.ne.s32.totalorder %s95, %s109
      %p111 = scmp.eq.s32.totalorder %s22, 0
      %p112 = por %p110, %p111
      %s114 = sadd.s32 %s113, 1
      %p117 = scmp.eq.s32.totalorder %s16, 1
      %p118 = scmp.ne.s32.totalorder %s113, %s115
      %p119 = scmp.eq.s32.totalorder %s16, 0
      %p120 = por %p118, %p119
      %p121 = scmp.ne.s32.totalorder %s113, %s115
      %p122 = scmp.eq.s32.totalorder %s21, 1
      %p123 = por %p121, %p122
      %p124 = scmp.ne.s32.totalorder %s115, %s116
      %p125 = scmp.eq.s32.totalorder %s21, 0
      %p126 = por %p124, %p125
      %p127 = scmp.ne.s32.totalorder %s115, %s116
      %p128 = scmp.eq.s32.totalorder %s22, 1
      %p129 = por %p127, %p128
      %p131 = scmp.ne.s32.totalorder %s116, %s130
      %p132 = scmp.eq.s32.totalorder %s22, 0
      %p133 = por %p131, %p132
      %s135 = sadd.s32 %s134, 1
      %p138 = scmp.eq.s32.totalorder %s16, 1
      %p139 = scmp.ne.s32.totalorder %s134, %s136
      %p140 = scmp.eq.s32.totalorder %s16, 0
      %p141 = por %p139, %p140
      %p142 = scmp.ne.s32.totalorder %s134, %s136
      %p143 = scmp.eq.s32.totalorder %s21, 1
      %p144 = por %p142, %p143
      %p145 = scmp.ne.s32.totalorder %s136, %s137
      %p146 = scmp.eq.s32.totalorder %s21, 0
      %p147 = por %p145, %p146
      %p148 = scmp.ne.s32.totalorder %s136, %s137
      %p149 = scmp.eq.s32.totalorder %s22, 1
      %p150 = por %p148, %p149
      %p152 = scmp.ne.s32.totalorder %s137, %s151
      %p153 = scmp.eq.s32.totalorder %s22, 0
      %p154 = por %p152, %p153
      %s156 = sadd.s32 %s155, 1
      %p159 = scmp.eq.s32.totalorder %s16, 1
      %p160 = scmp.ne.s32.totalorder %s155, %s157
      %p161 = scmp.eq.s32.totalorder %s16, 0
      %p162 = por %p160, %p161
      %p163 = scmp.ne.s32.totalorder %s155, %s157
      %p164 = scmp.eq.s32.totalorder %s21, 1
      %p165 = por %p163, %p164
      %p166 = scmp.ne.s32.totalorder %s157, %s158
      %p167 = scmp.eq.s32.totalorder %s21, 0
      %p168 = por %p166, %p167
      %p169 = scmp.ne.s32.totalorder %s157, %s158
      %p170 = scmp.eq.s32.totalorder %s22, 1
      %p171 = por %p169, %p170
      %p173 = scmp.ne.s32.totalorder %s158, %s172
      %p174 = scmp.eq.s32.totalorder %s22, 0
      %p175 = por %p173, %p174
      %s176 = ssub.s32 %s16, %s23
      %p177 = scmp.eq.s32.totalorder %s176, 0
      %s179 = sadd.s32 %s178, 1
      %s180 = scalar_select %p177, %s178, %s179
      %p183 = pneg %p177
      %p184 = scmp.eq.s32.totalorder %s16, 1
      %p185 = por %p183, %p184
      %p186 = scmp.ne.s32.totalorder %s178, %s181
      %p187 = scmp.eq.s32.totalorder %s16, 0
      %p188 = por %p186, %p187
      %p189 = scmp.ne.s32.totalorder %s178, %s181
      %p190 = scmp.eq.s32.totalorder %s21, 1
      %p191 = por %p189, %p190
      %p192 = scmp.ne.s32.totalorder %s181, %s182
      %p193 = scmp.eq.s32.totalorder %s21, 0
      %p194 = por %p192, %p193
      %p195 = scmp.ne.s32.totalorder %s181, %s182
      %p196 = scmp.eq.s32.totalorder %s22, 1
      %p197 = por %p195, %p196
      %p199 = scmp.ne.s32.totalorder %s182, %s198
      %p200 = scmp.eq.s32.totalorder %s22, 0
      %p201 = por %p199, %p200
      %p202 = scmp.le.s32.totalorder 1, %s16
      %p203 = scmp.lt.s32.totalorder %s16, 3
      %p204 = pnand %p202, %p203
      %p205 = pneg %p204
      // Predicated region
      $region9: #{model_forward.1} parent=5 // pred_check
        _
      $region10: #{model_forward.1} parent=5 // pred_check_branch
        %207 = sbr.rel (%p204) target = $region12
      $region11: #{model_forward.1} parent=5 // pred_region
        %s208 = ssub.s32 %s16, 1
        // Predicated region
        $region13: #{model_forward.1} parent=11 // pred_check
          %p209 = pneg %p63
        $region14: #{model_forward.1} parent=11 // pred_check_branch
          %211 = sbr.rel (%p209) target = $region16
        $region15: #{model_forward.1} parent=11 // pred_region
          _
        $region16: #{model_forward.1} parent=11 // pred_fallthru
          _
        // Predicated region
        $region17: #{model_forward.1} parent=11 // pred_check
          %p212 = pneg %p84
        $region18: #{model_forward.1} parent=11 // pred_check_branch
          %214 = sbr.rel (%p212) target = $region20
        $region19: #{model_forward.1} parent=11 // pred_region
          _
        $region20: #{model_forward.1} parent=11 // pred_fallthru
          _
        // Predicated region
        $region21: #{model_forward.1} parent=11 // pred_check
          %p215 = pneg %p105
        $region22: #{model_forward.1} parent=11 // pred_check_branch
          %217 = sbr.rel (%p215) target = $region24
        $region23: #{model_forward.1} parent=11 // pred_region
          _
        $region24: #{model_forward.1} parent=11 // pred_fallthru
          _
        // Predicated region
        $region25: #{model_forward.1} parent=11 // pred_check
          %p218 = pneg %p126
        $region26: #{model_forward.1} parent=11 // pred_check_branch
          %220 = sbr.rel (%p218) target = $region28
        $region27: #{model_forward.1} parent=11 // pred_region
          _
        $region28: #{model_forward.1} parent=11 // pred_fallthru
          _
        // Predicated region
        $region29: #{model_forward.1} parent=11 // pred_check
          %p221 = pneg %p147
        $region30: #{model_forward.1} parent=11 // pred_check_branch
          %223 = sbr.rel (%p221) target = $region32
        $region31: #{model_forward.1} parent=11 // pred_region
          _
        $region32: #{model_forward.1} parent=11 // pred_fallthru
          _
        // Predicated region
        $region33: #{model_forward.1} parent=11 // pred_check
          %p224 = pneg %p168
        $region34: #{model_forward.1} parent=11 // pred_check_branch
          %226 = sbr.rel (%p224) target = $region36
        $region35: #{model_forward.1} parent=11 // pred_region
          _
        $region36: #{model_forward.1} parent=11 // pred_fallthru
          _
      $region12: #{model_forward.1} parent=5 // pred_fallthru
        _
      %p227 = scmp.lt.s32.totalorder %s16, 2
      // Predicated region
      $region37: #{model_forward.1} parent=5 // pred_check
        %p228 = pneg %p227
      $region38: #{model_forward.1} parent=5 // pred_check_branch
        %230 = sbr.rel (%p228) target = $region40
      $region39: #{model_forward.1} parent=5 // pred_region
        // Predicated region
        $region41: #{model_forward.1} parent=39 // pred_check
          %p231 = pneg %p36
        $region42: #{model_forward.1} parent=39 // pred_check_branch
          %233 = sbr.rel (%p231) target = $region44
        $region43: #{model_forward.1} parent=39 // pred_region
          %p234 = scmp.lt.s32.totalorder %s16, 1
          %s235 = scalar_select %p234, %s16, 1
          %s236 = smul.addr %s235, 189
          %s237 = smul.addr %s236, 4
          %s238 = scalar_lea.vmem %s0, %s237
        $region44: #{model_forward.1} parent=39 // pred_fallthru
          _
      $region40: #{model_forward.1} parent=5 // pred_fallthru
        _
      %p239 = scmp.le.s32.totalorder 1, %s16
      %p240 = scmp.lt.s32.totalorder %s16, 3
      %p241 = pnand %p239, %p240
      %p242 = pneg %p241
      // Predicated region
      $region45: #{model_forward.1} parent=5 // pred_check
        _
      $region46: #{model_forward.1} parent=5 // pred_check_branch
        %244 = sbr.rel (%p241) target = $region48
      $region47: #{model_forward.1} parent=5 // pred_region
        %s245 = ssub.s32 %s16, 1
        %p246 = scmp.lt.s32.totalorder %s21, 1
        %s247 = scalar_select %p246, %s21, 1
        %s248 = smul.addr %s247, 189
        %s249 = smul.addr %s248, 4
        %s250 = scalar_lea.vmem %s0, %s249
        %p251 = pneg %p42
        %p252 = pneg %p39
        %p253 = pneg %p63
        %p254 = pneg %p60
        %p255 = pneg %p84
        %p256 = pneg %p81
        %p257 = pneg %p105
        %p258 = pneg %p102
        %p259 = pneg %p126
        %p260 = pneg %p123
        %p261 = pneg %p147
        %p262 = pneg %p144
        %p263 = pneg %p168
        %p264 = pneg %p165
        %p265 = pneg %p194
        %p266 = pneg %p191
        %s267 = sand.u32 %s181, 1
        %s268 = scalar_lea.sflag [#allocation8], %s267
        %s269 = sand.u32 %s181, 1
        %s270 = scalar_lea.vmem [#allocation7], %s269
        %p271 = scmp.lt.s32.totalorder %s21, 1
        %s272 = scalar_select %p271, %s21, 1
        %s273 = smul.addr %s272, 189
        %s274 = smul.addr %s273, 4
        %s275 = scalar_lea.vmem %s0, %s274
        %v277 = vld [vmem:[%s1] sm:$0xf]
        %v278 = vld [vmem:[%s1 + $0x4] sm:$0xf]
        %v279 = vld [vmem:[%s1 + $0x8] sm:$0xf]
        %v280 = vld [vmem:[%s1 + $0xc] sm:$0xf]
        %v281 = vld [vmem:[%s1 + $0x10] sm:$0xf]
        %v282 = vld [vmem:[%s1 + $0x14] sm:$0xf]
        %v283 = vld [vmem:[%s1 + $0x18] sm:$0xf]
        %v284 = vld [vmem:[%s1 + $0x1c] sm:$0xf]
        %v285 = vld [vmem:[%s1 + $0x20] sm:$0xf]
        %v286 = vld [vmem:[%s1 + $0x24] sm:$0xf]
        %v287 = vld [vmem:[%s1 + $0x28] sm:$0xf]
        %v288 = vld [vmem:[%s1 + $0x2c] sm:$0xf]
        %v289 = vld [vmem:[%s1 + $0x30] sm:$0xf]
        %v290 = vld [vmem:[%s1 + $0x34] sm:$0xf]
        %v291 = vld [vmem:[%s1 + $0x38] sm:$0xf]
        %v292 = vld [vmem:[%s1 + $0x3c] sm:$0xf]
        %v293 = vld [vmem:[%s1 + $0x40] sm:$0xf]
        %v294 = vld [vmem:[%s1 + $0x44] sm:$0xf]
        %v295 = vld [vmem:[%s1 + $0x48] sm:$0xf]
        %v296 = vld [vmem:[%s1 + $0x4c] sm:$0xf]
        %v297 = vld [vmem:[%s1 + $0x50] sm:$0xf]
        %v298 = vld [vmem:[%s1 + $0x54] sm:$0xf]
        %v299 = vld [vmem:[%s1 + $0x58] sm:$0xf]
        %v300 = vld [vmem:[%s1 + $0x5c] sm:$0xf]
        %v301 = vld [vmem:[%s1 + $0x60] sm:$0xf]
        %v302 = vld [vmem:[%s1 + $0x64] sm:$0xf]
        %v303 = vld [vmem:[%s1 + $0x68] sm:$0xf]
        %v304 = vld [vmem:[%s1 + $0x6c] sm:$0xf]
        %v305 = vld [vmem:[%s1 + $0x70] sm:$0xf]
        %v306 = vld [vmem:[%s1 + $0x74] sm:$0xf]
        %v307 = vld [vmem:[%s1 + $0x78] sm:$0xf]
        %v308 = vld [vmem:[%s1 + $0x7c] sm:$0xf]
        %v309 = vld [vmem:[%s1 + $0x80] sm:$0xf]
        %v310 = vld [vmem:[%s1 + $0x84] sm:$0xf]
        %v311 = vld [vmem:[%s1 + $0x88] sm:$0xf]
        %v312 = vld [vmem:[%s1 + $0x8c] sm:$0xf]
        %v313 = vld [vmem:[%s1 + $0x90] sm:$0xf]
        %v314 = vld [vmem:[%s1 + $0x94] sm:$0xf]
        %v315 = vld [vmem:[%s1 + $0x98] sm:$0xf]
        %v316 = vld [vmem:[%s1 + $0x9c] sm:$0xf]
        %v317 = vld [vmem:[%s1 + $0xa0] sm:$0xf]
        %v318 = vld [vmem:[%s1 + $0xa4] sm:$0xf]
        %v319 = vld [vmem:[%s1 + $0xa8] sm:$0xf]
        %v320 = vld [vmem:[%s1 + $0xac] sm:$0xf]
        %v321 = vld [vmem:[%s1 + $0xb0] sm:$0xf]
        %v322 = vld [vmem:[%s1 + $0xb4] sm:$0xf]
        %v323 = vld [vmem:[%s1 + $0xb8] sm:$0xf]
        %v324 = vld [vmem:[%s1 + $0xbc] sm:$0xf]
        %v325 = vld [vmem:[%s275] sm:$0xff]
        %v326 = vld [vmem:[%s275 + $0x8] sm:$0xf]
        %v327 = vld [vmem:[%s275 + $0xc] sm:$0xff]
        %v328 = vld [vmem:[%s275 + $0x14] sm:$0xf]
        %v329 = vld [vmem:[%s275 + $0x18] sm:$0xff]
        %v330 = vld [vmem:[%s275 + $0x20] sm:$0xf]
        %v331 = vld [vmem:[%s275 + $0x24] sm:$0xff]
        %v332 = vld [vmem:[%s275 + $0x2c] sm:$0xf]
        %v333 = vld [vmem:[%s275 + $0x30] sm:$0xff]
        %v334 = vld [vmem:[%s275 + $0x38] sm:$0xf]
        %v335 = vld [vmem:[%s275 + $0x3c] sm:$0xff]
        %v336 = vld [vmem:[%s275 + $0x44] sm:$0xf]
        %v337 = vld [vmem:[%s275 + $0x48] sm:$0x11]
        %v338 = vld [vmem:[%s275 + $0x50] sm:$0x1]
        %v353 = vunpack.c.l.b16 %v325
        %v354 = vunpack.c.h.b16 %v325
        %v355 = vunpack.c.l.b16 %v326
        %v356 = vunpack.c.l.b16 %v327
        %v357 = vunpack.c.h.b16 %v327
        %v358 = vunpack.c.l.b16 %v328
        %v359 = vunpack.c.l.b16 %v329
        %v360 = vunpack.c.h.b16 %v329
        %v361 = vunpack.c.l.b16 %v330
        %v362 = vunpack.c.l.b16 %v331
        %v363 = vunpack.c.h.b16 %v331
        %v364 = vunpack.c.l.b16 %v332
        %v365 = vunpack.c.l.b16 %v333
        %v366 = vunpack.c.h.b16 %v333
        %v367 = vunpack.c.l.b16 %v334
        %v368 = vunpack.c.l.b16 %v335
        %v369 = vunpack.c.h.b16 %v335
        %v370 = vunpack.c.l.b16 %v336
        %v371 = vunpack.c.l.b16 %v337
        %v372 = vunpack.c.h.b16 %v337
        %v373 = vunpack.c.l.b16 %v338
        %v374 = vpack.c.b16 %v356, %v353
        %v375 = vpack.c.b16 %v357, %v354
        %v376 = vpack.c.b16 %v358, %v355
        %v377 = vpack.c.b16 %v362, %v359
        %v378 = vpack.c.b16 %v363, %v360
        %v379 = vpack.c.b16 %v364, %v361
        %v380 = vpack.c.b16 %v368, %v365
        %v381 = vpack.c.b16 %v369, %v366
        %v382 = vpack.c.b16 %v370, %v367
        %v383 = vpack.c.b16 %v371, %v371
        %v384 = vpack.c.b16 %v372, %v372
        %v385 = vpack.c.b16 %v373, %v373
        %v446 = vunpack.c.l.b16 %v277
        %v447 = vunpack.c.l.b16 %v278
        %v448 = vunpack.c.l.b16 %v279
        %v449 = vunpack.c.l.b16 %v280
        %v450 = vunpack.c.l.b16 %v281
        %v451 = vunpack.c.l.b16 %v282
        %v452 = vunpack.c.l.b16 %v283
        %v453 = vunpack.c.l.b16 %v284
        %v454 = vunpack.c.l.b16 %v285
        %v455 = vunpack.c.l.b16 %v286
        %v456 = vunpack.c.l.b16 %v287
        %v457 = vunpack.c.l.b16 %v288
        %v458 = vunpack.c.l.b16 %v289
        %v459 = vunpack.c.l.b16 %v290
        %v460 = vunpack.c.l.b16 %v291
        %v461 = vunpack.c.l.b16 %v292
        %v462 = vunpack.c.l.b16 %v293
        %v463 = vunpack.c.l.b16 %v294
        %v464 = vunpack.c.l.b16 %v295
        %v465 = vunpack.c.l.b16 %v296
        %v466 = vunpack.c.l.b16 %v297
        %v467 = vunpack.c.l.b16 %v298
        %v468 = vunpack.c.l.b16 %v299
        %v469 = vunpack.c.l.b16 %v300
        %v470 = vunpack.c.l.b16 %v301
        %v471 = vunpack.c.l.b16 %v302
        %v472 = vunpack.c.l.b16 %v303
        %v473 = vunpack.c.l.b16 %v304
        %v474 = vunpack.c.l.b16 %v305
        %v475 = vunpack.c.l.b16 %v306
        %v476 = vunpack.c.l.b16 %v307
        %v477 = vunpack.c.l.b16 %v308
        %v478 = vunpack.c.l.b16 %v309
        %v479 = vunpack.c.l.b16 %v310
        %v480 = vunpack.c.l.b16 %v311
        %v481 = vunpack.c.l.b16 %v312
        %v482 = vunpack.c.l.b16 %v313
        %v483 = vunpack.c.l.b16 %v314
        %v484 = vunpack.c.l.b16 %v315
        %v485 = vunpack.c.l.b16 %v316
        %v486 = vunpack.c.l.b16 %v317
        %v487 = vunpack.c.l.b16 %v318
        %v488 = vunpack.c.l.b16 %v319
        %v489 = vunpack.c.l.b16 %v320
        %v490 = vunpack.c.l.b16 %v321
        %v491 = vunpack.c.l.b16 %v322
        %v492 = vunpack.c.l.b16 %v323
        %v493 = vunpack.c.l.b16 %v324
        %v494 = vpack.c.b16 %v447, %v446
        %v495 = vpack.c.b16 %v449, %v448
        %v496 = vpack.c.b16 %v451, %v450
        %v497 = vpack.c.b16 %v453, %v452
        %v498 = vpack.c.b16 %v455, %v454
        %v499 = vpack.c.b16 %v457, %v456
        %v500 = vpack.c.b16 %v459, %v458
        %v501 = vpack.c.b16 %v461, %v460
        %v502 = vpack.c.b16 %v463, %v462
        %v503 = vpack.c.b16 %v465, %v464
        %v504 = vpack.c.b16 %v467, %v466
        %v505 = vpack.c.b16 %v469, %v468
        %v506 = vpack.c.b16 %v471, %v470
        %v507 = vpack.c.b16 %v473, %v472
        %v508 = vpack.c.b16 %v475, %v474
        %v509 = vpack.c.b16 %v477, %v476
        %v510 = vpack.c.b16 %v479, %v478
        %v511 = vpack.c.b16 %v481, %v480
        %v512 = vpack.c.b16 %v483, %v482
        %v513 = vpack.c.b16 %v485, %v484
        %v514 = vpack.c.b16 %v487, %v486
        %v515 = vpack.c.b16 %v489, %v488
        %v516 = vpack.c.b16 %v491, %v490
        %v517 = vpack.c.b16 %v493, %v492
        %542 = vmatprep.subr.bf16.mxu0 0
        %543 = vmatpush1.bf16.msra.mxu0 %v501
        %544 = vmatprep.subr.bf16.mxu0 0
        %545 = vmatpush1.bf16.msra.mxu0 %v500
        %546 = vmatprep.subr.bf16.mxu0 0
        %547 = vmatpush1.bf16.msra.mxu0 %v499
        %548 = vmatprep.subr.bf16.mxu0 0
        %549 = vmatpush1.bf16.msra.mxu0 %v498
        %550 = vmatprep.subr.bf16.mxu0 0
        %551 = vmatpush1.bf16.msra.mxu0 %v497
        %552 = vmatprep.subr.bf16.mxu0 0
        %553 = vmatpush1.bf16.msra.mxu0 %v496
        %554 = vmatprep.subr.bf16.mxu0 0
        %555 = vmatpush1.bf16.msra.mxu0 %v495
        %556 = vmatprep.subr.bf16.mxu0 0
        %557 = vmatpush1.bf16.msra.mxu0 %v494
        %558 = vmatprep.subr.bf16.mxu0 0
        %559 = vmatpush2.bf16.msra.mxu0 %v509
        %560 = vmatprep.subr.bf16.mxu0 0
        %561 = vmatpush2.bf16.msra.mxu0 %v508
        %562 = vmatprep.subr.bf16.mxu0 0
        %563 = vmatpush2.bf16.msra.mxu0 %v507
        %564 = vmatprep.subr.bf16.mxu0 0
        %565 = vmatpush2.bf16.msra.mxu0 %v506
        %566 = vmatprep.subr.bf16.mxu0 0
        %567 = vmatpush2.bf16.msra.mxu0 %v505
        %568 = vmatprep.subr.bf16.mxu0 0
        %569 = vmatpush2.bf16.msra.mxu0 %v504
        %570 = vmatprep.subr.bf16.mxu0 0
        %571 = vmatpush2.bf16.msra.mxu0 %v503
        %572 = vmatprep.subr.bf16.mxu0 0
        %573 = vmatpush2.bf16.msra.mxu0 %v502
        %574 = vmatprep.mubr.bf16.mxu0 %v375
        %575 = vmatmul.mubr.bf16.gmra.mxu0 %v374
        %v576 = vpop.f32.mrf.mxu0
        %v577 = vadd.f32 0.0, %v576
        %v578 = vpop.f32.mrf.mxu0
        %v579 = vpop.f32.mrf.mxu0
        %v580 = vadd.f32 0.0, %v579
        %v581 = vpop.f32.mrf.mxu0
        %582 = vmatprep.mubr.bf16.mxu0 %v378
        %583 = vmatmul.mubr.bf16.gmra.mxu0 %v377
        %v584 = vpop.f32.mrf.mxu0
        %v585 = vadd.f32 0.0, %v584
        %v586 = vpop.f32.mrf.mxu0
        %v587 = vpop.f32.mrf.mxu0
        %v588 = vadd.f32 0.0, %v587
        %v589 = vpop.f32.mrf.mxu0
        %590 = vmatprep.mubr.bf16.mxu0 %v381
        %591 = vmatmul.mubr.bf16.gmra.mxu0 %v380
        %v592 = vpop.f32.mrf.mxu0
        %v593 = vadd.f32 0.0, %v592
        %v594 = vpop.f32.mrf.mxu0
        %v595 = vpop.f32.mrf.mxu0
        %v596 = vadd.f32 0.0, %v595
        %v597 = vpop.f32.mrf.mxu0
        %598 = vmatprep.mubr.bf16.mxu0 %v384
        %599 = vmatmul.mubr.bf16.gmra.mxu0 %v383
        %v600 = vpop.f32.mrf.mxu0
        %v601 = vadd.f32 0.0, %v600
        %v602 = vpop.f32.mrf.mxu0
        %v603 = vpop.f32.mrf.mxu0
        %v604 = vpop.f32.mrf.mxu0
        %605 = vdwg.mxu0
        %606 = vmatprep.subr.bf16.mxu0 0
        %607 = vmatpush1.bf16.msra.mxu0 %v517
        %608 = vmatprep.subr.bf16.mxu0 0
        %609 = vmatpush1.bf16.msra.mxu0 %v516
        %610 = vmatprep.subr.bf16.mxu0 0
        %611 = vmatpush1.bf16.msra.mxu0 %v515
        %612 = vmatprep.subr.bf16.mxu0 0
        %613 = vmatpush1.bf16.msra.mxu0 %v514
        %614 = vmatprep.subr.bf16.mxu0 0
        %615 = vmatpush1.bf16.msra.mxu0 %v513
        %616 = vmatprep.subr.bf16.mxu0 0
        %617 = vmatpush1.bf16.msra.mxu0 %v512
        %618 = vmatprep.subr.bf16.mxu0 0
        %619 = vmatpush1.bf16.msra.mxu0 %v511
        %620 = vmatprep.subr.bf16.mxu0 0
        %621 = vmatpush1.bf16.msra.mxu0 %v510
        %622 = vmatprep.subr.bf16.mxu0 0
        %623 = vmatpush2.bf16.msra.mxu0 0
        %624 = vmatprep.subr.bf16.mxu0 0
        %625 = vmatpush2.bf16.msra.mxu0 0
        %626 = vmatprep.subr.bf16.mxu0 0
        %627 = vmatpush2.bf16.msra.mxu0 0
        %628 = vmatprep.subr.bf16.mxu0 0
        %629 = vmatpush2.bf16.msra.mxu0 0
        %630 = vmatprep.subr.bf16.mxu0 0
        %631 = vmatpush2.bf16.msra.mxu0 0
        %632 = vmatprep.subr.bf16.mxu0 0
        %633 = vmatpush2.bf16.msra.mxu0 0
        %634 = vmatprep.subr.bf16.mxu0 0
        %635 = vmatpush2.bf16.msra.mxu0 0
        %636 = vmatprep.subr.bf16.mxu0 0
        %637 = vmatpush2.bf16.msra.mxu0 0
        %638 = vmatprep.mubr.bf16.mxu0 0
        %639 = vmatmul.mubr.bf16.gmra.mxu0 %v376
        %v640 = vpop.f32.mrf.mxu0
        %v641 = vadd.f32 %v577, %v640
        %v642 = vpop.f32.mrf.mxu0
        %v643 = vpop.f32.mrf.mxu0
        %v644 = vadd.f32 %v580, %v643
        %v645 = vpop.f32.mrf.mxu0
        %646 = vmatprep.mubr.bf16.mxu0 0
        %647 = vmatmul.mubr.bf16.gmra.mxu0 %v379
        %v648 = vpop.f32.mrf.mxu0
        %v649 = vadd.f32 %v585, %v648
        %v650 = vpop.f32.mrf.mxu0
        %v651 = vpop.f32.mrf.mxu0
        %v652 = vadd.f32 %v588, %v651
        %v653 = vpop.f32.mrf.mxu0
        %654 = vmatprep.mubr.bf16.mxu0 0
        %655 = vmatmul.mubr.bf16.gmra.mxu0 %v382
        %v656 = vpop.f32.mrf.mxu0
        %v657 = vadd.f32 %v593, %v656
        %v658 = vpop.f32.mrf.mxu0
        %v659 = vpop.f32.mrf.mxu0
        %v660 = vadd.f32 %v596, %v659
        %v661 = vpop.f32.mrf.mxu0
        %662 = vmatprep.mubr.bf16.mxu0 0
        %663 = vmatmul.mubr.bf16.gmra.mxu0 %v385
        %v664 = vpop.f32.mrf.mxu0
        %v665 = vadd.f32 %v601, %v664
        %v666 = vpop.f32.mrf.mxu0
        %v667 = vpop.f32.mrf.mxu0
        %v668 = vpop.f32.mrf.mxu0
        %669 = vdwg.mxu0
        %670 = vst [vmem:[#allocation2] sm:$0xff] %v641
        %671 = vst [vmem:[#allocation2 + $0x8] sm:$0xff] %v644
        %672 = vst [vmem:[#allocation2 + $0x10] sm:$0xff] %v649
        %673 = vst [vmem:[#allocation2 + $0x18] sm:$0xff] %v652
        %674 = vst [vmem:[#allocation2 + $0x20] sm:$0xff] %v657
        %675 = vst [vmem:[#allocation2 + $0x28] sm:$0xff] %v660
        %676 = vst [vmem:[#allocation2 + $0x30] sm:$0x1] %v665
        %s677 = scalar_lea.vmem %s275, 84
        %v678 = vld [vmem:[%s677] sm:$0xff]
        %v679 = vld [vmem:[%s677 + $0x8] sm:$0xf]
        %v680 = vld [vmem:[%s677 + $0xc] sm:$0xff]
        %v681 = vld [vmem:[%s677 + $0x14] sm:$0xf]
        %v682 = vld [vmem:[%s677 + $0x18] sm:$0xff]
        %v683 = vld [vmem:[%s677 + $0x20] sm:$0xf]
        %v684 = vld [vmem:[%s677 + $0x24] sm:$0xff]
        %v685 = vld [vmem:[%s677 + $0x2c] sm:$0xf]
        %v686 = vld [vmem:[%s677 + $0x30] sm:$0xff]
        %v687 = vld [vmem:[%s677 + $0x38] sm:$0xf]
        %v688 = vld [vmem:[%s677 + $0x3c] sm:$0xff]
        %v689 = vld [vmem:[%s677 + $0x44] sm:$0xf]
        %v690 = vld [vmem:[%s677 + $0x48] sm:$0x11]
        %v691 = vld [vmem:[%s677 + $0x50] sm:$0x1]
        %v706 = vunpack.c.l.b16 %v678
        %v707 = vunpack.c.h.b16 %v678
        %v708 = vunpack.c.l.b16 %v679
        %v709 = vunpack.c.l.b16 %v680
        %v710 = vunpack.c.h.b16 %v680
        %v711 = vunpack.c.l.b16 %v681
        %v712 = vunpack.c.l.b16 %v682
        %v713 = vunpack.c.h.b16 %v682
        %v714 = vunpack.c.l.b16 %v683
        %v715 = vunpack.c.l.b16 %v684
        %v716 = vunpack.c.h.b16 %v684
        %v717 = vunpack.c.l.b16 %v685
        %v718 = vunpack.c.l.b16 %v686
        %v719 = vunpack.c.h.b16 %v686
        %v720 = vunpack.c.l.b16 %v687
        %v721 = vunpack.c.l.b16 %v688
        %v722 = vunpack.c.h.b16 %v688
        %v723 = vunpack.c.l.b16 %v689
        %v724 = vunpack.c.l.b16 %v690
        %v725 = vunpack.c.h.b16 %v690
        %v726 = vunpack.c.l.b16 %v691
        %v727 = vpack.c.b16 %v709, %v706
        %v728 = vpack.c.b16 %v710, %v707
        %v729 = vpack.c.b16 %v711, %v708
        %v730 = vpack.c.b16 %v715, %v712
        %v731 = vpack.c.b16 %v716, %v713
        %v732 = vpack.c.b16 %v717, %v714
        %v733 = vpack.c.b16 %v721, %v718
        %v734 = vpack.c.b16 %v722, %v719
        %v735 = vpack.c.b16 %v723, %v720
        %v736 = vpack.c.b16 %v724, %v724
        %v737 = vpack.c.b16 %v725, %v725
        %v738 = vpack.c.b16 %v726, %v726
        %751 = vmatprep.subr.bf16.mxu0 0
        %752 = vmatpush1.bf16.msra.mxu0 %v501
        %753 = vmatprep.subr.bf16.mxu0 0
        %754 = vmatpush1.bf16.msra.mxu0 %v500
        %755 = vmatprep.subr.bf16.mxu0 0
        %756 = vmatpush1.bf16.msra.mxu0 %v499
        %757 = vmatprep.subr.bf16.mxu0 0
        %758 = vmatpush1.bf16.msra.mxu0 %v498
        %759 = vmatprep.subr.bf16.mxu0 0
        %760 = vmatpush1.bf16.msra.mxu0 %v497
        %761 = vmatprep.subr.bf16.mxu0 0
        %762 = vmatpush1.bf16.msra.mxu0 %v496
        %763 = vmatprep.subr.bf16.mxu0 0
        %764 = vmatpush1.bf16.msra.mxu0 %v495
        %765 = vmatprep.subr.bf16.mxu0 0
        %766 = vmatpush1.bf16.msra.mxu0 %v494
        %767 = vmatprep.subr.bf16.mxu0 0
        %768 = vmatpush2.bf16.msra.mxu0 %v509
        %769 = vmatprep.subr.bf16.mxu0 0
        %770 = vmatpush2.bf16.msra.mxu0 %v508
        %771 = vmatprep.subr.bf16.mxu0 0
        %772 = vmatpush2.bf16.msra.mxu0 %v507
        %773 = vmatprep.subr.bf16.mxu0 0
        %774 = vmatpush2.bf16.msra.mxu0 %v506
        %775 = vmatprep.subr.bf16.mxu0 0
        %776 = vmatpush2.bf16.msra.mxu0 %v505
        %777 = vmatprep.subr.bf16.mxu0 0
        %778 = vmatpush2.bf16.msra.mxu0 %v504
        %779 = vmatprep.subr.bf16.mxu0 0
        %780 = vmatpush2.bf16.msra.mxu0 %v503
        %781 = vmatprep.subr.bf16.mxu0 0
        %782 = vmatpush2.bf16.msra.mxu0 %v502
        %783 = vmatprep.mubr.bf16.mxu0 %v728
        %784 = vmatmul.mubr.bf16.gmra.mxu0 %v727
        %v785 = vpop.f32.mrf.mxu0
        %v786 = vadd.f32 0.0, %v785
        %v787 = vpop.f32.mrf.mxu0
        %v788 = vpop.f32.mrf.mxu0
        %v789 = vadd.f32 0.0, %v788
        %v790 = vpop.f32.mrf.mxu0
        %791 = vmatprep.mubr.bf16.mxu0 %v731
        %792 = vmatmul.mubr.bf16.gmra.mxu0 %v730
        %v793 = vpop.f32.mrf.mxu0
        %v794 = vadd.f32 0.0, %v793
        %v795 = vpop.f32.mrf.mxu0
        %v796 = vpop.f32.mrf.mxu0
        %v797 = vadd.f32 0.0, %v796
        %v798 = vpop.f32.mrf.mxu0
        %799 = vmatprep.mubr.bf16.mxu0 %v734
        %800 = vmatmul.mubr.bf16.gmra.mxu0 %v733
        %v801 = vpop.f32.mrf.mxu0
        %v802 = vadd.f32 0.0, %v801
        %v803 = vpop.f32.mrf.mxu0
        %v804 = vpop.f32.mrf.mxu0
        %v805 = vadd.f32 0.0, %v804
        %v806 = vpop.f32.mrf.mxu0
        %807 = vmatprep.mubr.bf16.mxu0 %v737
        %808 = vmatmul.mubr.bf16.gmra.mxu0 %v736
        %v809 = vpop.f32.mrf.mxu0
        %v810 = vadd.f32 0.0, %v809
        %v811 = vpop.f32.mrf.mxu0
        %v812 = vpop.f32.mrf.mxu0
        %v813 = vpop.f32.mrf.mxu0
        %814 = vdwg.mxu0
        %815 = vmatprep.subr.bf16.mxu0 0
        %816 = vmatpush1.bf16.msra.mxu0 %v517
        %817 = vmatprep.subr.bf16.mxu0 0
        %818 = vmatpush1.bf16.msra.mxu0 %v516
        %819 = vmatprep.subr.bf16.mxu0 0
        %820 = vmatpush1.bf16.msra.mxu0 %v515
        %821 = vmatprep.subr.bf16.mxu0 0
        %822 = vmatpush1.bf16.msra.mxu0 %v514
        %823 = vmatprep.subr.bf16.mxu0 0
        %824 = vmatpush1.bf16.msra.mxu0 %v513
        %825 = vmatprep.subr.bf16.mxu0 0
        %826 = vmatpush1.bf16.msra.mxu0 %v512
        %827 = vmatprep.subr.bf16.mxu0 0
        %828 = vmatpush1.bf16.msra.mxu0 %v511
        %829 = vmatprep.subr.bf16.mxu0 0
        %830 = vmatpush1.bf16.msra.mxu0 %v510
        %831 = vmatprep.subr.bf16.mxu0 0
        %832 = vmatpush2.bf16.msra.mxu0 0
        %833 = vmatprep.subr.bf16.mxu0 0
        %834 = vmatpush2.bf16.msra.mxu0 0
        %835 = vmatprep.subr.bf16.mxu0 0
        %836 = vmatpush2.bf16.msra.mxu0 0
        %837 = vmatprep.subr.bf16.mxu0 0
        %838 = vmatpush2.bf16.msra.mxu0 0
        %839 = vmatprep.subr.bf16.mxu0 0
        %840 = vmatpush2.bf16.msra.mxu0 0
        %841 = vmatprep.subr.bf16.mxu0 0
        %842 = vmatpush2.bf16.msra.mxu0 0
        %843 = vmatprep.subr.bf16.mxu0 0
        %844 = vmatpush2.bf16.msra.mxu0 0
        %845 = vmatprep.subr.bf16.mxu0 0
        %846 = vmatpush2.bf16.msra.mxu0 0
        %847 = vmatprep.mubr.bf16.mxu0 0
        %848 = vmatmul.mubr.bf16.gmra.mxu0 %v729
        %v849 = vpop.f32.mrf.mxu0
        %v850 = vadd.f32 %v786, %v849
        %v851 = vpop.f32.mrf.mxu0
        %v852 = vpop.f32.mrf.mxu0
        %v853 = vadd.f32 %v789, %v852
        %v854 = vpop.f32.mrf.mxu0
        %855 = vmatprep.mubr.bf16.mxu0 0
        %856 = vmatmul.mubr.bf16.gmra.mxu0 %v732
        %v857 = vpop.f32.mrf.mxu0
        %v858 = vadd.f32 %v794, %v857
        %v859 = vpop.f32.mrf.mxu0
        %v860 = vpop.f32.mrf.mxu0
        %v861 = vadd.f32 %v797, %v860
        %v862 = vpop.f32.mrf.mxu0
        %863 = vmatprep.mubr.bf16.mxu0 0
        %864 = vmatmul.mubr.bf16.gmra.mxu0 %v735
        %v865 = vpop.f32.mrf.mxu0
        %v866 = vadd.f32 %v802, %v865
        %v867 = vpop.f32.mrf.mxu0
        %v868 = vpop.f32.mrf.mxu0
        %v869 = vadd.f32 %v805, %v868
        %v870 = vpop.f32.mrf.mxu0
        %871 = vmatprep.mubr.bf16.mxu0 0
        %872 = vmatmul.mubr.bf16.gmra.mxu0 %v738
        %v873 = vpop.f32.mrf.mxu0
        %v874 = vadd.f32 %v810, %v873
        %v875 = vpop.f32.mrf.mxu0
        %v876 = vpop.f32.mrf.mxu0
        %v877 = vpop.f32.mrf.mxu0
        %878 = vdwg.mxu0
        %v879 = vld [vmem:[#allocation2] sm:$0xff]
        %v880 = vld [vmem:[#allocation2 + $0x8] sm:$0xff]
        %v881 = vld [vmem:[#allocation2 + $0x10] sm:$0xff]
        %v882 = vld [vmem:[#allocation2 + $0x18] sm:$0xff]
        %v883 = vld [vmem:[#allocation2 + $0x20] sm:$0xff]
        %v884 = vld [vmem:[#allocation2 + $0x28] sm:$0xff]
        %v885 = vld [vmem:[#allocation2 + $0x30] sm:$0x1]
        %v886 = vmax.f32 %v879, %v850
        %v887 = vmax.f32 %v880, %v853
        %v888 = vmax.f32 %v881, %v858
        %v889 = vmax.f32 %v882, %v861
        %v890 = vmax.f32 %v883, %v866
        %v891 = vmax.f32 %v884, %v869
        %v892 = vmax.f32 %v885, %v874
        %893 = vst [vmem:[#allocation2] sm:$0xff] %v886
        %894 = vst [vmem:[#allocation2 + $0x8] sm:$0xff] %v887
        %895 = vst [vmem:[#allocation2 + $0x10] sm:$0xff] %v888
        %896 = vst [vmem:[#allocation2 + $0x18] sm:$0xff] %v889
        %897 = vst [vmem:[#allocation2 + $0x20] sm:$0xff] %v890
        %898 = vst [vmem:[#allocation2 + $0x28] sm:$0xff] %v891
        %899 = vst [vmem:[#allocation2 + $0x30] sm:$0x1] %v892
        %s900 = scalar_lea.vmem %s275, 168
        %v901 = vld [vmem:[%s900] sm:$0xff]
        %v902 = vld [vmem:[%s900 + $0x8] sm:$0xf]
        %v903 = vld [vmem:[%s900 + $0xc] sm:$0xff]
        %v904 = vld [vmem:[%s900 + $0x14] sm:$0xf]
        %v905 = vld [vmem:[%s900 + $0x18] sm:$0xff]
        %v906 = vld [vmem:[%s900 + $0x20] sm:$0xf]
        %v907 = vld [vmem:[%s900 + $0x24] sm:$0xff]
        %v908 = vld [vmem:[%s900 + $0x2c] sm:$0xf]
        %v909 = vld [vmem:[%s900 + $0x30] sm:$0xff]
        %v910 = vld [vmem:[%s900 + $0x38] sm:$0xf]
        %v911 = vld [vmem:[%s900 + $0x3c] sm:$0xff]
        %v912 = vld [vmem:[%s900 + $0x44] sm:$0xf]
        %v913 = vld [vmem:[%s900 + $0x48] sm:$0x11]
        %v914 = vld [vmem:[%s900 + $0x50] sm:$0x1]
        %v929 = vunpack.c.l.b16 %v901
        %v930 = vunpack.c.h.b16 %v901
        %v931 = vunpack.c.l.b16 %v902
        %v932 = vunpack.c.l.b16 %v903
        %v933 = vunpack.c.h.b16 %v903
        %v934 = vunpack.c.l.b16 %v904
        %v935 = vunpack.c.l.b16 %v905
        %v936 = vunpack.c.h.b16 %v905
        %v937 = vunpack.c.l.b16 %v906
        %v938 = vunpack.c.l.b16 %v907
        %v939 = vunpack.c.h.b16 %v907
        %v940 = vunpack.c.l.b16 %v908
        %v941 = vunpack.c.l.b16 %v909
        %v942 = vunpack.c.h.b16 %v909
        %v943 = vunpack.c.l.b16 %v910
        %v944 = vunpack.c.l.b16 %v911
        %v945 = vunpack.c.h.b16 %v911
        %v946 = vunpack.c.l.b16 %v912
        %v947 = vunpack.c.l.b16 %v913
        %v948 = vunpack.c.h.b16 %v913
        %v949 = vunpack.c.l.b16 %v914
        %v950 = vpack.c.b16 %v932, %v929
        %v951 = vpack.c.b16 %v933, %v930
        %v952 = vpack.c.b16 %v934, %v931
        %v953 = vpack.c.b16 %v938, %v935
        %v954 = vpack.c.b16 %v939, %v936
        %v955 = vpack.c.b16 %v940, %v937
        %v956 = vpack.c.b16 %v944, %v941
        %v957 = vpack.c.b16 %v945, %v942
        %v958 = vpack.c.b16 %v946, %v943
        %v959 = vpack.c.b16 %v947, %v947
        %v960 = vpack.c.b16 %v948, %v948
        %v961 = vpack.c.b16 %v949, %v949
        %974 = vmatprep.subr.bf16.mxu0 0
        %975 = vmatpush1.bf16.msra.mxu0 %v501
        %976 = vmatprep.subr.bf16.mxu0 0
        %977 = vmatpush1.bf16.msra.mxu0 %v500
        %978 = vmatprep.subr.bf16.mxu0 0
        %979 = vmatpush1.bf16.msra.mxu0 %v499
        %980 = vmatprep.subr.bf16.mxu0 0
        %981 = vmatpush1.bf16.msra.mxu0 %v498
        %982 = vmatprep.subr.bf16.mxu0 0
        %983 = vmatpush1.bf16.msra.mxu0 %v497
        %984 = vmatprep.subr.bf16.mxu0 0
        %985 = vmatpush1.bf16.msra.mxu0 %v496
        %986 = vmatprep.subr.bf16.mxu0 0
        %987 = vmatpush1.bf16.msra.mxu0 %v495
        %988 = vmatprep.subr.bf16.mxu0 0
        %989 = vmatpush1.bf16.msra.mxu0 %v494
        %990 = vmatprep.subr.bf16.mxu0 0
        %991 = vmatpush2.bf16.msra.mxu0 %v509
        %992 = vmatprep.subr.bf16.mxu0 0
        %993 = vmatpush2.bf16.msra.mxu0 %v508
        %994 = vmatprep.subr.bf16.mxu0 0
        %995 = vmatpush2.bf16.msra.mxu0 %v507
        %996 = vmatprep.subr.bf16.mxu0 0
        %997 = vmatpush2.bf16.msra.mxu0 %v506
        %998 = vmatprep.subr.bf16.mxu0 0
        %999 = vmatpush2.bf16.msra.mxu0 %v505
        %1000 = vmatprep.subr.bf16.mxu0 0
        %1001 = vmatpush2.bf16.msra.mxu0 %v504
        %1002 = vmatprep.subr.bf16.mxu0 0
        %1003 = vmatpush2.bf16.msra.mxu0 %v503
        %1004 = vmatprep.subr.bf16.mxu0 0
        %1005 = vmatpush2.bf16.msra.mxu0 %v502
        %1006 = vmatprep.mubr.bf16.mxu0 %v951
        %1007 = vmatmul.mubr.bf16.gmra.mxu0 %v950
        %v1008 = vpop.f32.mrf.mxu0
        %v1009 = vadd.f32 0.0, %v1008
        %v1010 = vpop.f32.mrf.mxu0
        %v1011 = vpop.f32.mrf.mxu0
        %v1012 = vadd.f32 0.0, %v1011
        %v1013 = vpop.f32.mrf.mxu0
        %1014 = vmatprep.mubr.bf16.mxu0 %v954
        %1015 = vmatmul.mubr.bf16.gmra.mxu0 %v953
        %v1016 = vpop.f32.mrf.mxu0
        %v1017 = vadd.f32 0.0, %v1016
        %v1018 = vpop.f32.mrf.mxu0
        %v1019 = vpop.f32.mrf.mxu0
        %v1020 = vadd.f32 0.0, %v1019
        %v1021 = vpop.f32.mrf.mxu0
        %1022 = vmatprep.mubr.bf16.mxu0 %v957
        %1023 = vmatmul.mubr.bf16.gmra.mxu0 %v956
        %v1024 = vpop.f32.mrf.mxu0
        %v1025 = vadd.f32 0.0, %v1024
        %v1026 = vpop.f32.mrf.mxu0
        %v1027 = vpop.f32.mrf.mxu0
        %v1028 = vadd.f32 0.0, %v1027
        %v1029 = vpop.f32.mrf.mxu0
        %1030 = vmatprep.mubr.bf16.mxu0 %v960
        %1031 = vmatmul.mubr.bf16.gmra.mxu0 %v959
        %v1032 = vpop.f32.mrf.mxu0
        %v1033 = vadd.f32 0.0, %v1032
        %v1034 = vpop.f32.mrf.mxu0
        %v1035 = vpop.f32.mrf.mxu0
        %v1036 = vpop.f32.mrf.mxu0
        %1037 = vdwg.mxu0
        %1038 = vmatprep.subr.bf16.mxu0 0
        %1039 = vmatpush1.bf16.msra.mxu0 %v517
        %1040 = vmatprep.subr.bf16.mxu0 0
        %1041 = vmatpush1.bf16.msra.mxu0 %v516
        %1042 = vmatprep.subr.bf16.mxu0 0
        %1043 = vmatpush1.bf16.msra.mxu0 %v515
        %1044 = vmatprep.subr.bf16.mxu0 0
        %1045 = vmatpush1.bf16.msra.mxu0 %v514
        %1046 = vmatprep.subr.bf16.mxu0 0
        %1047 = vmatpush1.bf16.msra.mxu0 %v513
        %1048 = vmatprep.subr.bf16.mxu0 0
        %1049 = vmatpush1.bf16.msra.mxu0 %v512
        %1050 = vmatprep.subr.bf16.mxu0 0
        %1051 = vmatpush1.bf16.msra.mxu0 %v511
        %1052 = vmatprep.subr.bf16.mxu0 0
        %1053 = vmatpush1.bf16.msra.mxu0 %v510
        %1054 = vmatprep.subr.bf16.mxu0 0
        %1055 = vmatpush2.bf16.msra.mxu0 0
        %1056 = vmatprep.subr.bf16.mxu0 0
        %1057 = vmatpush2.bf16.msra.mxu0 0
        %1058 = vmatprep.subr.bf16.mxu0 0
        %1059 = vmatpush2.bf16.msra.mxu0 0
        %1060 = vmatprep.subr.bf16.mxu0 0
        %1061 = vmatpush2.bf16.msra.mxu0 0
        %1062 = vmatprep.subr.bf16.mxu0 0
        %1063 = vmatpush2.bf16.msra.mxu0 0
        %1064 = vmatprep.subr.bf16.mxu0 0
        %1065 = vmatpush2.bf16.msra.mxu0 0
        %1066 = vmatprep.subr.bf16.mxu0 0
        %1067 = vmatpush2.bf16.msra.mxu0 0
        %1068 = vmatprep.subr.bf16.mxu0 0
        %1069 = vmatpush2.bf16.msra.mxu0 0
        %1070 = vmatprep.mubr.bf16.mxu0 0
        %1071 = vmatmul.mubr.bf16.gmra.mxu0 %v952
        %v1072 = vpop.f32.mrf.mxu0
        %v1073 = vadd.f32 %v1009, %v1072
        %v1074 = vpop.f32.mrf.mxu0
        %v1075 = vpop.f32.mrf.mxu0
        %v1076 = vadd.f32 %v1012, %v1075
        %v1077 = vpop.f32.mrf.mxu0
        %1078 = vmatprep.mubr.bf16.mxu0 0
        %1079 = vmatmul.mubr.bf16.gmra.mxu0 %v955
        %v1080 = vpop.f32.mrf.mxu0
        %v1081 = vadd.f32 %v1017, %v1080
        %v1082 = vpop.f32.mrf.mxu0
        %v1083 = vpop.f32.mrf.mxu0
        %v1084 = vadd.f32 %v1020, %v1083
        %v1085 = vpop.f32.mrf.mxu0
        %1086 = vmatprep.mubr.bf16.mxu0 0
        %1087 = vmatmul.mubr.bf16.gmra.mxu0 %v958
        %v1088 = vpop.f32.mrf.mxu0
        %v1089 = vadd.f32 %v1025, %v1088
        %v1090 = vpop.f32.mrf.mxu0
        %v1091 = vpop.f32.mrf.mxu0
        %v1092 = vadd.f32 %v1028, %v1091
        %v1093 = vpop.f32.mrf.mxu0
        %1094 = vmatprep.mubr.bf16.mxu0 0
        %1095 = vmatmul.mubr.bf16.gmra.mxu0 %v961
        %v1096 = vpop.f32.mrf.mxu0
        %v1097 = vadd.f32 %v1033, %v1096
        %v1098 = vpop.f32.mrf.mxu0
        %v1099 = vpop.f32.mrf.mxu0
        %v1100 = vpop.f32.mrf.mxu0
        %1101 = vdwg.mxu0
        %v1102 = vld [vmem:[#allocation2] sm:$0xff]
        %v1103 = vld [vmem:[#allocation2 + $0x8] sm:$0xff]
        %v1104 = vld [vmem:[#allocation2 + $0x10] sm:$0xff]
        %v1105 = vld [vmem:[#allocation2 + $0x18] sm:$0xff]
        %v1106 = vld [vmem:[#allocation2 + $0x20] sm:$0xff]
        %v1107 = vld [vmem:[#allocation2 + $0x28] sm:$0xff]
        %v1108 = vld [vmem:[#allocation2 + $0x30] sm:$0x1]
        %v1109 = vmax.f32 %v1102, %v1073
        %v1110 = vmax.f32 %v1103, %v1076
        %v1111 = vmax.f32 %v1104, %v1081
        %v1112 = vmax.f32 %v1105, %v1084
        %v1113 = vmax.f32 %v1106, %v1089
        %v1114 = vmax.f32 %v1107, %v1092
        %v1115 = vmax.f32 %v1108, %v1097
        %1116 = vst [vmem:[#allocation2] sm:$0xff] %v1109
        %1117 = vst [vmem:[#allocation2 + $0x8] sm:$0xff] %v1110
        %1118 = vst [vmem:[#allocation2 + $0x10] sm:$0xff] %v1111
        %1119 = vst [vmem:[#allocation2 + $0x18] sm:$0xff] %v1112
        %1120 = vst [vmem:[#allocation2 + $0x20] sm:$0xff] %v1113
        %1121 = vst [vmem:[#allocation2 + $0x28] sm:$0xff] %v1114
        %1122 = vst [vmem:[#allocation2 + $0x30] sm:$0x1] %v1115
        %s1123 = scalar_lea.vmem %s275, 252
        %v1124 = vld [vmem:[%s1123] sm:$0xff]
        %v1125 = vld [vmem:[%s1123 + $0x8] sm:$0xf]
        %v1126 = vld [vmem:[%s1123 + $0xc] sm:$0xff]
        %v1127 = vld [vmem:[%s1123 + $0x14] sm:$0xf]
        %v1128 = vld [vmem:[%s1123 + $0x18] sm:$0xff]
        %v1129 = vld [vmem:[%s1123 + $0x20] sm:$0xf]
        %v1130 = vld [vmem:[%s1123 + $0x24] sm:$0xff]
        %v1131 = vld [vmem:[%s1123 + $0x2c] sm:$0xf]
        %v1132 = vld [vmem:[%s1123 + $0x30] sm:$0xff]
        %v1133 = vld [vmem:[%s1123 + $0x38] sm:$0xf]
        %v1134 = vld [vmem:[%s1123 + $0x3c] sm:$0xff]
        %v1135 = vld [vmem:[%s1123 + $0x44] sm:$0xf]
        %v1136 = vld [vmem:[%s1123 + $0x48] sm:$0x11]
        %v1137 = vld [vmem:[%s1123 + $0x50] sm:$0x1]
        %v1152 = vunpack.c.l.b16 %v1124
        %v1153 = vunpack.c.h.b16 %v1124
        %v1154 = vunpack.c.l.b16 %v1125
        %v1155 = vunpack.c.l.b16 %v1126
        %v1156 = vunpack.c.h.b16 %v1126
        %v1157 = vunpack.c.l.b16 %v1127
        %v1158 = vunpack.c.l.b16 %v1128
        %v1159 = vunpack.c.h.b16 %v1128
        %v1160 = vunpack.c.l.b16 %v1129
        %v1161 = vunpack.c.l.b16 %v1130
        %v1162 = vunpack.c.h.b16 %v1130
        %v1163 = vunpack.c.l.b16 %v1131
        %v1164 = vunpack.c.l.b16 %v1132
        %v1165 = vunpack.c.h.b16 %v1132
        %v1166 = vunpack.c.l.b16 %v1133
        %v1167 = vunpack.c.l.b16 %v1134
        %v1168 = vunpack.c.h.b16 %v1134
        %v1169 = vunpack.c.l.b16 %v1135
        %v1170 = vunpack.c.l.b16 %v1136
        %v1171 = vunpack.c.h.b16 %v1136
        %v1172 = vunpack.c.l.b16 %v1137
        %v1173 = vpack.c.b16 %v1155, %v1152
        %v1174 = vpack.c.b16 %v1156, %v1153
        %v1175 = vpack.c.b16 %v1157, %v1154
        %v1176 = vpack.c.b16 %v1161, %v1158
        %v1177 = vpack.c.b16 %v1162, %v1159
        %v1178 = vpack.c.b16 %v1163, %v1160
        %v1179 = vpack.c.b16 %v1167, %v1164
        %v1180 = vpack.c.b16 %v1168, %v1165
        %v1181 = vpack.c.b16 %v1169, %v1166
        %v1182 = vpack.c.b16 %v1170, %v1170
        %v1183 = vpack.c.b16 %v1171, %v1171
        %v1184 = vpack.c.b16 %v1172, %v1172
        %1197 = vmatprep.subr.bf16.mxu0 0
        %1198 = vmatpush1.bf16.msra.mxu0 %v501
        %1199 = vmatprep.subr.bf16.mxu0 0
        %1200 = vmatpush1.bf16.msra.mxu0 %v500
        %1201 = vmatprep.subr.bf16.mxu0 0
        %1202 = vmatpush1.bf16.msra.mxu0 %v499
        %1203 = vmatprep.subr.bf16.mxu0 0
        %1204 = vmatpush1.bf16.msra.mxu0 %v498
        %1205 = vmatprep.subr.bf16.mxu0 0
        %1206 = vmatpush1.bf16.msra.mxu0 %v497
        %1207 = vmatprep.subr.bf16.mxu0 0
        %1208 = vmatpush1.bf16.msra.mxu0 %v496
        %1209 = vmatprep.subr.bf16.mxu0 0
        %1210 = vmatpush1.bf16.msra.mxu0 %v495
        %1211 = vmatprep.subr.bf16.mxu0 0
        %1212 = vmatpush1.bf16.msra.mxu0 %v494
        %1213 = vmatprep.subr.bf16.mxu0 0
        %1214 = vmatpush2.bf16.msra.mxu0 %v509
        %1215 = vmatprep.subr.bf16.mxu0 0
        %1216 = vmatpush2.bf16.msra.mxu0 %v508
        %1217 = vmatprep.subr.bf16.mxu0 0
        %1218 = vmatpush2.bf16.msra.mxu0 %v507
        %1219 = vmatprep.subr.bf16.mxu0 0
        %1220 = vmatpush2.bf16.msra.mxu0 %v506
        %1221 = vmatprep.subr.bf16.mxu0 0
        %1222 = vmatpush2.bf16.msra.mxu0 %v505
        %1223 = vmatprep.subr.bf16.mxu0 0
        %1224 = vmatpush2.bf16.msra.mxu0 %v504
        %1225 = vmatprep.subr.bf16.mxu0 0
        %1226 = vmatpush2.bf16.msra.mxu0 %v503
        %1227 = vmatprep.subr.bf16.mxu0 0
        %1228 = vmatpush2.bf16.msra.mxu0 %v502
        %1229 = vmatprep.mubr.bf16.mxu0 %v1174
        %1230 = vmatmul.mubr.bf16.gmra.mxu0 %v1173
        %v1231 = vpop.f32.mrf.mxu0
        %v1232 = vadd.f32 0.0, %v1231
        %v1233 = vpop.f32.mrf.mxu0
        %v1234 = vpop.f32.mrf.mxu0
        %v1235 = vadd.f32 0.0, %v1234
        %v1236 = vpop.f32.mrf.mxu0
        %1237 = vmatprep.mubr.bf16.mxu0 %v1177
        %1238 = vmatmul.mubr.bf16.gmra.mxu0 %v1176
        %v1239 = vpop.f32.mrf.mxu0
        %v1240 = vadd.f32 0.0, %v1239
        %v1241 = vpop.f32.mrf.mxu0
        %v1242 = vpop.f32.mrf.mxu0
        %v1243 = vadd.f32 0.0, %v1242
        %v1244 = vpop.f32.mrf.mxu0
        %1245 = vmatprep.mubr.bf16.mxu0 %v1180
        %1246 = vmatmul.mubr.bf16.gmra.mxu0 %v1179
        %v1247 = vpop.f32.mrf.mxu0
        %v1248 = vadd.f32 0.0, %v1247
        %v1249 = vpop.f32.mrf.mxu0
        %v1250 = vpop.f32.mrf.mxu0
        %v1251 = vadd.f32 0.0, %v1250
        %v1252 = vpop.f32.mrf.mxu0
        %1253 = vmatprep.mubr.bf16.mxu0 %v1183
        %1254 = vmatmul.mubr.bf16.gmra.mxu0 %v1182
        %v1255 = vpop.f32.mrf.mxu0
        %v1256 = vadd.f32 0.0, %v1255
        %v1257 = vpop.f32.mrf.mxu0
        %v1258 = vpop.f32.mrf.mxu0
        %v1259 = vpop.f32.mrf.mxu0
        %1260 = vdwg.mxu0
        %1261 = vmatprep.subr.bf16.mxu0 0
        %1262 = vmatpush1.bf16.msra.mxu0 %v517
        %1263 = vmatprep.subr.bf16.mxu0 0
        %1264 = vmatpush1.bf16.msra.mxu0 %v516
        %1265 = vmatprep.subr.bf16.mxu0 0
        %1266 = vmatpush1.bf16.msra.mxu0 %v515
        %1267 = vmatprep.subr.bf16.mxu0 0
        %1268 = vmatpush1.bf16.msra.mxu0 %v514
        %1269 = vmatprep.subr.bf16.mxu0 0
        %1270 = vmatpush1.bf16.msra.mxu0 %v513
        %1271 = vmatprep.subr.bf16.mxu0 0
        %1272 = vmatpush1.bf16.msra.mxu0 %v512
        %1273 = vmatprep.subr.bf16.mxu0 0
        %1274 = vmatpush1.bf16.msra.mxu0 %v511
        %1275 = vmatprep.subr.bf16.mxu0 0
        %1276 = vmatpush1.bf16.msra.mxu0 %v510
        %1277 = vmatprep.subr.bf16.mxu0 0
        %1278 = vmatpush2.bf16.msra.mxu0 0
        %1279 = vmatprep.subr.bf16.mxu0 0
        %1280 = vmatpush2.bf16.msra.mxu0 0
        %1281 = vmatprep.subr.bf16.mxu0 0
        %1282 = vmatpush2.bf16.msra.mxu0 0
        %1283 = vmatprep.subr.bf16.mxu0 0
        %1284 = vmatpush2.bf16.msra.mxu0 0
        %1285 = vmatprep.subr.bf16.mxu0 0
        %1286 = vmatpush2.bf16.msra.mxu0 0
        %1287 = vmatprep.subr.bf16.mxu0 0
        %1288 = vmatpush2.bf16.msra.mxu0 0
        %1289 = vmatprep.subr.bf16.mxu0 0
        %1290 = vmatpush2.bf16.msra.mxu0 0
        %1291 = vmatprep.subr.bf16.mxu0 0
        %1292 = vmatpush2.bf16.msra.mxu0 0
        %1293 = vmatprep.mubr.bf16.mxu0 0
        %1294 = vmatmul.mubr.bf16.gmra.mxu0 %v1175
        %v1295 = vpop.f32.mrf.mxu0
        %v1296 = vadd.f32 %v1232, %v1295
        %v1297 = vpop.f32.mrf.mxu0
        %v1298 = vpop.f32.mrf.mxu0
        %v1299 = vadd.f32 %v1235, %v1298
        %v1300 = vpop.f32.mrf.mxu0
        %1301 = vmatprep.mubr.bf16.mxu0 0
        %1302 = vmatmul.mubr.bf16.gmra.mxu0 %v1178
        %v1303 = vpop.f32.mrf.mxu0
        %v1304 = vadd.f32 %v1240, %v1303
        %v1305 = vpop.f32.mrf.mxu0
        %v1306 = vpop.f32.mrf.mxu0
        %v1307 = vadd.f32 %v1243, %v1306
        %v1308 = vpop.f32.mrf.mxu0
        %1309 = vmatprep.mubr.bf16.mxu0 0
        %1310 = vmatmul.mubr.bf16.gmra.mxu0 %v1181
        %v1311 = vpop.f32.mrf.mxu0
        %v1312 = vadd.f32 %v1248, %v1311
        %v1313 = vpop.f32.mrf.mxu0
        %v1314 = vpop.f32.mrf.mxu0
        %v1315 = vadd.f32 %v1251, %v1314
        %v1316 = vpop.f32.mrf.mxu0
        %1317 = vmatprep.mubr.bf16.mxu0 0
        %1318 = vmatmul.mubr.bf16.gmra.mxu0 %v1184
        %v1319 = vpop.f32.mrf.mxu0
        %v1320 = vadd.f32 %v1256, %v1319
        %v1321 = vpop.f32.mrf.mxu0
        %v1322 = vpop.f32.mrf.mxu0
        %v1323 = vpop.f32.mrf.mxu0
        %1324 = vdwg.mxu0
        %v1325 = vld [vmem:[#allocation2] sm:$0xff]
        %v1326 = vld [vmem:[#allocation2 + $0x8] sm:$0xff]
        %v1327 = vld [vmem:[#allocation2 + $0x10] sm:$0xff]
        %v1328 = vld [vmem:[#allocation2 + $0x18] sm:$0xff]
        %v1329 = vld [vmem:[#allocation2 + $0x20] sm:$0xff]
        %v1330 = vld [vmem:[#allocation2 + $0x28] sm:$0xff]
        %v1331 = vld [vmem:[#allocation2 + $0x30] sm:$0x1]
        %v1332 = vmax.f32 %v1325, %v1296
        %v1333 = vmax.f32 %v1326, %v1299
        %v1334 = vmax.f32 %v1327, %v1304
        %v1335 = vmax.f32 %v1328, %v1307
        %v1336 = vmax.f32 %v1329, %v1312
        %v1337 = vmax.f32 %v1330, %v1315
        %v1338 = vmax.f32 %v1331, %v1320
        %1339 = vst [vmem:[#allocation2] sm:$0xff] %v1332
        %1340 = vst [vmem:[#allocation2 + $0x8] sm:$0xff] %v1333
        %1341 = vst [vmem:[#allocation2 + $0x10] sm:$0xff] %v1334
        %1342 = vst [vmem:[#allocation2 + $0x18] sm:$0xff] %v1335
        %1343 = vst [vmem:[#allocation2 + $0x20] sm:$0xff] %v1336
        %1344 = vst [vmem:[#allocation2 + $0x28] sm:$0xff] %v1337
        %1345 = vst [vmem:[#allocation2 + $0x30] sm:$0x1] %v1338
        %s1346 = scalar_lea.vmem %s275, 336
        %v1347 = vld [vmem:[%s1346] sm:$0xff]
        %v1348 = vld [vmem:[%s1346 + $0x8] sm:$0xf]
        %v1349 = vld [vmem:[%s1346 + $0xc] sm:$0xff]
        %v1350 = vld [vmem:[%s1346 + $0x14] sm:$0xf]
        %v1351 = vld [vmem:[%s1346 + $0x18] sm:$0xff]
        %v1352 = vld [vmem:[%s1346 + $0x20] sm:$0xf]
        %v1353 = vld [vmem:[%s1346 + $0x24] sm:$0xff]
        %v1354 = vld [vmem:[%s1346 + $0x2c] sm:$0xf]
        %v1355 = vld [vmem:[%s1346 + $0x30] sm:$0xff]
        %v1356 = vld [vmem:[%s1346 + $0x38] sm:$0xf]
        %v1357 = vld [vmem:[%s1346 + $0x3c] sm:$0xff]
        %v1358 = vld [vmem:[%s1346 + $0x44] sm:$0xf]
        %v1359 = vld [vmem:[%s1346 + $0x48] sm:$0x11]
        %v1360 = vld [vmem:[%s1346 + $0x50] sm:$0x1]
        %v1375 = vunpack.c.l.b16 %v1347
        %v1376 = vunpack.c.h.b16 %v1347
        %v1377 = vunpack.c.l.b16 %v1348
        %v1378 = vunpack.c.l.b16 %v1349
        %v1379 = vunpack.c.h.b16 %v1349
        %v1380 = vunpack.c.l.b16 %v1350
        %v1381 = vunpack.c.l.b16 %v1351
        %v1382 = vunpack.c.h.b16 %v1351
        %v1383 = vunpack.c.l.b16 %v1352
        %v1384 = vunpack.c.l.b16 %v1353
        %v1385 = vunpack.c.h.b16 %v1353
        %v1386 = vunpack.c.l.b16 %v1354
        %v1387 = vunpack.c.l.b16 %v1355
        %v1388 = vunpack.c.h.b16 %v1355
        %v1389 = vunpack.c.l.b16 %v1356
        %v1390 = vunpack.c.l.b16 %v1357
        %v1391 = vunpack.c.h.b16 %v1357
        %v1392 = vunpack.c.l.b16 %v1358
        %v1393 = vunpack.c.l.b16 %v1359
        %v1394 = vunpack.c.h.b16 %v1359
        %v1395 = vunpack.c.l.b16 %v1360
        %v1396 = vpack.c.b16 %v1378, %v1375
        %v1397 = vpack.c.b16 %v1379, %v1376
        %v1398 = vpack.c.b16 %v1380, %v1377
        %v1399 = vpack.c.b16 %v1384, %v1381
        %v1400 = vpack.c.b16 %v1385, %v1382
        %v1401 = vpack.c.b16 %v1386, %v1383
        %v1402 = vpack.c.b16 %v1390, %v1387
        %v1403 = vpack.c.b16 %v1391, %v1388
        %v1404 = vpack.c.b16 %v1392, %v1389
        %v1405 = vpack.c.b16 %v1393, %v1393
        %v1406 = vpack.c.b16 %v1394, %v1394
        %v1407 = vpack.c.b16 %v1395, %v1395
        %1420 = vmatprep.subr.bf16.mxu0 0
        %1421 = vmatpush1.bf16.msra.mxu0 %v501
        %1422 = vmatprep.subr.bf16.mxu0 0
        %1423 = vmatpush1.bf16.msra.mxu0 %v500
        %1424 = vmatprep.subr.bf16.mxu0 0
        %1425 = vmatpush1.bf16.msra.mxu0 %v499
        %1426 = vmatprep.subr.bf16.mxu0 0
        %1427 = vmatpush1.bf16.msra.mxu0 %v498
        %1428 = vmatprep.subr.bf16.mxu0 0
        %1429 = vmatpush1.bf16.msra.mxu0 %v497
        %1430 = vmatprep.subr.bf16.mxu0 0
        %1431 = vmatpush1.bf16.msra.mxu0 %v496
        %1432 = vmatprep.subr.bf16.mxu0 0
        %1433 = vmatpush1.bf16.msra.mxu0 %v495
        %1434 = vmatprep.subr.bf16.mxu0 0
        %1435 = vmatpush1.bf16.msra.mxu0 %v494
        %1436 = vmatprep.subr.bf16.mxu0 0
        %1437 = vmatpush2.bf16.msra.mxu0 %v509
        %1438 = vmatprep.subr.bf16.mxu0 0
        %1439 = vmatpush2.bf16.msra.mxu0 %v508
        %1440 = vmatprep.subr.bf16.mxu0 0
        %1441 = vmatpush2.bf16.msra.mxu0 %v507
        %1442 = vmatprep.subr.bf16.mxu0 0
        %1443 = vmatpush2.bf16.msra.mxu0 %v506
        %1444 = vmatprep.subr.bf16.mxu0 0
        %1445 = vmatpush2.bf16.msra.mxu0 %v505
        %1446 = vmatprep.subr.bf16.mxu0 0
        %1447 = vmatpush2.bf16.msra.mxu0 %v504
        %1448 = vmatprep.subr.bf16.mxu0 0
        %1449 = vmatpush2.bf16.msra.mxu0 %v503
        %1450 = vmatprep.subr.bf16.mxu0 0
        %1451 = vmatpush2.bf16.msra.mxu0 %v502
        %1452 = vmatprep.mubr.bf16.mxu0 %v1397
        %1453 = vmatmul.mubr.bf16.gmra.mxu0 %v1396
        %v1454 = vpop.f32.mrf.mxu0
        %v1455 = vadd.f32 0.0, %v1454
        %v1456 = vpop.f32.mrf.mxu0
        %v1457 = vpop.f32.mrf.mxu0
        %v1458 = vadd.f32 0.0, %v1457
        %v1459 = vpop.f32.mrf.mxu0
        %1460 = vmatprep.mubr.bf16.mxu0 %v1400
        %1461 = vmatmul.mubr.bf16.gmra.mxu0 %v1399
        %v1462 = vpop.f32.mrf.mxu0
        %v1463 = vadd.f32 0.0, %v1462
        %v1464 = vpop.f32.mrf.mxu0
        %v1465 = vpop.f32.mrf.mxu0
        %v1466 = vadd.f32 0.0, %v1465
        %v1467 = vpop.f32.mrf.mxu0
        %1468 = vmatprep.mubr.bf16.mxu0 %v1403
        %1469 = vmatmul.mubr.bf16.gmra.mxu0 %v1402
        %v1470 = vpop.f32.mrf.mxu0
        %v1471 = vadd.f32 0.0, %v1470
        %v1472 = vpop.f32.mrf.mxu0
        %v1473 = vpop.f32.mrf.mxu0
        %v1474 = vadd.f32 0.0, %v1473
        %v1475 = vpop.f32.mrf.mxu0
        %1476 = vmatprep.mubr.bf16.mxu0 %v1406
        %1477 = vmatmul.mubr.bf16.gmra.mxu0 %v1405
        %v1478 = vpop.f32.mrf.mxu0
        %v1479 = vadd.f32 0.0, %v1478
        %v1480 = vpop.f32.mrf.mxu0
        %v1481 = vpop.f32.mrf.mxu0
        %v1482 = vpop.f32.mrf.mxu0
        %1483 = vdwg.mxu0
        %1484 = vmatprep.subr.bf16.mxu0 0
        %1485 = vmatpush1.bf16.msra.mxu0 %v517
        %1486 = vmatprep.subr.bf16.mxu0 0
        %1487 = vmatpush1.bf16.msra.mxu0 %v516
        %1488 = vmatprep.subr.bf16.mxu0 0
        %1489 = vmatpush1.bf16.msra.mxu0 %v515
        %1490 = vmatprep.subr.bf16.mxu0 0
        %1491 = vmatpush1.bf16.msra.mxu0 %v514
        %1492 = vmatprep.subr.bf16.mxu0 0
        %1493 = vmatpush1.bf16.msra.mxu0 %v513
        %1494 = vmatprep.subr.bf16.mxu0 0
        %1495 = vmatpush1.bf16.msra.mxu0 %v512
        %1496 = vmatprep.subr.bf16.mxu0 0
        %1497 = vmatpush1.bf16.msra.mxu0 %v511
        %1498 = vmatprep.subr.bf16.mxu0 0
        %1499 = vmatpush1.bf16.msra.mxu0 %v510
        %1500 = vmatprep.subr.bf16.mxu0 0
        %1501 = vmatpush2.bf16.msra.mxu0 0
        %1502 = vmatprep.subr.bf16.mxu0 0
        %1503 = vmatpush2.bf16.msra.mxu0 0
        %1504 = vmatprep.subr.bf16.mxu0 0
        %1505 = vmatpush2.bf16.msra.mxu0 0
        %1506 = vmatprep.subr.bf16.mxu0 0
        %1507 = vmatpush2.bf16.msra.mxu0 0
        %1508 = vmatprep.subr.bf16.mxu0 0
        %1509 = vmatpush2.bf16.msra.mxu0 0
        %1510 = vmatprep.subr.bf16.mxu0 0
        %1511 = vmatpush2.bf16.msra.mxu0 0
        %1512 = vmatprep.subr.bf16.mxu0 0
        %1513 = vmatpush2.bf16.msra.mxu0 0
        %1514 = vmatprep.subr.bf16.mxu0 0
        %1515 = vmatpush2.bf16.msra.mxu0 0
        %1516 = vmatprep.mubr.bf16.mxu0 0
        %1517 = vmatmul.mubr.bf16.gmra.mxu0 %v1398
        %v1518 = vpop.f32.mrf.mxu0
        %v1519 = vadd.f32 %v1455, %v1518
        %v1520 = vpop.f32.mrf.mxu0
        %v1521 = vpop.f32.mrf.mxu0
        %v1522 = vadd.f32 %v1458, %v1521
        %v1523 = vpop.f32.mrf.mxu0
        %1524 = vmatprep.mubr.bf16.mxu0 0
        %1525 = vmatmul.mubr.bf16.gmra.mxu0 %v1401
        %v1526 = vpop.f32.mrf.mxu0
        %v1527 = vadd.f32 %v1463, %v1526
        %v1528 = vpop.f32.mrf.mxu0
        %v1529 = vpop.f32.mrf.mxu0
        %v1530 = vadd.f32 %v1466, %v1529
        %v1531 = vpop.f32.mrf.mxu0
        %1532 = vmatprep.mubr.bf16.mxu0 0
        %1533 = vmatmul.mubr.bf16.gmra.mxu0 %v1404
        %v1534 = vpop.f32.mrf.mxu0
        %v1535 = vadd.f32 %v1471, %v1534
        %v1536 = vpop.f32.mrf.mxu0
        %v1537 = vpop.f32.mrf.mxu0
        %v1538 = vadd.f32 %v1474, %v1537
        %v1539 = vpop.f32.mrf.mxu0
        %1540 = vmatprep.mubr.bf16.mxu0 0
        %1541 = vmatmul.mubr.bf16.gmra.mxu0 %v1407
        %v1542 = vpop.f32.mrf.mxu0
        %v1543 = vadd.f32 %v1479, %v1542
        %v1544 = vpop.f32.mrf.mxu0
        %v1545 = vpop.f32.mrf.mxu0
        %v1546 = vpop.f32.mrf.mxu0
        %1547 = vdwg.mxu0
        %v1548 = vld [vmem:[#allocation2] sm:$0xff]
        %v1549 = vld [vmem:[#allocation2 + $0x8] sm:$0xff]
        %v1550 = vld [vmem:[#allocation2 + $0x10] sm:$0xff]
        %v1551 = vld [vmem:[#allocation2 + $0x18] sm:$0xff]
        %v1552 = vld [vmem:[#allocation2 + $0x20] sm:$0xff]
        %v1553 = vld [vmem:[#allocation2 + $0x28] sm:$0xff]
        %v1554 = vld [vmem:[#allocation2 + $0x30] sm:$0x1]
        %v1555 = vmax.f32 %v1548, %v1519
        %v1556 = vmax.f32 %v1549, %v1522
        %v1557 = vmax.f32 %v1550, %v1527
        %v1558 = vmax.f32 %v1551, %v1530
        %v1559 = vmax.f32 %v1552, %v1535
        %v1560 = vmax.f32 %v1553, %v1538
        %v1561 = vmax.f32 %v1554, %v1543
        %1562 = vst [vmem:[#allocation2] sm:$0xff] %v1555
        %1563 = vst [vmem:[#allocation2 + $0x8] sm:$0xff] %v1556
        %1564 = vst [vmem:[#allocation2 + $0x10] sm:$0xff] %v1557
        %1565 = vst [vmem:[#allocation2 + $0x18] sm:$0xff] %v1558
        %1566 = vst [vmem:[#allocation2 + $0x20] sm:$0xff] %v1559
        %1567 = vst [vmem:[#allocation2 + $0x28] sm:$0xff] %v1560
        %1568 = vst [vmem:[#allocation2 + $0x30] sm:$0x1] %v1561
        %s1569 = scalar_lea.vmem %s275, 420
        %v1570 = vld [vmem:[%s1569] sm:$0xff]
        %v1571 = vld [vmem:[%s1569 + $0x8] sm:$0xf]
        %v1572 = vld [vmem:[%s1569 + $0xc] sm:$0xff]
        %v1573 = vld [vmem:[%s1569 + $0x14] sm:$0xf]
        %v1574 = vld [vmem:[%s1569 + $0x18] sm:$0xff]
        %v1575 = vld [vmem:[%s1569 + $0x20] sm:$0xf]
        %v1576 = vld [vmem:[%s1569 + $0x24] sm:$0xff]
        %v1577 = vld [vmem:[%s1569 + $0x2c] sm:$0xf]
        %v1578 = vld [vmem:[%s1569 + $0x30] sm:$0xff]
        %v1579 = vld [vmem:[%s1569 + $0x38] sm:$0xf]
        %v1580 = vld [vmem:[%s1569 + $0x3c] sm:$0xff]
        %v1581 = vld [vmem:[%s1569 + $0x44] sm:$0xf]
        %v1582 = vld [vmem:[%s1569 + $0x48] sm:$0x11]
        %v1583 = vld [vmem:[%s1569 + $0x50] sm:$0x1]
        %v1598 = vunpack.c.l.b16 %v1570
        %v1599 = vunpack.c.h.b16 %v1570
        %v1600 = vunpack.c.l.b16 %v1571
        %v1601 = vunpack.c.l.b16 %v1572
        %v1602 = vunpack.c.h.b16 %v1572
        %v1603 = vunpack.c.l.b16 %v1573
        %v1604 = vunpack.c.l.b16 %v1574
        %v1605 = vunpack.c.h.b16 %v1574
        %v1606 = vunpack.c.l.b16 %v1575
        %v1607 = vunpack.c.l.b16 %v1576
        %v1608 = vunpack.c.h.b16 %v1576
        %v1609 = vunpack.c.l.b16 %v1577
        %v1610 = vunpack.c.l.b16 %v1578
        %v1611 = vunpack.c.h.b16 %v1578
        %v1612 = vunpack.c.l.b16 %v1579
        %v1613 = vunpack.c.l.b16 %v1580
        %v1614 = vunpack.c.h.b16 %v1580
        %v1615 = vunpack.c.l.b16 %v1581
        %v1616 = vunpack.c.l.b16 %v1582
        %v1617 = vunpack.c.h.b16 %v1582
        %v1618 = vunpack.c.l.b16 %v1583
        %v1619 = vpack.c.b16 %v1601, %v1598
        %v1620 = vpack.c.b16 %v1602, %v1599
        %v1621 = vpack.c.b16 %v1603, %v1600
        %v1622 = vpack.c.b16 %v1607, %v1604
        %v1623 = vpack.c.b16 %v1608, %v1605
        %v1624 = vpack.c.b16 %v1609, %v1606
        %v1625 = vpack.c.b16 %v1613, %v1610
        %v1626 = vpack.c.b16 %v1614, %v1611
        %v1627 = vpack.c.b16 %v1615, %v1612
        %v1628 = vpack.c.b16 %v1616, %v1616
        %v1629 = vpack.c.b16 %v1617, %v1617
        %v1630 = vpack.c.b16 %v1618, %v1618
        %1643 = vmatprep.subr.bf16.mxu0 0
        %1644 = vmatpush1.bf16.msra.mxu0 %v501
        %1645 = vmatprep.subr.bf16.mxu0 0
        %1646 = vmatpush1.bf16.msra.mxu0 %v500
        %1647 = vmatprep.subr.bf16.mxu0 0
        %1648 = vmatpush1.bf16.msra.mxu0 %v499
        %1649 = vmatprep.subr.bf16.mxu0 0
        %1650 = vmatpush1.bf16.msra.mxu0 %v498
        %1651 = vmatprep.subr.bf16.mxu0 0
        %1652 = vmatpush1.bf16.msra.mxu0 %v497
        %1653 = vmatprep.subr.bf16.mxu0 0
        %1654 = vmatpush1.bf16.msra.mxu0 %v496
        %1655 = vmatprep.subr.bf16.mxu0 0
        %1656 = vmatpush1.bf16.msra.mxu0 %v495
        %1657 = vmatprep.subr.bf16.mxu0 0
        %1658 = vmatpush1.bf16.msra.mxu0 %v494
        %1659 = vmatprep.subr.bf16.mxu0 0
        %1660 = vmatpush2.bf16.msra.mxu0 %v509
        %1661 = vmatprep.subr.bf16.mxu0 0
        %1662 = vmatpush2.bf16.msra.mxu0 %v508
        %1663 = vmatprep.subr.bf16.mxu0 0
        %1664 = vmatpush2.bf16.msra.mxu0 %v507
        %1665 = vmatprep.subr.bf16.mxu0 0
        %1666 = vmatpush2.bf16.msra.mxu0 %v506
        %1667 = vmatprep.subr.bf16.mxu0 0
        %1668 = vmatpush2.bf16.msra.mxu0 %v505
        %1669 = vmatprep.subr.bf16.mxu0 0
        %1670 = vmatpush2.bf16.msra.mxu0 %v504
        %1671 = vmatprep.subr.bf16.mxu0 0
        %1672 = vmatpush2.bf16.msra.mxu0 %v503
        %1673 = vmatprep.subr.bf16.mxu0 0
        %1674 = vmatpush2.bf16.msra.mxu0 %v502
        %1675 = vmatprep.mubr.bf16.mxu0 %v1620
        %1676 = vmatmul.mubr.bf16.gmra.mxu0 %v1619
        %v1677 = vpop.f32.mrf.mxu0
        %v1678 = vadd.f32 0.0, %v1677
        %v1679 = vpop.f32.mrf.mxu0
        %v1680 = vpop.f32.mrf.mxu0
        %v1681 = vadd.f32 0.0, %v1680
        %v1682 = vpop.f32.mrf.mxu0
        %1683 = vmatprep.mubr.bf16.mxu0 %v1623
        %1684 = vmatmul.mubr.bf16.gmra.mxu0 %v1622
        %v1685 = vpop.f32.mrf.mxu0
        %v1686 = vadd.f32 0.0, %v1685
        %v1687 = vpop.f32.mrf.mxu0
        %v1688 = vpop.f32.mrf.mxu0
        %v1689 = vadd.f32 0.0, %v1688
        %v1690 = vpop.f32.mrf.mxu0
        %1691 = vmatprep.mubr.bf16.mxu0 %v1626
        %1692 = vmatmul.mubr.bf16.gmra.mxu0 %v1625
        %v1693 = vpop.f32.mrf.mxu0
        %v1694 = vadd.f32 0.0, %v1693
        %v1695 = vpop.f32.mrf.mxu0
        %v1696 = vpop.f32.mrf.mxu0
        %v1697 = vadd.f32 0.0, %v1696
        %v1698 = vpop.f32.mrf.mxu0
        %1699 = vmatprep.mubr.bf16.mxu0 %v1629
        %1700 = vmatmul.mubr.bf16.gmra.mxu0 %v1628
        %v1701 = vpop.f32.mrf.mxu0
        %v1702 = vadd.f32 0.0, %v1701
        %v1703 = vpop.f32.mrf.mxu0
        %v1704 = vpop.f32.mrf.mxu0
        %v1705 = vpop.f32.mrf.mxu0
        %1706 = vdwg.mxu0
        %1707 = vmatprep.subr.bf16.mxu0 0
        %1708 = vmatpush1.bf16.msra.mxu0 %v517
        %1709 = vmatprep.subr.bf16.mxu0 0
        %1710 = vmatpush1.bf16.msra.mxu0 %v516
        %1711 = vmatprep.subr.bf16.mxu0 0
        %1712 = vmatpush1.bf16.msra.mxu0 %v515
        %1713 = vmatprep.subr.bf16.mxu0 0
        %1714 = vmatpush1.bf16.msra.mxu0 %v514
        %1715 = vmatprep.subr.bf16.mxu0 0
        %1716 = vmatpush1.bf16.msra.mxu0 %v513
        %1717 = vmatprep.subr.bf16.mxu0 0
        %1718 = vmatpush1.bf16.msra.mxu0 %v512
        %1719 = vmatprep.subr.bf16.mxu0 0
        %1720 = vmatpush1.bf16.msra.mxu0 %v511
        %1721 = vmatprep.subr.bf16.mxu0 0
        %1722 = vmatpush1.bf16.msra.mxu0 %v510
        %1723 = vmatprep.subr.bf16.mxu0 0
        %1724 = vmatpush2.bf16.msra.mxu0 0
        %1725 = vmatprep.subr.bf16.mxu0 0
        %1726 = vmatpush2.bf16.msra.mxu0 0
        %1727 = vmatprep.subr.bf16.mxu0 0
        %1728 = vmatpush2.bf16.msra.mxu0 0
        %1729 = vmatprep.subr.bf16.mxu0 0
        %1730 = vmatpush2.bf16.msra.mxu0 0
        %1731 = vmatprep.subr.bf16.mxu0 0
        %1732 = vmatpush2.bf16.msra.mxu0 0
        %1733 = vmatprep.subr.bf16.mxu0 0
        %1734 = vmatpush2.bf16.msra.mxu0 0
        %1735 = vmatprep.subr.bf16.mxu0 0
        %1736 = vmatpush2.bf16.msra.mxu0 0
        %1737 = vmatprep.subr.bf16.mxu0 0
        %1738 = vmatpush2.bf16.msra.mxu0 0
        %1739 = vmatprep.mubr.bf16.mxu0 0
        %1740 = vmatmul.mubr.bf16.gmra.mxu0 %v1621
        %v1741 = vpop.f32.mrf.mxu0
        %v1742 = vadd.f32 %v1678, %v1741
        %v1743 = vpop.f32.mrf.mxu0
        %v1744 = vpop.f32.mrf.mxu0
        %v1745 = vadd.f32 %v1681, %v1744
        %v1746 = vpop.f32.mrf.mxu0
        %1747 = vmatprep.mubr.bf16.mxu0 0
        %1748 = vmatmul.mubr.bf16.gmra.mxu0 %v1624
        %v1749 = vpop.f32.mrf.mxu0
        %v1750 = vadd.f32 %v1686, %v1749
        %v1751 = vpop.f32.mrf.mxu0
        %v1752 = vpop.f32.mrf.mxu0
        %v1753 = vadd.f32 %v1689, %v1752
        %v1754 = vpop.f32.mrf.mxu0
        %1755 = vmatprep.mubr.bf16.mxu0 0
        %1756 = vmatmul.mubr.bf16.gmra.mxu0 %v1627
        %v1757 = vpop.f32.mrf.mxu0
        %v1758 = vadd.f32 %v1694, %v1757
        %v1759 = vpop.f32.mrf.mxu0
        %v1760 = vpop.f32.mrf.mxu0
        %v1761 = vadd.f32 %v1697, %v1760
        %v1762 = vpop.f32.mrf.mxu0
        %1763 = vmatprep.mubr.bf16.mxu0 0
        %1764 = vmatmul.mubr.bf16.gmra.mxu0 %v1630
        %v1765 = vpop.f32.mrf.mxu0
        %v1766 = vadd.f32 %v1702, %v1765
        %v1767 = vpop.f32.mrf.mxu0
        %v1768 = vpop.f32.mrf.mxu0
        %v1769 = vpop.f32.mrf.mxu0
        %1770 = vdwg.mxu0
        %v1771 = vld [vmem:[#allocation2] sm:$0xff]
        %v1772 = vld [vmem:[#allocation2 + $0x8] sm:$0xff]
        %v1773 = vld [vmem:[#allocation2 + $0x10] sm:$0xff]
        %v1774 = vld [vmem:[#allocation2 + $0x18] sm:$0xff]
        %v1775 = vld [vmem:[#allocation2 + $0x20] sm:$0xff]
        %v1776 = vld [vmem:[#allocation2 + $0x28] sm:$0xff]
        %v1777 = vld [vmem:[#allocation2 + $0x30] sm:$0x1]
        %v1778 = vmax.f32 %v1771, %v1742
        %v1779 = vmax.f32 %v1772, %v1745
        %v1780 = vmax.f32 %v1773, %v1750
        %v1781 = vmax.f32 %v1774, %v1753
        %v1782 = vmax.f32 %v1775, %v1758
        %v1783 = vmax.f32 %v1776, %v1761
        %v1784 = vmax.f32 %v1777, %v1766
        %1785 = vst [vmem:[#allocation2] sm:$0xff] %v1778
        %1786 = vst [vmem:[#allocation2 + $0x8] sm:$0xff] %v1779
        %1787 = vst [vmem:[#allocation2 + $0x10] sm:$0xff] %v1780
        %1788 = vst [vmem:[#allocation2 + $0x18] sm:$0xff] %v1781
        %1789 = vst [vmem:[#allocation2 + $0x20] sm:$0xff] %v1782
        %1790 = vst [vmem:[#allocation2 + $0x28] sm:$0xff] %v1783
        %1791 = vst [vmem:[#allocation2 + $0x30] sm:$0x1] %v1784
        %s1792 = scalar_lea.vmem %s275, 504
        %v1793 = vld [vmem:[%s1792] sm:$0xff]
        %v1794 = vld [vmem:[%s1792 + $0x8] sm:$0xf]
        %v1795 = vld [vmem:[%s1792 + $0xc] sm:$0xff]
        %v1796 = vld [vmem:[%s1792 + $0x14] sm:$0xf]
        %v1797 = vld [vmem:[%s1792 + $0x18] sm:$0xff]
        %v1798 = vld [vmem:[%s1792 + $0x20] sm:$0xf]
        %v1799 = vld [vmem:[%s1792 + $0x24] sm:$0xff]
        %v1800 = vld [vmem:[%s1792 + $0x2c] sm:$0xf]
        %v1801 = vld [vmem:[%s1792 + $0x30] sm:$0xff]
        %v1802 = vld [vmem:[%s1792 + $0x38] sm:$0xf]
        %v1803 = vld [vmem:[%s1792 + $0x3c] sm:$0xff]
        %v1804 = vld [vmem:[%s1792 + $0x44] sm:$0xf]
        %v1805 = vld [vmem:[%s1792 + $0x48] sm:$0x11]
        %v1806 = vld [vmem:[%s1792 + $0x50] sm:$0x1]
        %v1821 = vunpack.c.l.b16 %v1793
        %v1822 = vunpack.c.h.b16 %v1793
        %v1823 = vunpack.c.l.b16 %v1794
        %v1824 = vunpack.c.l.b16 %v1795
        %v1825 = vunpack.c.h.b16 %v1795
        %v1826 = vunpack.c.l.b16 %v1796
        %v1827 = vunpack.c.l.b16 %v1797
        %v1828 = vunpack.c.h.b16 %v1797
        %v1829 = vunpack.c.l.b16 %v1798
        %v1830 = vunpack.c.l.b16 %v1799
        %v1831 = vunpack.c.h.b16 %v1799
        %v1832 = vunpack.c.l.b16 %v1800
        %v1833 = vunpack.c.l.b16 %v1801
        %v1834 = vunpack.c.h.b16 %v1801
        %v1835 = vunpack.c.l.b16 %v1802
        %v1836 = vunpack.c.l.b16 %v1803
        %v1837 = vunpack.c.h.b16 %v1803
        %v1838 = vunpack.c.l.b16 %v1804
        %v1839 = vunpack.c.l.b16 %v1805
        %v1840 = vunpack.c.h.b16 %v1805
        %v1841 = vunpack.c.l.b16 %v1806
        %v1842 = vpack.c.b16 %v1824, %v1821
        %v1843 = vpack.c.b16 %v1825, %v1822
        %v1844 = vpack.c.b16 %v1826, %v1823
        %v1845 = vpack.c.b16 %v1830, %v1827
        %v1846 = vpack.c.b16 %v1831, %v1828
        %v1847 = vpack.c.b16 %v1832, %v1829
        %v1848 = vpack.c.b16 %v1836, %v1833
        %v1849 = vpack.c.b16 %v1837, %v1834
        %v1850 = vpack.c.b16 %v1838, %v1835
        %v1851 = vpack.c.b16 %v1839, %v1839
        %v1852 = vpack.c.b16 %v1840, %v1840
        %v1853 = vpack.c.b16 %v1841, %v1841
        %1866 = vmatprep.subr.bf16.mxu0 0
        %1867 = vmatpush1.bf16.msra.mxu0 %v501
        %1868 = vmatprep.subr.bf16.mxu0 0
        %1869 = vmatpush1.bf16.msra.mxu0 %v500
        %1870 = vmatprep.subr.bf16.mxu0 0
        %1871 = vmatpush1.bf16.msra.mxu0 %v499
        %1872 = vmatprep.subr.bf16.mxu0 0
        %1873 = vmatpush1.bf16.msra.mxu0 %v498
        %1874 = vmatprep.subr.bf16.mxu0 0
        %1875 = vmatpush1.bf16.msra.mxu0 %v497
        %1876 = vmatprep.subr.bf16.mxu0 0
        %1877 = vmatpush1.bf16.msra.mxu0 %v496
        %1878 = vmatprep.subr.bf16.mxu0 0
        %1879 = vmatpush1.bf16.msra.mxu0 %v495
        %1880 = vmatprep.subr.bf16.mxu0 0
        %1881 = vmatpush1.bf16.msra.mxu0 %v494
        %1882 = vmatprep.subr.bf16.mxu0 0
        %1883 = vmatpush2.bf16.msra.mxu0 %v509
        %1884 = vmatprep.subr.bf16.mxu0 0
        %1885 = vmatpush2.bf16.msra.mxu0 %v508
        %1886 = vmatprep.subr.bf16.mxu0 0
        %1887 = vmatpush2.bf16.msra.mxu0 %v507
        %1888 = vmatprep.subr.bf16.mxu0 0
        %1889 = vmatpush2.bf16.msra.mxu0 %v506
        %1890 = vmatprep.subr.bf16.mxu0 0
        %1891 = vmatpush2.bf16.msra.mxu0 %v505
        %1892 = vmatprep.subr.bf16.mxu0 0
        %1893 = vmatpush2.bf16.msra.mxu0 %v504
        %1894 = vmatprep.subr.bf16.mxu0 0
        %1895 = vmatpush2.bf16.msra.mxu0 %v503
        %1896 = vmatprep.subr.bf16.mxu0 0
        %1897 = vmatpush2.bf16.msra.mxu0 %v502
        %1898 = vmatprep.mubr.bf16.mxu0 %v1843
        %1899 = vmatmul.mubr.bf16.gmra.mxu0 %v1842
        %v1900 = vpop.f32.mrf.mxu0
        %v1901 = vadd.f32 0.0, %v1900
        %v1902 = vpop.f32.mrf.mxu0
        %v1903 = vpop.f32.mrf.mxu0
        %v1904 = vadd.f32 0.0, %v1903
        %v1905 = vpop.f32.mrf.mxu0
        %1906 = vmatprep.mubr.bf16.mxu0 %v1846
        %1907 = vmatmul.mubr.bf16.gmra.mxu0 %v1845
        %v1908 = vpop.f32.mrf.mxu0
        %v1909 = vadd.f32 0.0, %v1908
        %v1910 = vpop.f32.mrf.mxu0
        %v1911 = vpop.f32.mrf.mxu0
        %v1912 = vadd.f32 0.0, %v1911
        %v1913 = vpop.f32.mrf.mxu0
        %1914 = vmatprep.mubr.bf16.mxu0 %v1849
        %1915 = vmatmul.mubr.bf16.gmra.mxu0 %v1848
        %v1916 = vpop.f32.mrf.mxu0
        %v1917 = vadd.f32 0.0, %v1916
        %v1918 = vpop.f32.mrf.mxu0
        %v1919 = vpop.f32.mrf.mxu0
        %v1920 = vadd.f32 0.0, %v1919
        %v1921 = vpop.f32.mrf.mxu0
        %1922 = vmatprep.mubr.bf16.mxu0 %v1852
        %1923 = vmatmul.mubr.bf16.gmra.mxu0 %v1851
        %v1924 = vpop.f32.mrf.mxu0
        %v1925 = vadd.f32 0.0, %v1924
        %v1926 = vpop.f32.mrf.mxu0
        %v1927 = vpop.f32.mrf.mxu0
        %v1928 = vpop.f32.mrf.mxu0
        %1929 = vdwg.mxu0
        %1930 = vmatprep.subr.bf16.mxu0 0
        %1931 = vmatpush1.bf16.msra.mxu0 %v517
        %1932 = vmatprep.subr.bf16.mxu0 0
        %1933 = vmatpush1.bf16.msra.mxu0 %v516
        %1934 = vmatprep.subr.bf16.mxu0 0
        %1935 = vmatpush1.bf16.msra.mxu0 %v515
        %1936 = vmatprep.subr.bf16.mxu0 0
        %1937 = vmatpush1.bf16.msra.mxu0 %v514
        %1938 = vmatprep.subr.bf16.mxu0 0
        %1939 = vmatpush1.bf16.msra.mxu0 %v513
        %1940 = vmatprep.subr.bf16.mxu0 0
        %1941 = vmatpush1.bf16.msra.mxu0 %v512
        %1942 = vmatprep.subr.bf16.mxu0 0
        %1943 = vmatpush1.bf16.msra.mxu0 %v511
        %1944 = vmatprep.subr.bf16.mxu0 0
        %1945 = vmatpush1.bf16.msra.mxu0 %v510
        %1946 = vmatprep.subr.bf16.mxu0 0
        %1947 = vmatpush2.bf16.msra.mxu0 0
        %1948 = vmatprep.subr.bf16.mxu0 0
        %1949 = vmatpush2.bf16.msra.mxu0 0
        %1950 = vmatprep.subr.bf16.mxu0 0
        %1951 = vmatpush2.bf16.msra.mxu0 0
        %1952 = vmatprep.subr.bf16.mxu0 0
        %1953 = vmatpush2.bf16.msra.mxu0 0
        %1954 = vmatprep.subr.bf16.mxu0 0
        %1955 = vmatpush2.bf16.msra.mxu0 0
        %1956 = vmatprep.subr.bf16.mxu0 0
        %1957 = vmatpush2.bf16.msra.mxu0 0
        %1958 = vmatprep.subr.bf16.mxu0 0
        %1959 = vmatpush2.bf16.msra.mxu0 0
        %1960 = vmatprep.subr.bf16.mxu0 0
        %1961 = vmatpush2.bf16.msra.mxu0 0
        %1962 = vmatprep.mubr.bf16.mxu0 0
        %1963 = vmatmul.mubr.bf16.gmra.mxu0 %v1844
        %v1964 = vpop.f32.mrf.mxu0
        %v1965 = vadd.f32 %v1901, %v1964
        %v1966 = vpop.f32.mrf.mxu0
        %v1967 = vpop.f32.mrf.mxu0
        %v1968 = vadd.f32 %v1904, %v1967
        %v1969 = vpop.f32.mrf.mxu0
        %1970 = vmatprep.mubr.bf16.mxu0 0
        %1971 = vmatmul.mubr.bf16.gmra.mxu0 %v1847
        %v1972 = vpop.f32.mrf.mxu0
        %v1973 = vadd.f32 %v1909, %v1972
        %v1974 = vpop.f32.mrf.mxu0
        %v1975 = vpop.f32.mrf.mxu0
        %v1976 = vadd.f32 %v1912, %v1975
        %v1977 = vpop.f32.mrf.mxu0
        %1978 = vmatprep.mubr.bf16.mxu0 0
        %1979 = vmatmul.mubr.bf16.gmra.mxu0 %v1850
        %v1980 = vpop.f32.mrf.mxu0
        %v1981 = vadd.f32 %v1917, %v1980
        %v1982 = vpop.f32.mrf.mxu0
        %v1983 = vpop.f32.mrf.mxu0
        %v1984 = vadd.f32 %v1920, %v1983
        %v1985 = vpop.f32.mrf.mxu0
        %1986 = vmatprep.mubr.bf16.mxu0 0
        %1987 = vmatmul.mubr.bf16.gmra.mxu0 %v1853
        %v1988 = vpop.f32.mrf.mxu0
        %v1989 = vadd.f32 %v1925, %v1988
        %v1990 = vpop.f32.mrf.mxu0
        %v1991 = vpop.f32.mrf.mxu0
        %v1992 = vpop.f32.mrf.mxu0
        %1993 = vdwg.mxu0
        %v1994 = vld [vmem:[#allocation2] sm:$0xff]
        %v1995 = vld [vmem:[#allocation2 + $0x8] sm:$0xff]
        %v1996 = vld [vmem:[#allocation2 + $0x10] sm:$0xff]
        %v1997 = vld [vmem:[#allocation2 + $0x18] sm:$0xff]
        %v1998 = vld [vmem:[#allocation2 + $0x20] sm:$0xff]
        %v1999 = vld [vmem:[#allocation2 + $0x28] sm:$0xff]
        %v2000 = vld [vmem:[#allocation2 + $0x30] sm:$0x1]
        %v2001 = vmax.f32 %v1994, %v1965
        %v2002 = vmax.f32 %v1995, %v1968
        %v2003 = vmax.f32 %v1996, %v1973
        %v2004 = vmax.f32 %v1997, %v1976
        %v2005 = vmax.f32 %v1998, %v1981
        %v2006 = vmax.f32 %v1999, %v1984
        %v2007 = vmax.f32 %v2000, %v1989
        %2008 = vst [vmem:[#allocation2] sm:$0xff] %v2001
        %2009 = vst [vmem:[#allocation2 + $0x8] sm:$0xff] %v2002
        %2010 = vst [vmem:[#allocation2 + $0x10] sm:$0xff] %v2003
        %2011 = vst [vmem:[#allocation2 + $0x18] sm:$0xff] %v2004
        %2012 = vst [vmem:[#allocation2 + $0x20] sm:$0xff] %v2005
        %2013 = vst [vmem:[#allocation2 + $0x28] sm:$0xff] %v2006
        %2014 = vst [vmem:[#allocation2 + $0x30] sm:$0x1] %v2007
        %s2015 = scalar_lea.vmem %s275, 588
        %v2016 = vld [vmem:[%s2015] sm:$0xff]
        %v2017 = vld [vmem:[%s2015 + $0x8] sm:$0xf]
        %v2018 = vld [vmem:[%s2015 + $0xc] sm:$0xff]
        %v2019 = vld [vmem:[%s2015 + $0x14] sm:$0xf]
        %v2020 = vld [vmem:[%s2015 + $0x18] sm:$0xff]
        %v2021 = vld [vmem:[%s2015 + $0x20] sm:$0xf]
        %v2022 = vld [vmem:[%s2015 + $0x24] sm:$0xff]
        %v2023 = vld [vmem:[%s2015 + $0x2c] sm:$0xf]
        %v2024 = vld [vmem:[%s2015 + $0x30] sm:$0xff]
        %v2025 = vld [vmem:[%s2015 + $0x38] sm:$0xf]
        %v2026 = vld [vmem:[%s2015 + $0x3c] sm:$0xff]
        %v2027 = vld [vmem:[%s2015 + $0x44] sm:$0xf]
        %v2028 = vld [vmem:[%s2015 + $0x48] sm:$0x11]
        %v2029 = vld [vmem:[%s2015 + $0x50] sm:$0x1]
        %v2044 = vunpack.c.l.b16 %v2016
        %v2045 = vunpack.c.h.b16 %v2016
        %v2046 = vunpack.c.l.b16 %v2017
        %v2047 = vunpack.c.l.b16 %v2018
        %v2048 = vunpack.c.h.b16 %v2018
        %v2049 = vunpack.c.l.b16 %v2019
        %v2050 = vunpack.c.l.b16 %v2020
        %v2051 = vunpack.c.h.b16 %v2020
        %v2052 = vunpack.c.l.b16 %v2021
        %v2053 = vunpack.c.l.b16 %v2022
        %v2054 = vunpack.c.h.b16 %v2022
        %v2055 = vunpack.c.l.b16 %v2023
        %v2056 = vunpack.c.l.b16 %v2024
        %v2057 = vunpack.c.h.b16 %v2024
        %v2058 = vunpack.c.l.b16 %v2025
        %v2059 = vunpack.c.l.b16 %v2026
        %v2060 = vunpack.c.h.b16 %v2026
        %v2061 = vunpack.c.l.b16 %v2027
        %v2062 = vunpack.c.l.b16 %v2028
        %v2063 = vunpack.c.h.b16 %v2028
        %v2064 = vunpack.c.l.b16 %v2029
        %v2065 = vpack.c.b16 %v2047, %v2044
        %v2066 = vpack.c.b16 %v2048, %v2045
        %v2067 = vpack.c.b16 %v2049, %v2046
        %v2068 = vpack.c.b16 %v2053, %v2050
        %v2069 = vpack.c.b16 %v2054, %v2051
        %v2070 = vpack.c.b16 %v2055, %v2052
        %v2071 = vpack.c.b16 %v2059, %v2056
        %v2072 = vpack.c.b16 %v2060, %v2057
        %v2073 = vpack.c.b16 %v2061, %v2058
        %v2074 = vpack.c.b16 %v2062, %v2062
        %v2075 = vpack.c.b16 %v2063, %v2063
        %v2076 = vpack.c.b16 %v2064, %v2064
        %2089 = vmatprep.subr.bf16.mxu0 0
        %2090 = vmatpush1.bf16.msra.mxu0 %v501
        %2091 = vmatprep.subr.bf16.mxu0 0
        %2092 = vmatpush1.bf16.msra.mxu0 %v500
        %2093 = vmatprep.subr.bf16.mxu0 0
        %2094 = vmatpush1.bf16.msra.mxu0 %v499
        %2095 = vmatprep.subr.bf16.mxu0 0
        %2096 = vmatpush1.bf16.msra.mxu0 %v498
        %2097 = vmatprep.subr.bf16.mxu0 0
        %2098 = vmatpush1.bf16.msra.mxu0 %v497
        %2099 = vmatprep.subr.bf16.mxu0 0
        %2100 = vmatpush1.bf16.msra.mxu0 %v496
        %2101 = vmatprep.subr.bf16.mxu0 0
        %2102 = vmatpush1.bf16.msra.mxu0 %v495
        %2103 = vmatprep.subr.bf16.mxu0 0
        %2104 = vmatpush1.bf16.msra.mxu0 %v494
        %2105 = vmatprep.subr.bf16.mxu0 0
        %2106 = vmatpush2.bf16.msra.mxu0 %v509
        %2107 = vmatprep.subr.bf16.mxu0 0
        %2108 = vmatpush2.bf16.msra.mxu0 %v508
        %2109 = vmatprep.subr.bf16.mxu0 0
        %2110 = vmatpush2.bf16.msra.mxu0 %v507
        %2111 = vmatprep.subr.bf16.mxu0 0
        %2112 = vmatpush2.bf16.msra.mxu0 %v506
        %2113 = vmatprep.subr.bf16.mxu0 0
        %2114 = vmatpush2.bf16.msra.mxu0 %v505
        %2115 = vmatprep.subr.bf16.mxu0 0
        %2116 = vmatpush2.bf16.msra.mxu0 %v504
        %2117 = vmatprep.subr.bf16.mxu0 0
        %2118 = vmatpush2.bf16.msra.mxu0 %v503
        %2119 = vmatprep.subr.bf16.mxu0 0
        %2120 = vmatpush2.bf16.msra.mxu0 %v502
        %2121 = vmatprep.mubr.bf16.mxu0 %v2066
        %2122 = vmatmul.mubr.bf16.gmra.mxu0 %v2065
        %v2123 = vpop.f32.mrf.mxu0
        %v2124 = vadd.f32 0.0, %v2123
        %v2125 = vpop.f32.mrf.mxu0
        %v2126 = vpop.f32.mrf.mxu0
        %v2127 = vadd.f32 0.0, %v2126
        %v2128 = vpop.f32.mrf.mxu0
        %2129 = vmatprep.mubr.bf16.mxu0 %v2069
        %2130 = vmatmul.mubr.bf16.gmra.mxu0 %v2068
        %v2131 = vpop.f32.mrf.mxu0
        %v2132 = vadd.f32 0.0, %v2131
        %v2133 = vpop.f32.mrf.mxu0
        %v2134 = vpop.f32.mrf.mxu0
        %v2135 = vadd.f32 0.0, %v2134
        %v2136 = vpop.f32.mrf.mxu0
        %2137 = vmatprep.mubr.bf16.mxu0 %v2072
        %2138 = vmatmul.mubr.bf16.gmra.mxu0 %v2071
        %v2139 = vpop.f32.mrf.mxu0
        %v2140 = vadd.f32 0.0, %v2139
        %v2141 = vpop.f32.mrf.mxu0
        %v2142 = vpop.f32.mrf.mxu0
        %v2143 = vadd.f32 0.0, %v2142
        %v2144 = vpop.f32.mrf.mxu0
        %2145 = vmatprep.mubr.bf16.mxu0 %v2075
        %2146 = vmatmul.mubr.bf16.gmra.mxu0 %v2074
        %v2147 = vpop.f32.mrf.mxu0
        %v2148 = vadd.f32 0.0, %v2147
        %v2149 = vpop.f32.mrf.mxu0
        %v2150 = vpop.f32.mrf.mxu0
        %v2151 = vpop.f32.mrf.mxu0
        %2152 = vdwg.mxu0
        %2153 = vmatprep.subr.bf16.mxu0 0
        %2154 = vmatpush1.bf16.msra.mxu0 %v517
        %2155 = vmatprep.subr.bf16.mxu0 0
        %2156 = vmatpush1.bf16.msra.mxu0 %v516
        %2157 = vmatprep.subr.bf16.mxu0 0
        %2158 = vmatpush1.bf16.msra.mxu0 %v515
        %2159 = vmatprep.subr.bf16.mxu0 0
        %2160 = vmatpush1.bf16.msra.mxu0 %v514
        %2161 = vmatprep.subr.bf16.mxu0 0
        %2162 = vmatpush1.bf16.msra.mxu0 %v513
        %2163 = vmatprep.subr.bf16.mxu0 0
        %2164 = vmatpush1.bf16.msra.mxu0 %v512
        %2165 = vmatprep.subr.bf16.mxu0 0
        %2166 = vmatpush1.bf16.msra.mxu0 %v511
        %2167 = vmatprep.subr.bf16.mxu0 0
        %2168 = vmatpush1.bf16.msra.mxu0 %v510
        %2169 = vmatprep.subr.bf16.mxu0 0
        %2170 = vmatpush2.bf16.msra.mxu0 0
        %2171 = vmatprep.subr.bf16.mxu0 0
        %2172 = vmatpush2.bf16.msra.mxu0 0
        %2173 = vmatprep.subr.bf16.mxu0 0
        %2174 = vmatpush2.bf16.msra.mxu0 0
        %2175 = vmatprep.subr.bf16.mxu0 0
        %2176 = vmatpush2.bf16.msra.mxu0 0
        %2177 = vmatprep.subr.bf16.mxu0 0
        %2178 = vmatpush2.bf16.msra.mxu0 0
        %2179 = vmatprep.subr.bf16.mxu0 0
        %2180 = vmatpush2.bf16.msra.mxu0 0
        %2181 = vmatprep.subr.bf16.mxu0 0
        %2182 = vmatpush2.bf16.msra.mxu0 0
        %2183 = vmatprep.subr.bf16.mxu0 0
        %2184 = vmatpush2.bf16.msra.mxu0 0
        %2185 = vmatprep.mubr.bf16.mxu0 0
        %2186 = vmatmul.mubr.bf16.gmra.mxu0 %v2067
        %v2187 = vpop.f32.mrf.mxu0
        %v2188 = vadd.f32 %v2124, %v2187
        %v2189 = vpop.f32.mrf.mxu0
        %v2190 = vpop.f32.mrf.mxu0
        %v2191 = vadd.f32 %v2127, %v2190
        %v2192 = vpop.f32.mrf.mxu0
        %2193 = vmatprep.mubr.bf16.mxu0 0
        %2194 = vmatmul.mubr.bf16.gmra.mxu0 %v2070
        %v2195 = vpop.f32.mrf.mxu0
        %v2196 = vadd.f32 %v2132, %v2195
        %v2197 = vpop.f32.mrf.mxu0
        %v2198 = vpop.f32.mrf.mxu0
        %v2199 = vadd.f32 %v2135, %v2198
        %v2200 = vpop.f32.mrf.mxu0
        %2201 = vmatprep.mubr.bf16.mxu0 0
        %2202 = vmatmul.mubr.bf16.gmra.mxu0 %v2073
        %v2203 = vpop.f32.mrf.mxu0
        %v2204 = vadd.f32 %v2140, %v2203
        %v2205 = vpop.f32.mrf.mxu0
        %v2206 = vpop.f32.mrf.mxu0
        %v2207 = vadd.f32 %v2143, %v2206
        %v2208 = vpop.f32.mrf.mxu0
        %2209 = vmatprep.mubr.bf16.mxu0 0
        %2210 = vmatmul.mubr.bf16.gmra.mxu0 %v2076
        %v2211 = vpop.f32.mrf.mxu0
        %v2212 = vadd.f32 %v2148, %v2211
        %v2213 = vpop.f32.mrf.mxu0
        %v2214 = vpop.f32.mrf.mxu0
        %v2215 = vpop.f32.mrf.mxu0
        %2216 = vdwg.mxu0
        %v2217 = vld [vmem:[#allocation2] sm:$0xff]
        %v2218 = vld [vmem:[#allocation2 + $0x8] sm:$0xff]
        %v2219 = vld [vmem:[#allocation2 + $0x10] sm:$0xff]
        %v2220 = vld [vmem:[#allocation2 + $0x18] sm:$0xff]
        %v2221 = vld [vmem:[#allocation2 + $0x20] sm:$0xff]
        %v2222 = vld [vmem:[#allocation2 + $0x28] sm:$0xff]
        %v2223 = vld [vmem:[#allocation2 + $0x30] sm:$0x1]
        %v2224 = vmax.f32 %v2217, %v2188
        %v2225 = vmax.f32 %v2218, %v2191
        %v2226 = vmax.f32 %v2219, %v2196
        %v2227 = vmax.f32 %v2220, %v2199
        %v2228 = vmax.f32 %v2221, %v2204
        %v2229 = vmax.f32 %v2222, %v2207
        %v2230 = vmax.f32 %v2223, %v2212
        %2231 = vst [vmem:[#allocation2] sm:$0xff] %v2224
        %2232 = vst [vmem:[#allocation2 + $0x8] sm:$0xff] %v2225
        %2233 = vst [vmem:[#allocation2 + $0x10] sm:$0xff] %v2226
        %2234 = vst [vmem:[#allocation2 + $0x18] sm:$0xff] %v2227
        %2235 = vst [vmem:[#allocation2 + $0x20] sm:$0xff] %v2228
        %2236 = vst [vmem:[#allocation2 + $0x28] sm:$0xff] %v2229
        %2237 = vst [vmem:[#allocation2 + $0x30] sm:$0x1] %v2230
        %s2238 = scalar_lea.vmem %s275, 672
        %v2239 = vld [vmem:[%s2238] sm:$0xff]
        %v2240 = vld [vmem:[%s2238 + $0x8] sm:$0xf]
        %v2241 = vld [vmem:[%s2238 + $0xc] sm:$0xff]
        %v2242 = vld [vmem:[%s2238 + $0x14] sm:$0xf]
        %v2243 = vld [vmem:[%s2238 + $0x18] sm:$0xff]
        %v2244 = vld [vmem:[%s2238 + $0x20] sm:$0xf]
        %v2245 = vld [vmem:[%s2238 + $0x24] sm:$0xff]
        %v2246 = vld [vmem:[%s2238 + $0x2c] sm:$0xf]
        %v2247 = vld [vmem:[%s2238 + $0x30] sm:$0xff]
        %v2248 = vld [vmem:[%s2238 + $0x38] sm:$0xf]
        %v2249 = vld [vmem:[%s2238 + $0x3c] sm:$0xff]
        %v2250 = vld [vmem:[%s2238 + $0x44] sm:$0xf]
        %v2251 = vld [vmem:[%s2238 + $0x48] sm:$0x11]
        %v2252 = vld [vmem:[%s2238 + $0x50] sm:$0x1]
        %v2267 = vunpack.c.l.b16 %v2239
        %v2268 = vunpack.c.h.b16 %v2239
        %v2269 = vunpack.c.l.b16 %v2240
        %v2270 = vunpack.c.l.b16 %v2241
        %v2271 = vunpack.c.h.b16 %v2241
        %v2272 = vunpack.c.l.b16 %v2242
        %v2273 = vunpack.c.l.b16 %v2243
        %v2274 = vunpack.c.h.b16 %v2243
        %v2275 = vunpack.c.l.b16 %v2244
        %v2276 = vunpack.c.l.b16 %v2245
        %v2277 = vunpack.c.h.b16 %v2245
        %v2278 = vunpack.c.l.b16 %v2246
        %v2279 = vunpack.c.l.b16 %v2247
        %v2280 = vunpack.c.h.b16 %v2247
        %v2281 = vunpack.c.l.b16 %v2248
        %v2282 = vunpack.c.l.b16 %v2249
        %v2283 = vunpack.c.h.b16 %v2249
        %v2284 = vunpack.c.l.b16 %v2250
        %v2285 = vunpack.c.l.b16 %v2251
        %v2286 = vunpack.c.h.b16 %v2251
        %v2287 = vunpack.c.l.b16 %v2252
        %v2288 = vpack.c.b16 %v2270, %v2267
        %v2289 = vpack.c.b16 %v2271, %v2268
        %v2290 = vpack.c.b16 %v2272, %v2269
        %v2291 = vpack.c.b16 %v2276, %v2273
        %v2292 = vpack.c.b16 %v2277, %v2274
        %v2293 = vpack.c.b16 %v2278, %v2275
        %v2294 = vpack.c.b16 %v2282, %v2279
        %v2295 = vpack.c.b16 %v2283, %v2280
        %v2296 = vpack.c.b16 %v2284, %v2281
        %v2297 = vpack.c.b16 %v2285, %v2285
        %v2298 = vpack.c.b16 %v2286, %v2286
        %v2299 = vpack.c.b16 %v2287, %v2287
        %2312 = vmatprep.subr.bf16.mxu0 0
        %2313 = vmatpush1.bf16.msra.mxu0 %v501
        %2314 = vmatprep.subr.bf16.mxu0 0
        %2315 = vmatpush1.bf16.msra.mxu0 %v500
        %2316 = vmatprep.subr.bf16.mxu0 0
        %2317 = vmatpush1.bf16.msra.mxu0 %v499
        %2318 = vmatprep.subr.bf16.mxu0 0
        %2319 = vmatpush1.bf16.msra.mxu0 %v498
        %2320 = vmatprep.subr.bf16.mxu0 0
        %2321 = vmatpush1.bf16.msra.mxu0 %v497
        %2322 = vmatprep.subr.bf16.mxu0 0
        %2323 = vmatpush1.bf16.msra.mxu0 %v496
        %2324 = vmatprep.subr.bf16.mxu0 0
        %2325 = vmatpush1.bf16.msra.mxu0 %v495
        %2326 = vmatprep.subr.bf16.mxu0 0
        %2327 = vmatpush1.bf16.msra.mxu0 %v494
        %2328 = vmatprep.subr.bf16.mxu0 0
        %2329 = vmatpush2.bf16.msra.mxu0 %v509
        %2330 = vmatprep.subr.bf16.mxu0 0
        %2331 = vmatpush2.bf16.msra.mxu0 %v508
        %2332 = vmatprep.subr.bf16.mxu0 0
        %2333 = vmatpush2.bf16.msra.mxu0 %v507
        %2334 = vmatprep.subr.bf16.mxu0 0
        %2335 = vmatpush2.bf16.msra.mxu0 %v506
        %2336 = vmatprep.subr.bf16.mxu0 0
        %2337 = vmatpush2.bf16.msra.mxu0 %v505
        %2338 = vmatprep.subr.bf16.mxu0 0
        %2339 = vmatpush2.bf16.msra.mxu0 %v504
        %2340 = vmatprep.subr.bf16.mxu0 0
        %2341 = vmatpush2.bf16.msra.mxu0 %v503
        %2342 = vmatprep.subr.bf16.mxu0 0
        %2343 = vmatpush2.bf16.msra.mxu0 %v502
        %2344 = vmatprep.mubr.bf16.mxu0 %v2289
        %2345 = vmatmul.mubr.bf16.gmra.mxu0 %v2288
        %v2346 = vpop.f32.mrf.mxu0
        %v2347 = vadd.f32 0.0, %v2346
        %v2348 = vpop.f32.mrf.mxu0
        %v2349 = vpop.f32.mrf.mxu0
        %v2350 = vadd.f32 0.0, %v2349
        %v2351 = vpop.f32.mrf.mxu0
        %2352 = vmatprep.mubr.bf16.mxu0 %v2292
        %2353 = vmatmul.mubr.bf16.gmra.mxu0 %v2291
        %v2354 = vpop.f32.mrf.mxu0
        %v2355 = vadd.f32 0.0, %v2354
        %v2356 = vpop.f32.mrf.mxu0
        %v2357 = vpop.f32.mrf.mxu0
        %v2358 = vadd.f32 0.0, %v2357
        %v2359 = vpop.f32.mrf.mxu0
        %2360 = vmatprep.mubr.bf16.mxu0 %v2295
        %2361 = vmatmul.mubr.bf16.gmra.mxu0 %v2294
        %v2362 = vpop.f32.mrf.mxu0
        %v2363 = vadd.f32 0.0, %v2362
        %v2364 = vpop.f32.mrf.mxu0
        %v2365 = vpop.f32.mrf.mxu0
        %v2366 = vadd.f32 0.0, %v2365
        %v2367 = vpop.f32.mrf.mxu0
        %2368 = vmatprep.mubr.bf16.mxu0 %v2298
        %2369 = vmatmul.mubr.bf16.gmra.mxu0 %v2297
        %v2370 = vpop.f32.mrf.mxu0
        %v2371 = vadd.f32 0.0, %v2370
        %v2372 = vpop.f32.mrf.mxu0
        %v2373 = vpop.f32.mrf.mxu0
        %v2374 = vpop.f32.mrf.mxu0
        %2375 = vdwg.mxu0
        %2376 = vmatprep.subr.bf16.mxu0 0
        %2377 = vmatpush1.bf16.msra.mxu0 %v517
        %2378 = vmatprep.subr.bf16.mxu0 0
        %2379 = vmatpush1.bf16.msra.mxu0 %v516
        %2380 = vmatprep.subr.bf16.mxu0 0
        %2381 = vmatpush1.bf16.msra.mxu0 %v515
        %2382 = vmatprep.subr.bf16.mxu0 0
        %2383 = vmatpush1.bf16.msra.mxu0 %v514
        %2384 = vmatprep.subr.bf16.mxu0 0
        %2385 = vmatpush1.bf16.msra.mxu0 %v513
        %2386 = vmatprep.subr.bf16.mxu0 0
        %2387 = vmatpush1.bf16.msra.mxu0 %v512
        %2388 = vmatprep.subr.bf16.mxu0 0
        %2389 = vmatpush1.bf16.msra.mxu0 %v511
        %2390 = vmatprep.subr.bf16.mxu0 0
        %2391 = vmatpush1.bf16.msra.mxu0 %v510
        %2392 = vmatprep.subr.bf16.mxu0 0
        %2393 = vmatpush2.bf16.msra.mxu0 0
        %2394 = vmatprep.subr.bf16.mxu0 0
        %2395 = vmatpush2.bf16.msra.mxu0 0
        %2396 = vmatprep.subr.bf16.mxu0 0
        %2397 = vmatpush2.bf16.msra.mxu0 0
        %2398 = vmatprep.subr.bf16.mxu0 0
        %2399 = vmatpush2.bf16.msra.mxu0 0
        %2400 = vmatprep.subr.bf16.mxu0 0
        %2401 = vmatpush2.bf16.msra.mxu0 0
        %2402 = vmatprep.subr.bf16.mxu0 0
        %2403 = vmatpush2.bf16.msra.mxu0 0
        %2404 = vmatprep.subr.bf16.mxu0 0
        %2405 = vmatpush2.bf16.msra.mxu0 0
        %2406 = vmatprep.subr.bf16.mxu0 0
        %2407 = vmatpush2.bf16.msra.mxu0 0
        %2408 = vmatprep.mubr.bf16.mxu0 0
        %2409 = vmatmul.mubr.bf16.gmra.mxu0 %v2290
        %v2410 = vpop.f32.mrf.mxu0
        %v2411 = vadd.f32 %v2347, %v2410
        %v2412 = vpop.f32.mrf.mxu0
        %v2413 = vpop.f32.mrf.mxu0
        %v2414 = vadd.f32 %v2350, %v2413
        %v2415 = vpop.f32.mrf.mxu0
        %2416 = vmatprep.mubr.bf16.mxu0 0
        %2417 = vmatmul.mubr.bf16.gmra.mxu0 %v2293
        %v2418 = vpop.f32.mrf.mxu0
        %v2419 = vadd.f32 %v2355, %v2418
        %v2420 = vpop.f32.mrf.mxu0
        %v2421 = vpop.f32.mrf.mxu0
        %v2422 = vadd.f32 %v2358, %v2421
        %v2423 = vpop.f32.mrf.mxu0
        %2424 = vmatprep.mubr.bf16.mxu0 0
        %2425 = vmatmul.mubr.bf16.gmra.mxu0 %v2296
        %v2426 = vpop.f32.mrf.mxu0
        %v2427 = vadd.f32 %v2363, %v2426
        %v2428 = vpop.f32.mrf.mxu0
        %v2429 = vpop.f32.mrf.mxu0
        %v2430 = vadd.f32 %v2366, %v2429
        %v2431 = vpop.f32.mrf.mxu0
        %2432 = vmatprep.mubr.bf16.mxu0 0
        %2433 = vmatmul.mubr.bf16.gmra.mxu0 %v2299
        %v2434 = vpop.f32.mrf.mxu0
        %v2435 = vadd.f32 %v2371, %v2434
        %v2436 = vpop.f32.mrf.mxu0
        %v2437 = vpop.f32.mrf.mxu0
        %v2438 = vpop.f32.mrf.mxu0
        %2439 = vdwg.mxu0
        %v2440 = vld [vmem:[#allocation2] sm:$0xff]
        %v2441 = vld [vmem:[#allocation2 + $0x8] sm:$0xff]
        %v2442 = vld [vmem:[#allocation2 + $0x10] sm:$0xff]
        %v2443 = vld [vmem:[#allocation2 + $0x18] sm:$0xff]
        %v2444 = vld [vmem:[#allocation2 + $0x20] sm:$0xff]
        %v2445 = vld [vmem:[#allocation2 + $0x28] sm:$0xff]
        %v2446 = vld [vmem:[#allocation2 + $0x30] sm:$0x1]
        %v2447 = vmax.f32 %v2440, %v2411
        %v2448 = vmax.f32 %v2441, %v2414
        %v2449 = vmax.f32 %v2442, %v2419
        %v2450 = vmax.f32 %v2443, %v2422
        %v2451 = vmax.f32 %v2444, %v2427
        %v2452 = vmax.f32 %v2445, %v2430
        %v2453 = vmax.f32 %v2446, %v2435
        %2454 = vst [vmem:[#allocation2] sm:$0xff] %v2447
        %2455 = vst [vmem:[#allocation2 + $0x8] sm:$0xff] %v2448
        %2456 = vst [vmem:[#allocation2 + $0x10] sm:$0xff] %v2449
        %2457 = vst [vmem:[#allocation2 + $0x18] sm:$0xff] %v2450
        %2458 = vst [vmem:[#allocation2 + $0x20] sm:$0xff] %v2451
        %2459 = vst [vmem:[#allocation2 + $0x28] sm:$0xff] %v2452
        %2460 = vst [vmem:[#allocation2 + $0x30] sm:$0x1] %v2453
        %v2461 = vld [vmem:[#allocation2] sm:$0xff]
        %v2462 = vld [vmem:[#allocation2 + $0x8] sm:$0xff]
        %v2463 = vld [vmem:[#allocation2 + $0x10] sm:$0xff]
        %v2464 = vld [vmem:[#allocation2 + $0x18] sm:$0xff]
        %v2465 = vld [vmem:[#allocation2 + $0x20] sm:$0xff]
        %v2466 = vld [vmem:[#allocation2 + $0x28] sm:$0xff]
        %v2467 = vld [vmem:[#allocation2 + $0x30] sm:$0x1]
        %v2468 = vld [vmem:[%s2] sm:$0x1]
        %v2470 = vlaneseq
        %v2471 = vshrl.u32 %v2470, 7
        %v2472 = vsub.s32 0, %v2471
        %v2473 = vrot.slane %v2468, %v2472
        %v2475 = vadd.f32 %v2461, %v2473
        %v2476 = vadd.f32 %v2462, %v2473
        %v2477 = vadd.f32 %v2463, %v2473
        %v2478 = vadd.f32 %v2464, %v2473
        %v2479 = vadd.f32 %v2465, %v2473
        %v2480 = vadd.f32 %v2466, %v2473
        %v2481 = vadd.f32 %v2467, %v2473
        %v2482 = vmax.f32 %v2475, 0.0
        %v2483 = vmax.f32 %v2476, 0.0
        %v2484 = vmax.f32 %v2477, 0.0
        %v2485 = vmax.f32 %v2478, 0.0
        %v2486 = vmax.f32 %v2479, 0.0
        %v2487 = vmax.f32 %v2480, 0.0
        %v2488 = vmax.f32 %v2481, 0.0
        %v2489 = vpack.c.bf16 %v2483, %v2482
        %v2490 = vpack.c.bf16 %v2485, %v2484
        %v2491 = vpack.c.bf16 %v2487, %v2486
        %v2492 = vpack.c.bf16 %v2488, %v2488
        %v2497 = vunpack.c.l.b16 %v2489
        %v2498 = vunpack.c.h.b16 %v2489
        %v2499 = vunpack.c.l.b16 %v2490
        %v2500 = vunpack.c.h.b16 %v2490
        %v2501 = vunpack.c.l.b16 %v2491
        %v2502 = vunpack.c.h.b16 %v2491
        %v2503 = vunpack.c.l.b16 %v2492
        %v2504 = vpack.c.b16 %v2497, %v2497
        %v2505 = vpack.c.b16 %v2498, %v2498
        %v2506 = vpack.c.b16 %v2499, %v2499
        %v2507 = vpack.c.b16 %v2500, %v2500
        %v2508 = vpack.c.b16 %v2501, %v2501
        %v2509 = vpack.c.b16 %v2502, %v2502
        %v2510 = vpack.c.b16 %v2503, %v2503
        %2518 = vst [vmem:[#allocation3] sm:$0xf] %v2504
        %2519 = vst [vmem:[#allocation3 + $0x4] sm:$0xf] %v2505
        %2520 = vst [vmem:[#allocation3 + $0x8] sm:$0xf] %v2506
        %2521 = vst [vmem:[#allocation3 + $0xc] sm:$0xf] %v2507
        %2522 = vst [vmem:[#allocation3 + $0x10] sm:$0xf] %v2508
        %2523 = vst [vmem:[#allocation3 + $0x14] sm:$0xf] %v2509
        %vm2524 = vcmask 1040384
        %vm2525 = vsmask.f32 256
        %vm2526 = vmand %vm2524, %vm2525
        %v2527 = vld [vmem:[#allocation3 + $0x18] sm:$0x1]
        %v2528 = vsel %vm2526, %v2510, %v2527
        %2529 = vst [vmem:[#allocation3 + $0x18] sm:$0x1] %v2528
        %2530 = vst [vmem:[#allocation4] sm:$0xf] 0
        %2531 = vst [vmem:[#allocation4 + $0x4] sm:$0xf] 0
        %2532 = vst [vmem:[#allocation4 + $0x8] sm:$0xf] 0
        %2533 = vst [vmem:[#allocation4 + $0xc] sm:$0xf] 0
        %2534 = vst [vmem:[#allocation4 + $0x10] sm:$0xf] 0
        %2535 = vst [vmem:[#allocation4 + $0x14] sm:$0xf] 0
        %2536 = vst [vmem:[#allocation4 + $0x18] sm:$0xf] 0
        %2537 = vst [vmem:[#allocation4 + $0x1c] sm:$0xf] 0
        %2538 = vst [vmem:[#allocation4 + $0x20] sm:$0xf] 0
        %2539 = vst [vmem:[#allocation4 + $0x24] sm:$0xf] 0
        %2540 = vst [vmem:[#allocation4 + $0x28] sm:$0xf] 0
        %2541 = vst [vmem:[#allocation4 + $0x2c] sm:$0xf] 0
        %2542 = vst [vmem:[#allocation4 + $0x30] sm:$0xf] 0
        %2543 = vst [vmem:[#allocation4 + $0x34] sm:$0xf] 0
        %2544 = vst [vmem:[#allocation4 + $0x38] sm:$0xf] 0
        %2545 = vst [vmem:[#allocation4 + $0x3c] sm:$0xf] 0
        %v2546 = vld [vmem:[#allocation3] sm:$0xf]
        %vm2547 = vcmask 1043456
        %vm2548 = vsmask.f32 3328
        %vm2549 = vmand %vm2547, %vm2548
        %v2550 = vld [vmem:[#allocation4 + $0xc] sm:$0xf]
        %v2551 = vsel %vm2549, %v2546, %v2550
        %2552 = vst [vmem:[#allocation4 + $0xc] sm:$0xf] %v2551
        %v2553 = vld [vmem:[#allocation3] sm:$0x8]
        %v2554 = vld [vmem:[#allocation3 + $0x4] sm:$0x7]
        %vm2557 = vcmask 1041408
        %vm2558 = vcmask 1045508
        %vm2559 = vmor %vm2557, %vm2558
        %v2560 = vrot.slane %v2553, 6
        %v2561 = vrot.slane %v2560, 4
        %v2562 = vrot.slane %v2554, 6
        %v2563 = vsel %vm2559, %v2561, %v2562
        %v2564 = vrot.slane %v2562, 4
        %vm2567 = vcmask 1043457
        %vm2568 = vsmask.f32 7942
        %vm2569 = vmand %vm2567, %vm2568
        %v2570 = vld [vmem:[#allocation4 + $0x10] sm:$0xe]
        %v2571 = vsel %vm2569, %v2563, %v2570
        %2572 = vst [vmem:[#allocation4 + $0x10] sm:$0xe] %v2571
        %2573 = vst [vmem:[#allocation4 + $0x14] sm:$0x1] %v2564
        %v2574 = vld [vmem:[#allocation3 + $0x4] sm:$0x8]
        %v2575 = vld [vmem:[#allocation3 + $0x8] sm:$0x7]
        %2576 = vst [vmem:[#allocation4 + $0x14] sm:$0x8] %v2574
        %vm2577 = vcmask 1042432
        %vm2578 = vsmask.f32 2304
        %vm2579 = vmand %vm2577, %vm2578
        %v2580 = vld [vmem:[#allocation4 + $0x18] sm:$0x7]
        %v2581 = vsel %vm2579, %v2575, %v2580
        %2582 = vst [vmem:[#allocation4 + $0x18] sm:$0x7] %v2581
        %v2583 = vld [vmem:[#allocation3 + $0x8] sm:$0xc]
        %v2584 = vld [vmem:[#allocation3 + $0xc] sm:$0x3]
        %v2587 = vrot.slane %v2583, 6
        %v2588 = vrot.slane %v2587, 4
        %v2589 = vrot.slane %v2584, 6
        %v2590 = vsel %vm2559, %v2588, %v2589
        %vm2592 = vsmask.f32 7938
        %vm2593 = vmand %vm2547, %vm2592
        %v2594 = vld [vmem:[#allocation4 + $0x1c] sm:$0xf]
        %v2595 = vsel %vm2593, %v2590, %v2594
        %2596 = vst [vmem:[#allocation4 + $0x1c] sm:$0xf] %v2595
        %v2597 = vld [vmem:[#allocation3 + $0xc] sm:$0xc]
        %v2598 = vld [vmem:[#allocation3 + $0x10] sm:$0x3]
        %2599 = vst [vmem:[#allocation4 + $0x20] sm:$0xc] %v2597
        %vm2600 = vsmask.f32 1280
        %vm2601 = vmand %vm2557, %vm2600
        %v2602 = vld [vmem:[#allocation4 + $0x24] sm:$0x3]
        %v2603 = vsel %vm2601, %v2598, %v2602
        %2604 = vst [vmem:[#allocation4 + $0x24] sm:$0x3] %v2603
        %v2605 = vld [vmem:[#allocation3 + $0x10] sm:$0xe]
        %v2606 = vld [vmem:[#allocation3 + $0x14] sm:$0x1]
        %v2609 = vrot.slane %v2605, 6
        %v2610 = vrot.slane %v2609, 4
        %v2611 = vrot.slane %v2606, 6
        %v2612 = vsel %vm2559, %v2610, %v2611
        %vm2615 = vcmask 1043459
        %vm2616 = vsmask.f32 7950
        %vm2617 = vmand %vm2615, %vm2616
        %v2618 = vld [vmem:[#allocation4 + $0x24] sm:$0x8]
        %v2619 = vsel %vm2617, %v2609, %v2618
        %2620 = vst [vmem:[#allocation4 + $0x24] sm:$0x8] %v2619
        %2621 = vst [vmem:[#allocation4 + $0x28] sm:$0x7] %v2612
        %v2622 = vld [vmem:[#allocation3 + $0x14] sm:$0xe]
        %v2623 = vld [vmem:[#allocation3 + $0x18] sm:$0x1]
        %2624 = vst [vmem:[#allocation4 + $0x2c] sm:$0xe] %v2622
        %v2625 = vld [vmem:[#allocation4 + $0x30] sm:$0x1]
        %v2626 = vsel %vm2526, %v2623, %v2625
        %2627 = vst [vmem:[#allocation4 + $0x30] sm:$0x1] %v2626
        %v2628 = vld [vmem:[%s3] sm:$0xff]
        %v2629 = vld [vmem:[%s3 + $0x8] sm:$0xff]
        %v2630 = vld [vmem:[%s3 + $0x10] sm:$0xff]
        %v2631 = vld [vmem:[%s3 + $0x18] sm:$0xff]
        %v2632 = vld [vmem:[%s3 + $0x20] sm:$0xff]
        %v2633 = vld [vmem:[%s3 + $0x28] sm:$0xff]
        %v2634 = vld [vmem:[%s3 + $0x30] sm:$0xff]
        %v2635 = vld [vmem:[%s3 + $0x38] sm:$0xff]
        %v2636 = vld [vmem:[%s3 + $0x40] sm:$0xff]
        %v2637 = vld [vmem:[%s3 + $0x48] sm:$0xff]
        %v2638 = vld [vmem:[%s3 + $0x50] sm:$0xff]
        %v2639 = vld [vmem:[%s3 + $0x58] sm:$0xff]
        %v2640 = vld [vmem:[%s3 + $0x60] sm:$0xff]
        %v2641 = vld [vmem:[%s3 + $0x68] sm:$0xff]
        %v2642 = vld [vmem:[%s3 + $0x70] sm:$0xff]
        %v2643 = vld [vmem:[%s3 + $0x78] sm:$0xff]
        %v2644 = vld [vmem:[%s3 + $0x80] sm:$0xff]
        %v2645 = vld [vmem:[%s3 + $0x88] sm:$0xff]
        %v2646 = vld [vmem:[%s3 + $0x90] sm:$0xff]
        %v2647 = vld [vmem:[%s3 + $0x98] sm:$0xff]
        %v2648 = vld [vmem:[%s3 + $0xa0] sm:$0xff]
        %v2649 = vld [vmem:[%s3 + $0xa8] sm:$0xff]
        %v2650 = vld [vmem:[%s3 + $0xb0] sm:$0xff]
        %v2651 = vld [vmem:[%s3 + $0xb8] sm:$0xff]
        %v2652 = vld [vmem:[%s3 + $0xc0] sm:$0xff]
        %v2653 = vld [vmem:[%s3 + $0xc8] sm:$0xff]
        %v2654 = vld [vmem:[%s3 + $0xd0] sm:$0xff]
        %v2655 = vld [vmem:[%s3 + $0xd8] sm:$0xff]
        %v2656 = vld [vmem:[%s3 + $0xe0] sm:$0xff]
        %v2657 = vld [vmem:[%s3 + $0xe8] sm:$0xff]
        %v2658 = vld [vmem:[%s3 + $0xf0] sm:$0xff]
        %v2659 = vld [vmem:[%s3 + $0xf8] sm:$0xff]
        %v2660 = vld [vmem:[%s3 + $0x100] sm:$0xff]
        %v2661 = vld [vmem:[%s3 + $0x108] sm:$0xff]
        %v2662 = vld [vmem:[%s3 + $0x110] sm:$0xff]
        %v2663 = vld [vmem:[%s3 + $0x118] sm:$0xff]
        %v2664 = vld [vmem:[%s3 + $0x120] sm:$0xff]
        %v2665 = vld [vmem:[%s3 + $0x128] sm:$0xff]
        %v2666 = vld [vmem:[%s3 + $0x130] sm:$0xff]
        %v2667 = vld [vmem:[%s3 + $0x138] sm:$0xff]
        %v2668 = vld [vmem:[%s3 + $0x140] sm:$0xff]
        %v2669 = vld [vmem:[%s3 + $0x148] sm:$0xff]
        %v2670 = vld [vmem:[%s3 + $0x150] sm:$0xff]
        %v2671 = vld [vmem:[%s3 + $0x158] sm:$0xff]
        %v2672 = vld [vmem:[%s3 + $0x160] sm:$0xff]
        %v2673 = vld [vmem:[%s3 + $0x168] sm:$0xff]
        %v2674 = vld [vmem:[%s3 + $0x170] sm:$0xff]
        %v2675 = vld [vmem:[%s3 + $0x178] sm:$0xff]
        %v2676 = vld [vmem:[%s3 + $0x180] sm:$0xff]
        %v2677 = vld [vmem:[%s3 + $0x188] sm:$0xff]
        %v2678 = vld [vmem:[%s3 + $0x190] sm:$0xff]
        %v2679 = vld [vmem:[%s3 + $0x198] sm:$0xff]
        %v2680 = vld [vmem:[%s3 + $0x1a0] sm:$0xff]
        %v2681 = vld [vmem:[%s3 + $0x1a8] sm:$0xff]
        %v2682 = vld [vmem:[%s3 + $0x1b0] sm:$0xff]
        %v2683 = vld [vmem:[%s3 + $0x1b8] sm:$0xff]
        %v2684 = vld [vmem:[%s3 + $0x1c0] sm:$0xff]
        %v2685 = vld [vmem:[%s3 + $0x1c8] sm:$0xff]
        %v2686 = vld [vmem:[%s3 + $0x1d0] sm:$0xff]
        %v2687 = vld [vmem:[%s3 + $0x1d8] sm:$0xff]
        %v2688 = vld [vmem:[%s3 + $0x1e0] sm:$0xff]
        %v2689 = vld [vmem:[%s3 + $0x1e8] sm:$0xff]
        %v2690 = vld [vmem:[%s3 + $0x1f0] sm:$0xff]
        %v2691 = vld [vmem:[%s3 + $0x1f8] sm:$0xff]
        %v2692 = vld [vmem:[%s3 + $0x200] sm:$0xff]
        %v2693 = vld [vmem:[%s3 + $0x208] sm:$0xff]
        %v2694 = vld [vmem:[%s3 + $0x210] sm:$0xff]
        %v2695 = vld [vmem:[%s3 + $0x218] sm:$0xff]
        %v2696 = vld [vmem:[%s3 + $0x220] sm:$0xff]
        %v2697 = vld [vmem:[%s3 + $0x228] sm:$0xff]
        %v2698 = vld [vmem:[%s3 + $0x230] sm:$0xff]
        %v2699 = vld [vmem:[%s3 + $0x238] sm:$0xff]
        %v2700 = vld [vmem:[%s3 + $0x240] sm:$0xff]
        %v2701 = vld [vmem:[%s3 + $0x248] sm:$0xff]
        %v2702 = vld [vmem:[%s3 + $0x250] sm:$0xff]
        %v2703 = vld [vmem:[%s3 + $0x258] sm:$0xff]
        %v2704 = vld [vmem:[%s3 + $0x260] sm:$0xff]
        %v2705 = vld [vmem:[%s3 + $0x268] sm:$0xff]
        %v2706 = vld [vmem:[%s3 + $0x270] sm:$0xff]
        %v2707 = vld [vmem:[%s3 + $0x278] sm:$0xff]
        %v2708 = vld [vmem:[%s3 + $0x280] sm:$0xff]
        %v2709 = vld [vmem:[%s3 + $0x288] sm:$0xff]
        %v2710 = vld [vmem:[%s3 + $0x290] sm:$0xff]
        %v2711 = vld [vmem:[%s3 + $0x298] sm:$0xff]
        %v2712 = vld [vmem:[%s3 + $0x2a0] sm:$0xff]
        %v2713 = vld [vmem:[%s3 + $0x2a8] sm:$0xff]
        %v2714 = vld [vmem:[%s3 + $0x2b0] sm:$0xff]
        %v2715 = vld [vmem:[%s3 + $0x2b8] sm:$0xff]
        %v2716 = vld [vmem:[%s3 + $0x2c0] sm:$0xff]
        %v2717 = vld [vmem:[%s3 + $0x2c8] sm:$0xff]
        %v2718 = vld [vmem:[%s3 + $0x2d0] sm:$0xff]
        %v2719 = vld [vmem:[%s3 + $0x2d8] sm:$0xff]
        %v2720 = vld [vmem:[%s3 + $0x2e0] sm:$0xff]
        %v2721 = vld [vmem:[%s3 + $0x2e8] sm:$0xff]
        %v2722 = vld [vmem:[%s3 + $0x2f0] sm:$0xff]
        %v2723 = vld [vmem:[%s3 + $0x2f8] sm:$0xff]
        %v2724 = vld [vmem:[%s3 + $0x300] sm:$0xff]
        %v2725 = vld [vmem:[%s3 + $0x308] sm:$0xff]
        %v2726 = vld [vmem:[%s3 + $0x310] sm:$0xff]
        %v2727 = vld [vmem:[%s3 + $0x318] sm:$0xff]
        %v2728 = vld [vmem:[%s3 + $0x320] sm:$0xff]
        %v2729 = vld [vmem:[%s3 + $0x328] sm:$0xff]
        %v2730 = vld [vmem:[%s3 + $0x330] sm:$0xff]
        %v2731 = vld [vmem:[%s3 + $0x338] sm:$0xff]
        %v2732 = vld [vmem:[%s3 + $0x340] sm:$0xff]
        %v2733 = vld [vmem:[%s3 + $0x348] sm:$0xff]
        %v2734 = vld [vmem:[%s3 + $0x350] sm:$0xff]
        %v2735 = vld [vmem:[%s3 + $0x358] sm:$0xff]
        %v2736 = vld [vmem:[%s3 + $0x360] sm:$0xff]
        %v2737 = vld [vmem:[%s3 + $0x368] sm:$0xff]
        %v2738 = vld [vmem:[%s3 + $0x370] sm:$0xff]
        %v2739 = vld [vmem:[%s3 + $0x378] sm:$0xff]
        %v2740 = vld [vmem:[%s3 + $0x380] sm:$0xff]
        %v2741 = vld [vmem:[%s3 + $0x388] sm:$0xff]
        %v2742 = vld [vmem:[%s3 + $0x390] sm:$0xff]
        %v2743 = vld [vmem:[%s3 + $0x398] sm:$0xff]
        %v2744 = vld [vmem:[%s3 + $0x3a0] sm:$0xff]
        %v2745 = vld [vmem:[%s3 + $0x3a8] sm:$0xff]
        %v2746 = vld [vmem:[%s3 + $0x3b0] sm:$0xff]
        %v2747 = vld [vmem:[%s3 + $0x3b8] sm:$0xff]
        %v2748 = vld [vmem:[%s3 + $0x3c0] sm:$0xff]
        %v2749 = vld [vmem:[%s3 + $0x3c8] sm:$0xff]
        %v2750 = vld [vmem:[%s3 + $0x3d0] sm:$0xff]
        %v2751 = vld [vmem:[%s3 + $0x3d8] sm:$0xff]
        %v2752 = vld [vmem:[%s3 + $0x3e0] sm:$0xff]
        %v2753 = vld [vmem:[%s3 + $0x3e8] sm:$0xff]
        %v2754 = vld [vmem:[%s3 + $0x3f0] sm:$0xff]
        %v2755 = vld [vmem:[%s3 + $0x3f8] sm:$0xff]
        %v2756 = vld [vmem:[%s3 + $0x400] sm:$0xff]
        %v2757 = vld [vmem:[%s3 + $0x408] sm:$0xff]
        %v2758 = vld [vmem:[%s3 + $0x410] sm:$0xff]
        %v2759 = vld [vmem:[%s3 + $0x418] sm:$0xff]
        %v2760 = vld [vmem:[%s3 + $0x420] sm:$0xff]
        %v2761 = vld [vmem:[%s3 + $0x428] sm:$0xff]
        %v2762 = vld [vmem:[%s3 + $0x430] sm:$0xff]
        %v2763 = vld [vmem:[%s3 + $0x438] sm:$0xff]
        %v2764 = vld [vmem:[%s3 + $0x440] sm:$0xff]
        %v2765 = vld [vmem:[%s3 + $0x448] sm:$0xff]
        %v2766 = vld [vmem:[%s3 + $0x450] sm:$0xff]
        %v2767 = vld [vmem:[%s3 + $0x458] sm:$0xff]
        %v2768 = vld [vmem:[%s3 + $0x460] sm:$0xff]
        %v2769 = vld [vmem:[%s3 + $0x468] sm:$0xff]
        %v2770 = vld [vmem:[%s3 + $0x470] sm:$0xff]
        %v2771 = vld [vmem:[%s3 + $0x478] sm:$0xff]
        %v2772 = vld [vmem:[%s3 + $0x480] sm:$0xff]
        %v2773 = vld [vmem:[%s3 + $0x488] sm:$0xff]
        %v2774 = vld [vmem:[%s3 + $0x490] sm:$0xff]
        %v2775 = vld [vmem:[%s3 + $0x498] sm:$0xff]
        %v2776 = vld [vmem:[%s3 + $0x4a0] sm:$0xff]
        %v2777 = vld [vmem:[%s3 + $0x4a8] sm:$0xff]
        %v2778 = vld [vmem:[%s3 + $0x4b0] sm:$0xff]
        %v2779 = vld [vmem:[%s3 + $0x4b8] sm:$0xff]
        %v2780 = vld [vmem:[%s3 + $0x4c0] sm:$0xff]
        %v2781 = vld [vmem:[%s3 + $0x4c8] sm:$0xff]
        %v2782 = vld [vmem:[%s3 + $0x4d0] sm:$0xff]
        %v2783 = vld [vmem:[%s3 + $0x4d8] sm:$0xff]
        %v2784 = vld [vmem:[%s3 + $0x4e0] sm:$0xff]
        %v2785 = vld [vmem:[%s3 + $0x4e8] sm:$0xff]
        %v2786 = vld [vmem:[%s3 + $0x4f0] sm:$0xff]
        %v2787 = vld [vmem:[%s3 + $0x4f8] sm:$0xff]
        %v2788 = vld [vmem:[%s3 + $0x500] sm:$0xff]
        %v2789 = vld [vmem:[%s3 + $0x508] sm:$0xff]
        %v2790 = vld [vmem:[%s3 + $0x510] sm:$0xff]
        %v2791 = vld [vmem:[%s3 + $0x518] sm:$0xff]
        %v2792 = vld [vmem:[%s3 + $0x520] sm:$0xff]
        %v2793 = vld [vmem:[%s3 + $0x528] sm:$0xff]
        %v2794 = vld [vmem:[%s3 + $0x530] sm:$0xff]
        %v2795 = vld [vmem:[%s3 + $0x538] sm:$0xff]
        %v2796 = vld [vmem:[%s3 + $0x540] sm:$0xff]
        %v2797 = vld [vmem:[%s3 + $0x548] sm:$0xff]
        %v2798 = vld [vmem:[%s3 + $0x550] sm:$0xff]
        %v2799 = vld [vmem:[%s3 + $0x558] sm:$0xff]
        %v2800 = vld [vmem:[%s3 + $0x560] sm:$0xff]
        %v2801 = vld [vmem:[%s3 + $0x568] sm:$0xff]
        %v2802 = vld [vmem:[%s3 + $0x570] sm:$0xff]
        %v2803 = vld [vmem:[%s3 + $0x578] sm:$0xff]
        %v2804 = vld [vmem:[%s3 + $0x580] sm:$0xff]
        %v2805 = vld [vmem:[%s3 + $0x588] sm:$0xff]
        %v2806 = vld [vmem:[%s3 + $0x590] sm:$0xff]
        %v2807 = vld [vmem:[%s3 + $0x598] sm:$0xff]
        %v2808 = vld [vmem:[%s3 + $0x5a0] sm:$0xff]
        %v2809 = vld [vmem:[%s3 + $0x5a8] sm:$0xff]
        %v2810 = vld [vmem:[%s3 + $0x5b0] sm:$0xff]
        %v2811 = vld [vmem:[%s3 + $0x5b8] sm:$0xff]
        %v2812 = vld [vmem:[%s3 + $0x5c0] sm:$0xff]
        %v2813 = vld [vmem:[%s3 + $0x5c8] sm:$0xff]
        %v2814 = vld [vmem:[%s3 + $0x5d0] sm:$0xff]
        %v2815 = vld [vmem:[%s3 + $0x5d8] sm:$0xff]
        %v2816 = vld [vmem:[%s3 + $0x5e0] sm:$0xff]
        %v2817 = vld [vmem:[%s3 + $0x5e8] sm:$0xff]
        %v2818 = vld [vmem:[%s3 + $0x5f0] sm:$0xff]
        %v2819 = vld [vmem:[%s3 + $0x5f8] sm:$0xff]
        %v2820 = vld [vmem:[%s3 + $0x600] sm:$0xff]
        %v2821 = vld [vmem:[%s3 + $0x608] sm:$0xff]
        %v2822 = vld [vmem:[%s3 + $0x610] sm:$0xff]
        %v2823 = vld [vmem:[%s3 + $0x618] sm:$0xff]
        %v2824 = vld [vmem:[%s3 + $0x620] sm:$0xff]
        %v2825 = vld [vmem:[%s3 + $0x628] sm:$0xff]
        %v2826 = vld [vmem:[%s3 + $0x630] sm:$0xff]
        %v2827 = vld [vmem:[%s3 + $0x638] sm:$0xff]
        %v2828 = vld [vmem:[%s3 + $0x640] sm:$0xff]
        %v2829 = vld [vmem:[%s3 + $0x648] sm:$0xff]
        %v2830 = vld [vmem:[%s3 + $0x650] sm:$0xff]
        %v2831 = vld [vmem:[%s3 + $0x658] sm:$0xff]
        %v2832 = vld [vmem:[%s3 + $0x660] sm:$0xff]
        %v2833 = vld [vmem:[%s3 + $0x668] sm:$0xff]
        %v2834 = vld [vmem:[%s3 + $0x670] sm:$0xff]
        %v2835 = vld [vmem:[%s3 + $0x678] sm:$0xff]
        %v2836 = vld [vmem:[%s3 + $0x680] sm:$0xff]
        %v2837 = vld [vmem:[%s3 + $0x688] sm:$0xff]
        %v2838 = vld [vmem:[%s3 + $0x690] sm:$0xff]
        %v2839 = vld [vmem:[%s3 + $0x698] sm:$0xff]
        %v2840 = vld [vmem:[%s3 + $0x6a0] sm:$0xff]
        %v2841 = vld [vmem:[%s3 + $0x6a8] sm:$0xff]
        %v2842 = vld [vmem:[%s3 + $0x6b0] sm:$0xff]
        %v2843 = vld [vmem:[%s3 + $0x6b8] sm:$0xff]
        %v2844 = vld [vmem:[%s3 + $0x6c0] sm:$0xff]
        %v2845 = vld [vmem:[%s3 + $0x6c8] sm:$0xff]
        %v2846 = vld [vmem:[%s3 + $0x6d0] sm:$0xff]
        %v2847 = vld [vmem:[%s3 + $0x6d8] sm:$0xff]
        %v2848 = vld [vmem:[%s3 + $0x6e0] sm:$0xff]
        %v2849 = vld [vmem:[%s3 + $0x6e8] sm:$0xff]
        %v2850 = vld [vmem:[%s3 + $0x6f0] sm:$0xff]
        %v2851 = vld [vmem:[%s3 + $0x6f8] sm:$0xff]
        %v2852 = vld [vmem:[%s3 + $0x700] sm:$0xff]
        %v2853 = vld [vmem:[%s3 + $0x708] sm:$0xff]
        %v2854 = vld [vmem:[%s3 + $0x710] sm:$0xff]
        %v2855 = vld [vmem:[%s3 + $0x718] sm:$0xff]
        %v2856 = vld [vmem:[%s3 + $0x720] sm:$0xff]
        %v2857 = vld [vmem:[%s3 + $0x728] sm:$0xff]
        %v2858 = vld [vmem:[%s3 + $0x730] sm:$0xff]
        %v2859 = vld [vmem:[%s3 + $0x738] sm:$0xff]
        %v2860 = vld [vmem:[%s3 + $0x740] sm:$0xff]
        %v2861 = vld [vmem:[%s3 + $0x748] sm:$0xff]
        %v2862 = vld [vmem:[%s3 + $0x750] sm:$0xff]
        %v2863 = vld [vmem:[%s3 + $0x758] sm:$0xff]
        %v2864 = vld [vmem:[%s3 + $0x760] sm:$0xff]
        %v2865 = vld [vmem:[%s3 + $0x768] sm:$0xff]
        %v2866 = vld [vmem:[%s3 + $0x770] sm:$0xff]
        %v2867 = vld [vmem:[%s3 + $0x778] sm:$0xff]
        %v2868 = vld [vmem:[%s3 + $0x780] sm:$0xff]
        %v2869 = vld [vmem:[%s3 + $0x788] sm:$0xff]
        %v2870 = vld [vmem:[%s3 + $0x790] sm:$0xff]
        %v2871 = vld [vmem:[%s3 + $0x798] sm:$0xff]
        %v2872 = vld [vmem:[%s3 + $0x7a0] sm:$0xff]
        %v2873 = vld [vmem:[%s3 + $0x7a8] sm:$0xff]
        %v2874 = vld [vmem:[%s3 + $0x7b0] sm:$0xff]
        %v2875 = vld [vmem:[%s3 + $0x7b8] sm:$0xff]
        %v2876 = vld [vmem:[%s3 + $0x7c0] sm:$0xff]
        %v2877 = vld [vmem:[%s3 + $0x7c8] sm:$0xff]
        %v2878 = vld [vmem:[%s3 + $0x7d0] sm:$0xff]
        %v2879 = vld [vmem:[%s3 + $0x7d8] sm:$0xff]
        %v2880 = vld [vmem:[%s3 + $0x7e0] sm:$0xff]
        %v2881 = vld [vmem:[%s3 + $0x7e8] sm:$0xff]
        %v2882 = vld [vmem:[%s3 + $0x7f0] sm:$0xff]
        %v2883 = vld [vmem:[%s3 + $0x7f8] sm:$0xff]
        %v2884 = vld [vmem:[%s3 + $0x800] sm:$0xff]
        %v2885 = vld [vmem:[%s3 + $0x808] sm:$0xff]
        %v2886 = vld [vmem:[%s3 + $0x810] sm:$0xff]
        %v2887 = vld [vmem:[%s3 + $0x818] sm:$0xff]
        %v2888 = vld [vmem:[%s3 + $0x820] sm:$0xff]
        %v2889 = vld [vmem:[%s3 + $0x828] sm:$0xff]
        %v2890 = vld [vmem:[%s3 + $0x830] sm:$0xff]
        %v2891 = vld [vmem:[%s3 + $0x838] sm:$0xff]
        %v2892 = vld [vmem:[%s3 + $0x840] sm:$0xff]
        %v2893 = vld [vmem:[%s3 + $0x848] sm:$0xff]
        %v2894 = vld [vmem:[%s3 + $0x850] sm:$0xff]
        %v2895 = vld [vmem:[%s3 + $0x858] sm:$0xff]
        %v2896 = vld [vmem:[%s3 + $0x860] sm:$0xff]
        %v2897 = vld [vmem:[%s3 + $0x868] sm:$0xff]
        %v2898 = vld [vmem:[%s3 + $0x870] sm:$0xff]
        %v2899 = vld [vmem:[%s3 + $0x878] sm:$0xff]
        %v2900 = vld [vmem:[%s3 + $0x880] sm:$0xff]
        %v2901 = vld [vmem:[%s3 + $0x888] sm:$0xff]
        %v2902 = vld [vmem:[%s3 + $0x890] sm:$0xff]
        %v2903 = vld [vmem:[%s3 + $0x898] sm:$0xff]
        %v2904 = vld [vmem:[%s3 + $0x8a0] sm:$0xff]
        %v2905 = vld [vmem:[%s3 + $0x8a8] sm:$0xff]
        %v2906 = vld [vmem:[%s3 + $0x8b0] sm:$0xff]
        %v2907 = vld [vmem:[%s3 + $0x8b8] sm:$0xff]
        %v2908 = vld [vmem:[%s3 + $0x8c0] sm:$0xff]
        %v2909 = vld [vmem:[%s3 + $0x8c8] sm:$0xff]
        %v2910 = vld [vmem:[%s3 + $0x8d0] sm:$0xff]
        %v2911 = vld [vmem:[%s3 + $0x8d8] sm:$0xff]
        %v2912 = vld [vmem:[%s3 + $0x8e0] sm:$0xff]
        %v2913 = vld [vmem:[%s3 + $0x8e8] sm:$0xff]
        %v2914 = vld [vmem:[%s3 + $0x8f0] sm:$0xff]
        %v2915 = vld [vmem:[%s3 + $0x8f8] sm:$0xff]
        %v2916 = vld [vmem:[%s3 + $0x900] sm:$0xff]
        %v2917 = vld [vmem:[%s3 + $0x908] sm:$0xff]
        %v2918 = vld [vmem:[%s3 + $0x910] sm:$0xff]
        %v2919 = vld [vmem:[%s3 + $0x918] sm:$0xff]
        %v2920 = vld [vmem:[%s3 + $0x920] sm:$0xff]
        %v2921 = vld [vmem:[%s3 + $0x928] sm:$0xff]
        %v2922 = vld [vmem:[%s3 + $0x930] sm:$0xff]
        %v2923 = vld [vmem:[%s3 + $0x938] sm:$0xff]
        %v2924 = vld [vmem:[%s3 + $0x940] sm:$0xff]
        %v2925 = vld [vmem:[%s3 + $0x948] sm:$0xff]
        %v2926 = vld [vmem:[%s3 + $0x950] sm:$0xff]
        %v2927 = vld [vmem:[%s3 + $0x958] sm:$0xff]
        %v2928 = vld [vmem:[%s3 + $0x960] sm:$0xff]
        %v2929 = vld [vmem:[%s3 + $0x968] sm:$0xff]
        %v2930 = vld [vmem:[%s3 + $0x970] sm:$0xff]
        %v2931 = vld [vmem:[%s3 + $0x978] sm:$0xff]
        %v2932 = vld [vmem:[%s3 + $0x980] sm:$0xff]
        %v2933 = vld [vmem:[%s3 + $0x988] sm:$0xff]
        %v2934 = vld [vmem:[%s3 + $0x990] sm:$0xff]
        %v2935 = vld [vmem:[%s3 + $0x998] sm:$0xff]
        %v2936 = vld [vmem:[%s3 + $0x9a0] sm:$0xff]
        %v2937 = vld [vmem:[%s3 + $0x9a8] sm:$0xff]
        %v2938 = vld [vmem:[%s3 + $0x9b0] sm:$0xff]
        %v2939 = vld [vmem:[%s3 + $0x9b8] sm:$0xff]
        %v2940 = vld [vmem:[%s3 + $0x9c0] sm:$0xff]
        %v2941 = vld [vmem:[%s3 + $0x9c8] sm:$0xff]
        %v2942 = vld [vmem:[%s3 + $0x9d0] sm:$0xff]
        %v2943 = vld [vmem:[%s3 + $0x9d8] sm:$0xff]
        %v2944 = vld [vmem:[%s3 + $0x9e0] sm:$0xff]
        %v2945 = vld [vmem:[%s3 + $0x9e8] sm:$0xff]
        %v2946 = vld [vmem:[%s3 + $0x9f0] sm:$0xff]
        %v2947 = vld [vmem:[%s3 + $0x9f8] sm:$0xff]
        %v2948 = vld [vmem:[%s3 + $0xa00] sm:$0xff]
        %v2949 = vld [vmem:[%s3 + $0xa08] sm:$0xff]
        %v2950 = vld [vmem:[%s3 + $0xa10] sm:$0xff]
        %v2951 = vld [vmem:[%s3 + $0xa18] sm:$0xff]
        %v2952 = vld [vmem:[%s3 + $0xa20] sm:$0xff]
        %v2953 = vld [vmem:[%s3 + $0xa28] sm:$0xff]
        %v2954 = vld [vmem:[%s3 + $0xa30] sm:$0xff]
        %v2955 = vld [vmem:[%s3 + $0xa38] sm:$0xff]
        %v2956 = vld [vmem:[%s3 + $0xa40] sm:$0xff]
        %v2957 = vld [vmem:[%s3 + $0xa48] sm:$0xff]
        %v2958 = vld [vmem:[%s3 + $0xa50] sm:$0xff]
        %v2959 = vld [vmem:[%s3 + $0xa58] sm:$0xff]
        %v2960 = vld [vmem:[%s3 + $0xa60] sm:$0xff]
        %v2961 = vld [vmem:[%s3 + $0xa68] sm:$0xff]
        %v2962 = vld [vmem:[%s3 + $0xa70] sm:$0xff]
        %v2963 = vld [vmem:[%s3 + $0xa78] sm:$0xff]
        %v2964 = vld [vmem:[%s3 + $0xa80] sm:$0xff]
        %v2965 = vld [vmem:[%s3 + $0xa88] sm:$0xff]
        %v2966 = vld [vmem:[%s3 + $0xa90] sm:$0xff]
        %v2967 = vld [vmem:[%s3 + $0xa98] sm:$0xff]
        %v2968 = vld [vmem:[%s3 + $0xaa0] sm:$0xff]
        %v2969 = vld [vmem:[%s3 + $0xaa8] sm:$0xff]
        %v2970 = vld [vmem:[%s3 + $0xab0] sm:$0xff]
        %v2971 = vld [vmem:[%s3 + $0xab8] sm:$0xff]
        %v2972 = vld [vmem:[%s3 + $0xac0] sm:$0xff]
        %v2973 = vld [vmem:[%s3 + $0xac8] sm:$0xff]
        %v2974 = vld [vmem:[%s3 + $0xad0] sm:$0xff]
        %v2975 = vld [vmem:[%s3 + $0xad8] sm:$0xff]
        %v2976 = vld [vmem:[%s3 + $0xae0] sm:$0xff]
        %v2977 = vld [vmem:[%s3 + $0xae8] sm:$0xff]
        %v2978 = vld [vmem:[%s3 + $0xaf0] sm:$0xff]
        %v2979 = vld [vmem:[%s3 + $0xaf8] sm:$0xff]
        %v2980 = vld [vmem:[%s3 + $0xb00] sm:$0xff]
        %v2981 = vld [vmem:[%s3 + $0xb08] sm:$0xff]
        %v2982 = vld [vmem:[%s3 + $0xb10] sm:$0xff]
        %v2983 = vld [vmem:[%s3 + $0xb18] sm:$0xff]
        %v2984 = vld [vmem:[%s3 + $0xb20] sm:$0xff]
        %v2985 = vld [vmem:[%s3 + $0xb28] sm:$0xff]
        %v2986 = vld [vmem:[%s3 + $0xb30] sm:$0xff]
        %v2987 = vld [vmem:[%s3 + $0xb38] sm:$0xff]
        %v2988 = vld [vmem:[%s3 + $0xb40] sm:$0xff]
        %v2989 = vld [vmem:[%s3 + $0xb48] sm:$0xff]
        %v2990 = vld [vmem:[%s3 + $0xb50] sm:$0xff]
        %v2991 = vld [vmem:[%s3 + $0xb58] sm:$0xff]
        %v2992 = vld [vmem:[%s3 + $0xb60] sm:$0xff]
        %v2993 = vld [vmem:[%s3 + $0xb68] sm:$0xff]
        %v2994 = vld [vmem:[%s3 + $0xb70] sm:$0xff]
        %v2995 = vld [vmem:[%s3 + $0xb78] sm:$0xff]
        %v2996 = vld [vmem:[%s3 + $0xb80] sm:$0xff]
        %v2997 = vld [vmem:[%s3 + $0xb88] sm:$0xff]
        %v2998 = vld [vmem:[%s3 + $0xb90] sm:$0xff]
        %v2999 = vld [vmem:[%s3 + $0xb98] sm:$0xff]
        %v3000 = vld [vmem:[%s3 + $0xba0] sm:$0xff]
        %v3001 = vld [vmem:[%s3 + $0xba8] sm:$0xff]
        %v3002 = vld [vmem:[%s3 + $0xbb0] sm:$0xff]
        %v3003 = vld [vmem:[%s3 + $0xbb8] sm:$0xff]
        %v3004 = vld [vmem:[%s3 + $0xbc0] sm:$0xff]
        %v3005 = vld [vmem:[%s3 + $0xbc8] sm:$0xff]
        %v3006 = vld [vmem:[%s3 + $0xbd0] sm:$0xff]
        %v3007 = vld [vmem:[%s3 + $0xbd8] sm:$0xff]
        %v3008 = vld [vmem:[%s3 + $0xbe0] sm:$0xff]
        %v3009 = vld [vmem:[%s3 + $0xbe8] sm:$0xff]
        %v3010 = vld [vmem:[%s3 + $0xbf0] sm:$0xff]
        %v3011 = vld [vmem:[%s3 + $0xbf8] sm:$0xff]
        %v3012 = vld [vmem:[%s3 + $0xc00] sm:$0xff]
        %v3013 = vld [vmem:[%s3 + $0xc08] sm:$0xff]
        %v3014 = vld [vmem:[%s3 + $0xc10] sm:$0xff]
        %v3015 = vld [vmem:[%s3 + $0xc18] sm:$0xff]
        %v3016 = vld [vmem:[%s3 + $0xc20] sm:$0xff]
        %v3017 = vld [vmem:[%s3 + $0xc28] sm:$0xff]
        %v3018 = vld [vmem:[%s3 + $0xc30] sm:$0xff]
        %v3019 = vld [vmem:[%s3 + $0xc38] sm:$0xff]
        %v3020 = vld [vmem:[%s3 + $0xc40] sm:$0xff]
        %v3021 = vld [vmem:[%s3 + $0xc48] sm:$0xff]
        %v3022 = vld [vmem:[%s3 + $0xc50] sm:$0xff]
        %v3023 = vld [vmem:[%s3 + $0xc58] sm:$0xff]
        %v3024 = vld [vmem:[%s3 + $0xc60] sm:$0xff]
        %v3025 = vld [vmem:[%s3 + $0xc68] sm:$0xff]
        %v3026 = vld [vmem:[%s3 + $0xc70] sm:$0xff]
        %v3027 = vld [vmem:[%s3 + $0xc78] sm:$0xff]
        %v3028 = vld [vmem:[%s4] sm:$0x3]
        %v3029 = vld [vmem:[#allocation4] sm:$0xf]
        %v3030 = vld [vmem:[#allocation4 + $0x4] sm:$0xf]
        %v3031 = vld [vmem:[#allocation4 + $0x8] sm:$0xf]
        %v3032 = vld [vmem:[#allocation4 + $0xc] sm:$0xf]
        %v3033 = vld [vmem:[#allocation4 + $0x10] sm:$0xf]
        %v3034 = vld [vmem:[#allocation4 + $0x14] sm:$0xf]
        %v3035 = vld [vmem:[#allocation4 + $0x18] sm:$0xf]
        %v3036 = vld [vmem:[#allocation4 + $0x1c] sm:$0xf]
        %v3037 = vld [vmem:[#allocation4 + $0x20] sm:$0xf]
        %v3038 = vld [vmem:[#allocation4 + $0x24] sm:$0xf]
        %3039 = vst [vmem:[#allocation5] sm:$0xf] %v3029
        %3040 = vst [vmem:[#allocation5 + $0x64] sm:$0xf] %v3030
        %3041 = vst [vmem:[#allocation5 + $0xc8] sm:$0xf] %v3031
        %3042 = vst [vmem:[#allocation5 + $0x12c] sm:$0xf] %v3032
        %3043 = vst [vmem:[#allocation5 + $0x190] sm:$0xf] %v3033
        %3044 = vst [vmem:[#allocation5 + $0x1f4] sm:$0xf] %v3034
        %3045 = vst [vmem:[#allocation5 + $0x258] sm:$0xf] %v3035
        %3046 = vst [vmem:[#allocation5 + $0x2bc] sm:$0xf] %v3036
        %3047 = vst [vmem:[#allocation5 + $0x320] sm:$0xf] %v3037
        %3048 = vst [vmem:[#allocation5 + $0x384] sm:$0xf] %v3038
        %v3049 = vld [vmem:[#allocation4] sm:$0xf]
        %v3050 = vld [vmem:[#allocation4 + $0x4] sm:$0xf]
        %v3051 = vld [vmem:[#allocation4 + $0x8] sm:$0xf]
        %v3052 = vld [vmem:[#allocation4 + $0xc] sm:$0xf]
        %v3053 = vld [vmem:[#allocation4 + $0x10] sm:$0xf]
        %v3054 = vld [vmem:[#allocation4 + $0x14] sm:$0xf]
        %v3055 = vld [vmem:[#allocation4 + $0x18] sm:$0xf]
        %v3056 = vld [vmem:[#allocation4 + $0x1c] sm:$0xf]
        %v3057 = vld [vmem:[#allocation4 + $0x20] sm:$0xf]
        %v3058 = vld [vmem:[#allocation4 + $0x24] sm:$0xf]
        %v3059 = vld [vmem:[#allocation4 + $0x28] sm:$0x1]
        %vm3060 = vsmask.f32 7440
        %vm3061 = vmor %vm2548, %vm3060
        %v3063 = vshrl.u32 %v3049, 16
        %v3065 = vrot.slane %v3063, 4
        %v3066 = vshll.u32 %v3049, 16
        %v3068 = vrot.slane %v3066, 5
        %v3069 = vor.u32 %v3065, %v3068
        %v3070 = vrot.slane %v3069, 4
        %v3072 = vshll.u32 %v3050, 16
        %v3074 = vrot.slane %v3072, 5
        %v3075 = vsel %vm3061, %v3070, %v3074
        %v3076 = vshrl.u32 %v3050, 16
        %v3078 = vrot.slane %v3076, 4
        %v3079 = vor.u32 %v3078, %v3074
        %v3080 = vrot.slane %v3079, 4
        %v3082 = vshll.u32 %v3051, 16
        %v3084 = vrot.slane %v3082, 5
        %v3085 = vsel %vm3061, %v3080, %v3084
        %v3086 = vshrl.u32 %v3051, 16
        %v3088 = vrot.slane %v3086, 4
        %v3089 = vor.u32 %v3088, %v3084
        %v3090 = vrot.slane %v3089, 4
        %v3092 = vshll.u32 %v3052, 16
        %v3094 = vrot.slane %v3092, 5
        %v3095 = vsel %vm3061, %v3090, %v3094
        %v3096 = vshrl.u32 %v3052, 16
        %v3098 = vrot.slane %v3096, 4
        %v3099 = vor.u32 %v3098, %v3094
        %v3100 = vrot.slane %v3099, 4
        %v3102 = vshll.u32 %v3053, 16
        %v3104 = vrot.slane %v3102, 5
        %v3105 = vsel %vm3061, %v3100, %v3104
        %v3106 = vshrl.u32 %v3053, 16
        %v3108 = vrot.slane %v3106, 4
        %v3109 = vor.u32 %v3108, %v3104
        %v3110 = vrot.slane %v3109, 4
        %v3112 = vshll.u32 %v3054, 16
        %v3114 = vrot.slane %v3112, 5
        %v3115 = vsel %vm3061, %v3110, %v3114
        %v3116 = vshrl.u32 %v3054, 16
        %v3118 = vrot.slane %v3116, 4
        %v3119 = vor.u32 %v3118, %v3114
        %v3120 = vrot.slane %v3119, 4
        %v3122 = vshll.u32 %v3055, 16
        %v3124 = vrot.slane %v3122, 5
        %v3125 = vsel %vm3061, %v3120, %v3124
        %v3126 = vshrl.u32 %v3055, 16
        %v3128 = vrot.slane %v3126, 4
        %v3129 = vor.u32 %v3128, %v3124
        %v3130 = vrot.slane %v3129, 4
        %v3132 = vshll.u32 %v3056, 16
        %v3134 = vrot.slane %v3132, 5
        %v3135 = vsel %vm3061, %v3130, %v3134
        %v3136 = vshrl.u32 %v3056, 16
        %v3138 = vrot.slane %v3136, 4
        %v3139 = vor.u32 %v3138, %v3134
        %v3140 = vrot.slane %v3139, 4
        %v3142 = vshll.u32 %v3057, 16
        %v3144 = vrot.slane %v3142, 5
        %v3145 = vsel %vm3061, %v3140, %v3144
        %v3146 = vshrl.u32 %v3057, 16
        %v3148 = vrot.slane %v3146, 4
        %v3149 = vor.u32 %v3148, %v3144
        %v3150 = vrot.slane %v3149, 4
        %v3152 = vshll.u32 %v3058, 16
        %v3154 = vrot.slane %v3152, 5
        %v3155 = vsel %vm3061, %v3150, %v3154
        %v3156 = vshrl.u32 %v3058, 16
        %v3158 = vrot.slane %v3156, 4
        %v3159 = vor.u32 %v3158, %v3154
        %v3160 = vrot.slane %v3159, 4
        %v3162 = vshll.u32 %v3059, 16
        %v3164 = vrot.slane %v3162, 5
        %v3165 = vsel %vm3061, %v3160, %v3164
        %3176 = vst [vmem:[#allocation5 + $0x4] sm:$0xf] %v3075
        %3177 = vst [vmem:[#allocation5 + $0x68] sm:$0xf] %v3085
        %3178 = vst [vmem:[#allocation5 + $0xcc] sm:$0xf] %v3095
        %3179 = vst [vmem:[#allocation5 + $0x130] sm:$0xf] %v3105
        %3180 = vst [vmem:[#allocation5 + $0x194] sm:$0xf] %v3115
        %3181 = vst [vmem:[#allocation5 + $0x1f8] sm:$0xf] %v3125
        %3182 = vst [vmem:[#allocation5 + $0x25c] sm:$0xf] %v3135
        %3183 = vst [vmem:[#allocation5 + $0x2c0] sm:$0xf] %v3145
        %3184 = vst [vmem:[#allocation5 + $0x324] sm:$0xf] %v3155
        %3185 = vst [vmem:[#allocation5 + $0x388] sm:$0xf] %v3165
        %v3186 = vld [vmem:[#allocation4] sm:$0xe]
        %v3187 = vld [vmem:[#allocation4 + $0x4] sm:$0xf]
        %v3188 = vld [vmem:[#allocation4 + $0x8] sm:$0xf]
        %v3189 = vld [vmem:[#allocation4 + $0xc] sm:$0xf]
        %v3190 = vld [vmem:[#allocation4 + $0x10] sm:$0xf]
        %v3191 = vld [vmem:[#allocation4 + $0x14] sm:$0xf]
        %v3192 = vld [vmem:[#allocation4 + $0x18] sm:$0xf]
        %v3193 = vld [vmem:[#allocation4 + $0x1c] sm:$0xf]
        %v3194 = vld [vmem:[#allocation4 + $0x20] sm:$0xf]
        %v3195 = vld [vmem:[#allocation4 + $0x24] sm:$0xf]
        %v3196 = vld [vmem:[#allocation4 + $0x28] sm:$0x1]
        %vm3208 = vcmask 1046532
        %vm3209 = vmor %vm2577, %vm3208
        %v3210 = vrot.slane %v3186, 5
        %v3211 = vrot.slane %v3210, 4
        %v3212 = vrot.slane %v3187, 5
        %v3213 = vsel %vm3209, %v3211, %v3212
        %v3214 = vrot.slane %v3212, 4
        %v3215 = vrot.slane %v3188, 5
        %v3216 = vsel %vm3209, %v3214, %v3215
        %v3217 = vrot.slane %v3215, 4
        %v3218 = vrot.slane %v3189, 5
        %v3219 = vsel %vm3209, %v3217, %v3218
        %v3220 = vrot.slane %v3218, 4
        %v3221 = vrot.slane %v3190, 5
        %v3222 = vsel %vm3209, %v3220, %v3221
        %v3223 = vrot.slane %v3221, 4
        %v3224 = vrot.slane %v3191, 5
        %v3225 = vsel %vm3209, %v3223, %v3224
        %v3226 = vrot.slane %v3224, 4
        %v3227 = vrot.slane %v3192, 5
        %v3228 = vsel %vm3209, %v3226, %v3227
        %v3229 = vrot.slane %v3227, 4
        %v3230 = vrot.slane %v3193, 5
        %v3231 = vsel %vm3209, %v3229, %v3230
        %v3232 = vrot.slane %v3230, 4
        %v3233 = vrot.slane %v3194, 5
        %v3234 = vsel %vm3209, %v3232, %v3233
        %v3235 = vrot.slane %v3233, 4
        %v3236 = vrot.slane %v3195, 5
        %v3237 = vsel %vm3209, %v3235, %v3236
        %v3238 = vrot.slane %v3236, 4
        %v3239 = vrot.slane %v3196, 5
        %v3240 = vsel %vm3209, %v3238, %v3239
        %3251 = vst [vmem:[#allocation5 + $0x8] sm:$0xf] %v3213
        %3252 = vst [vmem:[#allocation5 + $0x6c] sm:$0xf] %v3216
        %3253 = vst [vmem:[#allocation5 + $0xd0] sm:$0xf] %v3219
        %3254 = vst [vmem:[#allocation5 + $0x134] sm:$0xf] %v3222
        %3255 = vst [vmem:[#allocation5 + $0x198] sm:$0xf] %v3225
        %3256 = vst [vmem:[#allocation5 + $0x1fc] sm:$0xf] %v3228
        %3257 = vst [vmem:[#allocation5 + $0x260] sm:$0xf] %v3231
        %3258 = vst [vmem:[#allocation5 + $0x2c4] sm:$0xf] %v3234
        %3259 = vst [vmem:[#allocation5 + $0x328] sm:$0xf] %v3237
        %3260 = vst [vmem:[#allocation5 + $0x38c] sm:$0xf] %v3240
        %v3261 = vld [vmem:[#allocation4] sm:$0xe]
        %v3262 = vld [vmem:[#allocation4 + $0x4] sm:$0xf]
        %v3263 = vld [vmem:[#allocation4 + $0x8] sm:$0xf]
        %v3264 = vld [vmem:[#allocation4 + $0xc] sm:$0xf]
        %v3265 = vld [vmem:[#allocation4 + $0x10] sm:$0xf]
        %v3266 = vld [vmem:[#allocation4 + $0x14] sm:$0xf]
        %v3267 = vld [vmem:[#allocation4 + $0x18] sm:$0xf]
        %v3268 = vld [vmem:[#allocation4 + $0x1c] sm:$0xf]
        %v3269 = vld [vmem:[#allocation4 + $0x20] sm:$0xf]
        %v3270 = vld [vmem:[#allocation4 + $0x24] sm:$0xf]
        %v3271 = vld [vmem:[#allocation4 + $0x28] sm:$0x3]
        %vm3272 = vsmask.f32 6416
        %vm3273 = vmor %vm2578, %vm3272
        %v3275 = vshrl.u32 %v3261, 16
        %v3277 = vrot.slane %v3275, 5
        %v3278 = vshll.u32 %v3261, 16
        %v3280 = vrot.slane %v3278, 6
        %v3281 = vor.u32 %v3277, %v3280
        %v3282 = vrot.slane %v3281, 4
        %v3284 = vshrl.u32 %v3262, 16
        %v3286 = vrot.slane %v3284, 5
        %v3287 = vshll.u32 %v3262, 16
        %v3289 = vrot.slane %v3287, 6
        %v3290 = vor.u32 %v3286, %v3289
        %v3291 = vsel %vm3273, %v3282, %v3290
        %v3292 = vrot.slane %v3290, 4
        %v3294 = vshrl.u32 %v3263, 16
        %v3296 = vrot.slane %v3294, 5
        %v3297 = vshll.u32 %v3263, 16
        %v3299 = vrot.slane %v3297, 6
        %v3300 = vor.u32 %v3296, %v3299
        %v3301 = vsel %vm3273, %v3292, %v3300
        %v3302 = vrot.slane %v3300, 4
        %v3304 = vshrl.u32 %v3264, 16
        %v3306 = vrot.slane %v3304, 5
        %v3307 = vshll.u32 %v3264, 16
        %v3309 = vrot.slane %v3307, 6
        %v3310 = vor.u32 %v3306, %v3309
        %v3311 = vsel %vm3273, %v3302, %v3310
        %v3312 = vrot.slane %v3310, 4
        %v3314 = vshrl.u32 %v3265, 16
        %v3316 = vrot.slane %v3314, 5
        %v3317 = vshll.u32 %v3265, 16
        %v3319 = vrot.slane %v3317, 6
        %v3320 = vor.u32 %v3316, %v3319
        %v3321 = vsel %vm3273, %v3312, %v3320
        %v3322 = vrot.slane %v3320, 4
        %v3324 = vshrl.u32 %v3266, 16
        %v3326 = vrot.slane %v3324, 5
        %v3327 = vshll.u32 %v3266, 16
        %v3329 = vrot.slane %v3327, 6
        %v3330 = vor.u32 %v3326, %v3329
        %v3331 = vsel %vm3273, %v3322, %v3330
        %v3332 = vrot.slane %v3330, 4
        %v3334 = vshrl.u32 %v3267, 16
        %v3336 = vrot.slane %v3334, 5
        %v3337 = vshll.u32 %v3267, 16
        %v3339 = vrot.slane %v3337, 6
        %v3340 = vor.u32 %v3336, %v3339
        %v3341 = vsel %vm3273, %v3332, %v3340
        %v3342 = vrot.slane %v3340, 4
        %v3344 = vshrl.u32 %v3268, 16
        %v3346 = vrot.slane %v3344, 5
        %v3347 = vshll.u32 %v3268, 16
        %v3349 = vrot.slane %v3347, 6
        %v3350 = vor.u32 %v3346, %v3349
        %v3351 = vsel %vm3273, %v3342, %v3350
        %v3352 = vrot.slane %v3350, 4
        %v3354 = vshrl.u32 %v3269, 16
        %v3356 = vrot.slane %v3354, 5
        %v3357 = vshll.u32 %v3269, 16
        %v3359 = vrot.slane %v3357, 6
        %v3360 = vor.u32 %v3356, %v3359
        %v3361 = vsel %vm3273, %v3352, %v3360
        %v3362 = vrot.slane %v3360, 4
        %v3364 = vshrl.u32 %v3270, 16
        %v3366 = vrot.slane %v3364, 5
        %v3367 = vshll.u32 %v3270, 16
        %v3369 = vrot.slane %v3367, 6
        %v3370 = vor.u32 %v3366, %v3369
        %v3371 = vsel %vm3273, %v3362, %v3370
        %v3372 = vrot.slane %v3370, 4
        %v3374 = vshrl.u32 %v3271, 16
        %v3376 = vrot.slane %v3374, 5
        %v3377 = vshll.u32 %v3271, 16
        %v3379 = vrot.slane %v3377, 6
        %v3380 = vor.u32 %v3376, %v3379
        %v3381 = vsel %vm3273, %v3372, %v3380
        %3392 = vst [vmem:[#allocation5 + $0xc] sm:$0xf] %v3291
        %3393 = vst [vmem:[#allocation5 + $0x70] sm:$0xf] %v3301
        %3394 = vst [vmem:[#allocation5 + $0xd4] sm:$0xf] %v3311
        %3395 = vst [vmem:[#allocation5 + $0x138] sm:$0xf] %v3321
        %3396 = vst [vmem:[#allocation5 + $0x19c] sm:$0xf] %v3331
        %3397 = vst [vmem:[#allocation5 + $0x200] sm:$0xf] %v3341
        %3398 = vst [vmem:[#allocation5 + $0x264] sm:$0xf] %v3351
        %3399 = vst [vmem:[#allocation5 + $0x2c8] sm:$0xf] %v3361
        %3400 = vst [vmem:[#allocation5 + $0x32c] sm:$0xf] %v3371
        %3401 = vst [vmem:[#allocation5 + $0x390] sm:$0xf] %v3381
        %v3402 = vld [vmem:[#allocation4] sm:$0xc]
        %v3403 = vld [vmem:[#allocation4 + $0x4] sm:$0xf]
        %v3404 = vld [vmem:[#allocation4 + $0x8] sm:$0xf]
        %v3405 = vld [vmem:[#allocation4 + $0xc] sm:$0xf]
        %v3406 = vld [vmem:[#allocation4 + $0x10] sm:$0xf]
        %v3407 = vld [vmem:[#allocation4 + $0x14] sm:$0xf]
        %v3408 = vld [vmem:[#allocation4 + $0x18] sm:$0xf]
        %v3409 = vld [vmem:[#allocation4 + $0x1c] sm:$0xf]
        %v3410 = vld [vmem:[#allocation4 + $0x20] sm:$0xf]
        %v3411 = vld [vmem:[#allocation4 + $0x24] sm:$0xf]
        %v3412 = vld [vmem:[#allocation4 + $0x28] sm:$0x3]
        %v3424 = vrot.slane %v3402, 6
        %v3425 = vrot.slane %v3424, 4
        %v3426 = vrot.slane %v3403, 6
        %v3427 = vsel %vm2559, %v3425, %v3426
        %v3428 = vrot.slane %v3426, 4
        %v3429 = vrot.slane %v3404, 6
        %v3430 = vsel %vm2559, %v3428, %v3429
        %v3431 = vrot.slane %v3429, 4
        %v3432 = vrot.slane %v3405, 6
        %v3433 = vsel %vm2559, %v3431, %v3432
        %v3434 = vrot.slane %v3432, 4
        %v3435 = vrot.slane %v3406, 6
        %v3436 = vsel %vm2559, %v3434, %v3435
        %v3437 = vrot.slane %v3435, 4
        %v3438 = vrot.slane %v3407, 6
        %v3439 = vsel %vm2559, %v3437, %v3438
        %v3440 = vrot.slane %v3438, 4
        %v3441 = vrot.slane %v3408, 6
        %v3442 = vsel %vm2559, %v3440, %v3441
        %v3443 = vrot.slane %v3441, 4
        %v3444 = vrot.slane %v3409, 6
        %v3445 = vsel %vm2559, %v3443, %v3444
        %v3446 = vrot.slane %v3444, 4
        %v3447 = vrot.slane %v3410, 6
        %v3448 = vsel %vm2559, %v3446, %v3447
        %v3449 = vrot.slane %v3447, 4
        %v3450 = vrot.slane %v3411, 6
        %v3451 = vsel %vm2559, %v3449, %v3450
        %v3452 = vrot.slane %v3450, 4
        %v3453 = vrot.slane %v3412, 6
        %v3454 = vsel %vm2559, %v3452, %v3453
        %3465 = vst [vmem:[#allocation5 + $0x10] sm:$0xf] %v3427
        %3466 = vst [vmem:[#allocation5 + $0x74] sm:$0xf] %v3430
        %3467 = vst [vmem:[#allocation5 + $0xd8] sm:$0xf] %v3433
        %3468 = vst [vmem:[#allocation5 + $0x13c] sm:$0xf] %v3436
        %3469 = vst [vmem:[#allocation5 + $0x1a0] sm:$0xf] %v3439
        %3470 = vst [vmem:[#allocation5 + $0x204] sm:$0xf] %v3442
        %3471 = vst [vmem:[#allocation5 + $0x268] sm:$0xf] %v3445
        %3472 = vst [vmem:[#allocation5 + $0x2cc] sm:$0xf] %v3448
        %3473 = vst [vmem:[#allocation5 + $0x330] sm:$0xf] %v3451
        %3474 = vst [vmem:[#allocation5 + $0x394] sm:$0xf] %v3454
        %v3475 = vld [vmem:[#allocation4 + $0x4] sm:$0xe]
        %v3476 = vld [vmem:[#allocation4 + $0x8] sm:$0xf]
        %v3477 = vld [vmem:[#allocation4 + $0xc] sm:$0xf]
        %v3478 = vld [vmem:[#allocation4 + $0x10] sm:$0xf]
        %v3479 = vld [vmem:[#allocation4 + $0x14] sm:$0xf]
        %v3480 = vld [vmem:[#allocation4 + $0x18] sm:$0xf]
        %v3481 = vld [vmem:[#allocation4 + $0x1c] sm:$0xf]
        %v3482 = vld [vmem:[#allocation4 + $0x20] sm:$0xf]
        %v3483 = vld [vmem:[#allocation4 + $0x24] sm:$0xf]
        %v3484 = vld [vmem:[#allocation4 + $0x28] sm:$0xf]
        %v3485 = vld [vmem:[#allocation4 + $0x2c] sm:$0x3]
        %v3487 = vshrl.u32 %v3475, 16
        %v3489 = vrot.slane %v3487, 5
        %v3490 = vshll.u32 %v3475, 16
        %v3492 = vrot.slane %v3490, 6
        %v3493 = vor.u32 %v3489, %v3492
        %v3494 = vrot.slane %v3493, 4
        %v3496 = vshrl.u32 %v3476, 16
        %v3498 = vrot.slane %v3496, 5
        %v3499 = vshll.u32 %v3476, 16
        %v3501 = vrot.slane %v3499, 6
        %v3502 = vor.u32 %v3498, %v3501
        %v3503 = vsel %vm3273, %v3494, %v3502
        %v3504 = vrot.slane %v3502, 4
        %v3506 = vshrl.u32 %v3477, 16
        %v3508 = vrot.slane %v3506, 5
        %v3509 = vshll.u32 %v3477, 16
        %v3511 = vrot.slane %v3509, 6
        %v3512 = vor.u32 %v3508, %v3511
        %v3513 = vsel %vm3273, %v3504, %v3512
        %v3514 = vrot.slane %v3512, 4
        %v3516 = vshrl.u32 %v3478, 16
        %v3518 = vrot.slane %v3516, 5
        %v3519 = vshll.u32 %v3478, 16
        %v3521 = vrot.slane %v3519, 6
        %v3522 = vor.u32 %v3518, %v3521
        %v3523 = vsel %vm3273, %v3514, %v3522
        %v3524 = vrot.slane %v3522, 4
        %v3526 = vshrl.u32 %v3479, 16
        %v3528 = vrot.slane %v3526, 5
        %v3529 = vshll.u32 %v3479, 16
        %v3531 = vrot.slane %v3529, 6
        %v3532 = vor.u32 %v3528, %v3531
        %v3533 = vsel %vm3273, %v3524, %v3532
        %v3534 = vrot.slane %v3532, 4
        %v3536 = vshrl.u32 %v3480, 16
        %v3538 = vrot.slane %v3536, 5
        %v3539 = vshll.u32 %v3480, 16
        %v3541 = vrot.slane %v3539, 6
        %v3542 = vor.u32 %v3538, %v3541
        %v3543 = vsel %vm3273, %v3534, %v3542
        %v3544 = vrot.slane %v3542, 4
        %v3546 = vshrl.u32 %v3481, 16
        %v3548 = vrot.slane %v3546, 5
        %v3549 = vshll.u32 %v3481, 16
        %v3551 = vrot.slane %v3549, 6
        %v3552 = vor.u32 %v3548, %v3551
        %v3553 = vsel %vm3273, %v3544, %v3552
        %v3554 = vrot.slane %v3552, 4
        %v3556 = vshrl.u32 %v3482, 16
        %v3558 = vrot.slane %v3556, 5
        %v3559 = vshll.u32 %v3482, 16
        %v3561 = vrot.slane %v3559, 6
        %v3562 = vor.u32 %v3558, %v3561
        %v3563 = vsel %vm3273, %v3554, %v3562
        %v3564 = vrot.slane %v3562, 4
        %v3566 = vshrl.u32 %v3483, 16
        %v3568 = vrot.slane %v3566, 5
        %v3569 = vshll.u32 %v3483, 16
        %v3571 = vrot.slane %v3569, 6
        %v3572 = vor.u32 %v3568, %v3571
        %v3573 = vsel %vm3273, %v3564, %v3572
        %v3574 = vrot.slane %v3572, 4
        %v3576 = vshrl.u32 %v3484, 16
        %v3578 = vrot.slane %v3576, 5
        %v3579 = vshll.u32 %v3484, 16
        %v3581 = vrot.slane %v3579, 6
        %v3582 = vor.u32 %v3578, %v3581
        %v3583 = vsel %vm3273, %v3574, %v3582
        %v3584 = vrot.slane %v3582, 4
        %v3586 = vshrl.u32 %v3485, 16
        %v3588 = vrot.slane %v3586, 5
        %v3589 = vshll.u32 %v3485, 16
        %v3591 = vrot.slane %v3589, 6
        %v3592 = vor.u32 %v3588, %v3591
        %v3593 = vsel %vm3273, %v3584, %v3592
        %3604 = vst [vmem:[#allocation5 + $0x14] sm:$0xf] %v3503
        %3605 = vst [vmem:[#allocation5 + $0x78] sm:$0xf] %v3513
        %3606 = vst [vmem:[#allocation5 + $0xdc] sm:$0xf] %v3523
        %3607 = vst [vmem:[#allocation5 + $0x140] sm:$0xf] %v3533
        %3608 = vst [vmem:[#allocation5 + $0x1a4] sm:$0xf] %v3543
        %3609 = vst [vmem:[#allocation5 + $0x208] sm:$0xf] %v3553
        %3610 = vst [vmem:[#allocation5 + $0x26c] sm:$0xf] %v3563
        %3611 = vst [vmem:[#allocation5 + $0x2d0] sm:$0xf] %v3573
        %3612 = vst [vmem:[#allocation5 + $0x334] sm:$0xf] %v3583
        %3613 = vst [vmem:[#allocation5 + $0x398] sm:$0xf] %v3593
        %v3614 = vld [vmem:[#allocation4 + $0x4] sm:$0xc]
        %v3615 = vld [vmem:[#allocation4 + $0x8] sm:$0xf]
        %v3616 = vld [vmem:[#allocation4 + $0xc] sm:$0xf]
        %v3617 = vld [vmem:[#allocation4 + $0x10] sm:$0xf]
        %v3618 = vld [vmem:[#allocation4 + $0x14] sm:$0xf]
        %v3619 = vld [vmem:[#allocation4 + $0x18] sm:$0xf]
        %v3620 = vld [vmem:[#allocation4 + $0x1c] sm:$0xf]
        %v3621 = vld [vmem:[#allocation4 + $0x20] sm:$0xf]
        %v3622 = vld [vmem:[#allocation4 + $0x24] sm:$0xf]
        %v3623 = vld [vmem:[#allocation4 + $0x28] sm:$0xf]
        %v3624 = vld [vmem:[#allocation4 + $0x2c] sm:$0x3]
        %v3636 = vrot.slane %v3614, 6
        %v3637 = vrot.slane %v3636, 4
        %v3638 = vrot.slane %v3615, 6
        %v3639 = vsel %vm2559, %v3637, %v3638
        %v3640 = vrot.slane %v3638, 4
        %v3641 = vrot.slane %v3616, 6
        %v3642 = vsel %vm2559, %v3640, %v3641
        %v3643 = vrot.slane %v3641, 4
        %v3644 = vrot.slane %v3617, 6
        %v3645 = vsel %vm2559, %v3643, %v3644
        %v3646 = vrot.slane %v3644, 4
        %v3647 = vrot.slane %v3618, 6
        %v3648 = vsel %vm2559, %v3646, %v3647
        %v3649 = vrot.slane %v3647, 4
        %v3650 = vrot.slane %v3619, 6
        %v3651 = vsel %vm2559, %v3649, %v3650
        %v3652 = vrot.slane %v3650, 4
        %v3653 = vrot.slane %v3620, 6
        %v3654 = vsel %vm2559, %v3652, %v3653
        %v3655 = vrot.slane %v3653, 4
        %v3656 = vrot.slane %v3621, 6
        %v3657 = vsel %vm2559, %v3655, %v3656
        %v3658 = vrot.slane %v3656, 4
        %v3659 = vrot.slane %v3622, 6
        %v3660 = vsel %vm2559, %v3658, %v3659
        %v3661 = vrot.slane %v3659, 4
        %v3662 = vrot.slane %v3623, 6
        %v3663 = vsel %vm2559, %v3661, %v3662
        %v3664 = vrot.slane %v3662, 4
        %v3665 = vrot.slane %v3624, 6
        %v3666 = vsel %vm2559, %v3664, %v3665
        %3677 = vst [vmem:[#allocation5 + $0x18] sm:$0xf] %v3639
        %3678 = vst [vmem:[#allocation5 + $0x7c] sm:$0xf] %v3642
        %3679 = vst [vmem:[#allocation5 + $0xe0] sm:$0xf] %v3645
        %3680 = vst [vmem:[#allocation5 + $0x144] sm:$0xf] %v3648
        %3681 = vst [vmem:[#allocation5 + $0x1a8] sm:$0xf] %v3651
        %3682 = vst [vmem:[#allocation5 + $0x20c] sm:$0xf] %v3654
        %3683 = vst [vmem:[#allocation5 + $0x270] sm:$0xf] %v3657
        %3684 = vst [vmem:[#allocation5 + $0x2d4] sm:$0xf] %v3660
        %3685 = vst [vmem:[#allocation5 + $0x338] sm:$0xf] %v3663
        %3686 = vst [vmem:[#allocation5 + $0x39c] sm:$0xf] %v3666
        %v3687 = vld [vmem:[#allocation4 + $0x4] sm:$0xc]
        %v3688 = vld [vmem:[#allocation4 + $0x8] sm:$0xf]
        %v3689 = vld [vmem:[#allocation4 + $0xc] sm:$0xf]
        %v3690 = vld [vmem:[#allocation4 + $0x10] sm:$0xf]
        %v3691 = vld [vmem:[#allocation4 + $0x14] sm:$0xf]
        %v3692 = vld [vmem:[#allocation4 + $0x18] sm:$0xf]
        %v3693 = vld [vmem:[#allocation4 + $0x1c] sm:$0xf]
        %v3694 = vld [vmem:[#allocation4 + $0x20] sm:$0xf]
        %v3695 = vld [vmem:[#allocation4 + $0x24] sm:$0xf]
        %v3696 = vld [vmem:[#allocation4 + $0x28] sm:$0xf]
        %v3697 = vld [vmem:[#allocation4 + $0x2c] sm:$0x7]
        %vm3698 = vsmask.f32 5392
        %vm3699 = vmor %vm2600, %vm3698
        %v3701 = vshrl.u32 %v3687, 16
        %v3703 = vrot.slane %v3701, 6
        %v3704 = vshll.u32 %v3687, 16
        %v3706 = vrot.slane %v3704, 7
        %v3707 = vor.u32 %v3703, %v3706
        %v3708 = vrot.slane %v3707, 4
        %v3710 = vshrl.u32 %v3688, 16
        %v3712 = vrot.slane %v3710, 6
        %v3713 = vshll.u32 %v3688, 16
        %v3715 = vrot.slane %v3713, 7
        %v3716 = vor.u32 %v3712, %v3715
        %v3717 = vsel %vm3699, %v3708, %v3716
        %v3718 = vrot.slane %v3716, 4
        %v3720 = vshrl.u32 %v3689, 16
        %v3722 = vrot.slane %v3720, 6
        %v3723 = vshll.u32 %v3689, 16
        %v3725 = vrot.slane %v3723, 7
        %v3726 = vor.u32 %v3722, %v3725
        %v3727 = vsel %vm3699, %v3718, %v3726
        %v3728 = vrot.slane %v3726, 4
        %v3730 = vshrl.u32 %v3690, 16
        %v3732 = vrot.slane %v3730, 6
        %v3733 = vshll.u32 %v3690, 16
        %v3735 = vrot.slane %v3733, 7
        %v3736 = vor.u32 %v3732, %v3735
        %v3737 = vsel %vm3699, %v3728, %v3736
        %v3738 = vrot.slane %v3736, 4
        %v3740 = vshrl.u32 %v3691, 16
        %v3742 = vrot.slane %v3740, 6
        %v3743 = vshll.u32 %v3691, 16
        %v3745 = vrot.slane %v3743, 7
        %v3746 = vor.u32 %v3742, %v3745
        %v3747 = vsel %vm3699, %v3738, %v3746
        %v3748 = vrot.slane %v3746, 4
        %v3750 = vshrl.u32 %v3692, 16
        %v3752 = vrot.slane %v3750, 6
        %v3753 = vshll.u32 %v3692, 16
        %v3755 = vrot.slane %v3753, 7
        %v3756 = vor.u32 %v3752, %v3755
        %v3757 = vsel %vm3699, %v3748, %v3756
        %v3758 = vrot.slane %v3756, 4
        %v3760 = vshrl.u32 %v3693, 16
        %v3762 = vrot.slane %v3760, 6
        %v3763 = vshll.u32 %v3693, 16
        %v3765 = vrot.slane %v3763, 7
        %v3766 = vor.u32 %v3762, %v3765
        %v3767 = vsel %vm3699, %v3758, %v3766
        %v3768 = vrot.slane %v3766, 4
        %v3770 = vshrl.u32 %v3694, 16
        %v3772 = vrot.slane %v3770, 6
        %v3773 = vshll.u32 %v3694, 16
        %v3775 = vrot.slane %v3773, 7
        %v3776 = vor.u32 %v3772, %v3775
        %v3777 = vsel %vm3699, %v3768, %v3776
        %v3778 = vrot.slane %v3776, 4
        %v3780 = vshrl.u32 %v3695, 16
        %v3782 = vrot.slane %v3780, 6
        %v3783 = vshll.u32 %v3695, 16
        %v3785 = vrot.slane %v3783, 7
        %v3786 = vor.u32 %v3782, %v3785
        %v3787 = vsel %vm3699, %v3778, %v3786
        %v3788 = vrot.slane %v3786, 4
        %v3790 = vshrl.u32 %v3696, 16
        %v3792 = vrot.slane %v3790, 6
        %v3793 = vshll.u32 %v3696, 16
        %v3795 = vrot.slane %v3793, 7
        %v3796 = vor.u32 %v3792, %v3795
        %v3797 = vsel %vm3699, %v3788, %v3796
        %v3798 = vrot.slane %v3796, 4
        %v3800 = vshrl.u32 %v3697, 16
        %v3802 = vrot.slane %v3800, 6
        %v3803 = vshll.u32 %v3697, 16
        %v3805 = vrot.slane %v3803, 7
        %v3806 = vor.u32 %v3802, %v3805
        %v3807 = vsel %vm3699, %v3798, %v3806
        %3818 = vst [vmem:[#allocation5 + $0x1c] sm:$0xf] %v3717
        %3819 = vst [vmem:[#allocation5 + $0x80] sm:$0xf] %v3727
        %3820 = vst [vmem:[#allocation5 + $0xe4] sm:$0xf] %v3737
        %3821 = vst [vmem:[#allocation5 + $0x148] sm:$0xf] %v3747
        %3822 = vst [vmem:[#allocation5 + $0x1ac] sm:$0xf] %v3757
        %3823 = vst [vmem:[#allocation5 + $0x210] sm:$0xf] %v3767
        %3824 = vst [vmem:[#allocation5 + $0x274] sm:$0xf] %v3777
        %3825 = vst [vmem:[#allocation5 + $0x2d8] sm:$0xf] %v3787
        %3826 = vst [vmem:[#allocation5 + $0x33c] sm:$0xf] %v3797
        %3827 = vst [vmem:[#allocation5 + $0x3a0] sm:$0xf] %v3807
        %v3828 = vld [vmem:[#allocation4 + $0x4] sm:$0x8]
        %v3829 = vld [vmem:[#allocation4 + $0x8] sm:$0xf]
        %v3830 = vld [vmem:[#allocation4 + $0xc] sm:$0xf]
        %v3831 = vld [vmem:[#allocation4 + $0x10] sm:$0xf]
        %v3832 = vld [vmem:[#allocation4 + $0x14] sm:$0xf]
        %v3833 = vld [vmem:[#allocation4 + $0x18] sm:$0xf]
        %v3834 = vld [vmem:[#allocation4 + $0x1c] sm:$0xf]
        %v3835 = vld [vmem:[#allocation4 + $0x20] sm:$0xf]
        %v3836 = vld [vmem:[#allocation4 + $0x24] sm:$0xf]
        %v3837 = vld [vmem:[#allocation4 + $0x28] sm:$0xf]
        %v3838 = vld [vmem:[#allocation4 + $0x2c] sm:$0x7]
        %vm3850 = vcmask 1044484
        %vm3851 = vmor %vm2524, %vm3850
        %v3852 = vrot.slane %v3828, 7
        %v3853 = vrot.slane %v3852, 4
        %v3854 = vrot.slane %v3829, 7
        %v3855 = vsel %vm3851, %v3853, %v3854
        %v3856 = vrot.slane %v3854, 4
        %v3857 = vrot.slane %v3830, 7
        %v3858 = vsel %vm3851, %v3856, %v3857
        %v3859 = vrot.slane %v3857, 4
        %v3860 = vrot.slane %v3831, 7
        %v3861 = vsel %vm3851, %v3859, %v3860
        %v3862 = vrot.slane %v3860, 4
        %v3863 = vrot.slane %v3832, 7
        %v3864 = vsel %vm3851, %v3862, %v3863
        %v3865 = vrot.slane %v3863, 4
        %v3866 = vrot.slane %v3833, 7
        %v3867 = vsel %vm3851, %v3865, %v3866
        %v3868 = vrot.slane %v3866, 4
        %v3869 = vrot.slane %v3834, 7
        %v3870 = vsel %vm3851, %v3868, %v3869
        %v3871 = vrot.slane %v3869, 4
        %v3872 = vrot.slane %v3835, 7
        %v3873 = vsel %vm3851, %v3871, %v3872
        %v3874 = vrot.slane %v3872, 4
        %v3875 = vrot.slane %v3836, 7
        %v3876 = vsel %vm3851, %v3874, %v3875
        %v3877 = vrot.slane %v3875, 4
        %v3878 = vrot.slane %v3837, 7
        %v3879 = vsel %vm3851, %v3877, %v3878
        %v3880 = vrot.slane %v3878, 4
        %v3881 = vrot.slane %v3838, 7
        %v3882 = vsel %vm3851, %v3880, %v3881
        %3893 = vst [vmem:[#allocation5 + $0x20] sm:$0xf] %v3855
        %3894 = vst [vmem:[#allocation5 + $0x84] sm:$0xf] %v3858
        %3895 = vst [vmem:[#allocation5 + $0xe8] sm:$0xf] %v3861
        %3896 = vst [vmem:[#allocation5 + $0x14c] sm:$0xf] %v3864
        %3897 = vst [vmem:[#allocation5 + $0x1b0] sm:$0xf] %v3867
        %3898 = vst [vmem:[#allocation5 + $0x214] sm:$0xf] %v3870
        %3899 = vst [vmem:[#allocation5 + $0x278] sm:$0xf] %v3873
        %3900 = vst [vmem:[#allocation5 + $0x2dc] sm:$0xf] %v3876
        %3901 = vst [vmem:[#allocation5 + $0x340] sm:$0xf] %v3879
        %3902 = vst [vmem:[#allocation5 + $0x3a4] sm:$0xf] %v3882
        %v3903 = vld [vmem:[#allocation4 + $0x4] sm:$0x8]
        %v3904 = vld [vmem:[#allocation4 + $0x8] sm:$0xf]
        %v3905 = vld [vmem:[#allocation4 + $0xc] sm:$0xf]
        %v3906 = vld [vmem:[#allocation4 + $0x10] sm:$0xf]
        %v3907 = vld [vmem:[#allocation4 + $0x14] sm:$0xf]
        %v3908 = vld [vmem:[#allocation4 + $0x18] sm:$0xf]
        %v3909 = vld [vmem:[#allocation4 + $0x1c] sm:$0xf]
        %v3910 = vld [vmem:[#allocation4 + $0x20] sm:$0xf]
        %v3911 = vld [vmem:[#allocation4 + $0x24] sm:$0xf]
        %v3912 = vld [vmem:[#allocation4 + $0x28] sm:$0xf]
        %v3913 = vld [vmem:[#allocation4 + $0x2c] sm:$0xf]
        %vm3914 = vsmask.f32 4368
        %vm3915 = vmor %vm2525, %vm3914
        %v3917 = vshrl.u32 %v3903, 16
        %v3919 = vrot.slane %v3917, 7
        %v3920 = vrot.slane %v3919, 4
        %v3922 = vshrl.u32 %v3904, 16
        %v3924 = vrot.slane %v3922, 7
        %v3925 = vshll.u32 %v3904, 16
        %v3927 = vor.u32 %v3924, %v3925
        %v3928 = vsel %vm3915, %v3920, %v3927
        %v3929 = vrot.slane %v3924, 4
        %v3931 = vshrl.u32 %v3905, 16
        %v3933 = vrot.slane %v3931, 7
        %v3934 = vshll.u32 %v3905, 16
        %v3936 = vor.u32 %v3933, %v3934
        %v3937 = vsel %vm3915, %v3929, %v3936
        %v3938 = vrot.slane %v3933, 4
        %v3940 = vshrl.u32 %v3906, 16
        %v3942 = vrot.slane %v3940, 7
        %v3943 = vshll.u32 %v3906, 16
        %v3945 = vor.u32 %v3942, %v3943
        %v3946 = vsel %vm3915, %v3938, %v3945
        %v3947 = vrot.slane %v3942, 4
        %v3949 = vshrl.u32 %v3907, 16
        %v3951 = vrot.slane %v3949, 7
        %v3952 = vshll.u32 %v3907, 16
        %v3954 = vor.u32 %v3951, %v3952
        %v3955 = vsel %vm3915, %v3947, %v3954
        %v3956 = vrot.slane %v3951, 4
        %v3958 = vshrl.u32 %v3908, 16
        %v3960 = vrot.slane %v3958, 7
        %v3961 = vshll.u32 %v3908, 16
        %v3963 = vor.u32 %v3960, %v3961
        %v3964 = vsel %vm3915, %v3956, %v3963
        %v3965 = vrot.slane %v3960, 4
        %v3967 = vshrl.u32 %v3909, 16
        %v3969 = vrot.slane %v3967, 7
        %v3970 = vshll.u32 %v3909, 16
        %v3972 = vor.u32 %v3969, %v3970
        %v3973 = vsel %vm3915, %v3965, %v3972
        %v3974 = vrot.slane %v3969, 4
        %v3976 = vshrl.u32 %v3910, 16
        %v3978 = vrot.slane %v3976, 7
        %v3979 = vshll.u32 %v3910, 16
        %v3981 = vor.u32 %v3978, %v3979
        %v3982 = vsel %vm3915, %v3974, %v3981
        %v3983 = vrot.slane %v3978, 4
        %v3985 = vshrl.u32 %v3911, 16
        %v3987 = vrot.slane %v3985, 7
        %v3988 = vshll.u32 %v3911, 16
        %v3990 = vor.u32 %v3987, %v3988
        %v3991 = vsel %vm3915, %v3983, %v3990
        %v3992 = vrot.slane %v3987, 4
        %v3994 = vshrl.u32 %v3912, 16
        %v3996 = vrot.slane %v3994, 7
        %v3997 = vshll.u32 %v3912, 16
        %v3999 = vor.u32 %v3996, %v3997
        %v4000 = vsel %vm3915, %v3992, %v3999
        %v4001 = vrot.slane %v3996, 4
        %v4003 = vshrl.u32 %v3913, 16
        %v4005 = vrot.slane %v4003, 7
        %v4006 = vshll.u32 %v3913, 16
        %v4008 = vor.u32 %v4005, %v4006
        %v4009 = vsel %vm3915, %v4001, %v4008
        %4020 = vst [vmem:[#allocation5 + $0x24] sm:$0xf] %v3928
        %4021 = vst [vmem:[#allocation5 + $0x88] sm:$0xf] %v3937
        %4022 = vst [vmem:[#allocation5 + $0xec] sm:$0xf] %v3946
        %4023 = vst [vmem:[#allocation5 + $0x150] sm:$0xf] %v3955
        %4024 = vst [vmem:[#allocation5 + $0x1b4] sm:$0xf] %v3964
        %4025 = vst [vmem:[#allocation5 + $0x218] sm:$0xf] %v3973
        %4026 = vst [vmem:[#allocation5 + $0x27c] sm:$0xf] %v3982
        %4027 = vst [vmem:[#allocation5 + $0x2e0] sm:$0xf] %v3991
        %4028 = vst [vmem:[#allocation5 + $0x344] sm:$0xf] %v4000
        %4029 = vst [vmem:[#allocation5 + $0x3a8] sm:$0xf] %v4009
        %v4030 = vld [vmem:[#allocation4 + $0x8] sm:$0x8]
        %v4031 = vld [vmem:[#allocation4 + $0xc] sm:$0xf]
        %v4032 = vld [vmem:[#allocation4 + $0x10] sm:$0xf]
        %v4033 = vld [vmem:[#allocation4 + $0x14] sm:$0xf]
        %v4034 = vld [vmem:[#allocation4 + $0x18] sm:$0xf]
        %v4035 = vld [vmem:[#allocation4 + $0x1c] sm:$0xf]
        %v4036 = vld [vmem:[#allocation4 + $0x20] sm:$0xf]
        %v4037 = vld [vmem:[#allocation4 + $0x24] sm:$0xf]
        %v4038 = vld [vmem:[#allocation4 + $0x28] sm:$0xf]
        %v4039 = vld [vmem:[#allocation4 + $0x2c] sm:$0xf]
        %v4040 = vld [vmem:[#allocation4 + $0x30] sm:$0x7]
        %v4052 = vrot.slane %v4030, 7
        %v4053 = vrot.slane %v4052, 4
        %v4054 = vrot.slane %v4031, 7
        %v4055 = vsel %vm3851, %v4053, %v4054
        %v4056 = vrot.slane %v4054, 4
        %v4057 = vrot.slane %v4032, 7
        %v4058 = vsel %vm3851, %v4056, %v4057
        %v4059 = vrot.slane %v4057, 4
        %v4060 = vrot.slane %v4033, 7
        %v4061 = vsel %vm3851, %v4059, %v4060
        %v4062 = vrot.slane %v4060, 4
        %v4063 = vrot.slane %v4034, 7
        %v4064 = vsel %vm3851, %v4062, %v4063
        %v4065 = vrot.slane %v4063, 4
        %v4066 = vrot.slane %v4035, 7
        %v4067 = vsel %vm3851, %v4065, %v4066
        %v4068 = vrot.slane %v4066, 4
        %v4069 = vrot.slane %v4036, 7
        %v4070 = vsel %vm3851, %v4068, %v4069
        %v4071 = vrot.slane %v4069, 4
        %v4072 = vrot.slane %v4037, 7
        %v4073 = vsel %vm3851, %v4071, %v4072
        %v4074 = vrot.slane %v4072, 4
        %v4075 = vrot.slane %v4038, 7
        %v4076 = vsel %vm3851, %v4074, %v4075
        %v4077 = vrot.slane %v4075, 4
        %v4078 = vrot.slane %v4039, 7
        %v4079 = vsel %vm3851, %v4077, %v4078
        %v4080 = vrot.slane %v4078, 4
        %v4081 = vrot.slane %v4040, 7
        %v4082 = vsel %vm3851, %v4080, %v4081
        %4093 = vst [vmem:[#allocation5 + $0x28] sm:$0xf] %v4055
        %4094 = vst [vmem:[#allocation5 + $0x8c] sm:$0xf] %v4058
        %4095 = vst [vmem:[#allocation5 + $0xf0] sm:$0xf] %v4061
        %4096 = vst [vmem:[#allocation5 + $0x154] sm:$0xf] %v4064
        %4097 = vst [vmem:[#allocation5 + $0x1b8] sm:$0xf] %v4067
        %4098 = vst [vmem:[#allocation5 + $0x21c] sm:$0xf] %v4070
        %4099 = vst [vmem:[#allocation5 + $0x280] sm:$0xf] %v4073
        %4100 = vst [vmem:[#allocation5 + $0x2e4] sm:$0xf] %v4076
        %4101 = vst [vmem:[#allocation5 + $0x348] sm:$0xf] %v4079
        %4102 = vst [vmem:[#allocation5 + $0x3ac] sm:$0xf] %v4082
        %v4103 = vld [vmem:[#allocation4 + $0x8] sm:$0x8]
        %v4104 = vld [vmem:[#allocation4 + $0xc] sm:$0xf]
        %v4105 = vld [vmem:[#allocation4 + $0x10] sm:$0xf]
        %v4106 = vld [vmem:[#allocation4 + $0x14] sm:$0xf]
        %v4107 = vld [vmem:[#allocation4 + $0x18] sm:$0xf]
        %v4108 = vld [vmem:[#allocation4 + $0x1c] sm:$0xf]
        %v4109 = vld [vmem:[#allocation4 + $0x20] sm:$0xf]
        %v4110 = vld [vmem:[#allocation4 + $0x24] sm:$0xf]
        %v4111 = vld [vmem:[#allocation4 + $0x28] sm:$0xf]
        %v4112 = vld [vmem:[#allocation4 + $0x2c] sm:$0xf]
        %v4113 = vld [vmem:[#allocation4 + $0x30] sm:$0xf]
        %v4115 = vshrl.u32 %v4103, 16
        %v4117 = vrot.slane %v4115, 7
        %v4118 = vrot.slane %v4117, 4
        %v4120 = vshrl.u32 %v4104, 16
        %v4122 = vrot.slane %v4120, 7
        %v4123 = vshll.u32 %v4104, 16
        %v4125 = vor.u32 %v4122, %v4123
        %v4126 = vsel %vm3915, %v4118, %v4125
        %v4127 = vrot.slane %v4122, 4
        %v4129 = vshrl.u32 %v4105, 16
        %v4131 = vrot.slane %v4129, 7
        %v4132 = vshll.u32 %v4105, 16
        %v4134 = vor.u32 %v4131, %v4132
        %v4135 = vsel %vm3915, %v4127, %v4134
        %v4136 = vrot.slane %v4131, 4
        %v4138 = vshrl.u32 %v4106, 16
        %v4140 = vrot.slane %v4138, 7
        %v4141 = vshll.u32 %v4106, 16
        %v4143 = vor.u32 %v4140, %v4141
        %v4144 = vsel %vm3915, %v4136, %v4143
        %v4145 = vrot.slane %v4140, 4
        %v4147 = vshrl.u32 %v4107, 16
        %v4149 = vrot.slane %v4147, 7
        %v4150 = vshll.u32 %v4107, 16
        %v4152 = vor.u32 %v4149, %v4150
        %v4153 = vsel %vm3915, %v4145, %v4152
        %v4154 = vrot.slane %v4149, 4
        %v4156 = vshrl.u32 %v4108, 16
        %v4158 = vrot.slane %v4156, 7
        %v4159 = vshll.u32 %v4108, 16
        %v4161 = vor.u32 %v4158, %v4159
        %v4162 = vsel %vm3915, %v4154, %v4161
        %v4163 = vrot.slane %v4158, 4
        %v4165 = vshrl.u32 %v4109, 16
        %v4167 = vrot.slane %v4165, 7
        %v4168 = vshll.u32 %v4109, 16
        %v4170 = vor.u32 %v4167, %v4168
        %v4171 = vsel %vm3915, %v4163, %v4170
        %v4172 = vrot.slane %v4167, 4
        %v4174 = vshrl.u32 %v4110, 16
        %v4176 = vrot.slane %v4174, 7
        %v4177 = vshll.u32 %v4110, 16
        %v4179 = vor.u32 %v4176, %v4177
        %v4180 = vsel %vm3915, %v4172, %v4179
        %v4181 = vrot.slane %v4176, 4
        %v4183 = vshrl.u32 %v4111, 16
        %v4185 = vrot.slane %v4183, 7
        %v4186 = vshll.u32 %v4111, 16
        %v4188 = vor.u32 %v4185, %v4186
        %v4189 = vsel %vm3915, %v4181, %v4188
        %v4190 = vrot.slane %v4185, 4
        %v4192 = vshrl.u32 %v4112, 16
        %v4194 = vrot.slane %v4192, 7
        %v4195 = vshll.u32 %v4112, 16
        %v4197 = vor.u32 %v4194, %v4195
        %v4198 = vsel %vm3915, %v4190, %v4197
        %v4199 = vrot.slane %v4194, 4
        %v4201 = vshrl.u32 %v4113, 16
        %v4203 = vrot.slane %v4201, 7
        %v4204 = vshll.u32 %v4113, 16
        %v4206 = vor.u32 %v4203, %v4204
        %v4207 = vsel %vm3915, %v4199, %v4206
        %4218 = vst [vmem:[#allocation5 + $0x2c] sm:$0xf] %v4126
        %4219 = vst [vmem:[#allocation5 + $0x90] sm:$0xf] %v4135
        %4220 = vst [vmem:[#allocation5 + $0xf4] sm:$0xf] %v4144
        %4221 = vst [vmem:[#allocation5 + $0x158] sm:$0xf] %v4153
        %4222 = vst [vmem:[#allocation5 + $0x1bc] sm:$0xf] %v4162
        %4223 = vst [vmem:[#allocation5 + $0x220] sm:$0xf] %v4171
        %4224 = vst [vmem:[#allocation5 + $0x284] sm:$0xf] %v4180
        %4225 = vst [vmem:[#allocation5 + $0x2e8] sm:$0xf] %v4189
        %4226 = vst [vmem:[#allocation5 + $0x34c] sm:$0xf] %v4198
        %4227 = vst [vmem:[#allocation5 + $0x3b0] sm:$0xf] %v4207
        %v4228 = vld [vmem:[#allocation4 + $0xc] sm:$0xf]
        %v4229 = vld [vmem:[#allocation4 + $0x10] sm:$0xf]
        %v4230 = vld [vmem:[#allocation4 + $0x14] sm:$0xf]
        %v4231 = vld [vmem:[#allocation4 + $0x18] sm:$0xf]
        %v4232 = vld [vmem:[#allocation4 + $0x1c] sm:$0xf]
        %v4233 = vld [vmem:[#allocation4 + $0x20] sm:$0xf]
        %v4234 = vld [vmem:[#allocation4 + $0x24] sm:$0xf]
        %v4235 = vld [vmem:[#allocation4 + $0x28] sm:$0xf]
        %v4236 = vld [vmem:[#allocation4 + $0x2c] sm:$0xf]
        %v4237 = vld [vmem:[#allocation4 + $0x30] sm:$0xf]
        %4238 = vst [vmem:[#allocation5 + $0x30] sm:$0xf] %v4228
        %4239 = vst [vmem:[#allocation5 + $0x94] sm:$0xf] %v4229
        %4240 = vst [vmem:[#allocation5 + $0xf8] sm:$0xf] %v4230
        %4241 = vst [vmem:[#allocation5 + $0x15c] sm:$0xf] %v4231
        %4242 = vst [vmem:[#allocation5 + $0x1c0] sm:$0xf] %v4232
        %4243 = vst [vmem:[#allocation5 + $0x224] sm:$0xf] %v4233
        %4244 = vst [vmem:[#allocation5 + $0x288] sm:$0xf] %v4234
        %4245 = vst [vmem:[#allocation5 + $0x2ec] sm:$0xf] %v4235
        %4246 = vst [vmem:[#allocation5 + $0x350] sm:$0xf] %v4236
        %4247 = vst [vmem:[#allocation5 + $0x3b4] sm:$0xf] %v4237
        %v4248 = vld [vmem:[#allocation4 + $0xc] sm:$0xf]
        %v4249 = vld [vmem:[#allocation4 + $0x10] sm:$0xf]
        %v4250 = vld [vmem:[#allocation4 + $0x14] sm:$0xf]
        %v4251 = vld [vmem:[#allocation4 + $0x18] sm:$0xf]
        %v4252 = vld [vmem:[#allocation4 + $0x1c] sm:$0xf]
        %v4253 = vld [vmem:[#allocation4 + $0x20] sm:$0xf]
        %v4254 = vld [vmem:[#allocation4 + $0x24] sm:$0xf]
        %v4255 = vld [vmem:[#allocation4 + $0x28] sm:$0xf]
        %v4256 = vld [vmem:[#allocation4 + $0x2c] sm:$0xf]
        %v4257 = vld [vmem:[#allocation4 + $0x30] sm:$0xf]
        %v4258 = vld [vmem:[#allocation4 + $0x34] sm:$0x1]
        %v4260 = vshrl.u32 %v4248, 16
        %v4262 = vrot.slane %v4260, 4
        %v4263 = vshll.u32 %v4248, 16
        %v4265 = vrot.slane %v4263, 5
        %v4266 = vor.u32 %v4262, %v4265
        %v4267 = vrot.slane %v4266, 4
        %v4269 = vshll.u32 %v4249, 16
        %v4271 = vrot.slane %v4269, 5
        %v4272 = vsel %vm3061, %v4267, %v4271
        %v4273 = vshrl.u32 %v4249, 16
        %v4275 = vrot.slane %v4273, 4
        %v4276 = vor.u32 %v4275, %v4271
        %v4277 = vrot.slane %v4276, 4
        %v4279 = vshll.u32 %v4250, 16
        %v4281 = vrot.slane %v4279, 5
        %v4282 = vsel %vm3061, %v4277, %v4281
        %v4283 = vshrl.u32 %v4250, 16
        %v4285 = vrot.slane %v4283, 4
        %v4286 = vor.u32 %v4285, %v4281
        %v4287 = vrot.slane %v4286, 4
        %v4289 = vshll.u32 %v4251, 16
        %v4291 = vrot.slane %v4289, 5
        %v4292 = vsel %vm3061, %v4287, %v4291
        %v4293 = vshrl.u32 %v4251, 16
        %v4295 = vrot.slane %v4293, 4
        %v4296 = vor.u32 %v4295, %v4291
        %v4297 = vrot.slane %v4296, 4
        %v4299 = vshll.u32 %v4252, 16
        %v4301 = vrot.slane %v4299, 5
        %v4302 = vsel %vm3061, %v4297, %v4301
        %v4303 = vshrl.u32 %v4252, 16
        %v4305 = vrot.slane %v4303, 4
        %v4306 = vor.u32 %v4305, %v4301
        %v4307 = vrot.slane %v4306, 4
        %v4309 = vshll.u32 %v4253, 16
        %v4311 = vrot.slane %v4309, 5
        %v4312 = vsel %vm3061, %v4307, %v4311
        %v4313 = vshrl.u32 %v4253, 16
        %v4315 = vrot.slane %v4313, 4
        %v4316 = vor.u32 %v4315, %v4311
        %v4317 = vrot.slane %v4316, 4
        %v4319 = vshll.u32 %v4254, 16
        %v4321 = vrot.slane %v4319, 5
        %v4322 = vsel %vm3061, %v4317, %v4321
        %v4323 = vshrl.u32 %v4254, 16
        %v4325 = vrot.slane %v4323, 4
        %v4326 = vor.u32 %v4325, %v4321
        %v4327 = vrot.slane %v4326, 4
        %v4329 = vshll.u32 %v4255, 16
        %v4331 = vrot.slane %v4329, 5
        %v4332 = vsel %vm3061, %v4327, %v4331
        %v4333 = vshrl.u32 %v4255, 16
        %v4335 = vrot.slane %v4333, 4
        %v4336 = vor.u32 %v4335, %v4331
        %v4337 = vrot.slane %v4336, 4
        %v4339 = vshll.u32 %v4256, 16
        %v4341 = vrot.slane %v4339, 5
        %v4342 = vsel %vm3061, %v4337, %v4341
        %v4343 = vshrl.u32 %v4256, 16
        %v4345 = vrot.slane %v4343, 4
        %v4346 = vor.u32 %v4345, %v4341
        %v4347 = vrot.slane %v4346, 4
        %v4349 = vshll.u32 %v4257, 16
        %v4351 = vrot.slane %v4349, 5
        %v4352 = vsel %vm3061, %v4347, %v4351
        %v4353 = vshrl.u32 %v4257, 16
        %v4355 = vrot.slane %v4353, 4
        %v4356 = vor.u32 %v4355, %v4351
        %v4357 = vrot.slane %v4356, 4
        %v4359 = vshll.u32 %v4258, 16
        %v4361 = vrot.slane %v4359, 5
        %v4362 = vsel %vm3061, %v4357, %v4361
        %4373 = vst [vmem:[#allocation5 + $0x34] sm:$0xf] %v4272
        %4374 = vst [vmem:[#allocation5 + $0x98] sm:$0xf] %v4282
        %4375 = vst [vmem:[#allocation5 + $0xfc] sm:$0xf] %v4292
        %4376 = vst [vmem:[#allocation5 + $0x160] sm:$0xf] %v4302
        %4377 = vst [vmem:[#allocation5 + $0x1c4] sm:$0xf] %v4312
        %4378 = vst [vmem:[#allocation5 + $0x228] sm:$0xf] %v4322
        %4379 = vst [vmem:[#allocation5 + $0x28c] sm:$0xf] %v4332
        %4380 = vst [vmem:[#allocation5 + $0x2f0] sm:$0xf] %v4342
        %4381 = vst [vmem:[#allocation5 + $0x354] sm:$0xf] %v4352
        %4382 = vst [vmem:[#allocation5 + $0x3b8] sm:$0xf] %v4362
        %v4383 = vld [vmem:[#allocation4 + $0xc] sm:$0xe]
        %v4384 = vld [vmem:[#allocation4 + $0x10] sm:$0xf]
        %v4385 = vld [vmem:[#allocation4 + $0x14] sm:$0xf]
        %v4386 = vld [vmem:[#allocation4 + $0x18] sm:$0xf]
        %v4387 = vld [vmem:[#allocation4 + $0x1c] sm:$0xf]
        %v4388 = vld [vmem:[#allocation4 + $0x20] sm:$0xf]
        %v4389 = vld [vmem:[#allocation4 + $0x24] sm:$0xf]
        %v4390 = vld [vmem:[#allocation4 + $0x28] sm:$0xf]
        %v4391 = vld [vmem:[#allocation4 + $0x2c] sm:$0xf]
        %v4392 = vld [vmem:[#allocation4 + $0x30] sm:$0xf]
        %v4393 = vld [vmem:[#allocation4 + $0x34] sm:$0x1]
        %v4405 = vrot.slane %v4383, 5
        %v4406 = vrot.slane %v4405, 4
        %v4407 = vrot.slane %v4384, 5
        %v4408 = vsel %vm3209, %v4406, %v4407
        %v4409 = vrot.slane %v4407, 4
        %v4410 = vrot.slane %v4385, 5
        %v4411 = vsel %vm3209, %v4409, %v4410
        %v4412 = vrot.slane %v4410, 4
        %v4413 = vrot.slane %v4386, 5
        %v4414 = vsel %vm3209, %v4412, %v4413
        %v4415 = vrot.slane %v4413, 4
        %v4416 = vrot.slane %v4387, 5
        %v4417 = vsel %vm3209, %v4415, %v4416
        %v4418 = vrot.slane %v4416, 4
        %v4419 = vrot.slane %v4388, 5
        %v4420 = vsel %vm3209, %v4418, %v4419
        %v4421 = vrot.slane %v4419, 4
        %v4422 = vrot.slane %v4389, 5
        %v4423 = vsel %vm3209, %v4421, %v4422
        %v4424 = vrot.slane %v4422, 4
        %v4425 = vrot.slane %v4390, 5
        %v4426 = vsel %vm3209, %v4424, %v4425
        %v4427 = vrot.slane %v4425, 4
        %v4428 = vrot.slane %v4391, 5
        %v4429 = vsel %vm3209, %v4427, %v4428
        %v4430 = vrot.slane %v4428, 4
        %v4431 = vrot.slane %v4392, 5
        %v4432 = vsel %vm3209, %v4430, %v4431
        %v4433 = vrot.slane %v4431, 4
        %v4434 = vrot.slane %v4393, 5
        %v4435 = vsel %vm3209, %v4433, %v4434
        %4446 = vst [vmem:[#allocation5 + $0x38] sm:$0xf] %v4408
        %4447 = vst [vmem:[#allocation5 + $0x9c] sm:$0xf] %v4411
        %4448 = vst [vmem:[#allocation5 + $0x100] sm:$0xf] %v4414
        %4449 = vst [vmem:[#allocation5 + $0x164] sm:$0xf] %v4417
        %4450 = vst [vmem:[#allocation5 + $0x1c8] sm:$0xf] %v4420
        %4451 = vst [vmem:[#allocation5 + $0x22c] sm:$0xf] %v4423
        %4452 = vst [vmem:[#allocation5 + $0x290] sm:$0xf] %v4426
        %4453 = vst [vmem:[#allocation5 + $0x2f4] sm:$0xf] %v4429
        %4454 = vst [vmem:[#allocation5 + $0x358] sm:$0xf] %v4432
        %4455 = vst [vmem:[#allocation5 + $0x3bc] sm:$0xf] %v4435
        %v4456 = vld [vmem:[#allocation4 + $0x10] sm:$0xf]
        %v4457 = vld [vmem:[#allocation4 + $0x14] sm:$0xf]
        %v4458 = vld [vmem:[#allocation4 + $0x18] sm:$0xf]
        %v4459 = vld [vmem:[#allocation4 + $0x1c] sm:$0xf]
        %v4460 = vld [vmem:[#allocation4 + $0x20] sm:$0xf]
        %v4461 = vld [vmem:[#allocation4 + $0x24] sm:$0xf]
        %v4462 = vld [vmem:[#allocation4 + $0x28] sm:$0xf]
        %v4463 = vld [vmem:[#allocation4 + $0x2c] sm:$0xf]
        %v4464 = vld [vmem:[#allocation4 + $0x30] sm:$0xf]
        %v4465 = vld [vmem:[#allocation4 + $0x34] sm:$0xf]
        %v4466 = vld [vmem:[#allocation4 + $0x38] sm:$0x1]
        %v4468 = vshrl.u32 %v4456, 16
        %v4470 = vrot.slane %v4468, 4
        %v4471 = vshll.u32 %v4456, 16
        %v4473 = vrot.slane %v4471, 5
        %v4474 = vor.u32 %v4470, %v4473
        %v4475 = vrot.slane %v4474, 4
        %v4477 = vshll.u32 %v4457, 16
        %v4479 = vrot.slane %v4477, 5
        %v4480 = vsel %vm3061, %v4475, %v4479
        %v4481 = vshrl.u32 %v4457, 16
        %v4483 = vrot.slane %v4481, 4
        %v4484 = vor.u32 %v4483, %v4479
        %v4485 = vrot.slane %v4484, 4
        %v4487 = vshll.u32 %v4458, 16
        %v4489 = vrot.slane %v4487, 5
        %v4490 = vsel %vm3061, %v4485, %v4489
        %v4491 = vshrl.u32 %v4458, 16
        %v4493 = vrot.slane %v4491, 4
        %v4494 = vor.u32 %v4493, %v4489
        %v4495 = vrot.slane %v4494, 4
        %v4497 = vshll.u32 %v4459, 16
        %v4499 = vrot.slane %v4497, 5
        %v4500 = vsel %vm3061, %v4495, %v4499
        %v4501 = vshrl.u32 %v4459, 16
        %v4503 = vrot.slane %v4501, 4
        %v4504 = vor.u32 %v4503, %v4499
        %v4505 = vrot.slane %v4504, 4
        %v4507 = vshll.u32 %v4460, 16
        %v4509 = vrot.slane %v4507, 5
        %v4510 = vsel %vm3061, %v4505, %v4509
        %v4511 = vshrl.u32 %v4460, 16
        %v4513 = vrot.slane %v4511, 4
        %v4514 = vor.u32 %v4513, %v4509
        %v4515 = vrot.slane %v4514, 4
        %v4517 = vshll.u32 %v4461, 16
        %v4519 = vrot.slane %v4517, 5
        %v4520 = vsel %vm3061, %v4515, %v4519
        %v4521 = vshrl.u32 %v4461, 16
        %v4523 = vrot.slane %v4521, 4
        %v4524 = vor.u32 %v4523, %v4519
        %v4525 = vrot.slane %v4524, 4
        %v4527 = vshll.u32 %v4462, 16
        %v4529 = vrot.slane %v4527, 5
        %v4530 = vsel %vm3061, %v4525, %v4529
        %v4531 = vshrl.u32 %v4462, 16
        %v4533 = vrot.slane %v4531, 4
        %v4534 = vor.u32 %v4533, %v4529
        %v4535 = vrot.slane %v4534, 4
        %v4537 = vshll.u32 %v4463, 16
        %v4539 = vrot.slane %v4537, 5
        %v4540 = vsel %vm3061, %v4535, %v4539
        %v4541 = vshrl.u32 %v4463, 16
        %v4543 = vrot.slane %v4541, 4
        %v4544 = vor.u32 %v4543, %v4539
        %v4545 = vrot.slane %v4544, 4
        %v4547 = vshll.u32 %v4464, 16
        %v4549 = vrot.slane %v4547, 5
        %v4550 = vsel %vm3061, %v4545, %v4549
        %v4551 = vshrl.u32 %v4464, 16
        %v4553 = vrot.slane %v4551, 4
        %v4554 = vor.u32 %v4553, %v4549
        %v4555 = vrot.slane %v4554, 4
        %v4557 = vshll.u32 %v4465, 16
        %v4559 = vrot.slane %v4557, 5
        %v4560 = vsel %vm3061, %v4555, %v4559
        %v4561 = vshrl.u32 %v4465, 16
        %v4563 = vrot.slane %v4561, 4
        %v4564 = vor.u32 %v4563, %v4559
        %v4565 = vrot.slane %v4564, 4
        %v4567 = vshll.u32 %v4466, 16
        %v4569 = vrot.slane %v4567, 5
        %v4570 = vsel %vm3061, %v4565, %v4569
        %4581 = vst [vmem:[#allocation5 + $0x3c] sm:$0xf] %v4480
        %4582 = vst [vmem:[#allocation5 + $0xa0] sm:$0xf] %v4490
        %4583 = vst [vmem:[#allocation5 + $0x104] sm:$0xf] %v4500
        %4584 = vst [vmem:[#allocation5 + $0x168] sm:$0xf] %v4510
        %4585 = vst [vmem:[#allocation5 + $0x1cc] sm:$0xf] %v4520
        %4586 = vst [vmem:[#allocation5 + $0x230] sm:$0xf] %v4530
        %4587 = vst [vmem:[#allocation5 + $0x294] sm:$0xf] %v4540
        %4588 = vst [vmem:[#allocation5 + $0x2f8] sm:$0xf] %v4550
        %4589 = vst [vmem:[#allocation5 + $0x35c] sm:$0xf] %v4560
        %4590 = vst [vmem:[#allocation5 + $0x3c0] sm:$0xf] %v4570
        %v4591 = vld [vmem:[#allocation4 + $0x10] sm:$0xe]
        %v4592 = vld [vmem:[#allocation4 + $0x14] sm:$0xf]
        %v4593 = vld [vmem:[#allocation4 + $0x18] sm:$0xf]
        %v4594 = vld [vmem:[#allocation4 + $0x1c] sm:$0xf]
        %v4595 = vld [vmem:[#allocation4 + $0x20] sm:$0xf]
        %v4596 = vld [vmem:[#allocation4 + $0x24] sm:$0xf]
        %v4597 = vld [vmem:[#allocation4 + $0x28] sm:$0xf]
        %v4598 = vld [vmem:[#allocation4 + $0x2c] sm:$0xf]
        %v4599 = vld [vmem:[#allocation4 + $0x30] sm:$0xf]
        %v4600 = vld [vmem:[#allocation4 + $0x34] sm:$0xf]
        %v4601 = vld [vmem:[#allocation4 + $0x38] sm:$0x1]
        %v4613 = vrot.slane %v4591, 5
        %v4614 = vrot.slane %v4613, 4
        %v4615 = vrot.slane %v4592, 5
        %v4616 = vsel %vm3209, %v4614, %v4615
        %v4617 = vrot.slane %v4615, 4
        %v4618 = vrot.slane %v4593, 5
        %v4619 = vsel %vm3209, %v4617, %v4618
        %v4620 = vrot.slane %v4618, 4
        %v4621 = vrot.slane %v4594, 5
        %v4622 = vsel %vm3209, %v4620, %v4621
        %v4623 = vrot.slane %v4621, 4
        %v4624 = vrot.slane %v4595, 5
        %v4625 = vsel %vm3209, %v4623, %v4624
        %v4626 = vrot.slane %v4624, 4
        %v4627 = vrot.slane %v4596, 5
        %v4628 = vsel %vm3209, %v4626, %v4627
        %v4629 = vrot.slane %v4627, 4
        %v4630 = vrot.slane %v4597, 5
        %v4631 = vsel %vm3209, %v4629, %v4630
        %v4632 = vrot.slane %v4630, 4
        %v4633 = vrot.slane %v4598, 5
        %v4634 = vsel %vm3209, %v4632, %v4633
        %v4635 = vrot.slane %v4633, 4
        %v4636 = vrot.slane %v4599, 5
        %v4637 = vsel %vm3209, %v4635, %v4636
        %v4638 = vrot.slane %v4636, 4
        %v4639 = vrot.slane %v4600, 5
        %v4640 = vsel %vm3209, %v4638, %v4639
        %v4641 = vrot.slane %v4639, 4
        %v4642 = vrot.slane %v4601, 5
        %v4643 = vsel %vm3209, %v4641, %v4642
        %4654 = vst [vmem:[#allocation5 + $0x40] sm:$0xf] %v4616
        %4655 = vst [vmem:[#allocation5 + $0xa4] sm:$0xf] %v4619
        %4656 = vst [vmem:[#allocation5 + $0x108] sm:$0xf] %v4622
        %4657 = vst [vmem:[#allocation5 + $0x16c] sm:$0xf] %v4625
        %4658 = vst [vmem:[#allocation5 + $0x1d0] sm:$0xf] %v4628
        %4659 = vst [vmem:[#allocation5 + $0x234] sm:$0xf] %v4631
        %4660 = vst [vmem:[#allocation5 + $0x298] sm:$0xf] %v4634
        %4661 = vst [vmem:[#allocation5 + $0x2fc] sm:$0xf] %v4637
        %4662 = vst [vmem:[#allocation5 + $0x360] sm:$0xf] %v4640
        %4663 = vst [vmem:[#allocation5 + $0x3c4] sm:$0xf] %v4643
        %v4664 = vld [vmem:[#allocation4 + $0x10] sm:$0xe]
        %v4665 = vld [vmem:[#allocation4 + $0x14] sm:$0xf]
        %v4666 = vld [vmem:[#allocation4 + $0x18] sm:$0xf]
        %v4667 = vld [vmem:[#allocation4 + $0x1c] sm:$0xf]
        %v4668 = vld [vmem:[#allocation4 + $0x20] sm:$0xf]
        %v4669 = vld [vmem:[#allocation4 + $0x24] sm:$0xf]
        %v4670 = vld [vmem:[#allocation4 + $0x28] sm:$0xf]
        %v4671 = vld [vmem:[#allocation4 + $0x2c] sm:$0xf]
        %v4672 = vld [vmem:[#allocation4 + $0x30] sm:$0xf]
        %v4673 = vld [vmem:[#allocation4 + $0x34] sm:$0xf]
        %v4674 = vld [vmem:[#allocation4 + $0x38] sm:$0x3]
        %v4676 = vshrl.u32 %v4664, 16
        %v4678 = vrot.slane %v4676, 5
        %v4679 = vshll.u32 %v4664, 16
        %v4681 = vrot.slane %v4679, 6
        %v4682 = vor.u32 %v4678, %v4681
        %v4683 = vrot.slane %v4682, 4
        %v4685 = vshrl.u32 %v4665, 16
        %v4687 = vrot.slane %v4685, 5
        %v4688 = vshll.u32 %v4665, 16
        %v4690 = vrot.slane %v4688, 6
        %v4691 = vor.u32 %v4687, %v4690
        %v4692 = vsel %vm3273, %v4683, %v4691
        %v4693 = vrot.slane %v4691, 4
        %v4695 = vshrl.u32 %v4666, 16
        %v4697 = vrot.slane %v4695, 5
        %v4698 = vshll.u32 %v4666, 16
        %v4700 = vrot.slane %v4698, 6
        %v4701 = vor.u32 %v4697, %v4700
        %v4702 = vsel %vm3273, %v4693, %v4701
        %v4703 = vrot.slane %v4701, 4
        %v4705 = vshrl.u32 %v4667, 16
        %v4707 = vrot.slane %v4705, 5
        %v4708 = vshll.u32 %v4667, 16
        %v4710 = vrot.slane %v4708, 6
        %v4711 = vor.u32 %v4707, %v4710
        %v4712 = vsel %vm3273, %v4703, %v4711
        %v4713 = vrot.slane %v4711, 4
        %v4715 = vshrl.u32 %v4668, 16
        %v4717 = vrot.slane %v4715, 5
        %v4718 = vshll.u32 %v4668, 16
        %v4720 = vrot.slane %v4718, 6
        %v4721 = vor.u32 %v4717, %v4720
        %v4722 = vsel %vm3273, %v4713, %v4721
        %v4723 = vrot.slane %v4721, 4
        %v4725 = vshrl.u32 %v4669, 16
        %v4727 = vrot.slane %v4725, 5
        %v4728 = vshll.u32 %v4669, 16
        %v4730 = vrot.slane %v4728, 6
        %v4731 = vor.u32 %v4727, %v4730
        %v4732 = vsel %vm3273, %v4723, %v4731
        %v4733 = vrot.slane %v4731, 4
        %v4735 = vshrl.u32 %v4670, 16
        %v4737 = vrot.slane %v4735, 5
        %v4738 = vshll.u32 %v4670, 16
        %v4740 = vrot.slane %v4738, 6
        %v4741 = vor.u32 %v4737, %v4740
        %v4742 = vsel %vm3273, %v4733, %v4741
        %v4743 = vrot.slane %v4741, 4
        %v4745 = vshrl.u32 %v4671, 16
        %v4747 = vrot.slane %v4745, 5
        %v4748 = vshll.u32 %v4671, 16
        %v4750 = vrot.slane %v4748, 6
        %v4751 = vor.u32 %v4747, %v4750
        %v4752 = vsel %vm3273, %v4743, %v4751
        %v4753 = vrot.slane %v4751, 4
        %v4755 = vshrl.u32 %v4672, 16
        %v4757 = vrot.slane %v4755, 5
        %v4758 = vshll.u32 %v4672, 16
        %v4760 = vrot.slane %v4758, 6
        %v4761 = vor.u32 %v4757, %v4760
        %v4762 = vsel %vm3273, %v4753, %v4761
        %v4763 = vrot.slane %v4761, 4
        %v4765 = vshrl.u32 %v4673, 16
        %v4767 = vrot.slane %v4765, 5
        %v4768 = vshll.u32 %v4673, 16
        %v4770 = vrot.slane %v4768, 6
        %v4771 = vor.u32 %v4767, %v4770
        %v4772 = vsel %vm3273, %v4763, %v4771
        %v4773 = vrot.slane %v4771, 4
        %v4775 = vshrl.u32 %v4674, 16
        %v4777 = vrot.slane %v4775, 5
        %v4778 = vshll.u32 %v4674, 16
        %v4780 = vrot.slane %v4778, 6
        %v4781 = vor.u32 %v4777, %v4780
        %v4782 = vsel %vm3273, %v4773, %v4781
        %4793 = vst [vmem:[#allocation5 + $0x44] sm:$0xf] %v4692
        %4794 = vst [vmem:[#allocation5 + $0xa8] sm:$0xf] %v4702
        %4795 = vst [vmem:[#allocation5 + $0x10c] sm:$0xf] %v4712
        %4796 = vst [vmem:[#allocation5 + $0x170] sm:$0xf] %v4722
        %4797 = vst [vmem:[#allocation5 + $0x1d4] sm:$0xf] %v4732
        %4798 = vst [vmem:[#allocation5 + $0x238] sm:$0xf] %v4742
        %4799 = vst [vmem:[#allocation5 + $0x29c] sm:$0xf] %v4752
        %4800 = vst [vmem:[#allocation5 + $0x300] sm:$0xf] %v4762
        %4801 = vst [vmem:[#allocation5 + $0x364] sm:$0xf] %v4772
        %4802 = vst [vmem:[#allocation5 + $0x3c8] sm:$0xf] %v4782
        %v4803 = vld [vmem:[#allocation4 + $0x10] sm:$0xc]
        %v4804 = vld [vmem:[#allocation4 + $0x14] sm:$0xf]
        %v4805 = vld [vmem:[#allocation4 + $0x18] sm:$0xf]
        %v4806 = vld [vmem:[#allocation4 + $0x1c] sm:$0xf]
        %v4807 = vld [vmem:[#allocation4 + $0x20] sm:$0xf]
        %v4808 = vld [vmem:[#allocation4 + $0x24] sm:$0xf]
        %v4809 = vld [vmem:[#allocation4 + $0x28] sm:$0xf]
        %v4810 = vld [vmem:[#allocation4 + $0x2c] sm:$0xf]
        %v4811 = vld [vmem:[#allocation4 + $0x30] sm:$0xf]
        %v4812 = vld [vmem:[#allocation4 + $0x34] sm:$0xf]
        %v4813 = vld [vmem:[#allocation4 + $0x38] sm:$0x3]
        %v4825 = vrot.slane %v4803, 6
        %v4826 = vrot.slane %v4825, 4
        %v4827 = vrot.slane %v4804, 6
        %v4828 = vsel %vm2559, %v4826, %v4827
        %v4829 = vrot.slane %v4827, 4
        %v4830 = vrot.slane %v4805, 6
        %v4831 = vsel %vm2559, %v4829, %v4830
        %v4832 = vrot.slane %v4830, 4
        %v4833 = vrot.slane %v4806, 6
        %v4834 = vsel %vm2559, %v4832, %v4833
        %v4835 = vrot.slane %v4833, 4
        %v4836 = vrot.slane %v4807, 6
        %v4837 = vsel %vm2559, %v4835, %v4836
        %v4838 = vrot.slane %v4836, 4
        %v4839 = vrot.slane %v4808, 6
        %v4840 = vsel %vm2559, %v4838, %v4839
        %v4841 = vrot.slane %v4839, 4
        %v4842 = vrot.slane %v4809, 6
        %v4843 = vsel %vm2559, %v4841, %v4842
        %v4844 = vrot.slane %v4842, 4
        %v4845 = vrot.slane %v4810, 6
        %v4846 = vsel %vm2559, %v4844, %v4845
        %v4847 = vrot.slane %v4845, 4
        %v4848 = vrot.slane %v4811, 6
        %v4849 = vsel %vm2559, %v4847, %v4848
        %v4850 = vrot.slane %v4848, 4
        %v4851 = vrot.slane %v4812, 6
        %v4852 = vsel %vm2559, %v4850, %v4851
        %v4853 = vrot.slane %v4851, 4
        %v4854 = vrot.slane %v4813, 6
        %v4855 = vsel %vm2559, %v4853, %v4854
        %4866 = vst [vmem:[#allocation5 + $0x48] sm:$0xf] %v4828
        %4867 = vst [vmem:[#allocation5 + $0xac] sm:$0xf] %v4831
        %4868 = vst [vmem:[#allocation5 + $0x110] sm:$0xf] %v4834
        %4869 = vst [vmem:[#allocation5 + $0x174] sm:$0xf] %v4837
        %4870 = vst [vmem:[#allocation5 + $0x1d8] sm:$0xf] %v4840
        %4871 = vst [vmem:[#allocation5 + $0x23c] sm:$0xf] %v4843
        %4872 = vst [vmem:[#allocation5 + $0x2a0] sm:$0xf] %v4846
        %4873 = vst [vmem:[#allocation5 + $0x304] sm:$0xf] %v4849
        %4874 = vst [vmem:[#allocation5 + $0x368] sm:$0xf] %v4852
        %4875 = vst [vmem:[#allocation5 + $0x3cc] sm:$0xf] %v4855
        %v4876 = vld [vmem:[#allocation4 + $0x10] sm:$0xc]
        %v4877 = vld [vmem:[#allocation4 + $0x14] sm:$0xf]
        %v4878 = vld [vmem:[#allocation4 + $0x18] sm:$0xf]
        %v4879 = vld [vmem:[#allocation4 + $0x1c] sm:$0xf]
        %v4880 = vld [vmem:[#allocation4 + $0x20] sm:$0xf]
        %v4881 = vld [vmem:[#allocation4 + $0x24] sm:$0xf]
        %v4882 = vld [vmem:[#allocation4 + $0x28] sm:$0xf]
        %v4883 = vld [vmem:[#allocation4 + $0x2c] sm:$0xf]
        %v4884 = vld [vmem:[#allocation4 + $0x30] sm:$0xf]
        %v4885 = vld [vmem:[#allocation4 + $0x34] sm:$0xf]
        %v4886 = vld [vmem:[#allocation4 + $0x38] sm:$0x7]
        %v4888 = vshrl.u32 %v4876, 16
        %v4890 = vrot.slane %v4888, 6
        %v4891 = vshll.u32 %v4876, 16
        %v4893 = vrot.slane %v4891, 7
        %v4894 = vor.u32 %v4890, %v4893
        %v4895 = vrot.slane %v4894, 4
        %v4897 = vshrl.u32 %v4877, 16
        %v4899 = vrot.slane %v4897, 6
        %v4900 = vshll.u32 %v4877, 16
        %v4902 = vrot.slane %v4900, 7
        %v4903 = vor.u32 %v4899, %v4902
        %v4904 = vsel %vm3699, %v4895, %v4903
        %v4905 = vrot.slane %v4903, 4
        %v4907 = vshrl.u32 %v4878, 16
        %v4909 = vrot.slane %v4907, 6
        %v4910 = vshll.u32 %v4878, 16
        %v4912 = vrot.slane %v4910, 7
        %v4913 = vor.u32 %v4909, %v4912
        %v4914 = vsel %vm3699, %v4905, %v4913
        %v4915 = vrot.slane %v4913, 4
        %v4917 = vshrl.u32 %v4879, 16
        %v4919 = vrot.slane %v4917, 6
        %v4920 = vshll.u32 %v4879, 16
        %v4922 = vrot.slane %v4920, 7
        %v4923 = vor.u32 %v4919, %v4922
        %v4924 = vsel %vm3699, %v4915, %v4923
        %v4925 = vrot.slane %v4923, 4
        %v4927 = vshrl.u32 %v4880, 16
        %v4929 = vrot.slane %v4927, 6
        %v4930 = vshll.u32 %v4880, 16
        %v4932 = vrot.slane %v4930, 7
        %v4933 = vor.u32 %v4929, %v4932
        %v4934 = vsel %vm3699, %v4925, %v4933
        %v4935 = vrot.slane %v4933, 4
        %v4937 = vshrl.u32 %v4881, 16
        %v4939 = vrot.slane %v4937, 6
        %v4940 = vshll.u32 %v4881, 16
        %v4942 = vrot.slane %v4940, 7
        %v4943 = vor.u32 %v4939, %v4942
        %v4944 = vsel %vm3699, %v4935, %v4943
        %v4945 = vrot.slane %v4943, 4
        %v4947 = vshrl.u32 %v4882, 16
        %v4949 = vrot.slane %v4947, 6
        %v4950 = vshll.u32 %v4882, 16
        %v4952 = vrot.slane %v4950, 7
        %v4953 = vor.u32 %v4949, %v4952
        %v4954 = vsel %vm3699, %v4945, %v4953
        %v4955 = vrot.slane %v4953, 4
        %v4957 = vshrl.u32 %v4883, 16
        %v4959 = vrot.slane %v4957, 6
        %v4960 = vshll.u32 %v4883, 16
        %v4962 = vrot.slane %v4960, 7
        %v4963 = vor.u32 %v4959, %v4962
        %v4964 = vsel %vm3699, %v4955, %v4963
        %v4965 = vrot.slane %v4963, 4
        %v4967 = vshrl.u32 %v4884, 16
        %v4969 = vrot.slane %v4967, 6
        %v4970 = vshll.u32 %v4884, 16
        %v4972 = vrot.slane %v4970, 7
        %v4973 = vor.u32 %v4969, %v4972
        %v4974 = vsel %vm3699, %v4965, %v4973
        %v4975 = vrot.slane %v4973, 4
        %v4977 = vshrl.u32 %v4885, 16
        %v4979 = vrot.slane %v4977, 6
        %v4980 = vshll.u32 %v4885, 16
        %v4982 = vrot.slane %v4980, 7
        %v4983 = vor.u32 %v4979, %v4982
        %v4984 = vsel %vm3699, %v4975, %v4983
        %v4985 = vrot.slane %v4983, 4
        %v4987 = vshrl.u32 %v4886, 16
        %v4989 = vrot.slane %v4987, 6
        %v4990 = vshll.u32 %v4886, 16
        %v4992 = vrot.slane %v4990, 7
        %v4993 = vor.u32 %v4989, %v4992
        %v4994 = vsel %vm3699, %v4985, %v4993
        %5005 = vst [vmem:[#allocation5 + $0x4c] sm:$0xf] %v4904
        %5006 = vst [vmem:[#allocation5 + $0xb0] sm:$0xf] %v4914
        %5007 = vst [vmem:[#allocation5 + $0x114] sm:$0xf] %v4924
        %5008 = vst [vmem:[#allocation5 + $0x178] sm:$0xf] %v4934
        %5009 = vst [vmem:[#allocation5 + $0x1dc] sm:$0xf] %v4944
        %5010 = vst [vmem:[#allocation5 + $0x240] sm:$0xf] %v4954
        %5011 = vst [vmem:[#allocation5 + $0x2a4] sm:$0xf] %v4964
        %5012 = vst [vmem:[#allocation5 + $0x308] sm:$0xf] %v4974
        %5013 = vst [vmem:[#allocation5 + $0x36c] sm:$0xf] %v4984
        %5014 = vst [vmem:[#allocation5 + $0x3d0] sm:$0xf] %v4994
        %v5015 = vld [vmem:[#allocation4 + $0x14] sm:$0xc]
        %v5016 = vld [vmem:[#allocation4 + $0x18] sm:$0xf]
        %v5017 = vld [vmem:[#allocation4 + $0x1c] sm:$0xf]
        %v5018 = vld [vmem:[#allocation4 + $0x20] sm:$0xf]
        %v5019 = vld [vmem:[#allocation4 + $0x24] sm:$0xf]
        %v5020 = vld [vmem:[#allocation4 + $0x28] sm:$0xf]
        %v5021 = vld [vmem:[#allocation4 + $0x2c] sm:$0xf]
        %v5022 = vld [vmem:[#allocation4 + $0x30] sm:$0xf]
        %v5023 = vld [vmem:[#allocation4 + $0x34] sm:$0xf]
        %v5024 = vld [vmem:[#allocation4 + $0x38] sm:$0xf]
        %v5025 = vld [vmem:[#allocation4 + $0x3c] sm:$0x3]
        %v5037 = vrot.slane %v5015, 6
        %v5038 = vrot.slane %v5037, 4
        %v5039 = vrot.slane %v5016, 6
        %v5040 = vsel %vm2559, %v5038, %v5039
        %v5041 = vrot.slane %v5039, 4
        %v5042 = vrot.slane %v5017, 6
        %v5043 = vsel %vm2559, %v5041, %v5042
        %v5044 = vrot.slane %v5042, 4
        %v5045 = vrot.slane %v5018, 6
        %v5046 = vsel %vm2559, %v5044, %v5045
        %v5047 = vrot.slane %v5045, 4
        %v5048 = vrot.slane %v5019, 6
        %v5049 = vsel %vm2559, %v5047, %v5048
        %v5050 = vrot.slane %v5048, 4
        %v5051 = vrot.slane %v5020, 6
        %v5052 = vsel %vm2559, %v5050, %v5051
        %v5053 = vrot.slane %v5051, 4
        %v5054 = vrot.slane %v5021, 6
        %v5055 = vsel %vm2559, %v5053, %v5054
        %v5056 = vrot.slane %v5054, 4
        %v5057 = vrot.slane %v5022, 6
        %v5058 = vsel %vm2559, %v5056, %v5057
        %v5059 = vrot.slane %v5057, 4
        %v5060 = vrot.slane %v5023, 6
        %v5061 = vsel %vm2559, %v5059, %v5060
        %v5062 = vrot.slane %v5060, 4
        %v5063 = vrot.slane %v5024, 6
        %v5064 = vsel %vm2559, %v5062, %v5063
        %v5065 = vrot.slane %v5063, 4
        %v5066 = vrot.slane %v5025, 6
        %v5067 = vsel %vm2559, %v5065, %v5066
        %5078 = vst [vmem:[#allocation5 + $0x50] sm:$0xf] %v5040
        %5079 = vst [vmem:[#allocation5 + $0xb4] sm:$0xf] %v5043
        %5080 = vst [vmem:[#allocation5 + $0x118] sm:$0xf] %v5046
        %5081 = vst [vmem:[#allocation5 + $0x17c] sm:$0xf] %v5049
        %5082 = vst [vmem:[#allocation5 + $0x1e0] sm:$0xf] %v5052
        %5083 = vst [vmem:[#allocation5 + $0x244] sm:$0xf] %v5055
        %5084 = vst [vmem:[#allocation5 + $0x2a8] sm:$0xf] %v5058
        %5085 = vst [vmem:[#allocation5 + $0x30c] sm:$0xf] %v5061
        %5086 = vst [vmem:[#allocation5 + $0x370] sm:$0xf] %v5064
        %5087 = vst [vmem:[#allocation5 + $0x3d4] sm:$0xf] %v5067
        %v5088 = vld [vmem:[#allocation4 + $0x14] sm:$0xc]
        %v5089 = vld [vmem:[#allocation4 + $0x18] sm:$0xf]
        %v5090 = vld [vmem:[#allocation4 + $0x1c] sm:$0xf]
        %v5091 = vld [vmem:[#allocation4 + $0x20] sm:$0xf]
        %v5092 = vld [vmem:[#allocation4 + $0x24] sm:$0xf]
        %v5093 = vld [vmem:[#allocation4 + $0x28] sm:$0xf]
        %v5094 = vld [vmem:[#allocation4 + $0x2c] sm:$0xf]
        %v5095 = vld [vmem:[#allocation4 + $0x30] sm:$0xf]
        %v5096 = vld [vmem:[#allocation4 + $0x34] sm:$0xf]
        %v5097 = vld [vmem:[#allocation4 + $0x38] sm:$0xf]
        %v5098 = vld [vmem:[#allocation4 + $0x3c] sm:$0x7]
        %v5100 = vshrl.u32 %v5088, 16
        %v5102 = vrot.slane %v5100, 6
        %v5103 = vshll.u32 %v5088, 16
        %v5105 = vrot.slane %v5103, 7
        %v5106 = vor.u32 %v5102, %v5105
        %v5107 = vrot.slane %v5106, 4
        %v5109 = vshrl.u32 %v5089, 16
        %v5111 = vrot.slane %v5109, 6
        %v5112 = vshll.u32 %v5089, 16
        %v5114 = vrot.slane %v5112, 7
        %v5115 = vor.u32 %v5111, %v5114
        %v5116 = vsel %vm3699, %v5107, %v5115
        %v5117 = vrot.slane %v5115, 4
        %v5119 = vshrl.u32 %v5090, 16
        %v5121 = vrot.slane %v5119, 6
        %v5122 = vshll.u32 %v5090, 16
        %v5124 = vrot.slane %v5122, 7
        %v5125 = vor.u32 %v5121, %v5124
        %v5126 = vsel %vm3699, %v5117, %v5125
        %v5127 = vrot.slane %v5125, 4
        %v5129 = vshrl.u32 %v5091, 16
        %v5131 = vrot.slane %v5129, 6
        %v5132 = vshll.u32 %v5091, 16
        %v5134 = vrot.slane %v5132, 7
        %v5135 = vor.u32 %v5131, %v5134
        %v5136 = vsel %vm3699, %v5127, %v5135
        %v5137 = vrot.slane %v5135, 4
        %v5139 = vshrl.u32 %v5092, 16
        %v5141 = vrot.slane %v5139, 6
        %v5142 = vshll.u32 %v5092, 16
        %v5144 = vrot.slane %v5142, 7
        %v5145 = vor.u32 %v5141, %v5144
        %v5146 = vsel %vm3699, %v5137, %v5145
        %v5147 = vrot.slane %v5145, 4
        %v5149 = vshrl.u32 %v5093, 16
        %v5151 = vrot.slane %v5149, 6
        %v5152 = vshll.u32 %v5093, 16
        %v5154 = vrot.slane %v5152, 7
        %v5155 = vor.u32 %v5151, %v5154
        %v5156 = vsel %vm3699, %v5147, %v5155
        %v5157 = vrot.slane %v5155, 4
        %v5159 = vshrl.u32 %v5094, 16
        %v5161 = vrot.slane %v5159, 6
        %v5162 = vshll.u32 %v5094, 16
        %v5164 = vrot.slane %v5162, 7
        %v5165 = vor.u32 %v5161, %v5164
        %v5166 = vsel %vm3699, %v5157, %v5165
        %v5167 = vrot.slane %v5165, 4
        %v5169 = vshrl.u32 %v5095, 16
        %v5171 = vrot.slane %v5169, 6
        %v5172 = vshll.u32 %v5095, 16
        %v5174 = vrot.slane %v5172, 7
        %v5175 = vor.u32 %v5171, %v5174
        %v5176 = vsel %vm3699, %v5167, %v5175
        %v5177 = vrot.slane %v5175, 4
        %v5179 = vshrl.u32 %v5096, 16
        %v5181 = vrot.slane %v5179, 6
        %v5182 = vshll.u32 %v5096, 16
        %v5184 = vrot.slane %v5182, 7
        %v5185 = vor.u32 %v5181, %v5184
        %v5186 = vsel %vm3699, %v5177, %v5185
        %v5187 = vrot.slane %v5185, 4
        %v5189 = vshrl.u32 %v5097, 16
        %v5191 = vrot.slane %v5189, 6
        %v5192 = vshll.u32 %v5097, 16
        %v5194 = vrot.slane %v5192, 7
        %v5195 = vor.u32 %v5191, %v5194
        %v5196 = vsel %vm3699, %v5187, %v5195
        %v5197 = vrot.slane %v5195, 4
        %v5199 = vshrl.u32 %v5098, 16
        %v5201 = vrot.slane %v5199, 6
        %v5202 = vshll.u32 %v5098, 16
        %v5204 = vrot.slane %v5202, 7
        %v5205 = vor.u32 %v5201, %v5204
        %v5206 = vsel %vm3699, %v5197, %v5205
        %5217 = vst [vmem:[#allocation5 + $0x54] sm:$0xf] %v5116
        %5218 = vst [vmem:[#allocation5 + $0xb8] sm:$0xf] %v5126
        %5219 = vst [vmem:[#allocation5 + $0x11c] sm:$0xf] %v5136
        %5220 = vst [vmem:[#allocation5 + $0x180] sm:$0xf] %v5146
        %5221 = vst [vmem:[#allocation5 + $0x1e4] sm:$0xf] %v5156
        %5222 = vst [vmem:[#allocation5 + $0x248] sm:$0xf] %v5166
        %5223 = vst [vmem:[#allocation5 + $0x2ac] sm:$0xf] %v5176
        %5224 = vst [vmem:[#allocation5 + $0x310] sm:$0xf] %v5186
        %5225 = vst [vmem:[#allocation5 + $0x374] sm:$0xf] %v5196
        %5226 = vst [vmem:[#allocation5 + $0x3d8] sm:$0xf] %v5206
        %v5227 = vld [vmem:[#allocation4 + $0x14] sm:$0x8]
        %v5228 = vld [vmem:[#allocation4 + $0x18] sm:$0xf]
        %v5229 = vld [vmem:[#allocation4 + $0x1c] sm:$0xf]
        %v5230 = vld [vmem:[#allocation4 + $0x20] sm:$0xf]
        %v5231 = vld [vmem:[#allocation4 + $0x24] sm:$0xf]
        %v5232 = vld [vmem:[#allocation4 + $0x28] sm:$0xf]
        %v5233 = vld [vmem:[#allocation4 + $0x2c] sm:$0xf]
        %v5234 = vld [vmem:[#allocation4 + $0x30] sm:$0xf]
        %v5235 = vld [vmem:[#allocation4 + $0x34] sm:$0xf]
        %v5236 = vld [vmem:[#allocation4 + $0x38] sm:$0xf]
        %v5237 = vld [vmem:[#allocation4 + $0x3c] sm:$0x7]
        %v5249 = vrot.slane %v5227, 7
        %v5250 = vrot.slane %v5249, 4
        %v5251 = vrot.slane %v5228, 7
        %v5252 = vsel %vm3851, %v5250, %v5251
        %v5253 = vrot.slane %v5251, 4
        %v5254 = vrot.slane %v5229, 7
        %v5255 = vsel %vm3851, %v5253, %v5254
        %v5256 = vrot.slane %v5254, 4
        %v5257 = vrot.slane %v5230, 7
        %v5258 = vsel %vm3851, %v5256, %v5257
        %v5259 = vrot.slane %v5257, 4
        %v5260 = vrot.slane %v5231, 7
        %v5261 = vsel %vm3851, %v5259, %v5260
        %v5262 = vrot.slane %v5260, 4
        %v5263 = vrot.slane %v5232, 7
        %v5264 = vsel %vm3851, %v5262, %v5263
        %v5265 = vrot.slane %v5263, 4
        %v5266 = vrot.slane %v5233, 7
        %v5267 = vsel %vm3851, %v5265, %v5266
        %v5268 = vrot.slane %v5266, 4
        %v5269 = vrot.slane %v5234, 7
        %v5270 = vsel %vm3851, %v5268, %v5269
        %v5271 = vrot.slane %v5269, 4
        %v5272 = vrot.slane %v5235, 7
        %v5273 = vsel %vm3851, %v5271, %v5272
        %v5274 = vrot.slane %v5272, 4
        %v5275 = vrot.slane %v5236, 7
        %v5276 = vsel %vm3851, %v5274, %v5275
        %v5277 = vrot.slane %v5275, 4
        %v5278 = vrot.slane %v5237, 7
        %v5279 = vsel %vm3851, %v5277, %v5278
        %5290 = vst [vmem:[#allocation5 + $0x58] sm:$0xf] %v5252
        %5291 = vst [vmem:[#allocation5 + $0xbc] sm:$0xf] %v5255
        %5292 = vst [vmem:[#allocation5 + $0x120] sm:$0xf] %v5258
        %5293 = vst [vmem:[#allocation5 + $0x184] sm:$0xf] %v5261
        %5294 = vst [vmem:[#allocation5 + $0x1e8] sm:$0xf] %v5264
        %5295 = vst [vmem:[#allocation5 + $0x24c] sm:$0xf] %v5267
        %5296 = vst [vmem:[#allocation5 + $0x2b0] sm:$0xf] %v5270
        %5297 = vst [vmem:[#allocation5 + $0x314] sm:$0xf] %v5273
        %5298 = vst [vmem:[#allocation5 + $0x378] sm:$0xf] %v5276
        %5299 = vst [vmem:[#allocation5 + $0x3dc] sm:$0xf] %v5279
        %v5300 = vld [vmem:[#allocation4 + $0x14] sm:$0x8]
        %v5301 = vld [vmem:[#allocation4 + $0x18] sm:$0xf]
        %v5302 = vld [vmem:[#allocation4 + $0x1c] sm:$0xf]
        %v5303 = vld [vmem:[#allocation4 + $0x20] sm:$0xf]
        %v5304 = vld [vmem:[#allocation4 + $0x24] sm:$0xf]
        %v5305 = vld [vmem:[#allocation4 + $0x28] sm:$0xf]
        %v5306 = vld [vmem:[#allocation4 + $0x2c] sm:$0xf]
        %v5307 = vld [vmem:[#allocation4 + $0x30] sm:$0xf]
        %v5308 = vld [vmem:[#allocation4 + $0x34] sm:$0xf]
        %v5309 = vld [vmem:[#allocation4 + $0x38] sm:$0xf]
        %v5310 = vld [vmem:[#allocation4 + $0x3c] sm:$0xf]
        %v5312 = vshrl.u32 %v5300, 16
        %v5314 = vrot.slane %v5312, 7
        %v5315 = vrot.slane %v5314, 4
        %v5317 = vshrl.u32 %v5301, 16
        %v5319 = vrot.slane %v5317, 7
        %v5320 = vshll.u32 %v5301, 16
        %v5322 = vor.u32 %v5319, %v5320
        %v5323 = vsel %vm3915, %v5315, %v5322
        %v5324 = vrot.slane %v5319, 4
        %v5326 = vshrl.u32 %v5302, 16
        %v5328 = vrot.slane %v5326, 7
        %v5329 = vshll.u32 %v5302, 16
        %v5331 = vor.u32 %v5328, %v5329
        %v5332 = vsel %vm3915, %v5324, %v5331
        %v5333 = vrot.slane %v5328, 4
        %v5335 = vshrl.u32 %v5303, 16
        %v5337 = vrot.slane %v5335, 7
        %v5338 = vshll.u32 %v5303, 16
        %v5340 = vor.u32 %v5337, %v5338
        %v5341 = vsel %vm3915, %v5333, %v5340
        %v5342 = vrot.slane %v5337, 4
        %v5344 = vshrl.u32 %v5304, 16
        %v5346 = vrot.slane %v5344, 7
        %v5347 = vshll.u32 %v5304, 16
        %v5349 = vor.u32 %v5346, %v5347
        %v5350 = vsel %vm3915, %v5342, %v5349
        %v5351 = vrot.slane %v5346, 4
        %v5353 = vshrl.u32 %v5305, 16
        %v5355 = vrot.slane %v5353, 7
        %v5356 = vshll.u32 %v5305, 16
        %v5358 = vor.u32 %v5355, %v5356
        %v5359 = vsel %vm3915, %v5351, %v5358
        %v5360 = vrot.slane %v5355, 4
        %v5362 = vshrl.u32 %v5306, 16
        %v5364 = vrot.slane %v5362, 7
        %v5365 = vshll.u32 %v5306, 16
        %v5367 = vor.u32 %v5364, %v5365
        %v5368 = vsel %vm3915, %v5360, %v5367
        %v5369 = vrot.slane %v5364, 4
        %v5371 = vshrl.u32 %v5307, 16
        %v5373 = vrot.slane %v5371, 7
        %v5374 = vshll.u32 %v5307, 16
        %v5376 = vor.u32 %v5373, %v5374
        %v5377 = vsel %vm3915, %v5369, %v5376
        %v5378 = vrot.slane %v5373, 4
        %v5380 = vshrl.u32 %v5308, 16
        %v5382 = vrot.slane %v5380, 7
        %v5383 = vshll.u32 %v5308, 16
        %v5385 = vor.u32 %v5382, %v5383
        %v5386 = vsel %vm3915, %v5378, %v5385
        %v5387 = vrot.slane %v5382, 4
        %v5389 = vshrl.u32 %v5309, 16
        %v5391 = vrot.slane %v5389, 7
        %v5392 = vshll.u32 %v5309, 16
        %v5394 = vor.u32 %v5391, %v5392
        %v5395 = vsel %vm3915, %v5387, %v5394
        %v5396 = vrot.slane %v5391, 4
        %v5398 = vshrl.u32 %v5310, 16
        %v5400 = vrot.slane %v5398, 7
        %v5401 = vshll.u32 %v5310, 16
        %v5403 = vor.u32 %v5400, %v5401
        %v5404 = vsel %vm3915, %v5396, %v5403
        %5415 = vst [vmem:[#allocation5 + $0x5c] sm:$0xf] %v5323
        %5416 = vst [vmem:[#allocation5 + $0xc0] sm:$0xf] %v5332
        %5417 = vst [vmem:[#allocation5 + $0x124] sm:$0xf] %v5341
        %5418 = vst [vmem:[#allocation5 + $0x188] sm:$0xf] %v5350
        %5419 = vst [vmem:[#allocation5 + $0x1ec] sm:$0xf] %v5359
        %5420 = vst [vmem:[#allocation5 + $0x250] sm:$0xf] %v5368
        %5421 = vst [vmem:[#allocation5 + $0x2b4] sm:$0xf] %v5377
        %5422 = vst [vmem:[#allocation5 + $0x318] sm:$0xf] %v5386
        %5423 = vst [vmem:[#allocation5 + $0x37c] sm:$0xf] %v5395
        %5424 = vst [vmem:[#allocation5 + $0x3e0] sm:$0xf] %v5404
        %v5425 = vld [vmem:[#allocation4 + $0x18] sm:$0xf]
        %v5426 = vld [vmem:[#allocation4 + $0x1c] sm:$0xf]
        %v5427 = vld [vmem:[#allocation4 + $0x20] sm:$0xf]
        %v5428 = vld [vmem:[#allocation4 + $0x24] sm:$0xf]
        %v5429 = vld [vmem:[#allocation4 + $0x28] sm:$0xf]
        %v5430 = vld [vmem:[#allocation4 + $0x2c] sm:$0xf]
        %v5431 = vld [vmem:[#allocation4 + $0x30] sm:$0xf]
        %v5432 = vld [vmem:[#allocation4 + $0x34] sm:$0xf]
        %v5433 = vld [vmem:[#allocation4 + $0x38] sm:$0xf]
        %v5434 = vld [vmem:[#allocation4 + $0x3c] sm:$0xf]
        %5435 = vst [vmem:[#allocation5 + $0x60] sm:$0xf] %v5425
        %5436 = vst [vmem:[#allocation5 + $0xc4] sm:$0xf] %v5426
        %5437 = vst [vmem:[#allocation5 + $0x128] sm:$0xf] %v5427
        %5438 = vst [vmem:[#allocation5 + $0x18c] sm:$0xf] %v5428
        %5439 = vst [vmem:[#allocation5 + $0x1f0] sm:$0xf] %v5429
        %5440 = vst [vmem:[#allocation5 + $0x254] sm:$0xf] %v5430
        %5441 = vst [vmem:[#allocation5 + $0x2b8] sm:$0xf] %v5431
        %5442 = vst [vmem:[#allocation5 + $0x31c] sm:$0xf] %v5432
        %5443 = vst [vmem:[#allocation5 + $0x380] sm:$0xf] %v5433
        %5444 = vst [vmem:[#allocation5 + $0x3e4] sm:$0xf] %v5434
        %v5445 = vld [vmem:[#allocation5] sm:$0xff]
        %v5446 = vld [vmem:[#allocation5 + $0x8] sm:$0xff]
        %v5447 = vld [vmem:[#allocation5 + $0x10] sm:$0xff]
        %v5448 = vld [vmem:[#allocation5 + $0x18] sm:$0xff]
        %v5449 = vld [vmem:[#allocation5 + $0x20] sm:$0xff]
        %v5450 = vld [vmem:[#allocation5 + $0x28] sm:$0xff]
        %v5451 = vld [vmem:[#allocation5 + $0x30] sm:$0xff]
        %v5452 = vld [vmem:[#allocation5 + $0x38] sm:$0xff]
        %v5453 = vld [vmem:[#allocation5 + $0x40] sm:$0xff]
        %v5454 = vld [vmem:[#allocation5 + $0x48] sm:$0xff]
        %v5455 = vld [vmem:[#allocation5 + $0x50] sm:$0xff]
        %v5456 = vld [vmem:[#allocation5 + $0x58] sm:$0xff]
        %v5457 = vld [vmem:[#allocation5 + $0x60] sm:$0xf]
        %v5458 = vld [vmem:[#allocation5 + $0x64] sm:$0xff]
        %v5459 = vld [vmem:[#allocation5 + $0x6c] sm:$0xff]
        %v5460 = vld [vmem:[#allocation5 + $0x74] sm:$0xff]
        %v5461 = vld [vmem:[#allocation5 + $0x7c] sm:$0xff]
        %v5462 = vld [vmem:[#allocation5 + $0x84] sm:$0xff]
        %v5463 = vld [vmem:[#allocation5 + $0x8c] sm:$0xff]
        %v5464 = vld [vmem:[#allocation5 + $0x94] sm:$0xff]
        %v5465 = vld [vmem:[#allocation5 + $0x9c] sm:$0xff]
        %v5466 = vld [vmem:[#allocation5 + $0xa4] sm:$0xff]
        %v5467 = vld [vmem:[#allocation5 + $0xac] sm:$0xff]
        %v5468 = vld [vmem:[#allocation5 + $0xb4] sm:$0xff]
        %v5469 = vld [vmem:[#allocation5 + $0xbc] sm:$0xff]
        %v5470 = vld [vmem:[#allocation5 + $0xc4] sm:$0xf]
        %v5471 = vld [vmem:[#allocation5 + $0xc8] sm:$0xff]
        %v5472 = vld [vmem:[#allocation5 + $0xd0] sm:$0xff]
        %v5473 = vld [vmem:[#allocation5 + $0xd8] sm:$0xff]
        %v5474 = vld [vmem:[#allocation5 + $0xe0] sm:$0xff]
        %v5475 = vld [vmem:[#allocation5 + $0xe8] sm:$0xff]
        %v5476 = vld [vmem:[#allocation5 + $0xf0] sm:$0xff]
        %v5477 = vld [vmem:[#allocation5 + $0xf8] sm:$0xff]
        %v5478 = vld [vmem:[#allocation5 + $0x100] sm:$0xff]
        %v5479 = vld [vmem:[#allocation5 + $0x108] sm:$0xff]
        %v5480 = vld [vmem:[#allocation5 + $0x110] sm:$0xff]
        %v5481 = vld [vmem:[#allocation5 + $0x118] sm:$0xff]
        %v5482 = vld [vmem:[#allocation5 + $0x120] sm:$0xff]
        %v5483 = vld [vmem:[#allocation5 + $0x128] sm:$0xf]
        %v5484 = vld [vmem:[#allocation5 + $0x12c] sm:$0xff]
        %v5485 = vld [vmem:[#allocation5 + $0x134] sm:$0xff]
        %v5486 = vld [vmem:[#allocation5 + $0x13c] sm:$0xff]
        %v5487 = vld [vmem:[#allocation5 + $0x144] sm:$0xff]
        %v5488 = vld [vmem:[#allocation5 + $0x14c] sm:$0xff]
        %v5489 = vld [vmem:[#allocation5 + $0x154] sm:$0xff]
        %v5490 = vld [vmem:[#allocation5 + $0x15c] sm:$0xff]
        %v5491 = vld [vmem:[#allocation5 + $0x164] sm:$0xff]
        %v5492 = vld [vmem:[#allocation5 + $0x16c] sm:$0xff]
        %v5493 = vld [vmem:[#allocation5 + $0x174] sm:$0xff]
        %v5494 = vld [vmem:[#allocation5 + $0x17c] sm:$0xff]
        %v5495 = vld [vmem:[#allocation5 + $0x184] sm:$0xff]
        %v5496 = vld [vmem:[#allocation5 + $0x18c] sm:$0xf]
        %v5497 = vld [vmem:[#allocation5 + $0x190] sm:$0xff]
        %v5498 = vld [vmem:[#allocation5 + $0x198] sm:$0xff]
        %v5499 = vld [vmem:[#allocation5 + $0x1a0] sm:$0xff]
        %v5500 = vld [vmem:[#allocation5 + $0x1a8] sm:$0xff]
        %v5501 = vld [vmem:[#allocation5 + $0x1b0] sm:$0xff]
        %v5502 = vld [vmem:[#allocation5 + $0x1b8] sm:$0xff]
        %v5503 = vld [vmem:[#allocation5 + $0x1c0] sm:$0xff]
        %v5504 = vld [vmem:[#allocation5 + $0x1c8] sm:$0xff]
        %v5505 = vld [vmem:[#allocation5 + $0x1d0] sm:$0xff]
        %v5506 = vld [vmem:[#allocation5 + $0x1d8] sm:$0xff]
        %v5507 = vld [vmem:[#allocation5 + $0x1e0] sm:$0xff]
        %v5508 = vld [vmem:[#allocation5 + $0x1e8] sm:$0xff]
        %v5509 = vld [vmem:[#allocation5 + $0x1f0] sm:$0xf]
        %v5510 = vld [vmem:[#allocation5 + $0x1f4] sm:$0xff]
        %v5511 = vld [vmem:[#allocation5 + $0x1fc] sm:$0xff]
        %v5512 = vld [vmem:[#allocation5 + $0x204] sm:$0xff]
        %v5513 = vld [vmem:[#allocation5 + $0x20c] sm:$0xff]
        %v5514 = vld [vmem:[#allocation5 + $0x214] sm:$0xff]
        %v5515 = vld [vmem:[#allocation5 + $0x21c] sm:$0xff]
        %v5516 = vld [vmem:[#allocation5 + $0x224] sm:$0xff]
        %v5517 = vld [vmem:[#allocation5 + $0x22c] sm:$0xff]
        %v5518 = vld [vmem:[#allocation5 + $0x234] sm:$0xff]
        %v5519 = vld [vmem:[#allocation5 + $0x23c] sm:$0xff]
        %v5520 = vld [vmem:[#allocation5 + $0x244] sm:$0xff]
        %v5521 = vld [vmem:[#allocation5 + $0x24c] sm:$0xff]
        %v5522 = vld [vmem:[#allocation5 + $0x254] sm:$0xf]
        %v5523 = vld [vmem:[#allocation5 + $0x258] sm:$0xff]
        %v5524 = vld [vmem:[#allocation5 + $0x260] sm:$0xff]
        %v5525 = vld [vmem:[#allocation5 + $0x268] sm:$0xff]
        %v5526 = vld [vmem:[#allocation5 + $0x270] sm:$0xff]
        %v5527 = vld [vmem:[#allocation5 + $0x278] sm:$0xff]
        %v5528 = vld [vmem:[#allocation5 + $0x280] sm:$0xff]
        %v5529 = vld [vmem:[#allocation5 + $0x288] sm:$0xff]
        %v5530 = vld [vmem:[#allocation5 + $0x290] sm:$0xff]
        %v5531 = vld [vmem:[#allocation5 + $0x298] sm:$0xff]
        %v5532 = vld [vmem:[#allocation5 + $0x2a0] sm:$0xff]
        %v5533 = vld [vmem:[#allocation5 + $0x2a8] sm:$0xff]
        %v5534 = vld [vmem:[#allocation5 + $0x2b0] sm:$0xff]
        %v5535 = vld [vmem:[#allocation5 + $0x2b8] sm:$0xf]
        %v5536 = vld [vmem:[#allocation5 + $0x2bc] sm:$0xff]
        %v5537 = vld [vmem:[#allocation5 + $0x2c4] sm:$0xff]
        %v5538 = vld [vmem:[#allocation5 + $0x2cc] sm:$0xff]
        %v5539 = vld [vmem:[#allocation5 + $0x2d4] sm:$0xff]
        %v5540 = vld [vmem:[#allocation5 + $0x2dc] sm:$0xff]
        %v5541 = vld [vmem:[#allocation5 + $0x2e4] sm:$0xff]
        %v5542 = vld [vmem:[#allocation5 + $0x2ec] sm:$0xff]
        %v5543 = vld [vmem:[#allocation5 + $0x2f4] sm:$0xff]
        %v5544 = vld [vmem:[#allocation5 + $0x2fc] sm:$0xff]
        %v5545 = vld [vmem:[#allocation5 + $0x304] sm:$0xff]
        %v5546 = vld [vmem:[#allocation5 + $0x30c] sm:$0xff]
        %v5547 = vld [vmem:[#allocation5 + $0x314] sm:$0xff]
        %v5548 = vld [vmem:[#allocation5 + $0x31c] sm:$0xf]
        %v5549 = vld [vmem:[#allocation5 + $0x320] sm:$0xff]
        %v5550 = vld [vmem:[#allocation5 + $0x328] sm:$0xff]
        %v5551 = vld [vmem:[#allocation5 + $0x330] sm:$0xff]
        %v5552 = vld [vmem:[#allocation5 + $0x338] sm:$0xff]
        %v5553 = vld [vmem:[#allocation5 + $0x340] sm:$0xff]
        %v5554 = vld [vmem:[#allocation5 + $0x348] sm:$0xff]
        %v5555 = vld [vmem:[#allocation5 + $0x350] sm:$0xff]
        %v5556 = vld [vmem:[#allocation5 + $0x358] sm:$0xff]
        %v5557 = vld [vmem:[#allocation5 + $0x360] sm:$0xff]
        %v5558 = vld [vmem:[#allocation5 + $0x368] sm:$0xff]
        %v5559 = vld [vmem:[#allocation5 + $0x370] sm:$0xff]
        %v5560 = vld [vmem:[#allocation5 + $0x378] sm:$0xff]
        %v5561 = vld [vmem:[#allocation5 + $0x380] sm:$0xf]
        %v5562 = vld [vmem:[#allocation5 + $0x384] sm:$0xff]
        %v5563 = vld [vmem:[#allocation5 + $0x38c] sm:$0xff]
        %v5564 = vld [vmem:[#allocation5 + $0x394] sm:$0xff]
        %v5565 = vld [vmem:[#allocation5 + $0x39c] sm:$0xff]
        %v5566 = vld [vmem:[#allocation5 + $0x3a4] sm:$0xff]
        %v5567 = vld [vmem:[#allocation5 + $0x3ac] sm:$0xff]
        %v5568 = vld [vmem:[#allocation5 + $0x3b4] sm:$0xff]
        %v5569 = vld [vmem:[#allocation5 + $0x3bc] sm:$0xff]
        %v5570 = vld [vmem:[#allocation5 + $0x3c4] sm:$0xff]
        %v5571 = vld [vmem:[#allocation5 + $0x3cc] sm:$0xff]
        %v5572 = vld [vmem:[#allocation5 + $0x3d4] sm:$0xff]
        %v5573 = vld [vmem:[#allocation5 + $0x3dc] sm:$0xff]
        %v5574 = vld [vmem:[#allocation5 + $0x3e4] sm:$0xf]
        %v5576 = vlaneseq
        %v5577 = vshrl.u32 %v5576, 7
        %v5578 = vsub.s32 0, %v5577
        %v5579 = vrot.slane %v3028, %v5578
        %v5580 = vlaneseq
        %v5581 = vshrl.u32 %v5580, 7
        %v5582 = vsub.s32 1, %v5581
        %v5583 = vrot.slane %v3028, %v5582
        %v5716 = vunpack.c.l.b16 %v5445
        %v5717 = vunpack.c.h.b16 %v5445
        %v5718 = vunpack.c.l.b16 %v5446
        %v5719 = vunpack.c.h.b16 %v5446
        %v5720 = vunpack.c.l.b16 %v5447
        %v5721 = vunpack.c.h.b16 %v5447
        %v5722 = vunpack.c.l.b16 %v5448
        %v5723 = vunpack.c.h.b16 %v5448
        %v5724 = vunpack.c.l.b16 %v5449
        %v5725 = vunpack.c.h.b16 %v5449
        %v5726 = vunpack.c.l.b16 %v5450
        %v5727 = vunpack.c.h.b16 %v5450
        %v5728 = vunpack.c.l.b16 %v5451
        %v5729 = vunpack.c.h.b16 %v5451
        %v5730 = vunpack.c.l.b16 %v5452
        %v5731 = vunpack.c.h.b16 %v5452
        %v5732 = vunpack.c.l.b16 %v5453
        %v5733 = vunpack.c.h.b16 %v5453
        %v5734 = vunpack.c.l.b16 %v5454
        %v5735 = vunpack.c.h.b16 %v5454
        %v5736 = vunpack.c.l.b16 %v5455
        %v5737 = vunpack.c.h.b16 %v5455
        %v5738 = vunpack.c.l.b16 %v5456
        %v5739 = vunpack.c.h.b16 %v5456
        %v5740 = vunpack.c.l.b16 %v5457
        %v5741 = vunpack.c.l.b16 %v5458
        %v5742 = vunpack.c.h.b16 %v5458
        %v5743 = vunpack.c.l.b16 %v5459
        %v5744 = vunpack.c.h.b16 %v5459
        %v5745 = vunpack.c.l.b16 %v5460
        %v5746 = vunpack.c.h.b16 %v5460
        %v5747 = vunpack.c.l.b16 %v5461
        %v5748 = vunpack.c.h.b16 %v5461
        %v5749 = vunpack.c.l.b16 %v5462
        %v5750 = vunpack.c.h.b16 %v5462
        %v5751 = vunpack.c.l.b16 %v5463
        %v5752 = vunpack.c.h.b16 %v5463
        %v5753 = vunpack.c.l.b16 %v5464
        %v5754 = vunpack.c.h.b16 %v5464
        %v5755 = vunpack.c.l.b16 %v5465
        %v5756 = vunpack.c.h.b16 %v5465
        %v5757 = vunpack.c.l.b16 %v5466
        %v5758 = vunpack.c.h.b16 %v5466
        %v5759 = vunpack.c.l.b16 %v5467
        %v5760 = vunpack.c.h.b16 %v5467
        %v5761 = vunpack.c.l.b16 %v5468
        %v5762 = vunpack.c.h.b16 %v5468
        %v5763 = vunpack.c.l.b16 %v5469
        %v5764 = vunpack.c.h.b16 %v5469
        %v5765 = vunpack.c.l.b16 %v5470
        %v5766 = vunpack.c.l.b16 %v5471
        %v5767 = vunpack.c.h.b16 %v5471
        %v5768 = vunpack.c.l.b16 %v5472
        %v5769 = vunpack.c.h.b16 %v5472
        %v5770 = vunpack.c.l.b16 %v5473
        %v5771 = vunpack.c.h.b16 %v5473
        %v5772 = vunpack.c.l.b16 %v5474
        %v5773 = vunpack.c.h.b16 %v5474
        %v5774 = vunpack.c.l.b16 %v5475
        %v5775 = vunpack.c.h.b16 %v5475
        %v5776 = vunpack.c.l.b16 %v5476
        %v5777 = vunpack.c.h.b16 %v5476
        %v5778 = vunpack.c.l.b16 %v5477
        %v5779 = vunpack.c.h.b16 %v5477
        %v5780 = vunpack.c.l.b16 %v5478
        %v5781 = vunpack.c.h.b16 %v5478
        %v5782 = vunpack.c.l.b16 %v5479
        %v5783 = vunpack.c.h.b16 %v5479
        %v5784 = vunpack.c.l.b16 %v5480
        %v5785 = vunpack.c.h.b16 %v5480
        %v5786 = vunpack.c.l.b16 %v5481
        %v5787 = vunpack.c.h.b16 %v5481
        %v5788 = vunpack.c.l.b16 %v5482
        %v5789 = vunpack.c.h.b16 %v5482
        %v5790 = vunpack.c.l.b16 %v5483
        %v5791 = vunpack.c.l.b16 %v5484
        %v5792 = vunpack.c.h.b16 %v5484
        %v5793 = vunpack.c.l.b16 %v5485
        %v5794 = vunpack.c.h.b16 %v5485
        %v5795 = vunpack.c.l.b16 %v5486
        %v5796 = vunpack.c.h.b16 %v5486
        %v5797 = vunpack.c.l.b16 %v5487
        %v5798 = vunpack.c.h.b16 %v5487
        %v5799 = vunpack.c.l.b16 %v5488
        %v5800 = vunpack.c.h.b16 %v5488
        %v5801 = vunpack.c.l.b16 %v5489
        %v5802 = vunpack.c.h.b16 %v5489
        %v5803 = vunpack.c.l.b16 %v5490
        %v5804 = vunpack.c.h.b16 %v5490
        %v5805 = vunpack.c.l.b16 %v5491
        %v5806 = vunpack.c.h.b16 %v5491
        %v5807 = vunpack.c.l.b16 %v5492
        %v5808 = vunpack.c.h.b16 %v5492
        %v5809 = vunpack.c.l.b16 %v5493
        %v5810 = vunpack.c.h.b16 %v5493
        %v5811 = vunpack.c.l.b16 %v5494
        %v5812 = vunpack.c.h.b16 %v5494
        %v5813 = vunpack.c.l.b16 %v5495
        %v5814 = vunpack.c.h.b16 %v5495
        %v5815 = vunpack.c.l.b16 %v5496
        %v5816 = vunpack.c.l.b16 %v5497
        %v5817 = vunpack.c.h.b16 %v5497
        %v5818 = vunpack.c.l.b16 %v5498
        %v5819 = vunpack.c.h.b16 %v5498
        %v5820 = vunpack.c.l.b16 %v5499
        %v5821 = vunpack.c.h.b16 %v5499
        %v5822 = vunpack.c.l.b16 %v5500
        %v5823 = vunpack.c.h.b16 %v5500
        %v5824 = vunpack.c.l.b16 %v5501
        %v5825 = vunpack.c.h.b16 %v5501
        %v5826 = vunpack.c.l.b16 %v5502
        %v5827 = vunpack.c.h.b16 %v5502
        %v5828 = vunpack.c.l.b16 %v5503
        %v5829 = vunpack.c.h.b16 %v5503
        %v5830 = vunpack.c.l.b16 %v5504
        %v5831 = vunpack.c.h.b16 %v5504
        %v5832 = vunpack.c.l.b16 %v5505
        %v5833 = vunpack.c.h.b16 %v5505
        %v5834 = vunpack.c.l.b16 %v5506
        %v5835 = vunpack.c.h.b16 %v5506
        %v5836 = vunpack.c.l.b16 %v5507
        %v5837 = vunpack.c.h.b16 %v5507
        %v5838 = vunpack.c.l.b16 %v5508
        %v5839 = vunpack.c.h.b16 %v5508
        %v5840 = vunpack.c.l.b16 %v5509
        %v5841 = vunpack.c.l.b16 %v5510
        %v5842 = vunpack.c.h.b16 %v5510
        %v5843 = vunpack.c.l.b16 %v5511
        %v5844 = vunpack.c.h.b16 %v5511
        %v5845 = vunpack.c.l.b16 %v5512
        %v5846 = vunpack.c.h.b16 %v5512
        %v5847 = vunpack.c.l.b16 %v5513
        %v5848 = vunpack.c.h.b16 %v5513
        %v5849 = vunpack.c.l.b16 %v5514
        %v5850 = vunpack.c.h.b16 %v5514
        %v5851 = vunpack.c.l.b16 %v5515
        %v5852 = vunpack.c.h.b16 %v5515
        %v5853 = vunpack.c.l.b16 %v5516
        %v5854 = vunpack.c.h.b16 %v5516
        %v5855 = vunpack.c.l.b16 %v5517
        %v5856 = vunpack.c.h.b16 %v5517
        %v5857 = vunpack.c.l.b16 %v5518
        %v5858 = vunpack.c.h.b16 %v5518
        %v5859 = vunpack.c.l.b16 %v5519
        %v5860 = vunpack.c.h.b16 %v5519
        %v5861 = vunpack.c.l.b16 %v5520
        %v5862 = vunpack.c.h.b16 %v5520
        %v5863 = vunpack.c.l.b16 %v5521
        %v5864 = vunpack.c.h.b16 %v5521
        %v5865 = vunpack.c.l.b16 %v5522
        %v5866 = vunpack.c.l.b16 %v5523
        %v5867 = vunpack.c.h.b16 %v5523
        %v5868 = vunpack.c.l.b16 %v5524
        %v5869 = vunpack.c.h.b16 %v5524
        %v5870 = vunpack.c.l.b16 %v5525
        %v5871 = vunpack.c.h.b16 %v5525
        %v5872 = vunpack.c.l.b16 %v5526
        %v5873 = vunpack.c.h.b16 %v5526
        %v5874 = vunpack.c.l.b16 %v5527
        %v5875 = vunpack.c.h.b16 %v5527
        %v5876 = vunpack.c.l.b16 %v5528
        %v5877 = vunpack.c.h.b16 %v5528
        %v5878 = vunpack.c.l.b16 %v5529
        %v5879 = vunpack.c.h.b16 %v5529
        %v5880 = vunpack.c.l.b16 %v5530
        %v5881 = vunpack.c.h.b16 %v5530
        %v5882 = vunpack.c.l.b16 %v5531
        %v5883 = vunpack.c.h.b16 %v5531
        %v5884 = vunpack.c.l.b16 %v5532
        %v5885 = vunpack.c.h.b16 %v5532
        %v5886 = vunpack.c.l.b16 %v5533
        %v5887 = vunpack.c.h.b16 %v5533
        %v5888 = vunpack.c.l.b16 %v5534
        %v5889 = vunpack.c.h.b16 %v5534
        %v5890 = vunpack.c.l.b16 %v5535
        %v5891 = vunpack.c.l.b16 %v5536
        %v5892 = vunpack.c.h.b16 %v5536
        %v5893 = vunpack.c.l.b16 %v5537
        %v5894 = vunpack.c.h.b16 %v5537
        %v5895 = vunpack.c.l.b16 %v5538
        %v5896 = vunpack.c.h.b16 %v5538
        %v5897 = vunpack.c.l.b16 %v5539
        %v5898 = vunpack.c.h.b16 %v5539
        %v5899 = vunpack.c.l.b16 %v5540
        %v5900 = vunpack.c.h.b16 %v5540
        %v5901 = vunpack.c.l.b16 %v5541
        %v5902 = vunpack.c.h.b16 %v5541
        %v5903 = vunpack.c.l.b16 %v5542
        %v5904 = vunpack.c.h.b16 %v5542
        %v5905 = vunpack.c.l.b16 %v5543
        %v5906 = vunpack.c.h.b16 %v5543
        %v5907 = vunpack.c.l.b16 %v5544
        %v5908 = vunpack.c.h.b16 %v5544
        %v5909 = vunpack.c.l.b16 %v5545
        %v5910 = vunpack.c.h.b16 %v5545
        %v5911 = vunpack.c.l.b16 %v5546
        %v5912 = vunpack.c.h.b16 %v5546
        %v5913 = vunpack.c.l.b16 %v5547
        %v5914 = vunpack.c.h.b16 %v5547
        %v5915 = vunpack.c.l.b16 %v5548
        %v5916 = vunpack.c.l.b16 %v5549
        %v5917 = vunpack.c.h.b16 %v5549
        %v5918 = vunpack.c.l.b16 %v5550
        %v5919 = vunpack.c.h.b16 %v5550
        %v5920 = vunpack.c.l.b16 %v5551
        %v5921 = vunpack.c.h.b16 %v5551
        %v5922 = vunpack.c.l.b16 %v5552
        %v5923 = vunpack.c.h.b16 %v5552
        %v5924 = vunpack.c.l.b16 %v5553
        %v5925 = vunpack.c.h.b16 %v5553
        %v5926 = vunpack.c.l.b16 %v5554
        %v5927 = vunpack.c.h.b16 %v5554
        %v5928 = vunpack.c.l.b16 %v5555
        %v5929 = vunpack.c.h.b16 %v5555
        %v5930 = vunpack.c.l.b16 %v5556
        %v5931 = vunpack.c.h.b16 %v5556
        %v5932 = vunpack.c.l.b16 %v5557
        %v5933 = vunpack.c.h.b16 %v5557
        %v5934 = vunpack.c.l.b16 %v5558
        %v5935 = vunpack.c.h.b16 %v5558
        %v5936 = vunpack.c.l.b16 %v5559
        %v5937 = vunpack.c.h.b16 %v5559
        %v5938 = vunpack.c.l.b16 %v5560
        %v5939 = vunpack.c.h.b16 %v5560
        %v5940 = vunpack.c.l.b16 %v5561
        %v5941 = vunpack.c.l.b16 %v5562
        %v5942 = vunpack.c.h.b16 %v5562
        %v5943 = vunpack.c.l.b16 %v5563
        %v5944 = vunpack.c.h.b16 %v5563
        %v5945 = vunpack.c.l.b16 %v5564
        %v5946 = vunpack.c.h.b16 %v5564
        %v5947 = vunpack.c.l.b16 %v5565
        %v5948 = vunpack.c.h.b16 %v5565
        %v5949 = vunpack.c.l.b16 %v5566
        %v5950 = vunpack.c.h.b16 %v5566
        %v5951 = vunpack.c.l.b16 %v5567
        %v5952 = vunpack.c.h.b16 %v5567
        %v5953 = vunpack.c.l.b16 %v5568
        %v5954 = vunpack.c.h.b16 %v5568
        %v5955 = vunpack.c.l.b16 %v5569
        %v5956 = vunpack.c.h.b16 %v5569
        %v5957 = vunpack.c.l.b16 %v5570
        %v5958 = vunpack.c.h.b16 %v5570
        %v5959 = vunpack.c.l.b16 %v5571
        %v5960 = vunpack.c.h.b16 %v5571
        %v5961 = vunpack.c.l.b16 %v5572
        %v5962 = vunpack.c.h.b16 %v5572
        %v5963 = vunpack.c.l.b16 %v5573
        %v5964 = vunpack.c.h.b16 %v5573
        %v5965 = vunpack.c.l.b16 %v5574
        %v5966 = vpack.c.b16 %v5741, %v5716
        %v5967 = vpack.c.b16 %v5742, %v5717
        %v5968 = vpack.c.b16 %v5743, %v5718
        %v5969 = vpack.c.b16 %v5744, %v5719
        %v5970 = vpack.c.b16 %v5745, %v5720
        %v5971 = vpack.c.b16 %v5746, %v5721
        %v5972 = vpack.c.b16 %v5747, %v5722
        %v5973 = vpack.c.b16 %v5748, %v5723
        %v5974 = vpack.c.b16 %v5749, %v5724
        %v5975 = vpack.c.b16 %v5750, %v5725
        %v5976 = vpack.c.b16 %v5751, %v5726
        %v5977 = vpack.c.b16 %v5752, %v5727
        %v5978 = vpack.c.b16 %v5753, %v5728
        %v5979 = vpack.c.b16 %v5754, %v5729
        %v5980 = vpack.c.b16 %v5755, %v5730
        %v5981 = vpack.c.b16 %v5756, %v5731
        %v5982 = vpack.c.b16 %v5757, %v5732
        %v5983 = vpack.c.b16 %v5758, %v5733
        %v5984 = vpack.c.b16 %v5759, %v5734
        %v5985 = vpack.c.b16 %v5760, %v5735
        %v5986 = vpack.c.b16 %v5761, %v5736
        %v5987 = vpack.c.b16 %v5762, %v5737
        %v5988 = vpack.c.b16 %v5763, %v5738
        %v5989 = vpack.c.b16 %v5764, %v5739
        %v5990 = vpack.c.b16 %v5765, %v5740
        %v5991 = vpack.c.b16 %v5791, %v5766
        %v5992 = vpack.c.b16 %v5792, %v5767
        %v5993 = vpack.c.b16 %v5793, %v5768
        %v5994 = vpack.c.b16 %v5794, %v5769
        %v5995 = vpack.c.b16 %v5795, %v5770
        %v5996 = vpack.c.b16 %v5796, %v5771
        %v5997 = vpack.c.b16 %v5797, %v5772
        %v5998 = vpack.c.b16 %v5798, %v5773
        %v5999 = vpack.c.b16 %v5799, %v5774
        %v6000 = vpack.c.b16 %v5800, %v5775
        %v6001 = vpack.c.b16 %v5801, %v5776
        %v6002 = vpack.c.b16 %v5802, %v5777
        %v6003 = vpack.c.b16 %v5803, %v5778
        %v6004 = vpack.c.b16 %v5804, %v5779
        %v6005 = vpack.c.b16 %v5805, %v5780
        %v6006 = vpack.c.b16 %v5806, %v5781
        %v6007 = vpack.c.b16 %v5807, %v5782
        %v6008 = vpack.c.b16 %v5808, %v5783
        %v6009 = vpack.c.b16 %v5809, %v5784
        %v6010 = vpack.c.b16 %v5810, %v5785
        %v6011 = vpack.c.b16 %v5811, %v5786
        %v6012 = vpack.c.b16 %v5812, %v5787
        %v6013 = vpack.c.b16 %v5813, %v5788
        %v6014 = vpack.c.b16 %v5814, %v5789
        %v6015 = vpack.c.b16 %v5815, %v5790
        %v6016 = vpack.c.b16 %v5841, %v5816
        %v6017 = vpack.c.b16 %v5842, %v5817
        %v6018 = vpack.c.b16 %v5843, %v5818
        %v6019 = vpack.c.b16 %v5844, %v5819
        %v6020 = vpack.c.b16 %v5845, %v5820
        %v6021 = vpack.c.b16 %v5846, %v5821
        %v6022 = vpack.c.b16 %v5847, %v5822
        %v6023 = vpack.c.b16 %v5848, %v5823
        %v6024 = vpack.c.b16 %v5849, %v5824
        %v6025 = vpack.c.b16 %v5850, %v5825
        %v6026 = vpack.c.b16 %v5851, %v5826
        %v6027 = vpack.c.b16 %v5852, %v5827
        %v6028 = vpack.c.b16 %v5853, %v5828
        %v6029 = vpack.c.b16 %v5854, %v5829
        %v6030 = vpack.c.b16 %v5855, %v5830
        %v6031 = vpack.c.b16 %v5856, %v5831
        %v6032 = vpack.c.b16 %v5857, %v5832
        %v6033 = vpack.c.b16 %v5858, %v5833
        %v6034 = vpack.c.b16 %v5859, %v5834
        %v6035 = vpack.c.b16 %v5860, %v5835
        %v6036 = vpack.c.b16 %v5861, %v5836
        %v6037 = vpack.c.b16 %v5862, %v5837
        %v6038 = vpack.c.b16 %v5863, %v5838
        %v6039 = vpack.c.b16 %v5864, %v5839
        %v6040 = vpack.c.b16 %v5865, %v5840
        %v6041 = vpack.c.b16 %v5891, %v5866
        %v6042 = vpack.c.b16 %v5892, %v5867
        %v6043 = vpack.c.b16 %v5893, %v5868
        %v6044 = vpack.c.b16 %v5894, %v5869
        %v6045 = vpack.c.b16 %v5895, %v5870
        %v6046 = vpack.c.b16 %v5896, %v5871
        %v6047 = vpack.c.b16 %v5897, %v5872
        %v6048 = vpack.c.b16 %v5898, %v5873
        %v6049 = vpack.c.b16 %v5899, %v5874
        %v6050 = vpack.c.b16 %v5900, %v5875
        %v6051 = vpack.c.b16 %v5901, %v5876
        %v6052 = vpack.c.b16 %v5902, %v5877
        %v6053 = vpack.c.b16 %v5903, %v5878
        %v6054 = vpack.c.b16 %v5904, %v5879
        %v6055 = vpack.c.b16 %v5905, %v5880
        %v6056 = vpack.c.b16 %v5906, %v5881
        %v6057 = vpack.c.b16 %v5907, %v5882
        %v6058 = vpack.c.b16 %v5908, %v5883
        %v6059 = vpack.c.b16 %v5909, %v5884
        %v6060 = vpack.c.b16 %v5910, %v5885
        %v6061 = vpack.c.b16 %v5911, %v5886
        %v6062 = vpack.c.b16 %v5912, %v5887
        %v6063 = vpack.c.b16 %v5913, %v5888
        %v6064 = vpack.c.b16 %v5914, %v5889
        %v6065 = vpack.c.b16 %v5915, %v5890
        %v6066 = vpack.c.b16 %v5941, %v5916
        %v6067 = vpack.c.b16 %v5942, %v5917
        %v6068 = vpack.c.b16 %v5943, %v5918
        %v6069 = vpack.c.b16 %v5944, %v5919
        %v6070 = vpack.c.b16 %v5945, %v5920
        %v6071 = vpack.c.b16 %v5946, %v5921
        %v6072 = vpack.c.b16 %v5947, %v5922
        %v6073 = vpack.c.b16 %v5948, %v5923
        %v6074 = vpack.c.b16 %v5949, %v5924
        %v6075 = vpack.c.b16 %v5950, %v5925
        %v6076 = vpack.c.b16 %v5951, %v5926
        %v6077 = vpack.c.b16 %v5952, %v5927
        %v6078 = vpack.c.b16 %v5953, %v5928
        %v6079 = vpack.c.b16 %v5954, %v5929
        %v6080 = vpack.c.b16 %v5955, %v5930
        %v6081 = vpack.c.b16 %v5956, %v5931
        %v6082 = vpack.c.b16 %v5957, %v5932
        %v6083 = vpack.c.b16 %v5958, %v5933
        %v6084 = vpack.c.b16 %v5959, %v5934
        %v6085 = vpack.c.b16 %v5960, %v5935
        %v6086 = vpack.c.b16 %v5961, %v5936
        %v6087 = vpack.c.b16 %v5962, %v5937
        %v6088 = vpack.c.b16 %v5963, %v5938
        %v6089 = vpack.c.b16 %v5964, %v5939
        %v6090 = vpack.c.b16 %v5965, %v5940
        %v6616 = vunpack.c.l.b16 %v2628
        %v6617 = vunpack.c.h.b16 %v2628
        %v6618 = vunpack.c.l.b16 %v2629
        %v6619 = vunpack.c.h.b16 %v2629
        %v6620 = vunpack.c.l.b16 %v2630
        %v6621 = vunpack.c.h.b16 %v2630
        %v6622 = vunpack.c.l.b16 %v2631
        %v6623 = vunpack.c.h.b16 %v2631
        %v6624 = vunpack.c.l.b16 %v2632
        %v6625 = vunpack.c.h.b16 %v2632
        %v6626 = vunpack.c.l.b16 %v2633
        %v6627 = vunpack.c.h.b16 %v2633
        %v6628 = vunpack.c.l.b16 %v2634
        %v6629 = vunpack.c.h.b16 %v2634
        %v6630 = vunpack.c.l.b16 %v2635
        %v6631 = vunpack.c.h.b16 %v2635
        %v6632 = vunpack.c.l.b16 %v2636
        %v6633 = vunpack.c.h.b16 %v2636
        %v6634 = vunpack.c.l.b16 %v2637
        %v6635 = vunpack.c.h.b16 %v2637
        %v6636 = vunpack.c.l.b16 %v2638
        %v6637 = vunpack.c.h.b16 %v2638
        %v6638 = vunpack.c.l.b16 %v2639
        %v6639 = vunpack.c.h.b16 %v2639
        %v6640 = vunpack.c.l.b16 %v2640
        %v6641 = vunpack.c.h.b16 %v2640
        %v6642 = vunpack.c.l.b16 %v2641
        %v6643 = vunpack.c.h.b16 %v2641
        %v6644 = vunpack.c.l.b16 %v2642
        %v6645 = vunpack.c.h.b16 %v2642
        %v6646 = vunpack.c.l.b16 %v2643
        %v6647 = vunpack.c.h.b16 %v2643
        %v6648 = vunpack.c.l.b16 %v2644
        %v6649 = vunpack.c.h.b16 %v2644
        %v6650 = vunpack.c.l.b16 %v2645
        %v6651 = vunpack.c.h.b16 %v2645
        %v6652 = vunpack.c.l.b16 %v2646
        %v6653 = vunpack.c.h.b16 %v2646
        %v6654 = vunpack.c.l.b16 %v2647
        %v6655 = vunpack.c.h.b16 %v2647
        %v6656 = vunpack.c.l.b16 %v2648
        %v6657 = vunpack.c.h.b16 %v2648
        %v6658 = vunpack.c.l.b16 %v2649
        %v6659 = vunpack.c.h.b16 %v2649
        %v6660 = vunpack.c.l.b16 %v2650
        %v6661 = vunpack.c.h.b16 %v2650
        %v6662 = vunpack.c.l.b16 %v2651
        %v6663 = vunpack.c.h.b16 %v2651
        %v6664 = vunpack.c.l.b16 %v2652
        %v6665 = vunpack.c.h.b16 %v2652
        %v6666 = vunpack.c.l.b16 %v2653
        %v6667 = vunpack.c.h.b16 %v2653
        %v6668 = vunpack.c.l.b16 %v2654
        %v6669 = vunpack.c.h.b16 %v2654
        %v6670 = vunpack.c.l.b16 %v2655
        %v6671 = vunpack.c.h.b16 %v2655
        %v6672 = vunpack.c.l.b16 %v2656
        %v6673 = vunpack.c.h.b16 %v2656
        %v6674 = vunpack.c.l.b16 %v2657
        %v6675 = vunpack.c.h.b16 %v2657
        %v6676 = vunpack.c.l.b16 %v2658
        %v6677 = vunpack.c.h.b16 %v2658
        %v6678 = vunpack.c.l.b16 %v2659
        %v6679 = vunpack.c.h.b16 %v2659
        %v6680 = vunpack.c.l.b16 %v2660
        %v6681 = vunpack.c.h.b16 %v2660
        %v6682 = vunpack.c.l.b16 %v2661
        %v6683 = vunpack.c.h.b16 %v2661
        %v6684 = vunpack.c.l.b16 %v2662
        %v6685 = vunpack.c.h.b16 %v2662
        %v6686 = vunpack.c.l.b16 %v2663
        %v6687 = vunpack.c.h.b16 %v2663
        %v6688 = vunpack.c.l.b16 %v2664
        %v6689 = vunpack.c.h.b16 %v2664
        %v6690 = vunpack.c.l.b16 %v2665
        %v6691 = vunpack.c.h.b16 %v2665
        %v6692 = vunpack.c.l.b16 %v2666
        %v6693 = vunpack.c.h.b16 %v2666
        %v6694 = vunpack.c.l.b16 %v2667
        %v6695 = vunpack.c.h.b16 %v2667
        %v6696 = vunpack.c.l.b16 %v2668
        %v6697 = vunpack.c.h.b16 %v2668
        %v6698 = vunpack.c.l.b16 %v2669
        %v6699 = vunpack.c.h.b16 %v2669
        %v6700 = vunpack.c.l.b16 %v2670
        %v6701 = vunpack.c.h.b16 %v2670
        %v6702 = vunpack.c.l.b16 %v2671
        %v6703 = vunpack.c.h.b16 %v2671
        %v6704 = vunpack.c.l.b16 %v2672
        %v6705 = vunpack.c.h.b16 %v2672
        %v6706 = vunpack.c.l.b16 %v2673
        %v6707 = vunpack.c.h.b16 %v2673
        %v6708 = vunpack.c.l.b16 %v2674
        %v6709 = vunpack.c.h.b16 %v2674
        %v6710 = vunpack.c.l.b16 %v2675
        %v6711 = vunpack.c.h.b16 %v2675
        %v6712 = vunpack.c.l.b16 %v2676
        %v6713 = vunpack.c.h.b16 %v2676
        %v6714 = vunpack.c.l.b16 %v2677
        %v6715 = vunpack.c.h.b16 %v2677
        %v6716 = vunpack.c.l.b16 %v2678
        %v6717 = vunpack.c.h.b16 %v2678
        %v6718 = vunpack.c.l.b16 %v2679
        %v6719 = vunpack.c.h.b16 %v2679
        %v6720 = vunpack.c.l.b16 %v2680
        %v6721 = vunpack.c.h.b16 %v2680
        %v6722 = vunpack.c.l.b16 %v2681
        %v6723 = vunpack.c.h.b16 %v2681
        %v6724 = vunpack.c.l.b16 %v2682
        %v6725 = vunpack.c.h.b16 %v2682
        %v6726 = vunpack.c.l.b16 %v2683
        %v6727 = vunpack.c.h.b16 %v2683
        %v6728 = vunpack.c.l.b16 %v2684
        %v6729 = vunpack.c.h.b16 %v2684
        %v6730 = vunpack.c.l.b16 %v2685
        %v6731 = vunpack.c.h.b16 %v2685
        %v6732 = vunpack.c.l.b16 %v2686
        %v6733 = vunpack.c.h.b16 %v2686
        %v6734 = vunpack.c.l.b16 %v2687
        %v6735 = vunpack.c.h.b16 %v2687
        %v6736 = vunpack.c.l.b16 %v2688
        %v6737 = vunpack.c.h.b16 %v2688
        %v6738 = vunpack.c.l.b16 %v2689
        %v6739 = vunpack.c.h.b16 %v2689
        %v6740 = vunpack.c.l.b16 %v2690
        %v6741 = vunpack.c.h.b16 %v2690
        %v6742 = vunpack.c.l.b16 %v2691
        %v6743 = vunpack.c.h.b16 %v2691
        %v6744 = vunpack.c.l.b16 %v2692
        %v6745 = vunpack.c.h.b16 %v2692
        %v6746 = vunpack.c.l.b16 %v2693
        %v6747 = vunpack.c.h.b16 %v2693
        %v6748 = vunpack.c.l.b16 %v2694
        %v6749 = vunpack.c.h.b16 %v2694
        %v6750 = vunpack.c.l.b16 %v2695
        %v6751 = vunpack.c.h.b16 %v2695
        %v6752 = vunpack.c.l.b16 %v2696
        %v6753 = vunpack.c.h.b16 %v2696
        %v6754 = vunpack.c.l.b16 %v2697
        %v6755 = vunpack.c.h.b16 %v2697
        %v6756 = vunpack.c.l.b16 %v2698
        %v6757 = vunpack.c.h.b16 %v2698
        %v6758 = vunpack.c.l.b16 %v2699
        %v6759 = vunpack.c.h.b16 %v2699
        %v6760 = vunpack.c.l.b16 %v2700
        %v6761 = vunpack.c.h.b16 %v2700
        %v6762 = vunpack.c.l.b16 %v2701
        %v6763 = vunpack.c.h.b16 %v2701
        %v6764 = vunpack.c.l.b16 %v2702
        %v6765 = vunpack.c.h.b16 %v2702
        %v6766 = vunpack.c.l.b16 %v2703
        %v6767 = vunpack.c.h.b16 %v2703
        %v6768 = vunpack.c.l.b16 %v2704
        %v6769 = vunpack.c.h.b16 %v2704
        %v6770 = vunpack.c.l.b16 %v2705
        %v6771 = vunpack.c.h.b16 %v2705
        %v6772 = vunpack.c.l.b16 %v2706
        %v6773 = vunpack.c.h.b16 %v2706
        %v6774 = vunpack.c.l.b16 %v2707
        %v6775 = vunpack.c.h.b16 %v2707
        %v6776 = vunpack.c.l.b16 %v2708
        %v6777 = vunpack.c.h.b16 %v2708
        %v6778 = vunpack.c.l.b16 %v2709
        %v6779 = vunpack.c.h.b16 %v2709
        %v6780 = vunpack.c.l.b16 %v2710
        %v6781 = vunpack.c.h.b16 %v2710
        %v6782 = vunpack.c.l.b16 %v2711
        %v6783 = vunpack.c.h.b16 %v2711
        %v6784 = vunpack.c.l.b16 %v2712
        %v6785 = vunpack.c.h.b16 %v2712
        %v6786 = vunpack.c.l.b16 %v2713
        %v6787 = vunpack.c.h.b16 %v2713
        %v6788 = vunpack.c.l.b16 %v2714
        %v6789 = vunpack.c.h.b16 %v2714
        %v6790 = vunpack.c.l.b16 %v2715
        %v6791 = vunpack.c.h.b16 %v2715
        %v6792 = vunpack.c.l.b16 %v2716
        %v6793 = vunpack.c.h.b16 %v2716
        %v6794 = vunpack.c.l.b16 %v2717
        %v6795 = vunpack.c.h.b16 %v2717
        %v6796 = vunpack.c.l.b16 %v2718
        %v6797 = vunpack.c.h.b16 %v2718
        %v6798 = vunpack.c.l.b16 %v2719
        %v6799 = vunpack.c.h.b16 %v2719
        %v6800 = vunpack.c.l.b16 %v2720
        %v6801 = vunpack.c.h.b16 %v2720
        %v6802 = vunpack.c.l.b16 %v2721
        %v6803 = vunpack.c.h.b16 %v2721
        %v6804 = vunpack.c.l.b16 %v2722
        %v6805 = vunpack.c.h.b16 %v2722
        %v6806 = vunpack.c.l.b16 %v2723
        %v6807 = vunpack.c.h.b16 %v2723
        %v6808 = vunpack.c.l.b16 %v2724
        %v6809 = vunpack.c.h.b16 %v2724
        %v6810 = vunpack.c.l.b16 %v2725
        %v6811 = vunpack.c.h.b16 %v2725
        %v6812 = vunpack.c.l.b16 %v2726
        %v6813 = vunpack.c.h.b16 %v2726
        %v6814 = vunpack.c.l.b16 %v2727
        %v6815 = vunpack.c.h.b16 %v2727
        %v6816 = vunpack.c.l.b16 %v2728
        %v6817 = vunpack.c.h.b16 %v2728
        %v6818 = vunpack.c.l.b16 %v2729
        %v6819 = vunpack.c.h.b16 %v2729
        %v6820 = vunpack.c.l.b16 %v2730
        %v6821 = vunpack.c.h.b16 %v2730
        %v6822 = vunpack.c.l.b16 %v2731
        %v6823 = vunpack.c.h.b16 %v2731
        %v6824 = vunpack.c.l.b16 %v2732
        %v6825 = vunpack.c.h.b16 %v2732
        %v6826 = vunpack.c.l.b16 %v2733
        %v6827 = vunpack.c.h.b16 %v2733
        %v6828 = vunpack.c.l.b16 %v2734
        %v6829 = vunpack.c.h.b16 %v2734
        %v6830 = vunpack.c.l.b16 %v2735
        %v6831 = vunpack.c.h.b16 %v2735
        %v6832 = vunpack.c.l.b16 %v2736
        %v6833 = vunpack.c.h.b16 %v2736
        %v6834 = vunpack.c.l.b16 %v2737
        %v6835 = vunpack.c.h.b16 %v2737
        %v6836 = vunpack.c.l.b16 %v2738
        %v6837 = vunpack.c.h.b16 %v2738
        %v6838 = vunpack.c.l.b16 %v2739
        %v6839 = vunpack.c.h.b16 %v2739
        %v6840 = vunpack.c.l.b16 %v2740
        %v6841 = vunpack.c.h.b16 %v2740
        %v6842 = vunpack.c.l.b16 %v2741
        %v6843 = vunpack.c.h.b16 %v2741
        %v6844 = vunpack.c.l.b16 %v2742
        %v6845 = vunpack.c.h.b16 %v2742
        %v6846 = vunpack.c.l.b16 %v2743
        %v6847 = vunpack.c.h.b16 %v2743
        %v6848 = vunpack.c.l.b16 %v2744
        %v6849 = vunpack.c.h.b16 %v2744
        %v6850 = vunpack.c.l.b16 %v2745
        %v6851 = vunpack.c.h.b16 %v2745
        %v6852 = vunpack.c.l.b16 %v2746
        %v6853 = vunpack.c.h.b16 %v2746
        %v6854 = vunpack.c.l.b16 %v2747
        %v6855 = vunpack.c.h.b16 %v2747
        %v6856 = vunpack.c.l.b16 %v2748
        %v6857 = vunpack.c.h.b16 %v2748
        %v6858 = vunpack.c.l.b16 %v2749
        %v6859 = vunpack.c.h.b16 %v2749
        %v6860 = vunpack.c.l.b16 %v2750
        %v6861 = vunpack.c.h.b16 %v2750
        %v6862 = vunpack.c.l.b16 %v2751
        %v6863 = vunpack.c.h.b16 %v2751
        %v6864 = vunpack.c.l.b16 %v2752
        %v6865 = vunpack.c.h.b16 %v2752
        %v6866 = vunpack.c.l.b16 %v2753
        %v6867 = vunpack.c.h.b16 %v2753
        %v6868 = vunpack.c.l.b16 %v2754
        %v6869 = vunpack.c.h.b16 %v2754
        %v6870 = vunpack.c.l.b16 %v2755
        %v6871 = vunpack.c.h.b16 %v2755
        %v6872 = vunpack.c.l.b16 %v2756
        %v6873 = vunpack.c.h.b16 %v2756
        %v6874 = vunpack.c.l.b16 %v2757
        %v6875 = vunpack.c.h.b16 %v2757
        %v6876 = vunpack.c.l.b16 %v2758
        %v6877 = vunpack.c.h.b16 %v2758
        %v6878 = vunpack.c.l.b16 %v2759
        %v6879 = vunpack.c.h.b16 %v2759
        %v6880 = vunpack.c.l.b16 %v2760
        %v6881 = vunpack.c.h.b16 %v2760
        %v6882 = vunpack.c.l.b16 %v2761
        %v6883 = vunpack.c.h.b16 %v2761
        %v6884 = vunpack.c.l.b16 %v2762
        %v6885 = vunpack.c.h.b16 %v2762
        %v6886 = vunpack.c.l.b16 %v2763
        %v6887 = vunpack.c.h.b16 %v2763
        %v6888 = vunpack.c.l.b16 %v2764
        %v6889 = vunpack.c.h.b16 %v2764
        %v6890 = vunpack.c.l.b16 %v2765
        %v6891 = vunpack.c.h.b16 %v2765
        %v6892 = vunpack.c.l.b16 %v2766
        %v6893 = vunpack.c.h.b16 %v2766
        %v6894 = vunpack.c.l.b16 %v2767
        %v6895 = vunpack.c.h.b16 %v2767
        %v6896 = vunpack.c.l.b16 %v2768
        %v6897 = vunpack.c.h.b16 %v2768
        %v6898 = vunpack.c.l.b16 %v2769
        %v6899 = vunpack.c.h.b16 %v2769
        %v6900 = vunpack.c.l.b16 %v2770
        %v6901 = vunpack.c.h.b16 %v2770
        %v6902 = vunpack.c.l.b16 %v2771
        %v6903 = vunpack.c.h.b16 %v2771
        %v6904 = vunpack.c.l.b16 %v2772
        %v6905 = vunpack.c.h.b16 %v2772
        %v6906 = vunpack.c.l.b16 %v2773
        %v6907 = vunpack.c.h.b16 %v2773
        %v6908 = vunpack.c.l.b16 %v2774
        %v6909 = vunpack.c.h.b16 %v2774
        %v6910 = vunpack.c.l.b16 %v2775
        %v6911 = vunpack.c.h.b16 %v2775
        %v6912 = vunpack.c.l.b16 %v2776
        %v6913 = vunpack.c.h.b16 %v2776
        %v6914 = vunpack.c.l.b16 %v2777
        %v6915 = vunpack.c.h.b16 %v2777
        %v6916 = vunpack.c.l.b16 %v2778
        %v6917 = vunpack.c.h.b16 %v2778
        %v6918 = vunpack.c.l.b16 %v2779
        %v6919 = vunpack.c.h.b16 %v2779
        %v6920 = vunpack.c.l.b16 %v2780
        %v6921 = vunpack.c.h.b16 %v2780
        %v6922 = vunpack.c.l.b16 %v2781
        %v6923 = vunpack.c.h.b16 %v2781
        %v6924 = vunpack.c.l.b16 %v2782
        %v6925 = vunpack.c.h.b16 %v2782
        %v6926 = vunpack.c.l.b16 %v2783
        %v6927 = vunpack.c.h.b16 %v2783
        %v6928 = vunpack.c.l.b16 %v2784
        %v6929 = vunpack.c.h.b16 %v2784
        %v6930 = vunpack.c.l.b16 %v2785
        %v6931 = vunpack.c.h.b16 %v2785
        %v6932 = vunpack.c.l.b16 %v2786
        %v6933 = vunpack.c.h.b16 %v2786
        %v6934 = vunpack.c.l.b16 %v2787
        %v6935 = vunpack.c.h.b16 %v2787
        %v6936 = vunpack.c.l.b16 %v2788
        %v6937 = vunpack.c.h.b16 %v2788
        %v6938 = vunpack.c.l.b16 %v2789
        %v6939 = vunpack.c.h.b16 %v2789
        %v6940 = vunpack.c.l.b16 %v2790
        %v6941 = vunpack.c.h.b16 %v2790
        %v6942 = vunpack.c.l.b16 %v2791
        %v6943 = vunpack.c.h.b16 %v2791
        %v6944 = vunpack.c.l.b16 %v2792
        %v6945 = vunpack.c.h.b16 %v2792
        %v6946 = vunpack.c.l.b16 %v2793
        %v6947 = vunpack.c.h.b16 %v2793
        %v6948 = vunpack.c.l.b16 %v2794
        %v6949 = vunpack.c.h.b16 %v2794
        %v6950 = vunpack.c.l.b16 %v2795
        %v6951 = vunpack.c.h.b16 %v2795
        %v6952 = vunpack.c.l.b16 %v2796
        %v6953 = vunpack.c.h.b16 %v2796
        %v6954 = vunpack.c.l.b16 %v2797
        %v6955 = vunpack.c.h.b16 %v2797
        %v6956 = vunpack.c.l.b16 %v2798
        %v6957 = vunpack.c.h.b16 %v2798
        %v6958 = vunpack.c.l.b16 %v2799
        %v6959 = vunpack.c.h.b16 %v2799
        %v6960 = vunpack.c.l.b16 %v2800
        %v6961 = vunpack.c.h.b16 %v2800
        %v6962 = vunpack.c.l.b16 %v2801
        %v6963 = vunpack.c.h.b16 %v2801
        %v6964 = vunpack.c.l.b16 %v2802
        %v6965 = vunpack.c.h.b16 %v2802
        %v6966 = vunpack.c.l.b16 %v2803
        %v6967 = vunpack.c.h.b16 %v2803
        %v6968 = vunpack.c.l.b16 %v2804
        %v6969 = vunpack.c.h.b16 %v2804
        %v6970 = vunpack.c.l.b16 %v2805
        %v6971 = vunpack.c.h.b16 %v2805
        %v6972 = vunpack.c.l.b16 %v2806
        %v6973 = vunpack.c.h.b16 %v2806
        %v6974 = vunpack.c.l.b16 %v2807
        %v6975 = vunpack.c.h.b16 %v2807
        %v6976 = vunpack.c.l.b16 %v2808
        %v6977 = vunpack.c.h.b16 %v2808
        %v6978 = vunpack.c.l.b16 %v2809
        %v6979 = vunpack.c.h.b16 %v2809
        %v6980 = vunpack.c.l.b16 %v2810
        %v6981 = vunpack.c.h.b16 %v2810
        %v6982 = vunpack.c.l.b16 %v2811
        %v6983 = vunpack.c.h.b16 %v2811
        %v6984 = vunpack.c.l.b16 %v2812
        %v6985 = vunpack.c.h.b16 %v2812
        %v6986 = vunpack.c.l.b16 %v2813
        %v6987 = vunpack.c.h.b16 %v2813
        %v6988 = vunpack.c.l.b16 %v2814
        %v6989 = vunpack.c.h.b16 %v2814
        %v6990 = vunpack.c.l.b16 %v2815
        %v6991 = vunpack.c.h.b16 %v2815
        %v6992 = vunpack.c.l.b16 %v2816
        %v6993 = vunpack.c.h.b16 %v2816
        %v6994 = vunpack.c.l.b16 %v2817
        %v6995 = vunpack.c.h.b16 %v2817
        %v6996 = vunpack.c.l.b16 %v2818
        %v6997 = vunpack.c.h.b16 %v2818
        %v6998 = vunpack.c.l.b16 %v2819
        %v6999 = vunpack.c.h.b16 %v2819
        %v7000 = vunpack.c.l.b16 %v2820
        %v7001 = vunpack.c.h.b16 %v2820
        %v7002 = vunpack.c.l.b16 %v2821
        %v7003 = vunpack.c.h.b16 %v2821
        %v7004 = vunpack.c.l.b16 %v2822
        %v7005 = vunpack.c.h.b16 %v2822
        %v7006 = vunpack.c.l.b16 %v2823
        %v7007 = vunpack.c.h.b16 %v2823
        %v7008 = vunpack.c.l.b16 %v2824
        %v7009 = vunpack.c.h.b16 %v2824
        %v7010 = vunpack.c.l.b16 %v2825
        %v7011 = vunpack.c.h.b16 %v2825
        %v7012 = vunpack.c.l.b16 %v2826
        %v7013 = vunpack.c.h.b16 %v2826
        %v7014 = vunpack.c.l.b16 %v2827
        %v7015 = vunpack.c.h.b16 %v2827
        %v7016 = vunpack.c.l.b16 %v2828
        %v7017 = vunpack.c.h.b16 %v2828
        %v7018 = vunpack.c.l.b16 %v2829
        %v7019 = vunpack.c.h.b16 %v2829
        %v7020 = vunpack.c.l.b16 %v2830
        %v7021 = vunpack.c.h.b16 %v2830
        %v7022 = vunpack.c.l.b16 %v2831
        %v7023 = vunpack.c.h.b16 %v2831
        %v7024 = vunpack.c.l.b16 %v2832
        %v7025 = vunpack.c.h.b16 %v2832
        %v7026 = vunpack.c.l.b16 %v2833
        %v7027 = vunpack.c.h.b16 %v2833
        %v7028 = vunpack.c.l.b16 %v2834
        %v7029 = vunpack.c.h.b16 %v2834
        %v7030 = vunpack.c.l.b16 %v2835
        %v7031 = vunpack.c.h.b16 %v2835
        %v7032 = vunpack.c.l.b16 %v2836
        %v7033 = vunpack.c.h.b16 %v2836
        %v7034 = vunpack.c.l.b16 %v2837
        %v7035 = vunpack.c.h.b16 %v2837
        %v7036 = vunpack.c.l.b16 %v2838
        %v7037 = vunpack.c.h.b16 %v2838
        %v7038 = vunpack.c.l.b16 %v2839
        %v7039 = vunpack.c.h.b16 %v2839
        %v7040 = vunpack.c.l.b16 %v2840
        %v7041 = vunpack.c.h.b16 %v2840
        %v7042 = vunpack.c.l.b16 %v2841
        %v7043 = vunpack.c.h.b16 %v2841
        %v7044 = vunpack.c.l.b16 %v2842
        %v7045 = vunpack.c.h.b16 %v2842
        %v7046 = vunpack.c.l.b16 %v2843
        %v7047 = vunpack.c.h.b16 %v2843
        %v7048 = vunpack.c.l.b16 %v2844
        %v7049 = vunpack.c.h.b16 %v2844
        %v7050 = vunpack.c.l.b16 %v2845
        %v7051 = vunpack.c.h.b16 %v2845
        %v7052 = vunpack.c.l.b16 %v2846
        %v7053 = vunpack.c.h.b16 %v2846
        %v7054 = vunpack.c.l.b16 %v2847
        %v7055 = vunpack.c.h.b16 %v2847
        %v7056 = vunpack.c.l.b16 %v2848
        %v7057 = vunpack.c.h.b16 %v2848
        %v7058 = vunpack.c.l.b16 %v2849
        %v7059 = vunpack.c.h.b16 %v2849
        %v7060 = vunpack.c.l.b16 %v2850
        %v7061 = vunpack.c.h.b16 %v2850
        %v7062 = vunpack.c.l.b16 %v2851
        %v7063 = vunpack.c.h.b16 %v2851
        %v7064 = vunpack.c.l.b16 %v2852
        %v7065 = vunpack.c.h.b16 %v2852
        %v7066 = vunpack.c.l.b16 %v2853
        %v7067 = vunpack.c.h.b16 %v2853
        %v7068 = vunpack.c.l.b16 %v2854
        %v7069 = vunpack.c.h.b16 %v2854
        %v7070 = vunpack.c.l.b16 %v2855
        %v7071 = vunpack.c.h.b16 %v2855
        %v7072 = vunpack.c.l.b16 %v2856
        %v7073 = vunpack.c.h.b16 %v2856
        %v7074 = vunpack.c.l.b16 %v2857
        %v7075 = vunpack.c.h.b16 %v2857
        %v7076 = vunpack.c.l.b16 %v2858
        %v7077 = vunpack.c.h.b16 %v2858
        %v7078 = vunpack.c.l.b16 %v2859
        %v7079 = vunpack.c.h.b16 %v2859
        %v7080 = vunpack.c.l.b16 %v2860
        %v7081 = vunpack.c.h.b16 %v2860
        %v7082 = vunpack.c.l.b16 %v2861
        %v7083 = vunpack.c.h.b16 %v2861
        %v7084 = vunpack.c.l.b16 %v2862
        %v7085 = vunpack.c.h.b16 %v2862
        %v7086 = vunpack.c.l.b16 %v2863
        %v7087 = vunpack.c.h.b16 %v2863
        %v7088 = vunpack.c.l.b16 %v2864
        %v7089 = vunpack.c.h.b16 %v2864
        %v7090 = vunpack.c.l.b16 %v2865
        %v7091 = vunpack.c.h.b16 %v2865
        %v7092 = vunpack.c.l.b16 %v2866
        %v7093 = vunpack.c.h.b16 %v2866
        %v7094 = vunpack.c.l.b16 %v2867
        %v7095 = vunpack.c.h.b16 %v2867
        %v7096 = vunpack.c.l.b16 %v2868
        %v7097 = vunpack.c.h.b16 %v2868
        %v7098 = vunpack.c.l.b16 %v2869
        %v7099 = vunpack.c.h.b16 %v2869
        %v7100 = vunpack.c.l.b16 %v2870
        %v7101 = vunpack.c.h.b16 %v2870
        %v7102 = vunpack.c.l.b16 %v2871
        %v7103 = vunpack.c.h.b16 %v2871
        %v7104 = vunpack.c.l.b16 %v2872
        %v7105 = vunpack.c.h.b16 %v2872
        %v7106 = vunpack.c.l.b16 %v2873
        %v7107 = vunpack.c.h.b16 %v2873
        %v7108 = vunpack.c.l.b16 %v2874
        %v7109 = vunpack.c.h.b16 %v2874
        %v7110 = vunpack.c.l.b16 %v2875
        %v7111 = vunpack.c.h.b16 %v2875
        %v7112 = vunpack.c.l.b16 %v2876
        %v7113 = vunpack.c.h.b16 %v2876
        %v7114 = vunpack.c.l.b16 %v2877
        %v7115 = vunpack.c.h.b16 %v2877
        %v7116 = vunpack.c.l.b16 %v2878
        %v7117 = vunpack.c.h.b16 %v2878
        %v7118 = vunpack.c.l.b16 %v2879
        %v7119 = vunpack.c.h.b16 %v2879
        %v7120 = vunpack.c.l.b16 %v2880
        %v7121 = vunpack.c.h.b16 %v2880
        %v7122 = vunpack.c.l.b16 %v2881
        %v7123 = vunpack.c.h.b16 %v2881
        %v7124 = vunpack.c.l.b16 %v2882
        %v7125 = vunpack.c.h.b16 %v2882
        %v7126 = vunpack.c.l.b16 %v2883
        %v7127 = vunpack.c.h.b16 %v2883
        %v7128 = vunpack.c.l.b16 %v2884
        %v7129 = vunpack.c.h.b16 %v2884
        %v7130 = vunpack.c.l.b16 %v2885
        %v7131 = vunpack.c.h.b16 %v2885
        %v7132 = vunpack.c.l.b16 %v2886
        %v7133 = vunpack.c.h.b16 %v2886
        %v7134 = vunpack.c.l.b16 %v2887
        %v7135 = vunpack.c.h.b16 %v2887
        %v7136 = vunpack.c.l.b16 %v2888
        %v7137 = vunpack.c.h.b16 %v2888
        %v7138 = vunpack.c.l.b16 %v2889
        %v7139 = vunpack.c.h.b16 %v2889
        %v7140 = vunpack.c.l.b16 %v2890
        %v7141 = vunpack.c.h.b16 %v2890
        %v7142 = vunpack.c.l.b16 %v2891
        %v7143 = vunpack.c.h.b16 %v2891
        %v7144 = vunpack.c.l.b16 %v2892
        %v7145 = vunpack.c.h.b16 %v2892
        %v7146 = vunpack.c.l.b16 %v2893
        %v7147 = vunpack.c.h.b16 %v2893
        %v7148 = vunpack.c.l.b16 %v2894
        %v7149 = vunpack.c.h.b16 %v2894
        %v7150 = vunpack.c.l.b16 %v2895
        %v7151 = vunpack.c.h.b16 %v2895
        %v7152 = vunpack.c.l.b16 %v2896
        %v7153 = vunpack.c.h.b16 %v2896
        %v7154 = vunpack.c.l.b16 %v2897
        %v7155 = vunpack.c.h.b16 %v2897
        %v7156 = vunpack.c.l.b16 %v2898
        %v7157 = vunpack.c.h.b16 %v2898
        %v7158 = vunpack.c.l.b16 %v2899
        %v7159 = vunpack.c.h.b16 %v2899
        %v7160 = vunpack.c.l.b16 %v2900
        %v7161 = vunpack.c.h.b16 %v2900
        %v7162 = vunpack.c.l.b16 %v2901
        %v7163 = vunpack.c.h.b16 %v2901
        %v7164 = vunpack.c.l.b16 %v2902
        %v7165 = vunpack.c.h.b16 %v2902
        %v7166 = vunpack.c.l.b16 %v2903
        %v7167 = vunpack.c.h.b16 %v2903
        %v7168 = vunpack.c.l.b16 %v2904
        %v7169 = vunpack.c.h.b16 %v2904
        %v7170 = vunpack.c.l.b16 %v2905
        %v7171 = vunpack.c.h.b16 %v2905
        %v7172 = vunpack.c.l.b16 %v2906
        %v7173 = vunpack.c.h.b16 %v2906
        %v7174 = vunpack.c.l.b16 %v2907
        %v7175 = vunpack.c.h.b16 %v2907
        %v7176 = vunpack.c.l.b16 %v2908
        %v7177 = vunpack.c.h.b16 %v2908
        %v7178 = vunpack.c.l.b16 %v2909
        %v7179 = vunpack.c.h.b16 %v2909
        %v7180 = vunpack.c.l.b16 %v2910
        %v7181 = vunpack.c.h.b16 %v2910
        %v7182 = vunpack.c.l.b16 %v2911
        %v7183 = vunpack.c.h.b16 %v2911
        %v7184 = vunpack.c.l.b16 %v2912
        %v7185 = vunpack.c.h.b16 %v2912
        %v7186 = vunpack.c.l.b16 %v2913
        %v7187 = vunpack.c.h.b16 %v2913
        %v7188 = vunpack.c.l.b16 %v2914
        %v7189 = vunpack.c.h.b16 %v2914
        %v7190 = vunpack.c.l.b16 %v2915
        %v7191 = vunpack.c.h.b16 %v2915
        %v7192 = vunpack.c.l.b16 %v2916
        %v7193 = vunpack.c.h.b16 %v2916
        %v7194 = vunpack.c.l.b16 %v2917
        %v7195 = vunpack.c.h.b16 %v2917
        %v7196 = vunpack.c.l.b16 %v2918
        %v7197 = vunpack.c.h.b16 %v2918
        %v7198 = vunpack.c.l.b16 %v2919
        %v7199 = vunpack.c.h.b16 %v2919
        %v7200 = vunpack.c.l.b16 %v2920
        %v7201 = vunpack.c.h.b16 %v2920
        %v7202 = vunpack.c.l.b16 %v2921
        %v7203 = vunpack.c.h.b16 %v2921
        %v7204 = vunpack.c.l.b16 %v2922
        %v7205 = vunpack.c.h.b16 %v2922
        %v7206 = vunpack.c.l.b16 %v2923
        %v7207 = vunpack.c.h.b16 %v2923
        %v7208 = vunpack.c.l.b16 %v2924
        %v7209 = vunpack.c.h.b16 %v2924
        %v7210 = vunpack.c.l.b16 %v2925
        %v7211 = vunpack.c.h.b16 %v2925
        %v7212 = vunpack.c.l.b16 %v2926
        %v7213 = vunpack.c.h.b16 %v2926
        %v7214 = vunpack.c.l.b16 %v2927
        %v7215 = vunpack.c.h.b16 %v2927
        %v7216 = vunpack.c.l.b16 %v2928
        %v7217 = vunpack.c.h.b16 %v2928
        %v7218 = vunpack.c.l.b16 %v2929
        %v7219 = vunpack.c.h.b16 %v2929
        %v7220 = vunpack.c.l.b16 %v2930
        %v7221 = vunpack.c.h.b16 %v2930
        %v7222 = vunpack.c.l.b16 %v2931
        %v7223 = vunpack.c.h.b16 %v2931
        %v7224 = vunpack.c.l.b16 %v2932
        %v7225 = vunpack.c.h.b16 %v2932
        %v7226 = vunpack.c.l.b16 %v2933
        %v7227 = vunpack.c.h.b16 %v2933
        %v7228 = vunpack.c.l.b16 %v2934
        %v7229 = vunpack.c.h.b16 %v2934
        %v7230 = vunpack.c.l.b16 %v2935
        %v7231 = vunpack.c.h.b16 %v2935
        %v7232 = vunpack.c.l.b16 %v2936
        %v7233 = vunpack.c.h.b16 %v2936
        %v7234 = vunpack.c.l.b16 %v2937
        %v7235 = vunpack.c.h.b16 %v2937
        %v7236 = vunpack.c.l.b16 %v2938
        %v7237 = vunpack.c.h.b16 %v2938
        %v7238 = vunpack.c.l.b16 %v2939
        %v7239 = vunpack.c.h.b16 %v2939
        %v7240 = vunpack.c.l.b16 %v2940
        %v7241 = vunpack.c.h.b16 %v2940
        %v7242 = vunpack.c.l.b16 %v2941
        %v7243 = vunpack.c.h.b16 %v2941
        %v7244 = vunpack.c.l.b16 %v2942
        %v7245 = vunpack.c.h.b16 %v2942
        %v7246 = vunpack.c.l.b16 %v2943
        %v7247 = vunpack.c.h.b16 %v2943
        %v7248 = vunpack.c.l.b16 %v2944
        %v7249 = vunpack.c.h.b16 %v2944
        %v7250 = vunpack.c.l.b16 %v2945
        %v7251 = vunpack.c.h.b16 %v2945
        %v7252 = vunpack.c.l.b16 %v2946
        %v7253 = vunpack.c.h.b16 %v2946
        %v7254 = vunpack.c.l.b16 %v2947
        %v7255 = vunpack.c.h.b16 %v2947
        %v7256 = vunpack.c.l.b16 %v2948
        %v7257 = vunpack.c.h.b16 %v2948
        %v7258 = vunpack.c.l.b16 %v2949
        %v7259 = vunpack.c.h.b16 %v2949
        %v7260 = vunpack.c.l.b16 %v2950
        %v7261 = vunpack.c.h.b16 %v2950
        %v7262 = vunpack.c.l.b16 %v2951
        %v7263 = vunpack.c.h.b16 %v2951
        %v7264 = vunpack.c.l.b16 %v2952
        %v7265 = vunpack.c.h.b16 %v2952
        %v7266 = vunpack.c.l.b16 %v2953
        %v7267 = vunpack.c.h.b16 %v2953
        %v7268 = vunpack.c.l.b16 %v2954
        %v7269 = vunpack.c.h.b16 %v2954
        %v7270 = vunpack.c.l.b16 %v2955
        %v7271 = vunpack.c.h.b16 %v2955
        %v7272 = vunpack.c.l.b16 %v2956
        %v7273 = vunpack.c.h.b16 %v2956
        %v7274 = vunpack.c.l.b16 %v2957
        %v7275 = vunpack.c.h.b16 %v2957
        %v7276 = vunpack.c.l.b16 %v2958
        %v7277 = vunpack.c.h.b16 %v2958
        %v7278 = vunpack.c.l.b16 %v2959
        %v7279 = vunpack.c.h.b16 %v2959
        %v7280 = vunpack.c.l.b16 %v2960
        %v7281 = vunpack.c.h.b16 %v2960
        %v7282 = vunpack.c.l.b16 %v2961
        %v7283 = vunpack.c.h.b16 %v2961
        %v7284 = vunpack.c.l.b16 %v2962
        %v7285 = vunpack.c.h.b16 %v2962
        %v7286 = vunpack.c.l.b16 %v2963
        %v7287 = vunpack.c.h.b16 %v2963
        %v7288 = vunpack.c.l.b16 %v2964
        %v7289 = vunpack.c.h.b16 %v2964
        %v7290 = vunpack.c.l.b16 %v2965
        %v7291 = vunpack.c.h.b16 %v2965
        %v7292 = vunpack.c.l.b16 %v2966
        %v7293 = vunpack.c.h.b16 %v2966
        %v7294 = vunpack.c.l.b16 %v2967
        %v7295 = vunpack.c.h.b16 %v2967
        %v7296 = vunpack.c.l.b16 %v2968
        %v7297 = vunpack.c.h.b16 %v2968
        %v7298 = vunpack.c.l.b16 %v2969
        %v7299 = vunpack.c.h.b16 %v2969
        %v7300 = vunpack.c.l.b16 %v2970
        %v7301 = vunpack.c.h.b16 %v2970
        %v7302 = vunpack.c.l.b16 %v2971
        %v7303 = vunpack.c.h.b16 %v2971
        %v7304 = vunpack.c.l.b16 %v2972
        %v7305 = vunpack.c.h.b16 %v2972
        %v7306 = vunpack.c.l.b16 %v2973
        %v7307 = vunpack.c.h.b16 %v2973
        %v7308 = vunpack.c.l.b16 %v2974
        %v7309 = vunpack.c.h.b16 %v2974
        %v7310 = vunpack.c.l.b16 %v2975
        %v7311 = vunpack.c.h.b16 %v2975
        %v7312 = vunpack.c.l.b16 %v2976
        %v7313 = vunpack.c.h.b16 %v2976
        %v7314 = vunpack.c.l.b16 %v2977
        %v7315 = vunpack.c.h.b16 %v2977
        %v7316 = vunpack.c.l.b16 %v2978
        %v7317 = vunpack.c.h.b16 %v2978
        %v7318 = vunpack.c.l.b16 %v2979
        %v7319 = vunpack.c.h.b16 %v2979
        %v7320 = vunpack.c.l.b16 %v2980
        %v7321 = vunpack.c.h.b16 %v2980
        %v7322 = vunpack.c.l.b16 %v2981
        %v7323 = vunpack.c.h.b16 %v2981
        %v7324 = vunpack.c.l.b16 %v2982
        %v7325 = vunpack.c.h.b16 %v2982
        %v7326 = vunpack.c.l.b16 %v2983
        %v7327 = vunpack.c.h.b16 %v2983
        %v7328 = vunpack.c.l.b16 %v2984
        %v7329 = vunpack.c.h.b16 %v2984
        %v7330 = vunpack.c.l.b16 %v2985
        %v7331 = vunpack.c.h.b16 %v2985
        %v7332 = vunpack.c.l.b16 %v2986
        %v7333 = vunpack.c.h.b16 %v2986
        %v7334 = vunpack.c.l.b16 %v2987
        %v7335 = vunpack.c.h.b16 %v2987
        %v7336 = vunpack.c.l.b16 %v2988
        %v7337 = vunpack.c.h.b16 %v2988
        %v7338 = vunpack.c.l.b16 %v2989
        %v7339 = vunpack.c.h.b16 %v2989
        %v7340 = vunpack.c.l.b16 %v2990
        %v7341 = vunpack.c.h.b16 %v2990
        %v7342 = vunpack.c.l.b16 %v2991
        %v7343 = vunpack.c.h.b16 %v2991
        %v7344 = vunpack.c.l.b16 %v2992
        %v7345 = vunpack.c.h.b16 %v2992
        %v7346 = vunpack.c.l.b16 %v2993
        %v7347 = vunpack.c.h.b16 %v2993
        %v7348 = vunpack.c.l.b16 %v2994
        %v7349 = vunpack.c.h.b16 %v2994
        %v7350 = vunpack.c.l.b16 %v2995
        %v7351 = vunpack.c.h.b16 %v2995
        %v7352 = vunpack.c.l.b16 %v2996
        %v7353 = vunpack.c.h.b16 %v2996
        %v7354 = vunpack.c.l.b16 %v2997
        %v7355 = vunpack.c.h.b16 %v2997
        %v7356 = vunpack.c.l.b16 %v2998
        %v7357 = vunpack.c.h.b16 %v2998
        %v7358 = vunpack.c.l.b16 %v2999
        %v7359 = vunpack.c.h.b16 %v2999
        %v7360 = vunpack.c.l.b16 %v3000
        %v7361 = vunpack.c.h.b16 %v3000
        %v7362 = vunpack.c.l.b16 %v3001
        %v7363 = vunpack.c.h.b16 %v3001
        %v7364 = vunpack.c.l.b16 %v3002
        %v7365 = vunpack.c.h.b16 %v3002
        %v7366 = vunpack.c.l.b16 %v3003
        %v7367 = vunpack.c.h.b16 %v3003
        %v7368 = vunpack.c.l.b16 %v3004
        %v7369 = vunpack.c.h.b16 %v3004
        %v7370 = vunpack.c.l.b16 %v3005
        %v7371 = vunpack.c.h.b16 %v3005
        %v7372 = vunpack.c.l.b16 %v3006
        %v7373 = vunpack.c.h.b16 %v3006
        %v7374 = vunpack.c.l.b16 %v3007
        %v7375 = vunpack.c.h.b16 %v3007
        %v7376 = vunpack.c.l.b16 %v3008
        %v7377 = vunpack.c.h.b16 %v3008
        %v7378 = vunpack.c.l.b16 %v3009
        %v7379 = vunpack.c.h.b16 %v3009
        %v7380 = vunpack.c.l.b16 %v3010
        %v7381 = vunpack.c.h.b16 %v3010
        %v7382 = vunpack.c.l.b16 %v3011
        %v7383 = vunpack.c.h.b16 %v3011
        %v7384 = vunpack.c.l.b16 %v3012
        %v7385 = vunpack.c.h.b16 %v3012
        %v7386 = vunpack.c.l.b16 %v3013
        %v7387 = vunpack.c.h.b16 %v3013
        %v7388 = vunpack.c.l.b16 %v3014
        %v7389 = vunpack.c.h.b16 %v3014
        %v7390 = vunpack.c.l.b16 %v3015
        %v7391 = vunpack.c.h.b16 %v3015
        %v7392 = vunpack.c.l.b16 %v3016
        %v7393 = vunpack.c.h.b16 %v3016
        %v7394 = vunpack.c.l.b16 %v3017
        %v7395 = vunpack.c.h.b16 %v3017
        %v7396 = vunpack.c.l.b16 %v3018
        %v7397 = vunpack.c.h.b16 %v3018
        %v7398 = vunpack.c.l.b16 %v3019
        %v7399 = vunpack.c.h.b16 %v3019
        %v7400 = vunpack.c.l.b16 %v3020
        %v7401 = vunpack.c.h.b16 %v3020
        %v7402 = vunpack.c.l.b16 %v3021
        %v7403 = vunpack.c.h.b16 %v3021
        %v7404 = vunpack.c.l.b16 %v3022
        %v7405 = vunpack.c.h.b16 %v3022
        %v7406 = vunpack.c.l.b16 %v3023
        %v7407 = vunpack.c.h.b16 %v3023
        %v7408 = vunpack.c.l.b16 %v3024
        %v7409 = vunpack.c.h.b16 %v3024
        %v7410 = vunpack.c.l.b16 %v3025
        %v7411 = vunpack.c.h.b16 %v3025
        %v7412 = vunpack.c.l.b16 %v3026
        %v7413 = vunpack.c.h.b16 %v3026
        %v7414 = vunpack.c.l.b16 %v3027
        %v7415 = vunpack.c.h.b16 %v3027
        %v7416 = vpack.c.b16 %v6618, %v6616
        %v7417 = vpack.c.b16 %v6619, %v6617
        %v7418 = vpack.c.b16 %v6622, %v6620
        %v7419 = vpack.c.b16 %v6623, %v6621
        %v7420 = vpack.c.b16 %v6626, %v6624
        %v7421 = vpack.c.b16 %v6627, %v6625
        %v7422 = vpack.c.b16 %v6630, %v6628
        %v7423 = vpack.c.b16 %v6631, %v6629
        %v7424 = vpack.c.b16 %v6634, %v6632
        %v7425 = vpack.c.b16 %v6635, %v6633
        %v7426 = vpack.c.b16 %v6638, %v6636
        %v7427 = vpack.c.b16 %v6639, %v6637
        %v7428 = vpack.c.b16 %v6642, %v6640
        %v7429 = vpack.c.b16 %v6643, %v6641
        %v7430 = vpack.c.b16 %v6646, %v6644
        %v7431 = vpack.c.b16 %v6647, %v6645
        %v7432 = vpack.c.b16 %v6650, %v6648
        %v7433 = vpack.c.b16 %v6651, %v6649
        %v7434 = vpack.c.b16 %v6654, %v6652
        %v7435 = vpack.c.b16 %v6655, %v6653
        %v7436 = vpack.c.b16 %v6658, %v6656
        %v7437 = vpack.c.b16 %v6659, %v6657
        %v7438 = vpack.c.b16 %v6662, %v6660
        %v7439 = vpack.c.b16 %v6663, %v6661
        %v7440 = vpack.c.b16 %v6666, %v6664
        %v7441 = vpack.c.b16 %v6667, %v6665
        %v7442 = vpack.c.b16 %v6670, %v6668
        %v7443 = vpack.c.b16 %v6671, %v6669
        %v7444 = vpack.c.b16 %v6674, %v6672
        %v7445 = vpack.c.b16 %v6675, %v6673
        %v7446 = vpack.c.b16 %v6678, %v6676
        %v7447 = vpack.c.b16 %v6679, %v6677
        %v7448 = vpack.c.b16 %v6682, %v6680
        %v7449 = vpack.c.b16 %v6683, %v6681
        %v7450 = vpack.c.b16 %v6686, %v6684
        %v7451 = vpack.c.b16 %v6687, %v6685
        %v7452 = vpack.c.b16 %v6690, %v6688
        %v7453 = vpack.c.b16 %v6691, %v6689
        %v7454 = vpack.c.b16 %v6694, %v6692
        %v7455 = vpack.c.b16 %v6695, %v6693
        %v7456 = vpack.c.b16 %v6698, %v6696
        %v7457 = vpack.c.b16 %v6699, %v6697
        %v7458 = vpack.c.b16 %v6702, %v6700
        %v7459 = vpack.c.b16 %v6703, %v6701
        %v7460 = vpack.c.b16 %v6706, %v6704
        %v7461 = vpack.c.b16 %v6707, %v6705
        %v7462 = vpack.c.b16 %v6710, %v6708
        %v7463 = vpack.c.b16 %v6711, %v6709
        %v7464 = vpack.c.b16 %v6714, %v6712
        %v7465 = vpack.c.b16 %v6715, %v6713
        %v7466 = vpack.c.b16 %v6718, %v6716
        %v7467 = vpack.c.b16 %v6719, %v6717
        %v7468 = vpack.c.b16 %v6722, %v6720
        %v7469 = vpack.c.b16 %v6723, %v6721
        %v7470 = vpack.c.b16 %v6726, %v6724
        %v7471 = vpack.c.b16 %v6727, %v6725
        %v7472 = vpack.c.b16 %v6730, %v6728
        %v7473 = vpack.c.b16 %v6731, %v6729
        %v7474 = vpack.c.b16 %v6734, %v6732
        %v7475 = vpack.c.b16 %v6735, %v6733
        %v7476 = vpack.c.b16 %v6738, %v6736
        %v7477 = vpack.c.b16 %v6739, %v6737
        %v7478 = vpack.c.b16 %v6742, %v6740
        %v7479 = vpack.c.b16 %v6743, %v6741
        %v7480 = vpack.c.b16 %v6746, %v6744
        %v7481 = vpack.c.b16 %v6747, %v6745
        %v7482 = vpack.c.b16 %v6750, %v6748
        %v7483 = vpack.c.b16 %v6751, %v6749
        %v7484 = vpack.c.b16 %v6754, %v6752
        %v7485 = vpack.c.b16 %v6755, %v6753
        %v7486 = vpack.c.b16 %v6758, %v6756
        %v7487 = vpack.c.b16 %v6759, %v6757
        %v7488 = vpack.c.b16 %v6762, %v6760
        %v7489 = vpack.c.b16 %v6763, %v6761
        %v7490 = vpack.c.b16 %v6766, %v6764
        %v7491 = vpack.c.b16 %v6767, %v6765
        %v7492 = vpack.c.b16 %v6770, %v6768
        %v7493 = vpack.c.b16 %v6771, %v6769
        %v7494 = vpack.c.b16 %v6774, %v6772
        %v7495 = vpack.c.b16 %v6775, %v6773
        %v7496 = vpack.c.b16 %v6778, %v6776
        %v7497 = vpack.c.b16 %v6779, %v6777
        %v7498 = vpack.c.b16 %v6782, %v6780
        %v7499 = vpack.c.b16 %v6783, %v6781
        %v7500 = vpack.c.b16 %v6786, %v6784
        %v7501 = vpack.c.b16 %v6787, %v6785
        %v7502 = vpack.c.b16 %v6790, %v6788
        %v7503 = vpack.c.b16 %v6791, %v6789
        %v7504 = vpack.c.b16 %v6794, %v6792
        %v7505 = vpack.c.b16 %v6795, %v6793
        %v7506 = vpack.c.b16 %v6798, %v6796
        %v7507 = vpack.c.b16 %v6799, %v6797
        %v7508 = vpack.c.b16 %v6802, %v6800
        %v7509 = vpack.c.b16 %v6803, %v6801
        %v7510 = vpack.c.b16 %v6806, %v6804
        %v7511 = vpack.c.b16 %v6807, %v6805
        %v7512 = vpack.c.b16 %v6810, %v6808
        %v7513 = vpack.c.b16 %v6811, %v6809
        %v7514 = vpack.c.b16 %v6814, %v6812
        %v7515 = vpack.c.b16 %v6815, %v6813
        %v7516 = vpack.c.b16 %v6818, %v6816
        %v7517 = vpack.c.b16 %v6819, %v6817
        %v7518 = vpack.c.b16 %v6822, %v6820
        %v7519 = vpack.c.b16 %v6823, %v6821
        %v7520 = vpack.c.b16 %v6826, %v6824
        %v7521 = vpack.c.b16 %v6827, %v6825
        %v7522 = vpack.c.b16 %v6830, %v6828
        %v7523 = vpack.c.b16 %v6831, %v6829
        %v7524 = vpack.c.b16 %v6834, %v6832
        %v7525 = vpack.c.b16 %v6835, %v6833
        %v7526 = vpack.c.b16 %v6838, %v6836
        %v7527 = vpack.c.b16 %v6839, %v6837
        %v7528 = vpack.c.b16 %v6842, %v6840
        %v7529 = vpack.c.b16 %v6843, %v6841
        %v7530 = vpack.c.b16 %v6846, %v6844
        %v7531 = vpack.c.b16 %v6847, %v6845
        %v7532 = vpack.c.b16 %v6850, %v6848
        %v7533 = vpack.c.b16 %v6851, %v6849
        %v7534 = vpack.c.b16 %v6854, %v6852
        %v7535 = vpack.c.b16 %v6855, %v6853
        %v7536 = vpack.c.b16 %v6858, %v6856
        %v7537 = vpack.c.b16 %v6859, %v6857
        %v7538 = vpack.c.b16 %v6862, %v6860
        %v7539 = vpack.c.b16 %v6863, %v6861
        %v7540 = vpack.c.b16 %v6866, %v6864
        %v7541 = vpack.c.b16 %v6867, %v6865
        %v7542 = vpack.c.b16 %v6870, %v6868
        %v7543 = vpack.c.b16 %v6871, %v6869
        %v7544 = vpack.c.b16 %v6874, %v6872
        %v7545 = vpack.c.b16 %v6875, %v6873
        %v7546 = vpack.c.b16 %v6878, %v6876
        %v7547 = vpack.c.b16 %v6879, %v6877
        %v7548 = vpack.c.b16 %v6882, %v6880
        %v7549 = vpack.c.b16 %v6883, %v6881
        %v7550 = vpack.c.b16 %v6886, %v6884
        %v7551 = vpack.c.b16 %v6887, %v6885
        %v7552 = vpack.c.b16 %v6890, %v6888
        %v7553 = vpack.c.b16 %v6891, %v6889
        %v7554 = vpack.c.b16 %v6894, %v6892
        %v7555 = vpack.c.b16 %v6895, %v6893
        %v7556 = vpack.c.b16 %v6898, %v6896
        %v7557 = vpack.c.b16 %v6899, %v6897
        %v7558 = vpack.c.b16 %v6902, %v6900
        %v7559 = vpack.c.b16 %v6903, %v6901
        %v7560 = vpack.c.b16 %v6906, %v6904
        %v7561 = vpack.c.b16 %v6907, %v6905
        %v7562 = vpack.c.b16 %v6910, %v6908
        %v7563 = vpack.c.b16 %v6911, %v6909
        %v7564 = vpack.c.b16 %v6914, %v6912
        %v7565 = vpack.c.b16 %v6915, %v6913
        %v7566 = vpack.c.b16 %v6918, %v6916
        %v7567 = vpack.c.b16 %v6919, %v6917
        %v7568 = vpack.c.b16 %v6922, %v6920
        %v7569 = vpack.c.b16 %v6923, %v6921
        %v7570 = vpack.c.b16 %v6926, %v6924
        %v7571 = vpack.c.b16 %v6927, %v6925
        %v7572 = vpack.c.b16 %v6930, %v6928
        %v7573 = vpack.c.b16 %v6931, %v6929
        %v7574 = vpack.c.b16 %v6934, %v6932
        %v7575 = vpack.c.b16 %v6935, %v6933
        %v7576 = vpack.c.b16 %v6938, %v6936
        %v7577 = vpack.c.b16 %v6939, %v6937
        %v7578 = vpack.c.b16 %v6942, %v6940
        %v7579 = vpack.c.b16 %v6943, %v6941
        %v7580 = vpack.c.b16 %v6946, %v6944
        %v7581 = vpack.c.b16 %v6947, %v6945
        %v7582 = vpack.c.b16 %v6950, %v6948
        %v7583 = vpack.c.b16 %v6951, %v6949
        %v7584 = vpack.c.b16 %v6954, %v6952
        %v7585 = vpack.c.b16 %v6955, %v6953
        %v7586 = vpack.c.b16 %v6958, %v6956
        %v7587 = vpack.c.b16 %v6959, %v6957
        %v7588 = vpack.c.b16 %v6962, %v6960
        %v7589 = vpack.c.b16 %v6963, %v6961
        %v7590 = vpack.c.b16 %v6966, %v6964
        %v7591 = vpack.c.b16 %v6967, %v6965
        %v7592 = vpack.c.b16 %v6970, %v6968
        %v7593 = vpack.c.b16 %v6971, %v6969
        %v7594 = vpack.c.b16 %v6974, %v6972
        %v7595 = vpack.c.b16 %v6975, %v6973
        %v7596 = vpack.c.b16 %v6978, %v6976
        %v7597 = vpack.c.b16 %v6979, %v6977
        %v7598 = vpack.c.b16 %v6982, %v6980
        %v7599 = vpack.c.b16 %v6983, %v6981
        %v7600 = vpack.c.b16 %v6986, %v6984
        %v7601 = vpack.c.b16 %v6987, %v6985
        %v7602 = vpack.c.b16 %v6990, %v6988
        %v7603 = vpack.c.b16 %v6991, %v6989
        %v7604 = vpack.c.b16 %v6994, %v6992
        %v7605 = vpack.c.b16 %v6995, %v6993
        %v7606 = vpack.c.b16 %v6998, %v6996
        %v7607 = vpack.c.b16 %v6999, %v6997
        %v7608 = vpack.c.b16 %v7002, %v7000
        %v7609 = vpack.c.b16 %v7003, %v7001
        %v7610 = vpack.c.b16 %v7006, %v7004
        %v7611 = vpack.c.b16 %v7007, %v7005
        %v7612 = vpack.c.b16 %v7010, %v7008
        %v7613 = vpack.c.b16 %v7011, %v7009
        %v7614 = vpack.c.b16 %v7014, %v7012
        %v7615 = vpack.c.b16 %v7015, %v7013
        %v7616 = vpack.c.b16 %v7018, %v7016
        %v7617 = vpack.c.b16 %v7019, %v7017
        %v7618 = vpack.c.b16 %v7022, %v7020
        %v7619 = vpack.c.b16 %v7023, %v7021
        %v7620 = vpack.c.b16 %v7026, %v7024
        %v7621 = vpack.c.b16 %v7027, %v7025
        %v7622 = vpack.c.b16 %v7030, %v7028
        %v7623 = vpack.c.b16 %v7031, %v7029
        %v7624 = vpack.c.b16 %v7034, %v7032
        %v7625 = vpack.c.b16 %v7035, %v7033
        %v7626 = vpack.c.b16 %v7038, %v7036
        %v7627 = vpack.c.b16 %v7039, %v7037
        %v7628 = vpack.c.b16 %v7042, %v7040
        %v7629 = vpack.c.b16 %v7043, %v7041
        %v7630 = vpack.c.b16 %v7046, %v7044
        %v7631 = vpack.c.b16 %v7047, %v7045
        %v7632 = vpack.c.b16 %v7050, %v7048
        %v7633 = vpack.c.b16 %v7051, %v7049
        %v7634 = vpack.c.b16 %v7054, %v7052
        %v7635 = vpack.c.b16 %v7055, %v7053
        %v7636 = vpack.c.b16 %v7058, %v7056
        %v7637 = vpack.c.b16 %v7059, %v7057
        %v7638 = vpack.c.b16 %v7062, %v7060
        %v7639 = vpack.c.b16 %v7063, %v7061
        %v7640 = vpack.c.b16 %v7066, %v7064
        %v7641 = vpack.c.b16 %v7067, %v7065
        %v7642 = vpack.c.b16 %v7070, %v7068
        %v7643 = vpack.c.b16 %v7071, %v7069
        %v7644 = vpack.c.b16 %v7074, %v7072
        %v7645 = vpack.c.b16 %v7075, %v7073
        %v7646 = vpack.c.b16 %v7078, %v7076
        %v7647 = vpack.c.b16 %v7079, %v7077
        %v7648 = vpack.c.b16 %v7082, %v7080
        %v7649 = vpack.c.b16 %v7083, %v7081
        %v7650 = vpack.c.b16 %v7086, %v7084
        %v7651 = vpack.c.b16 %v7087, %v7085
        %v7652 = vpack.c.b16 %v7090, %v7088
        %v7653 = vpack.c.b16 %v7091, %v7089
        %v7654 = vpack.c.b16 %v7094, %v7092
        %v7655 = vpack.c.b16 %v7095, %v7093
        %v7656 = vpack.c.b16 %v7098, %v7096
        %v7657 = vpack.c.b16 %v7099, %v7097
        %v7658 = vpack.c.b16 %v7102, %v7100
        %v7659 = vpack.c.b16 %v7103, %v7101
        %v7660 = vpack.c.b16 %v7106, %v7104
        %v7661 = vpack.c.b16 %v7107, %v7105
        %v7662 = vpack.c.b16 %v7110, %v7108
        %v7663 = vpack.c.b16 %v7111, %v7109
        %v7664 = vpack.c.b16 %v7114, %v7112
        %v7665 = vpack.c.b16 %v7115, %v7113
        %v7666 = vpack.c.b16 %v7118, %v7116
        %v7667 = vpack.c.b16 %v7119, %v7117
        %v7668 = vpack.c.b16 %v7122, %v7120
        %v7669 = vpack.c.b16 %v7123, %v7121
        %v7670 = vpack.c.b16 %v7126, %v7124
        %v7671 = vpack.c.b16 %v7127, %v7125
        %v7672 = vpack.c.b16 %v7130, %v7128
        %v7673 = vpack.c.b16 %v7131, %v7129
        %v7674 = vpack.c.b16 %v7134, %v7132
        %v7675 = vpack.c.b16 %v7135, %v7133
        %v7676 = vpack.c.b16 %v7138, %v7136
        %v7677 = vpack.c.b16 %v7139, %v7137
        %v7678 = vpack.c.b16 %v7142, %v7140
        %v7679 = vpack.c.b16 %v7143, %v7141
        %v7680 = vpack.c.b16 %v7146, %v7144
        %v7681 = vpack.c.b16 %v7147, %v7145
        %v7682 = vpack.c.b16 %v7150, %v7148
        %v7683 = vpack.c.b16 %v7151, %v7149
        %v7684 = vpack.c.b16 %v7154, %v7152
        %v7685 = vpack.c.b16 %v7155, %v7153
        %v7686 = vpack.c.b16 %v7158, %v7156
        %v7687 = vpack.c.b16 %v7159, %v7157
        %v7688 = vpack.c.b16 %v7162, %v7160
        %v7689 = vpack.c.b16 %v7163, %v7161
        %v7690 = vpack.c.b16 %v7166, %v7164
        %v7691 = vpack.c.b16 %v7167, %v7165
        %v7692 = vpack.c.b16 %v7170, %v7168
        %v7693 = vpack.c.b16 %v7171, %v7169
        %v7694 = vpack.c.b16 %v7174, %v7172
        %v7695 = vpack.c.b16 %v7175, %v7173
        %v7696 = vpack.c.b16 %v7178, %v7176
        %v7697 = vpack.c.b16 %v7179, %v7177
        %v7698 = vpack.c.b16 %v7182, %v7180
        %v7699 = vpack.c.b16 %v7183, %v7181
        %v7700 = vpack.c.b16 %v7186, %v7184
        %v7701 = vpack.c.b16 %v7187, %v7185
        %v7702 = vpack.c.b16 %v7190, %v7188
        %v7703 = vpack.c.b16 %v7191, %v7189
        %v7704 = vpack.c.b16 %v7194, %v7192
        %v7705 = vpack.c.b16 %v7195, %v7193
        %v7706 = vpack.c.b16 %v7198, %v7196
        %v7707 = vpack.c.b16 %v7199, %v7197
        %v7708 = vpack.c.b16 %v7202, %v7200
        %v7709 = vpack.c.b16 %v7203, %v7201
        %v7710 = vpack.c.b16 %v7206, %v7204
        %v7711 = vpack.c.b16 %v7207, %v7205
        %v7712 = vpack.c.b16 %v7210, %v7208
        %v7713 = vpack.c.b16 %v7211, %v7209
        %v7714 = vpack.c.b16 %v7214, %v7212
        %v7715 = vpack.c.b16 %v7215, %v7213
        %v7716 = vpack.c.b16 %v7218, %v7216
        %v7717 = vpack.c.b16 %v7219, %v7217
        %v7718 = vpack.c.b16 %v7222, %v7220
        %v7719 = vpack.c.b16 %v7223, %v7221
        %v7720 = vpack.c.b16 %v7226, %v7224
        %v7721 = vpack.c.b16 %v7227, %v7225
        %v7722 = vpack.c.b16 %v7230, %v7228
        %v7723 = vpack.c.b16 %v7231, %v7229
        %v7724 = vpack.c.b16 %v7234, %v7232
        %v7725 = vpack.c.b16 %v7235, %v7233
        %v7726 = vpack.c.b16 %v7238, %v7236
        %v7727 = vpack.c.b16 %v7239, %v7237
        %v7728 = vpack.c.b16 %v7242, %v7240
        %v7729 = vpack.c.b16 %v7243, %v7241
        %v7730 = vpack.c.b16 %v7246, %v7244
        %v7731 = vpack.c.b16 %v7247, %v7245
        %v7732 = vpack.c.b16 %v7250, %v7248
        %v7733 = vpack.c.b16 %v7251, %v7249
        %v7734 = vpack.c.b16 %v7254, %v7252
        %v7735 = vpack.c.b16 %v7255, %v7253
        %v7736 = vpack.c.b16 %v7258, %v7256
        %v7737 = vpack.c.b16 %v7259, %v7257
        %v7738 = vpack.c.b16 %v7262, %v7260
        %v7739 = vpack.c.b16 %v7263, %v7261
        %v7740 = vpack.c.b16 %v7266, %v7264
        %v7741 = vpack.c.b16 %v7267, %v7265
        %v7742 = vpack.c.b16 %v7270, %v7268
        %v7743 = vpack.c.b16 %v7271, %v7269
        %v7744 = vpack.c.b16 %v7274, %v7272
        %v7745 = vpack.c.b16 %v7275, %v7273
        %v7746 = vpack.c.b16 %v7278, %v7276
        %v7747 = vpack.c.b16 %v7279, %v7277
        %v7748 = vpack.c.b16 %v7282, %v7280
        %v7749 = vpack.c.b16 %v7283, %v7281
        %v7750 = vpack.c.b16 %v7286, %v7284
        %v7751 = vpack.c.b16 %v7287, %v7285
        %v7752 = vpack.c.b16 %v7290, %v7288
        %v7753 = vpack.c.b16 %v7291, %v7289
        %v7754 = vpack.c.b16 %v7294, %v7292
        %v7755 = vpack.c.b16 %v7295, %v7293
        %v7756 = vpack.c.b16 %v7298, %v7296
        %v7757 = vpack.c.b16 %v7299, %v7297
        %v7758 = vpack.c.b16 %v7302, %v7300
        %v7759 = vpack.c.b16 %v7303, %v7301
        %v7760 = vpack.c.b16 %v7306, %v7304
        %v7761 = vpack.c.b16 %v7307, %v7305
        %v7762 = vpack.c.b16 %v7310, %v7308
        %v7763 = vpack.c.b16 %v7311, %v7309
        %v7764 = vpack.c.b16 %v7314, %v7312
        %v7765 = vpack.c.b16 %v7315, %v7313
        %v7766 = vpack.c.b16 %v7318, %v7316
        %v7767 = vpack.c.b16 %v7319, %v7317
        %v7768 = vpack.c.b16 %v7322, %v7320
        %v7769 = vpack.c.b16 %v7323, %v7321
        %v7770 = vpack.c.b16 %v7326, %v7324
        %v7771 = vpack.c.b16 %v7327, %v7325
        %v7772 = vpack.c.b16 %v7330, %v7328
        %v7773 = vpack.c.b16 %v7331, %v7329
        %v7774 = vpack.c.b16 %v7334, %v7332
        %v7775 = vpack.c.b16 %v7335, %v7333
        %v7776 = vpack.c.b16 %v7338, %v7336
        %v7777 = vpack.c.b16 %v7339, %v7337
        %v7778 = vpack.c.b16 %v7342, %v7340
        %v7779 = vpack.c.b16 %v7343, %v7341
        %v7780 = vpack.c.b16 %v7346, %v7344
        %v7781 = vpack.c.b16 %v7347, %v7345
        %v7782 = vpack.c.b16 %v7350, %v7348
        %v7783 = vpack.c.b16 %v7351, %v7349
        %v7784 = vpack.c.b16 %v7354, %v7352
        %v7785 = vpack.c.b16 %v7355, %v7353
        %v7786 = vpack.c.b16 %v7358, %v7356
        %v7787 = vpack.c.b16 %v7359, %v7357
        %v7788 = vpack.c.b16 %v7362, %v7360
        %v7789 = vpack.c.b16 %v7363, %v7361
        %v7790 = vpack.c.b16 %v7366, %v7364
        %v7791 = vpack.c.b16 %v7367, %v7365
        %v7792 = vpack.c.b16 %v7370, %v7368
        %v7793 = vpack.c.b16 %v7371, %v7369
        %v7794 = vpack.c.b16 %v7374, %v7372
        %v7795 = vpack.c.b16 %v7375, %v7373
        %v7796 = vpack.c.b16 %v7378, %v7376
        %v7797 = vpack.c.b16 %v7379, %v7377
        %v7798 = vpack.c.b16 %v7382, %v7380
        %v7799 = vpack.c.b16 %v7383, %v7381
        %v7800 = vpack.c.b16 %v7386, %v7384
        %v7801 = vpack.c.b16 %v7387, %v7385
        %v7802 = vpack.c.b16 %v7390, %v7388
        %v7803 = vpack.c.b16 %v7391, %v7389
        %v7804 = vpack.c.b16 %v7394, %v7392
        %v7805 = vpack.c.b16 %v7395, %v7393
        %v7806 = vpack.c.b16 %v7398, %v7396
        %v7807 = vpack.c.b16 %v7399, %v7397
        %v7808 = vpack.c.b16 %v7402, %v7400
        %v7809 = vpack.c.b16 %v7403, %v7401
        %v7810 = vpack.c.b16 %v7406, %v7404
        %v7811 = vpack.c.b16 %v7407, %v7405
        %v7812 = vpack.c.b16 %v7410, %v7408
        %v7813 = vpack.c.b16 %v7411, %v7409
        %v7814 = vpack.c.b16 %v7414, %v7412
        %v7815 = vpack.c.b16 %v7415, %v7413
        %8216 = vmatprep.subr.bf16.mxu0 %v7431
        %8217 = vmatpush1.bf16.msra.mxu0 %v7430
        %8218 = vmatprep.subr.bf16.mxu0 %v7429
        %8219 = vmatpush1.bf16.msra.mxu0 %v7428
        %8220 = vmatprep.subr.bf16.mxu0 %v7427
        %8221 = vmatpush1.bf16.msra.mxu0 %v7426
        %8222 = vmatprep.subr.bf16.mxu0 %v7425
        %8223 = vmatpush1.bf16.msra.mxu0 %v7424
        %8224 = vmatprep.subr.bf16.mxu0 %v7423
        %8225 = vmatpush1.bf16.msra.mxu0 %v7422
        %8226 = vmatprep.subr.bf16.mxu0 %v7421
        %8227 = vmatpush1.bf16.msra.mxu0 %v7420
        %8228 = vmatprep.subr.bf16.mxu0 %v7419
        %8229 = vmatpush1.bf16.msra.mxu0 %v7418
        %8230 = vmatprep.subr.bf16.mxu0 %v7417
        %8231 = vmatpush1.bf16.msra.mxu0 %v7416
        %8232 = vmatprep.subr.bf16.mxu0 %v7447
        %8233 = vmatpush2.bf16.msra.mxu0 %v7446
        %8234 = vmatprep.subr.bf16.mxu0 %v7445
        %8235 = vmatpush2.bf16.msra.mxu0 %v7444
        %8236 = vmatprep.subr.bf16.mxu0 %v7443
        %8237 = vmatpush2.bf16.msra.mxu0 %v7442
        %8238 = vmatprep.subr.bf16.mxu0 %v7441
        %8239 = vmatpush2.bf16.msra.mxu0 %v7440
        %8240 = vmatprep.subr.bf16.mxu0 %v7439
        %8241 = vmatpush2.bf16.msra.mxu0 %v7438
        %8242 = vmatprep.subr.bf16.mxu0 %v7437
        %8243 = vmatpush2.bf16.msra.mxu0 %v7436
        %8244 = vmatprep.subr.bf16.mxu0 %v7435
        %8245 = vmatpush2.bf16.msra.mxu0 %v7434
        %8246 = vmatprep.subr.bf16.mxu0 %v7433
        %8247 = vmatpush2.bf16.msra.mxu0 %v7432
        %8248 = vmatprep.mubr.bf16.mxu0 %v5967
        %8249 = vmatmul.mubr.bf16.gmra.mxu0 %v5966
        %v8250 = vpop.f32.mrf.mxu0
        %v8251 = vadd.f32 %v5579, %v8250
        %v8252 = vpop.f32.mrf.mxu0
        %v8253 = vadd.f32 %v5583, %v8252
        %v8254 = vpop.f32.mrf.mxu0
        %v8255 = vadd.f32 %v5579, %v8254
        %v8256 = vpop.f32.mrf.mxu0
        %v8257 = vadd.f32 %v5583, %v8256
        %8258 = vmatprep.mubr.bf16.mxu0 %v5992
        %8259 = vmatmul.mubr.bf16.gmra.mxu0 %v5991
        %v8260 = vpop.f32.mrf.mxu0
        %v8261 = vadd.f32 %v5579, %v8260
        %v8262 = vpop.f32.mrf.mxu0
        %v8263 = vadd.f32 %v5583, %v8262
        %v8264 = vpop.f32.mrf.mxu0
        %v8265 = vadd.f32 %v5579, %v8264
        %v8266 = vpop.f32.mrf.mxu0
        %v8267 = vadd.f32 %v5583, %v8266
        %8268 = vmatprep.mubr.bf16.mxu0 %v6017
        %8269 = vmatmul.mubr.bf16.gmra.mxu0 %v6016
        %v8270 = vpop.f32.mrf.mxu0
        %v8271 = vadd.f32 %v5579, %v8270
        %v8272 = vpop.f32.mrf.mxu0
        %v8273 = vadd.f32 %v5583, %v8272
        %v8274 = vpop.f32.mrf.mxu0
        %v8275 = vadd.f32 %v5579, %v8274
        %v8276 = vpop.f32.mrf.mxu0
        %v8277 = vadd.f32 %v5583, %v8276
        %8278 = vmatprep.mubr.bf16.mxu0 %v6042
        %8279 = vmatmul.mubr.bf16.gmra.mxu0 %v6041
        %v8280 = vpop.f32.mrf.mxu0
        %v8281 = vadd.f32 %v5579, %v8280
        %v8282 = vpop.f32.mrf.mxu0
        %v8283 = vadd.f32 %v5583, %v8282
        %v8284 = vpop.f32.mrf.mxu0
        %v8285 = vadd.f32 %v5579, %v8284
        %v8286 = vpop.f32.mrf.mxu0
        %v8287 = vadd.f32 %v5583, %v8286
        %8288 = vmatprep.mubr.bf16.mxu0 %v6067
        %8289 = vmatmul.mubr.bf16.gmra.mxu0 %v6066
        %v8290 = vpop.f32.mrf.mxu0
        %v8291 = vadd.f32 %v5579, %v8290
        %v8292 = vpop.f32.mrf.mxu0
        %v8293 = vadd.f32 %v5583, %v8292
        %v8294 = vpop.f32.mrf.mxu0
        %v8295 = vadd.f32 %v5579, %v8294
        %v8296 = vpop.f32.mrf.mxu0
        %v8297 = vadd.f32 %v5583, %v8296
        %8298 = vdwg.mxu0
        %8299 = vmatprep.subr.bf16.mxu0 %v7463
        %8300 = vmatpush1.bf16.msra.mxu0 %v7462
        %8301 = vmatprep.subr.bf16.mxu0 %v7461
        %8302 = vmatpush1.bf16.msra.mxu0 %v7460
        %8303 = vmatprep.subr.bf16.mxu0 %v7459
        %8304 = vmatpush1.bf16.msra.mxu0 %v7458
        %8305 = vmatprep.subr.bf16.mxu0 %v7457
        %8306 = vmatpush1.bf16.msra.mxu0 %v7456
        %8307 = vmatprep.subr.bf16.mxu0 %v7455
        %8308 = vmatpush1.bf16.msra.mxu0 %v7454
        %8309 = vmatprep.subr.bf16.mxu0 %v7453
        %8310 = vmatpush1.bf16.msra.mxu0 %v7452
        %8311 = vmatprep.subr.bf16.mxu0 %v7451
        %8312 = vmatpush1.bf16.msra.mxu0 %v7450
        %8313 = vmatprep.subr.bf16.mxu0 %v7449
        %8314 = vmatpush1.bf16.msra.mxu0 %v7448
        %8315 = vmatprep.subr.bf16.mxu0 %v7479
        %8316 = vmatpush2.bf16.msra.mxu0 %v7478
        %8317 = vmatprep.subr.bf16.mxu0 %v7477
        %8318 = vmatpush2.bf16.msra.mxu0 %v7476
        %8319 = vmatprep.subr.bf16.mxu0 %v7475
        %8320 = vmatpush2.bf16.msra.mxu0 %v7474
        %8321 = vmatprep.subr.bf16.mxu0 %v7473
        %8322 = vmatpush2.bf16.msra.mxu0 %v7472
        %8323 = vmatprep.subr.bf16.mxu0 %v7471
        %8324 = vmatpush2.bf16.msra.mxu0 %v7470
        %8325 = vmatprep.subr.bf16.mxu0 %v7469
        %8326 = vmatpush2.bf16.msra.mxu0 %v7468
        %8327 = vmatprep.subr.bf16.mxu0 %v7467
        %8328 = vmatpush2.bf16.msra.mxu0 %v7466
        %8329 = vmatprep.subr.bf16.mxu0 %v7465
        %8330 = vmatpush2.bf16.msra.mxu0 %v7464
        %8331 = vmatprep.mubr.bf16.mxu0 %v5969
        %8332 = vmatmul.mubr.bf16.gmra.mxu0 %v5968
        %v8333 = vpop.f32.mrf.mxu0
        %v8334 = vadd.f32 %v8251, %v8333
        %v8335 = vpop.f32.mrf.mxu0
        %v8336 = vadd.f32 %v8253, %v8335
        %v8337 = vpop.f32.mrf.mxu0
        %v8338 = vadd.f32 %v8255, %v8337
        %v8339 = vpop.f32.mrf.mxu0
        %v8340 = vadd.f32 %v8257, %v8339
        %8341 = vmatprep.mubr.bf16.mxu0 %v5994
        %8342 = vmatmul.mubr.bf16.gmra.mxu0 %v5993
        %v8343 = vpop.f32.mrf.mxu0
        %v8344 = vadd.f32 %v8261, %v8343
        %v8345 = vpop.f32.mrf.mxu0
        %v8346 = vadd.f32 %v8263, %v8345
        %v8347 = vpop.f32.mrf.mxu0
        %v8348 = vadd.f32 %v8265, %v8347
        %v8349 = vpop.f32.mrf.mxu0
        %v8350 = vadd.f32 %v8267, %v8349
        %8351 = vmatprep.mubr.bf16.mxu0 %v6019
        %8352 = vmatmul.mubr.bf16.gmra.mxu0 %v6018
        %v8353 = vpop.f32.mrf.mxu0
        %v8354 = vadd.f32 %v8271, %v8353
        %v8355 = vpop.f32.mrf.mxu0
        %v8356 = vadd.f32 %v8273, %v8355
        %v8357 = vpop.f32.mrf.mxu0
        %v8358 = vadd.f32 %v8275, %v8357
        %v8359 = vpop.f32.mrf.mxu0
        %v8360 = vadd.f32 %v8277, %v8359
        %8361 = vmatprep.mubr.bf16.mxu0 %v6044
        %8362 = vmatmul.mubr.bf16.gmra.mxu0 %v6043
        %v8363 = vpop.f32.mrf.mxu0
        %v8364 = vadd.f32 %v8281, %v8363
        %v8365 = vpop.f32.mrf.mxu0
        %v8366 = vadd.f32 %v8283, %v8365
        %v8367 = vpop.f32.mrf.mxu0
        %v8368 = vadd.f32 %v8285, %v8367
        %v8369 = vpop.f32.mrf.mxu0
        %v8370 = vadd.f32 %v8287, %v8369
        %8371 = vmatprep.mubr.bf16.mxu0 %v6069
        %8372 = vmatmul.mubr.bf16.gmra.mxu0 %v6068
        %v8373 = vpop.f32.mrf.mxu0
        %v8374 = vadd.f32 %v8291, %v8373
        %v8375 = vpop.f32.mrf.mxu0
        %v8376 = vadd.f32 %v8293, %v8375
        %v8377 = vpop.f32.mrf.mxu0
        %v8378 = vadd.f32 %v8295, %v8377
        %v8379 = vpop.f32.mrf.mxu0
        %v8380 = vadd.f32 %v8297, %v8379
        %8381 = vdwg.mxu0
        %8382 = vmatprep.subr.bf16.mxu0 %v7495
        %8383 = vmatpush1.bf16.msra.mxu0 %v7494
        %8384 = vmatprep.subr.bf16.mxu0 %v7493
        %8385 = vmatpush1.bf16.msra.mxu0 %v7492
        %8386 = vmatprep.subr.bf16.mxu0 %v7491
        %8387 = vmatpush1.bf16.msra.mxu0 %v7490
        %8388 = vmatprep.subr.bf16.mxu0 %v7489
        %8389 = vmatpush1.bf16.msra.mxu0 %v7488
        %8390 = vmatprep.subr.bf16.mxu0 %v7487
        %8391 = vmatpush1.bf16.msra.mxu0 %v7486
        %8392 = vmatprep.subr.bf16.mxu0 %v7485
        %8393 = vmatpush1.bf16.msra.mxu0 %v7484
        %8394 = vmatprep.subr.bf16.mxu0 %v7483
        %8395 = vmatpush1.bf16.msra.mxu0 %v7482
        %8396 = vmatprep.subr.bf16.mxu0 %v7481
        %8397 = vmatpush1.bf16.msra.mxu0 %v7480
        %8398 = vmatprep.subr.bf16.mxu0 %v7511
        %8399 = vmatpush2.bf16.msra.mxu0 %v7510
        %8400 = vmatprep.subr.bf16.mxu0 %v7509
        %8401 = vmatpush2.bf16.msra.mxu0 %v7508
        %8402 = vmatprep.subr.bf16.mxu0 %v7507
        %8403 = vmatpush2.bf16.msra.mxu0 %v7506
        %8404 = vmatprep.subr.bf16.mxu0 %v7505
        %8405 = vmatpush2.bf16.msra.mxu0 %v7504
        %8406 = vmatprep.subr.bf16.mxu0 %v7503
        %8407 = vmatpush2.bf16.msra.mxu0 %v7502
        %8408 = vmatprep.subr.bf16.mxu0 %v7501
        %8409 = vmatpush2.bf16.msra.mxu0 %v7500
        %8410 = vmatprep.subr.bf16.mxu0 %v7499
        %8411 = vmatpush2.bf16.msra.mxu0 %v7498
        %8412 = vmatprep.subr.bf16.mxu0 %v7497
        %8413 = vmatpush2.bf16.msra.mxu0 %v7496
        %8414 = vmatprep.mubr.bf16.mxu0 %v5971
        %8415 = vmatmul.mubr.bf16.gmra.mxu0 %v5970
        %v8416 = vpop.f32.mrf.mxu0
        %v8417 = vadd.f32 %v8334, %v8416
        %v8418 = vpop.f32.mrf.mxu0
        %v8419 = vadd.f32 %v8336, %v8418
        %v8420 = vpop.f32.mrf.mxu0
        %v8421 = vadd.f32 %v8338, %v8420
        %v8422 = vpop.f32.mrf.mxu0
        %v8423 = vadd.f32 %v8340, %v8422
        %8424 = vmatprep.mubr.bf16.mxu0 %v5996
        %8425 = vmatmul.mubr.bf16.gmra.mxu0 %v5995
        %v8426 = vpop.f32.mrf.mxu0
        %v8427 = vadd.f32 %v8344, %v8426
        %v8428 = vpop.f32.mrf.mxu0
        %v8429 = vadd.f32 %v8346, %v8428
        %v8430 = vpop.f32.mrf.mxu0
        %v8431 = vadd.f32 %v8348, %v8430
        %v8432 = vpop.f32.mrf.mxu0
        %v8433 = vadd.f32 %v8350, %v8432
        %8434 = vmatprep.mubr.bf16.mxu0 %v6021
        %8435 = vmatmul.mubr.bf16.gmra.mxu0 %v6020
        %v8436 = vpop.f32.mrf.mxu0
        %v8437 = vadd.f32 %v8354, %v8436
        %v8438 = vpop.f32.mrf.mxu0
        %v8439 = vadd.f32 %v8356, %v8438
        %v8440 = vpop.f32.mrf.mxu0
        %v8441 = vadd.f32 %v8358, %v8440
        %v8442 = vpop.f32.mrf.mxu0
        %v8443 = vadd.f32 %v8360, %v8442
        %8444 = vmatprep.mubr.bf16.mxu0 %v6046
        %8445 = vmatmul.mubr.bf16.gmra.mxu0 %v6045
        %v8446 = vpop.f32.mrf.mxu0
        %v8447 = vadd.f32 %v8364, %v8446
        %v8448 = vpop.f32.mrf.mxu0
        %v8449 = vadd.f32 %v8366, %v8448
        %v8450 = vpop.f32.mrf.mxu0
        %v8451 = vadd.f32 %v8368, %v8450
        %v8452 = vpop.f32.mrf.mxu0
        %v8453 = vadd.f32 %v8370, %v8452
        %8454 = vmatprep.mubr.bf16.mxu0 %v6071
        %8455 = vmatmul.mubr.bf16.gmra.mxu0 %v6070
        %v8456 = vpop.f32.mrf.mxu0
        %v8457 = vadd.f32 %v8374, %v8456
        %v8458 = vpop.f32.mrf.mxu0
        %v8459 = vadd.f32 %v8376, %v8458
        %v8460 = vpop.f32.mrf.mxu0
        %v8461 = vadd.f32 %v8378, %v8460
        %v8462 = vpop.f32.mrf.mxu0
        %v8463 = vadd.f32 %v8380, %v8462
        %8464 = vdwg.mxu0
        %8465 = vmatprep.subr.bf16.mxu0 %v7527
        %8466 = vmatpush1.bf16.msra.mxu0 %v7526
        %8467 = vmatprep.subr.bf16.mxu0 %v7525
        %8468 = vmatpush1.bf16.msra.mxu0 %v7524
        %8469 = vmatprep.subr.bf16.mxu0 %v7523
        %8470 = vmatpush1.bf16.msra.mxu0 %v7522
        %8471 = vmatprep.subr.bf16.mxu0 %v7521
        %8472 = vmatpush1.bf16.msra.mxu0 %v7520
        %8473 = vmatprep.subr.bf16.mxu0 %v7519
        %8474 = vmatpush1.bf16.msra.mxu0 %v7518
        %8475 = vmatprep.subr.bf16.mxu0 %v7517
        %8476 = vmatpush1.bf16.msra.mxu0 %v7516
        %8477 = vmatprep.subr.bf16.mxu0 %v7515
        %8478 = vmatpush1.bf16.msra.mxu0 %v7514
        %8479 = vmatprep.subr.bf16.mxu0 %v7513
        %8480 = vmatpush1.bf16.msra.mxu0 %v7512
        %8481 = vmatprep.subr.bf16.mxu0 %v7543
        %8482 = vmatpush2.bf16.msra.mxu0 %v7542
        %8483 = vmatprep.subr.bf16.mxu0 %v7541
        %8484 = vmatpush2.bf16.msra.mxu0 %v7540
        %8485 = vmatprep.subr.bf16.mxu0 %v7539
        %8486 = vmatpush2.bf16.msra.mxu0 %v7538
        %8487 = vmatprep.subr.bf16.mxu0 %v7537
        %8488 = vmatpush2.bf16.msra.mxu0 %v7536
        %8489 = vmatprep.subr.bf16.mxu0 %v7535
        %8490 = vmatpush2.bf16.msra.mxu0 %v7534
        %8491 = vmatprep.subr.bf16.mxu0 %v7533
        %8492 = vmatpush2.bf16.msra.mxu0 %v7532
        %8493 = vmatprep.subr.bf16.mxu0 %v7531
        %8494 = vmatpush2.bf16.msra.mxu0 %v7530
        %8495 = vmatprep.subr.bf16.mxu0 %v7529
        %8496 = vmatpush2.bf16.msra.mxu0 %v7528
        %8497 = vmatprep.mubr.bf16.mxu0 %v5973
        %8498 = vmatmul.mubr.bf16.gmra.mxu0 %v5972
        %v8499 = vpop.f32.mrf.mxu0
        %v8500 = vadd.f32 %v8417, %v8499
        %v8501 = vpop.f32.mrf.mxu0
        %v8502 = vadd.f32 %v8419, %v8501
        %v8503 = vpop.f32.mrf.mxu0
        %v8504 = vadd.f32 %v8421, %v8503
        %v8505 = vpop.f32.mrf.mxu0
        %v8506 = vadd.f32 %v8423, %v8505
        %8507 = vmatprep.mubr.bf16.mxu0 %v5998
        %8508 = vmatmul.mubr.bf16.gmra.mxu0 %v5997
        %v8509 = vpop.f32.mrf.mxu0
        %v8510 = vadd.f32 %v8427, %v8509
        %v8511 = vpop.f32.mrf.mxu0
        %v8512 = vadd.f32 %v8429, %v8511
        %v8513 = vpop.f32.mrf.mxu0
        %v8514 = vadd.f32 %v8431, %v8513
        %v8515 = vpop.f32.mrf.mxu0
        %v8516 = vadd.f32 %v8433, %v8515
        %8517 = vmatprep.mubr.bf16.mxu0 %v6023
        %8518 = vmatmul.mubr.bf16.gmra.mxu0 %v6022
        %v8519 = vpop.f32.mrf.mxu0
        %v8520 = vadd.f32 %v8437, %v8519
        %v8521 = vpop.f32.mrf.mxu0
        %v8522 = vadd.f32 %v8439, %v8521
        %v8523 = vpop.f32.mrf.mxu0
        %v8524 = vadd.f32 %v8441, %v8523
        %v8525 = vpop.f32.mrf.mxu0
        %v8526 = vadd.f32 %v8443, %v8525
        %8527 = vmatprep.mubr.bf16.mxu0 %v6048
        %8528 = vmatmul.mubr.bf16.gmra.mxu0 %v6047
        %v8529 = vpop.f32.mrf.mxu0
        %v8530 = vadd.f32 %v8447, %v8529
        %v8531 = vpop.f32.mrf.mxu0
        %v8532 = vadd.f32 %v8449, %v8531
        %v8533 = vpop.f32.mrf.mxu0
        %v8534 = vadd.f32 %v8451, %v8533
        %v8535 = vpop.f32.mrf.mxu0
        %v8536 = vadd.f32 %v8453, %v8535
        %8537 = vmatprep.mubr.bf16.mxu0 %v6073
        %8538 = vmatmul.mubr.bf16.gmra.mxu0 %v6072
        %v8539 = vpop.f32.mrf.mxu0
        %v8540 = vadd.f32 %v8457, %v8539
        %v8541 = vpop.f32.mrf.mxu0
        %v8542 = vadd.f32 %v8459, %v8541
        %v8543 = vpop.f32.mrf.mxu0
        %v8544 = vadd.f32 %v8461, %v8543
        %v8545 = vpop.f32.mrf.mxu0
        %v8546 = vadd.f32 %v8463, %v8545
        %8547 = vdwg.mxu0
        %8548 = vmatprep.subr.bf16.mxu0 %v7559
        %8549 = vmatpush1.bf16.msra.mxu0 %v7558
        %8550 = vmatprep.subr.bf16.mxu0 %v7557
        %8551 = vmatpush1.bf16.msra.mxu0 %v7556
        %8552 = vmatprep.subr.bf16.mxu0 %v7555
        %8553 = vmatpush1.bf16.msra.mxu0 %v7554
        %8554 = vmatprep.subr.bf16.mxu0 %v7553
        %8555 = vmatpush1.bf16.msra.mxu0 %v7552
        %8556 = vmatprep.subr.bf16.mxu0 %v7551
        %8557 = vmatpush1.bf16.msra.mxu0 %v7550
        %8558 = vmatprep.subr.bf16.mxu0 %v7549
        %8559 = vmatpush1.bf16.msra.mxu0 %v7548
        %8560 = vmatprep.subr.bf16.mxu0 %v7547
        %8561 = vmatpush1.bf16.msra.mxu0 %v7546
        %8562 = vmatprep.subr.bf16.mxu0 %v7545
        %8563 = vmatpush1.bf16.msra.mxu0 %v7544
        %8564 = vmatprep.subr.bf16.mxu0 %v7575
        %8565 = vmatpush2.bf16.msra.mxu0 %v7574
        %8566 = vmatprep.subr.bf16.mxu0 %v7573
        %8567 = vmatpush2.bf16.msra.mxu0 %v7572
        %8568 = vmatprep.subr.bf16.mxu0 %v7571
        %8569 = vmatpush2.bf16.msra.mxu0 %v7570
        %8570 = vmatprep.subr.bf16.mxu0 %v7569
        %8571 = vmatpush2.bf16.msra.mxu0 %v7568
        %8572 = vmatprep.subr.bf16.mxu0 %v7567
        %8573 = vmatpush2.bf16.msra.mxu0 %v7566
        %8574 = vmatprep.subr.bf16.mxu0 %v7565
        %8575 = vmatpush2.bf16.msra.mxu0 %v7564
        %8576 = vmatprep.subr.bf16.mxu0 %v7563
        %8577 = vmatpush2.bf16.msra.mxu0 %v7562
        %8578 = vmatprep.subr.bf16.mxu0 %v7561
        %8579 = vmatpush2.bf16.msra.mxu0 %v7560
        %8580 = vmatprep.mubr.bf16.mxu0 %v5975
        %8581 = vmatmul.mubr.bf16.gmra.mxu0 %v5974
        %v8582 = vpop.f32.mrf.mxu0
        %v8583 = vadd.f32 %v8500, %v8582
        %v8584 = vpop.f32.mrf.mxu0
        %v8585 = vadd.f32 %v8502, %v8584
        %v8586 = vpop.f32.mrf.mxu0
        %v8587 = vadd.f32 %v8504, %v8586
        %v8588 = vpop.f32.mrf.mxu0
        %v8589 = vadd.f32 %v8506, %v8588
        %8590 = vmatprep.mubr.bf16.mxu0 %v6000
        %8591 = vmatmul.mubr.bf16.gmra.mxu0 %v5999
        %v8592 = vpop.f32.mrf.mxu0
        %v8593 = vadd.f32 %v8510, %v8592
        %v8594 = vpop.f32.mrf.mxu0
        %v8595 = vadd.f32 %v8512, %v8594
        %v8596 = vpop.f32.mrf.mxu0
        %v8597 = vadd.f32 %v8514, %v8596
        %v8598 = vpop.f32.mrf.mxu0
        %v8599 = vadd.f32 %v8516, %v8598
        %8600 = vmatprep.mubr.bf16.mxu0 %v6025
        %8601 = vmatmul.mubr.bf16.gmra.mxu0 %v6024
        %v8602 = vpop.f32.mrf.mxu0
        %v8603 = vadd.f32 %v8520, %v8602
        %v8604 = vpop.f32.mrf.mxu0
        %v8605 = vadd.f32 %v8522, %v8604
        %v8606 = vpop.f32.mrf.mxu0
        %v8607 = vadd.f32 %v8524, %v8606
        %v8608 = vpop.f32.mrf.mxu0
        %v8609 = vadd.f32 %v8526, %v8608
        %8610 = vmatprep.mubr.bf16.mxu0 %v6050
        %8611 = vmatmul.mubr.bf16.gmra.mxu0 %v6049
        %v8612 = vpop.f32.mrf.mxu0
        %v8613 = vadd.f32 %v8530, %v8612
        %v8614 = vpop.f32.mrf.mxu0
        %v8615 = vadd.f32 %v8532, %v8614
        %v8616 = vpop.f32.mrf.mxu0
        %v8617 = vadd.f32 %v8534, %v8616
        %v8618 = vpop.f32.mrf.mxu0
        %v8619 = vadd.f32 %v8536, %v8618
        %8620 = vmatprep.mubr.bf16.mxu0 %v6075
        %8621 = vmatmul.mubr.bf16.gmra.mxu0 %v6074
        %v8622 = vpop.f32.mrf.mxu0
        %v8623 = vadd.f32 %v8540, %v8622
        %v8624 = vpop.f32.mrf.mxu0
        %v8625 = vadd.f32 %v8542, %v8624
        %v8626 = vpop.f32.mrf.mxu0
        %v8627 = vadd.f32 %v8544, %v8626
        %v8628 = vpop.f32.mrf.mxu0
        %v8629 = vadd.f32 %v8546, %v8628
        %8630 = vdwg.mxu0
        %8631 = vmatprep.subr.bf16.mxu0 %v7591
        %8632 = vmatpush1.bf16.msra.mxu0 %v7590
        %8633 = vmatprep.subr.bf16.mxu0 %v7589
        %8634 = vmatpush1.bf16.msra.mxu0 %v7588
        %8635 = vmatprep.subr.bf16.mxu0 %v7587
        %8636 = vmatpush1.bf16.msra.mxu0 %v7586
        %8637 = vmatprep.subr.bf16.mxu0 %v7585
        %8638 = vmatpush1.bf16.msra.mxu0 %v7584
        %8639 = vmatprep.subr.bf16.mxu0 %v7583
        %8640 = vmatpush1.bf16.msra.mxu0 %v7582
        %8641 = vmatprep.subr.bf16.mxu0 %v7581
        %8642 = vmatpush1.bf16.msra.mxu0 %v7580
        %8643 = vmatprep.subr.bf16.mxu0 %v7579
        %8644 = vmatpush1.bf16.msra.mxu0 %v7578
        %8645 = vmatprep.subr.bf16.mxu0 %v7577
        %8646 = vmatpush1.bf16.msra.mxu0 %v7576
        %8647 = vmatprep.subr.bf16.mxu0 %v7607
        %8648 = vmatpush2.bf16.msra.mxu0 %v7606
        %8649 = vmatprep.subr.bf16.mxu0 %v7605
        %8650 = vmatpush2.bf16.msra.mxu0 %v7604
        %8651 = vmatprep.subr.bf16.mxu0 %v7603
        %8652 = vmatpush2.bf16.msra.mxu0 %v7602
        %8653 = vmatprep.subr.bf16.mxu0 %v7601
        %8654 = vmatpush2.bf16.msra.mxu0 %v7600
        %8655 = vmatprep.subr.bf16.mxu0 %v7599
        %8656 = vmatpush2.bf16.msra.mxu0 %v7598
        %8657 = vmatprep.subr.bf16.mxu0 %v7597
        %8658 = vmatpush2.bf16.msra.mxu0 %v7596
        %8659 = vmatprep.subr.bf16.mxu0 %v7595
        %8660 = vmatpush2.bf16.msra.mxu0 %v7594
        %8661 = vmatprep.subr.bf16.mxu0 %v7593
        %8662 = vmatpush2.bf16.msra.mxu0 %v7592
        %8663 = vmatprep.mubr.bf16.mxu0 %v5977
        %8664 = vmatmul.mubr.bf16.gmra.mxu0 %v5976
        %v8665 = vpop.f32.mrf.mxu0
        %v8666 = vadd.f32 %v8583, %v8665
        %v8667 = vpop.f32.mrf.mxu0
        %v8668 = vadd.f32 %v8585, %v8667
        %v8669 = vpop.f32.mrf.mxu0
        %v8670 = vadd.f32 %v8587, %v8669
        %v8671 = vpop.f32.mrf.mxu0
        %v8672 = vadd.f32 %v8589, %v8671
        %8673 = vmatprep.mubr.bf16.mxu0 %v6002
        %8674 = vmatmul.mubr.bf16.gmra.mxu0 %v6001
        %v8675 = vpop.f32.mrf.mxu0
        %v8676 = vadd.f32 %v8593, %v8675
        %v8677 = vpop.f32.mrf.mxu0
        %v8678 = vadd.f32 %v8595, %v8677
        %v8679 = vpop.f32.mrf.mxu0
        %v8680 = vadd.f32 %v8597, %v8679
        %v8681 = vpop.f32.mrf.mxu0
        %v8682 = vadd.f32 %v8599, %v8681
        %8683 = vmatprep.mubr.bf16.mxu0 %v6027
        %8684 = vmatmul.mubr.bf16.gmra.mxu0 %v6026
        %v8685 = vpop.f32.mrf.mxu0
        %v8686 = vadd.f32 %v8603, %v8685
        %v8687 = vpop.f32.mrf.mxu0
        %v8688 = vadd.f32 %v8605, %v8687
        %v8689 = vpop.f32.mrf.mxu0
        %v8690 = vadd.f32 %v8607, %v8689
        %v8691 = vpop.f32.mrf.mxu0
        %v8692 = vadd.f32 %v8609, %v8691
        %8693 = vmatprep.mubr.bf16.mxu0 %v6052
        %8694 = vmatmul.mubr.bf16.gmra.mxu0 %v6051
        %v8695 = vpop.f32.mrf.mxu0
        %v8696 = vadd.f32 %v8613, %v8695
        %v8697 = vpop.f32.mrf.mxu0
        %v8698 = vadd.f32 %v8615, %v8697
        %v8699 = vpop.f32.mrf.mxu0
        %v8700 = vadd.f32 %v8617, %v8699
        %v8701 = vpop.f32.mrf.mxu0
        %v8702 = vadd.f32 %v8619, %v8701
        %8703 = vmatprep.mubr.bf16.mxu0 %v6077
        %8704 = vmatmul.mubr.bf16.gmra.mxu0 %v6076
        %v8705 = vpop.f32.mrf.mxu0
        %v8706 = vadd.f32 %v8623, %v8705
        %v8707 = vpop.f32.mrf.mxu0
        %v8708 = vadd.f32 %v8625, %v8707
        %v8709 = vpop.f32.mrf.mxu0
        %v8710 = vadd.f32 %v8627, %v8709
        %v8711 = vpop.f32.mrf.mxu0
        %v8712 = vadd.f32 %v8629, %v8711
        %8713 = vdwg.mxu0
        %8714 = vmatprep.subr.bf16.mxu0 %v7623
        %8715 = vmatpush1.bf16.msra.mxu0 %v7622
        %8716 = vmatprep.subr.bf16.mxu0 %v7621
        %8717 = vmatpush1.bf16.msra.mxu0 %v7620
        %8718 = vmatprep.subr.bf16.mxu0 %v7619
        %8719 = vmatpush1.bf16.msra.mxu0 %v7618
        %8720 = vmatprep.subr.bf16.mxu0 %v7617
        %8721 = vmatpush1.bf16.msra.mxu0 %v7616
        %8722 = vmatprep.subr.bf16.mxu0 %v7615
        %8723 = vmatpush1.bf16.msra.mxu0 %v7614
        %8724 = vmatprep.subr.bf16.mxu0 %v7613
        %8725 = vmatpush1.bf16.msra.mxu0 %v7612
        %8726 = vmatprep.subr.bf16.mxu0 %v7611
        %8727 = vmatpush1.bf16.msra.mxu0 %v7610
        %8728 = vmatprep.subr.bf16.mxu0 %v7609
        %8729 = vmatpush1.bf16.msra.mxu0 %v7608
        %8730 = vmatprep.subr.bf16.mxu0 %v7639
        %8731 = vmatpush2.bf16.msra.mxu0 %v7638
        %8732 = vmatprep.subr.bf16.mxu0 %v7637
        %8733 = vmatpush2.bf16.msra.mxu0 %v7636
        %8734 = vmatprep.subr.bf16.mxu0 %v7635
        %8735 = vmatpush2.bf16.msra.mxu0 %v7634
        %8736 = vmatprep.subr.bf16.mxu0 %v7633
        %8737 = vmatpush2.bf16.msra.mxu0 %v7632
        %8738 = vmatprep.subr.bf16.mxu0 %v7631
        %8739 = vmatpush2.bf16.msra.mxu0 %v7630
        %8740 = vmatprep.subr.bf16.mxu0 %v7629
        %8741 = vmatpush2.bf16.msra.mxu0 %v7628
        %8742 = vmatprep.subr.bf16.mxu0 %v7627
        %8743 = vmatpush2.bf16.msra.mxu0 %v7626
        %8744 = vmatprep.subr.bf16.mxu0 %v7625
        %8745 = vmatpush2.bf16.msra.mxu0 %v7624
        %8746 = vmatprep.mubr.bf16.mxu0 %v5979
        %8747 = vmatmul.mubr.bf16.gmra.mxu0 %v5978
        %v8748 = vpop.f32.mrf.mxu0
        %v8749 = vadd.f32 %v8666, %v8748
        %v8750 = vpop.f32.mrf.mxu0
        %v8751 = vadd.f32 %v8668, %v8750
        %v8752 = vpop.f32.mrf.mxu0
        %v8753 = vadd.f32 %v8670, %v8752
        %v8754 = vpop.f32.mrf.mxu0
        %v8755 = vadd.f32 %v8672, %v8754
        %8756 = vmatprep.mubr.bf16.mxu0 %v6004
        %8757 = vmatmul.mubr.bf16.gmra.mxu0 %v6003
        %v8758 = vpop.f32.mrf.mxu0
        %v8759 = vadd.f32 %v8676, %v8758
        %v8760 = vpop.f32.mrf.mxu0
        %v8761 = vadd.f32 %v8678, %v8760
        %v8762 = vpop.f32.mrf.mxu0
        %v8763 = vadd.f32 %v8680, %v8762
        %v8764 = vpop.f32.mrf.mxu0
        %v8765 = vadd.f32 %v8682, %v8764
        %8766 = vmatprep.mubr.bf16.mxu0 %v6029
        %8767 = vmatmul.mubr.bf16.gmra.mxu0 %v6028
        %v8768 = vpop.f32.mrf.mxu0
        %v8769 = vadd.f32 %v8686, %v8768
        %v8770 = vpop.f32.mrf.mxu0
        %v8771 = vadd.f32 %v8688, %v8770
        %v8772 = vpop.f32.mrf.mxu0
        %v8773 = vadd.f32 %v8690, %v8772
        %v8774 = vpop.f32.mrf.mxu0
        %v8775 = vadd.f32 %v8692, %v8774
        %8776 = vmatprep.mubr.bf16.mxu0 %v6054
        %8777 = vmatmul.mubr.bf16.gmra.mxu0 %v6053
        %v8778 = vpop.f32.mrf.mxu0
        %v8779 = vadd.f32 %v8696, %v8778
        %v8780 = vpop.f32.mrf.mxu0
        %v8781 = vadd.f32 %v8698, %v8780
        %v8782 = vpop.f32.mrf.mxu0
        %v8783 = vadd.f32 %v8700, %v8782
        %v8784 = vpop.f32.mrf.mxu0
        %v8785 = vadd.f32 %v8702, %v8784
        %8786 = vmatprep.mubr.bf16.mxu0 %v6079
        %8787 = vmatmul.mubr.bf16.gmra.mxu0 %v6078
        %v8788 = vpop.f32.mrf.mxu0
        %v8789 = vadd.f32 %v8706, %v8788
        %v8790 = vpop.f32.mrf.mxu0
        %v8791 = vadd.f32 %v8708, %v8790
        %v8792 = vpop.f32.mrf.mxu0
        %v8793 = vadd.f32 %v8710, %v8792
        %v8794 = vpop.f32.mrf.mxu0
        %v8795 = vadd.f32 %v8712, %v8794
        %8796 = vdwg.mxu0
        %8797 = vmatprep.subr.bf16.mxu0 %v7655
        %8798 = vmatpush1.bf16.msra.mxu0 %v7654
        %8799 = vmatprep.subr.bf16.mxu0 %v7653
        %8800 = vmatpush1.bf16.msra.mxu0 %v7652
        %8801 = vmatprep.subr.bf16.mxu0 %v7651
        %8802 = vmatpush1.bf16.msra.mxu0 %v7650
        %8803 = vmatprep.subr.bf16.mxu0 %v7649
        %8804 = vmatpush1.bf16.msra.mxu0 %v7648
        %8805 = vmatprep.subr.bf16.mxu0 %v7647
        %8806 = vmatpush1.bf16.msra.mxu0 %v7646
        %8807 = vmatprep.subr.bf16.mxu0 %v7645
        %8808 = vmatpush1.bf16.msra.mxu0 %v7644
        %8809 = vmatprep.subr.bf16.mxu0 %v7643
        %8810 = vmatpush1.bf16.msra.mxu0 %v7642
        %8811 = vmatprep.subr.bf16.mxu0 %v7641
        %8812 = vmatpush1.bf16.msra.mxu0 %v7640
        %8813 = vmatprep.subr.bf16.mxu0 %v7671
        %8814 = vmatpush2.bf16.msra.mxu0 %v7670
        %8815 = vmatprep.subr.bf16.mxu0 %v7669
        %8816 = vmatpush2.bf16.msra.mxu0 %v7668
        %8817 = vmatprep.subr.bf16.mxu0 %v7667
        %8818 = vmatpush2.bf16.msra.mxu0 %v7666
        %8819 = vmatprep.subr.bf16.mxu0 %v7665
        %8820 = vmatpush2.bf16.msra.mxu0 %v7664
        %8821 = vmatprep.subr.bf16.mxu0 %v7663
        %8822 = vmatpush2.bf16.msra.mxu0 %v7662
        %8823 = vmatprep.subr.bf16.mxu0 %v7661
        %8824 = vmatpush2.bf16.msra.mxu0 %v7660
        %8825 = vmatprep.subr.bf16.mxu0 %v7659
        %8826 = vmatpush2.bf16.msra.mxu0 %v7658
        %8827 = vmatprep.subr.bf16.mxu0 %v7657
        %8828 = vmatpush2.bf16.msra.mxu0 %v7656
        %8829 = vmatprep.mubr.bf16.mxu0 %v5981
        %8830 = vmatmul.mubr.bf16.gmra.mxu0 %v5980
        %v8831 = vpop.f32.mrf.mxu0
        %v8832 = vadd.f32 %v8749, %v8831
        %v8833 = vpop.f32.mrf.mxu0
        %v8834 = vadd.f32 %v8751, %v8833
        %v8835 = vpop.f32.mrf.mxu0
        %v8836 = vadd.f32 %v8753, %v8835
        %v8837 = vpop.f32.mrf.mxu0
        %v8838 = vadd.f32 %v8755, %v8837
        %8839 = vmatprep.mubr.bf16.mxu0 %v6006
        %8840 = vmatmul.mubr.bf16.gmra.mxu0 %v6005
        %v8841 = vpop.f32.mrf.mxu0
        %v8842 = vadd.f32 %v8759, %v8841
        %v8843 = vpop.f32.mrf.mxu0
        %v8844 = vadd.f32 %v8761, %v8843
        %v8845 = vpop.f32.mrf.mxu0
        %v8846 = vadd.f32 %v8763, %v8845
        %v8847 = vpop.f32.mrf.mxu0
        %v8848 = vadd.f32 %v8765, %v8847
        %8849 = vmatprep.mubr.bf16.mxu0 %v6031
        %8850 = vmatmul.mubr.bf16.gmra.mxu0 %v6030
        %v8851 = vpop.f32.mrf.mxu0
        %v8852 = vadd.f32 %v8769, %v8851
        %v8853 = vpop.f32.mrf.mxu0
        %v8854 = vadd.f32 %v8771, %v8853
        %v8855 = vpop.f32.mrf.mxu0
        %v8856 = vadd.f32 %v8773, %v8855
        %v8857 = vpop.f32.mrf.mxu0
        %v8858 = vadd.f32 %v8775, %v8857
        %8859 = vmatprep.mubr.bf16.mxu0 %v6056
        %8860 = vmatmul.mubr.bf16.gmra.mxu0 %v6055
        %v8861 = vpop.f32.mrf.mxu0
        %v8862 = vadd.f32 %v8779, %v8861
        %v8863 = vpop.f32.mrf.mxu0
        %v8864 = vadd.f32 %v8781, %v8863
        %v8865 = vpop.f32.mrf.mxu0
        %v8866 = vadd.f32 %v8783, %v8865
        %v8867 = vpop.f32.mrf.mxu0
        %v8868 = vadd.f32 %v8785, %v8867
        %8869 = vmatprep.mubr.bf16.mxu0 %v6081
        %8870 = vmatmul.mubr.bf16.gmra.mxu0 %v6080
        %v8871 = vpop.f32.mrf.mxu0
        %v8872 = vadd.f32 %v8789, %v8871
        %v8873 = vpop.f32.mrf.mxu0
        %v8874 = vadd.f32 %v8791, %v8873
        %v8875 = vpop.f32.mrf.mxu0
        %v8876 = vadd.f32 %v8793, %v8875
        %v8877 = vpop.f32.mrf.mxu0
        %v8878 = vadd.f32 %v8795, %v8877
        %8879 = vdwg.mxu0
        %8880 = vmatprep.subr.bf16.mxu0 %v7687
        %8881 = vmatpush1.bf16.msra.mxu0 %v7686
        %8882 = vmatprep.subr.bf16.mxu0 %v7685
        %8883 = vmatpush1.bf16.msra.mxu0 %v7684
        %8884 = vmatprep.subr.bf16.mxu0 %v7683
        %8885 = vmatpush1.bf16.msra.mxu0 %v7682
        %8886 = vmatprep.subr.bf16.mxu0 %v7681
        %8887 = vmatpush1.bf16.msra.mxu0 %v7680
        %8888 = vmatprep.subr.bf16.mxu0 %v7679
        %8889 = vmatpush1.bf16.msra.mxu0 %v7678
        %8890 = vmatprep.subr.bf16.mxu0 %v7677
        %8891 = vmatpush1.bf16.msra.mxu0 %v7676
        %8892 = vmatprep.subr.bf16.mxu0 %v7675
        %8893 = vmatpush1.bf16.msra.mxu0 %v7674
        %8894 = vmatprep.subr.bf16.mxu0 %v7673
        %8895 = vmatpush1.bf16.msra.mxu0 %v7672
        %8896 = vmatprep.subr.bf16.mxu0 %v7703
        %8897 = vmatpush2.bf16.msra.mxu0 %v7702
        %8898 = vmatprep.subr.bf16.mxu0 %v7701
        %8899 = vmatpush2.bf16.msra.mxu0 %v7700
        %8900 = vmatprep.subr.bf16.mxu0 %v7699
        %8901 = vmatpush2.bf16.msra.mxu0 %v7698
        %8902 = vmatprep.subr.bf16.mxu0 %v7697
        %8903 = vmatpush2.bf16.msra.mxu0 %v7696
        %8904 = vmatprep.subr.bf16.mxu0 %v7695
        %8905 = vmatpush2.bf16.msra.mxu0 %v7694
        %8906 = vmatprep.subr.bf16.mxu0 %v7693
        %8907 = vmatpush2.bf16.msra.mxu0 %v7692
        %8908 = vmatprep.subr.bf16.mxu0 %v7691
        %8909 = vmatpush2.bf16.msra.mxu0 %v7690
        %8910 = vmatprep.subr.bf16.mxu0 %v7689
        %8911 = vmatpush2.bf16.msra.mxu0 %v7688
        %8912 = vmatprep.mubr.bf16.mxu0 %v5983
        %8913 = vmatmul.mubr.bf16.gmra.mxu0 %v5982
        %v8914 = vpop.f32.mrf.mxu0
        %v8915 = vadd.f32 %v8832, %v8914
        %v8916 = vpop.f32.mrf.mxu0
        %v8917 = vadd.f32 %v8834, %v8916
        %v8918 = vpop.f32.mrf.mxu0
        %v8919 = vadd.f32 %v8836, %v8918
        %v8920 = vpop.f32.mrf.mxu0
        %v8921 = vadd.f32 %v8838, %v8920
        %8922 = vmatprep.mubr.bf16.mxu0 %v6008
        %8923 = vmatmul.mubr.bf16.gmra.mxu0 %v6007
        %v8924 = vpop.f32.mrf.mxu0
        %v8925 = vadd.f32 %v8842, %v8924
        %v8926 = vpop.f32.mrf.mxu0
        %v8927 = vadd.f32 %v8844, %v8926
        %v8928 = vpop.f32.mrf.mxu0
        %v8929 = vadd.f32 %v8846, %v8928
        %v8930 = vpop.f32.mrf.mxu0
        %v8931 = vadd.f32 %v8848, %v8930
        %8932 = vmatprep.mubr.bf16.mxu0 %v6033
        %8933 = vmatmul.mubr.bf16.gmra.mxu0 %v6032
        %v8934 = vpop.f32.mrf.mxu0
        %v8935 = vadd.f32 %v8852, %v8934
        %v8936 = vpop.f32.mrf.mxu0
        %v8937 = vadd.f32 %v8854, %v8936
        %v8938 = vpop.f32.mrf.mxu0
        %v8939 = vadd.f32 %v8856, %v8938
        %v8940 = vpop.f32.mrf.mxu0
        %v8941 = vadd.f32 %v8858, %v8940
        %8942 = vmatprep.mubr.bf16.mxu0 %v6058
        %8943 = vmatmul.mubr.bf16.gmra.mxu0 %v6057
        %v8944 = vpop.f32.mrf.mxu0
        %v8945 = vadd.f32 %v8862, %v8944
        %v8946 = vpop.f32.mrf.mxu0
        %v8947 = vadd.f32 %v8864, %v8946
        %v8948 = vpop.f32.mrf.mxu0
        %v8949 = vadd.f32 %v8866, %v8948
        %v8950 = vpop.f32.mrf.mxu0
        %v8951 = vadd.f32 %v8868, %v8950
        %8952 = vmatprep.mubr.bf16.mxu0 %v6083
        %8953 = vmatmul.mubr.bf16.gmra.mxu0 %v6082
        %v8954 = vpop.f32.mrf.mxu0
        %v8955 = vadd.f32 %v8872, %v8954
        %v8956 = vpop.f32.mrf.mxu0
        %v8957 = vadd.f32 %v8874, %v8956
        %v8958 = vpop.f32.mrf.mxu0
        %v8959 = vadd.f32 %v8876, %v8958
        %v8960 = vpop.f32.mrf.mxu0
        %v8961 = vadd.f32 %v8878, %v8960
        %8962 = vdwg.mxu0
        %8963 = vmatprep.subr.bf16.mxu0 %v7719
        %8964 = vmatpush1.bf16.msra.mxu0 %v7718
        %8965 = vmatprep.subr.bf16.mxu0 %v7717
        %8966 = vmatpush1.bf16.msra.mxu0 %v7716
        %8967 = vmatprep.subr.bf16.mxu0 %v7715
        %8968 = vmatpush1.bf16.msra.mxu0 %v7714
        %8969 = vmatprep.subr.bf16.mxu0 %v7713
        %8970 = vmatpush1.bf16.msra.mxu0 %v7712
        %8971 = vmatprep.subr.bf16.mxu0 %v7711
        %8972 = vmatpush1.bf16.msra.mxu0 %v7710
        %8973 = vmatprep.subr.bf16.mxu0 %v7709
        %8974 = vmatpush1.bf16.msra.mxu0 %v7708
        %8975 = vmatprep.subr.bf16.mxu0 %v7707
        %8976 = vmatpush1.bf16.msra.mxu0 %v7706
        %8977 = vmatprep.subr.bf16.mxu0 %v7705
        %8978 = vmatpush1.bf16.msra.mxu0 %v7704
        %8979 = vmatprep.subr.bf16.mxu0 %v7735
        %8980 = vmatpush2.bf16.msra.mxu0 %v7734
        %8981 = vmatprep.subr.bf16.mxu0 %v7733
        %8982 = vmatpush2.bf16.msra.mxu0 %v7732
        %8983 = vmatprep.subr.bf16.mxu0 %v7731
        %8984 = vmatpush2.bf16.msra.mxu0 %v7730
        %8985 = vmatprep.subr.bf16.mxu0 %v7729
        %8986 = vmatpush2.bf16.msra.mxu0 %v7728
        %8987 = vmatprep.subr.bf16.mxu0 %v7727
        %8988 = vmatpush2.bf16.msra.mxu0 %v7726
        %8989 = vmatprep.subr.bf16.mxu0 %v7725
        %8990 = vmatpush2.bf16.msra.mxu0 %v7724
        %8991 = vmatprep.subr.bf16.mxu0 %v7723
        %8992 = vmatpush2.bf16.msra.mxu0 %v7722
        %8993 = vmatprep.subr.bf16.mxu0 %v7721
        %8994 = vmatpush2.bf16.msra.mxu0 %v7720
        %8995 = vmatprep.mubr.bf16.mxu0 %v5985
        %8996 = vmatmul.mubr.bf16.gmra.mxu0 %v5984
        %v8997 = vpop.f32.mrf.mxu0
        %v8998 = vadd.f32 %v8915, %v8997
        %v8999 = vpop.f32.mrf.mxu0
        %v9000 = vadd.f32 %v8917, %v8999
        %v9001 = vpop.f32.mrf.mxu0
        %v9002 = vadd.f32 %v8919, %v9001
        %v9003 = vpop.f32.mrf.mxu0
        %v9004 = vadd.f32 %v8921, %v9003
        %9005 = vmatprep.mubr.bf16.mxu0 %v6010
        %9006 = vmatmul.mubr.bf16.gmra.mxu0 %v6009
        %v9007 = vpop.f32.mrf.mxu0
        %v9008 = vadd.f32 %v8925, %v9007
        %v9009 = vpop.f32.mrf.mxu0
        %v9010 = vadd.f32 %v8927, %v9009
        %v9011 = vpop.f32.mrf.mxu0
        %v9012 = vadd.f32 %v8929, %v9011
        %v9013 = vpop.f32.mrf.mxu0
        %v9014 = vadd.f32 %v8931, %v9013
        %9015 = vmatprep.mubr.bf16.mxu0 %v6035
        %9016 = vmatmul.mubr.bf16.gmra.mxu0 %v6034
        %v9017 = vpop.f32.mrf.mxu0
        %v9018 = vadd.f32 %v8935, %v9017
        %v9019 = vpop.f32.mrf.mxu0
        %v9020 = vadd.f32 %v8937, %v9019
        %v9021 = vpop.f32.mrf.mxu0
        %v9022 = vadd.f32 %v8939, %v9021
        %v9023 = vpop.f32.mrf.mxu0
        %v9024 = vadd.f32 %v8941, %v9023
        %9025 = vmatprep.mubr.bf16.mxu0 %v6060
        %9026 = vmatmul.mubr.bf16.gmra.mxu0 %v6059
        %v9027 = vpop.f32.mrf.mxu0
        %v9028 = vadd.f32 %v8945, %v9027
        %v9029 = vpop.f32.mrf.mxu0
        %v9030 = vadd.f32 %v8947, %v9029
        %v9031 = vpop.f32.mrf.mxu0
        %v9032 = vadd.f32 %v8949, %v9031
        %v9033 = vpop.f32.mrf.mxu0
        %v9034 = vadd.f32 %v8951, %v9033
        %9035 = vmatprep.mubr.bf16.mxu0 %v6085
        %9036 = vmatmul.mubr.bf16.gmra.mxu0 %v6084
        %v9037 = vpop.f32.mrf.mxu0
        %v9038 = vadd.f32 %v8955, %v9037
        %v9039 = vpop.f32.mrf.mxu0
        %v9040 = vadd.f32 %v8957, %v9039
        %v9041 = vpop.f32.mrf.mxu0
        %v9042 = vadd.f32 %v8959, %v9041
        %v9043 = vpop.f32.mrf.mxu0
        %v9044 = vadd.f32 %v8961, %v9043
        %9045 = vdwg.mxu0
        %9046 = vmatprep.subr.bf16.mxu0 %v7751
        %9047 = vmatpush1.bf16.msra.mxu0 %v7750
        %9048 = vmatprep.subr.bf16.mxu0 %v7749
        %9049 = vmatpush1.bf16.msra.mxu0 %v7748
        %9050 = vmatprep.subr.bf16.mxu0 %v7747
        %9051 = vmatpush1.bf16.msra.mxu0 %v7746
        %9052 = vmatprep.subr.bf16.mxu0 %v7745
        %9053 = vmatpush1.bf16.msra.mxu0 %v7744
        %9054 = vmatprep.subr.bf16.mxu0 %v7743
        %9055 = vmatpush1.bf16.msra.mxu0 %v7742
        %9056 = vmatprep.subr.bf16.mxu0 %v7741
        %9057 = vmatpush1.bf16.msra.mxu0 %v7740
        %9058 = vmatprep.subr.bf16.mxu0 %v7739
        %9059 = vmatpush1.bf16.msra.mxu0 %v7738
        %9060 = vmatprep.subr.bf16.mxu0 %v7737
        %9061 = vmatpush1.bf16.msra.mxu0 %v7736
        %9062 = vmatprep.subr.bf16.mxu0 %v7767
        %9063 = vmatpush2.bf16.msra.mxu0 %v7766
        %9064 = vmatprep.subr.bf16.mxu0 %v7765
        %9065 = vmatpush2.bf16.msra.mxu0 %v7764
        %9066 = vmatprep.subr.bf16.mxu0 %v7763
        %9067 = vmatpush2.bf16.msra.mxu0 %v7762
        %9068 = vmatprep.subr.bf16.mxu0 %v7761
        %9069 = vmatpush2.bf16.msra.mxu0 %v7760
        %9070 = vmatprep.subr.bf16.mxu0 %v7759
        %9071 = vmatpush2.bf16.msra.mxu0 %v7758
        %9072 = vmatprep.subr.bf16.mxu0 %v7757
        %9073 = vmatpush2.bf16.msra.mxu0 %v7756
        %9074 = vmatprep.subr.bf16.mxu0 %v7755
        %9075 = vmatpush2.bf16.msra.mxu0 %v7754
        %9076 = vmatprep.subr.bf16.mxu0 %v7753
        %9077 = vmatpush2.bf16.msra.mxu0 %v7752
        %9078 = vmatprep.mubr.bf16.mxu0 %v5987
        %9079 = vmatmul.mubr.bf16.gmra.mxu0 %v5986
        %v9080 = vpop.f32.mrf.mxu0
        %v9081 = vadd.f32 %v8998, %v9080
        %v9082 = vpop.f32.mrf.mxu0
        %v9083 = vadd.f32 %v9000, %v9082
        %v9084 = vpop.f32.mrf.mxu0
        %v9085 = vadd.f32 %v9002, %v9084
        %v9086 = vpop.f32.mrf.mxu0
        %v9087 = vadd.f32 %v9004, %v9086
        %9088 = vmatprep.mubr.bf16.mxu0 %v6012
        %9089 = vmatmul.mubr.bf16.gmra.mxu0 %v6011
        %v9090 = vpop.f32.mrf.mxu0
        %v9091 = vadd.f32 %v9008, %v9090
        %v9092 = vpop.f32.mrf.mxu0
        %v9093 = vadd.f32 %v9010, %v9092
        %v9094 = vpop.f32.mrf.mxu0
        %v9095 = vadd.f32 %v9012, %v9094
        %v9096 = vpop.f32.mrf.mxu0
        %v9097 = vadd.f32 %v9014, %v9096
        %9098 = vmatprep.mubr.bf16.mxu0 %v6037
        %9099 = vmatmul.mubr.bf16.gmra.mxu0 %v6036
        %v9100 = vpop.f32.mrf.mxu0
        %v9101 = vadd.f32 %v9018, %v9100
        %v9102 = vpop.f32.mrf.mxu0
        %v9103 = vadd.f32 %v9020, %v9102
        %v9104 = vpop.f32.mrf.mxu0
        %v9105 = vadd.f32 %v9022, %v9104
        %v9106 = vpop.f32.mrf.mxu0
        %v9107 = vadd.f32 %v9024, %v9106
        %9108 = vmatprep.mubr.bf16.mxu0 %v6062
        %9109 = vmatmul.mubr.bf16.gmra.mxu0 %v6061
        %v9110 = vpop.f32.mrf.mxu0
        %v9111 = vadd.f32 %v9028, %v9110
        %v9112 = vpop.f32.mrf.mxu0
        %v9113 = vadd.f32 %v9030, %v9112
        %v9114 = vpop.f32.mrf.mxu0
        %v9115 = vadd.f32 %v9032, %v9114
        %v9116 = vpop.f32.mrf.mxu0
        %v9117 = vadd.f32 %v9034, %v9116
        %9118 = vmatprep.mubr.bf16.mxu0 %v6087
        %9119 = vmatmul.mubr.bf16.gmra.mxu0 %v6086
        %v9120 = vpop.f32.mrf.mxu0
        %v9121 = vadd.f32 %v9038, %v9120
        %v9122 = vpop.f32.mrf.mxu0
        %v9123 = vadd.f32 %v9040, %v9122
        %v9124 = vpop.f32.mrf.mxu0
        %v9125 = vadd.f32 %v9042, %v9124
        %v9126 = vpop.f32.mrf.mxu0
        %v9127 = vadd.f32 %v9044, %v9126
        %9128 = vdwg.mxu0
        %9129 = vmatprep.subr.bf16.mxu0 %v7783
        %9130 = vmatpush1.bf16.msra.mxu0 %v7782
        %9131 = vmatprep.subr.bf16.mxu0 %v7781
        %9132 = vmatpush1.bf16.msra.mxu0 %v7780
        %9133 = vmatprep.subr.bf16.mxu0 %v7779
        %9134 = vmatpush1.bf16.msra.mxu0 %v7778
        %9135 = vmatprep.subr.bf16.mxu0 %v7777
        %9136 = vmatpush1.bf16.msra.mxu0 %v7776
        %9137 = vmatprep.subr.bf16.mxu0 %v7775
        %9138 = vmatpush1.bf16.msra.mxu0 %v7774
        %9139 = vmatprep.subr.bf16.mxu0 %v7773
        %9140 = vmatpush1.bf16.msra.mxu0 %v7772
        %9141 = vmatprep.subr.bf16.mxu0 %v7771
        %9142 = vmatpush1.bf16.msra.mxu0 %v7770
        %9143 = vmatprep.subr.bf16.mxu0 %v7769
        %9144 = vmatpush1.bf16.msra.mxu0 %v7768
        %9145 = vmatprep.subr.bf16.mxu0 %v7799
        %9146 = vmatpush2.bf16.msra.mxu0 %v7798
        %9147 = vmatprep.subr.bf16.mxu0 %v7797
        %9148 = vmatpush2.bf16.msra.mxu0 %v7796
        %9149 = vmatprep.subr.bf16.mxu0 %v7795
        %9150 = vmatpush2.bf16.msra.mxu0 %v7794
        %9151 = vmatprep.subr.bf16.mxu0 %v7793
        %9152 = vmatpush2.bf16.msra.mxu0 %v7792
        %9153 = vmatprep.subr.bf16.mxu0 %v7791
        %9154 = vmatpush2.bf16.msra.mxu0 %v7790
        %9155 = vmatprep.subr.bf16.mxu0 %v7789
        %9156 = vmatpush2.bf16.msra.mxu0 %v7788
        %9157 = vmatprep.subr.bf16.mxu0 %v7787
        %9158 = vmatpush2.bf16.msra.mxu0 %v7786
        %9159 = vmatprep.subr.bf16.mxu0 %v7785
        %9160 = vmatpush2.bf16.msra.mxu0 %v7784
        %9161 = vmatprep.mubr.bf16.mxu0 %v5989
        %9162 = vmatmul.mubr.bf16.gmra.mxu0 %v5988
        %v9163 = vpop.f32.mrf.mxu0
        %v9164 = vadd.f32 %v9081, %v9163
        %v9165 = vpop.f32.mrf.mxu0
        %v9166 = vadd.f32 %v9083, %v9165
        %v9167 = vpop.f32.mrf.mxu0
        %v9168 = vadd.f32 %v9085, %v9167
        %v9169 = vpop.f32.mrf.mxu0
        %v9170 = vadd.f32 %v9087, %v9169
        %9171 = vmatprep.mubr.bf16.mxu0 %v6014
        %9172 = vmatmul.mubr.bf16.gmra.mxu0 %v6013
        %v9173 = vpop.f32.mrf.mxu0
        %v9174 = vadd.f32 %v9091, %v9173
        %v9175 = vpop.f32.mrf.mxu0
        %v9176 = vadd.f32 %v9093, %v9175
        %v9177 = vpop.f32.mrf.mxu0
        %v9178 = vadd.f32 %v9095, %v9177
        %v9179 = vpop.f32.mrf.mxu0
        %v9180 = vadd.f32 %v9097, %v9179
        %9181 = vmatprep.mubr.bf16.mxu0 %v6039
        %9182 = vmatmul.mubr.bf16.gmra.mxu0 %v6038
        %v9183 = vpop.f32.mrf.mxu0
        %v9184 = vadd.f32 %v9101, %v9183
        %v9185 = vpop.f32.mrf.mxu0
        %v9186 = vadd.f32 %v9103, %v9185
        %v9187 = vpop.f32.mrf.mxu0
        %v9188 = vadd.f32 %v9105, %v9187
        %v9189 = vpop.f32.mrf.mxu0
        %v9190 = vadd.f32 %v9107, %v9189
        %9191 = vmatprep.mubr.bf16.mxu0 %v6064
        %9192 = vmatmul.mubr.bf16.gmra.mxu0 %v6063
        %v9193 = vpop.f32.mrf.mxu0
        %v9194 = vadd.f32 %v9111, %v9193
        %v9195 = vpop.f32.mrf.mxu0
        %v9196 = vadd.f32 %v9113, %v9195
        %v9197 = vpop.f32.mrf.mxu0
        %v9198 = vadd.f32 %v9115, %v9197
        %v9199 = vpop.f32.mrf.mxu0
        %v9200 = vadd.f32 %v9117, %v9199
        %9201 = vmatprep.mubr.bf16.mxu0 %v6089
        %9202 = vmatmul.mubr.bf16.gmra.mxu0 %v6088
        %v9203 = vpop.f32.mrf.mxu0
        %v9204 = vadd.f32 %v9121, %v9203
        %v9205 = vpop.f32.mrf.mxu0
        %v9206 = vadd.f32 %v9123, %v9205
        %v9207 = vpop.f32.mrf.mxu0
        %v9208 = vadd.f32 %v9125, %v9207
        %v9209 = vpop.f32.mrf.mxu0
        %v9210 = vadd.f32 %v9127, %v9209
        %9211 = vdwg.mxu0
        %9212 = vmatprep.subr.bf16.mxu0 %v7815
        %9213 = vmatpush1.bf16.msra.mxu0 %v7814
        %9214 = vmatprep.subr.bf16.mxu0 %v7813
        %9215 = vmatpush1.bf16.msra.mxu0 %v7812
        %9216 = vmatprep.subr.bf16.mxu0 %v7811
        %9217 = vmatpush1.bf16.msra.mxu0 %v7810
        %9218 = vmatprep.subr.bf16.mxu0 %v7809
        %9219 = vmatpush1.bf16.msra.mxu0 %v7808
        %9220 = vmatprep.subr.bf16.mxu0 %v7807
        %9221 = vmatpush1.bf16.msra.mxu0 %v7806
        %9222 = vmatprep.subr.bf16.mxu0 %v7805
        %9223 = vmatpush1.bf16.msra.mxu0 %v7804
        %9224 = vmatprep.subr.bf16.mxu0 %v7803
        %9225 = vmatpush1.bf16.msra.mxu0 %v7802
        %9226 = vmatprep.subr.bf16.mxu0 %v7801
        %9227 = vmatpush1.bf16.msra.mxu0 %v7800
        %9228 = vmatprep.subr.bf16.mxu0 0
        %9229 = vmatpush2.bf16.msra.mxu0 0
        %9230 = vmatprep.subr.bf16.mxu0 0
        %9231 = vmatpush2.bf16.msra.mxu0 0
        %9232 = vmatprep.subr.bf16.mxu0 0
        %9233 = vmatpush2.bf16.msra.mxu0 0
        %9234 = vmatprep.subr.bf16.mxu0 0
        %9235 = vmatpush2.bf16.msra.mxu0 0
        %9236 = vmatprep.subr.bf16.mxu0 0
        %9237 = vmatpush2.bf16.msra.mxu0 0
        %9238 = vmatprep.subr.bf16.mxu0 0
        %9239 = vmatpush2.bf16.msra.mxu0 0
        %9240 = vmatprep.subr.bf16.mxu0 0
        %9241 = vmatpush2.bf16.msra.mxu0 0
        %9242 = vmatprep.subr.bf16.mxu0 0
        %9243 = vmatpush2.bf16.msra.mxu0 0
        %9244 = vmatprep.mubr.bf16.mxu0 0
        %9245 = vmatmul.mubr.bf16.gmra.mxu0 %v5990
        %v9246 = vpop.f32.mrf.mxu0
        %v9247 = vadd.f32 %v9164, %v9246
        %v9248 = vpop.f32.mrf.mxu0
        %v9249 = vadd.f32 %v9166, %v9248
        %v9250 = vpop.f32.mrf.mxu0
        %v9251 = vadd.f32 %v9168, %v9250
        %v9252 = vpop.f32.mrf.mxu0
        %v9253 = vadd.f32 %v9170, %v9252
        %9254 = vmatprep.mubr.bf16.mxu0 0
        %9255 = vmatmul.mubr.bf16.gmra.mxu0 %v6015
        %v9256 = vpop.f32.mrf.mxu0
        %v9257 = vadd.f32 %v9174, %v9256
        %v9258 = vpop.f32.mrf.mxu0
        %v9259 = vadd.f32 %v9176, %v9258
        %v9260 = vpop.f32.mrf.mxu0
        %v9261 = vadd.f32 %v9178, %v9260
        %v9262 = vpop.f32.mrf.mxu0
        %v9263 = vadd.f32 %v9180, %v9262
        %9264 = vmatprep.mubr.bf16.mxu0 0
        %9265 = vmatmul.mubr.bf16.gmra.mxu0 %v6040
        %v9266 = vpop.f32.mrf.mxu0
        %v9267 = vadd.f32 %v9184, %v9266
        %v9268 = vpop.f32.mrf.mxu0
        %v9269 = vadd.f32 %v9186, %v9268
        %v9270 = vpop.f32.mrf.mxu0
        %v9271 = vadd.f32 %v9188, %v9270
        %v9272 = vpop.f32.mrf.mxu0
        %v9273 = vadd.f32 %v9190, %v9272
        %9274 = vmatprep.mubr.bf16.mxu0 0
        %9275 = vmatmul.mubr.bf16.gmra.mxu0 %v6065
        %v9276 = vpop.f32.mrf.mxu0
        %v9277 = vadd.f32 %v9194, %v9276
        %v9278 = vpop.f32.mrf.mxu0
        %v9279 = vadd.f32 %v9196, %v9278
        %v9280 = vpop.f32.mrf.mxu0
        %v9281 = vadd.f32 %v9198, %v9280
        %v9282 = vpop.f32.mrf.mxu0
        %v9283 = vadd.f32 %v9200, %v9282
        %9284 = vmatprep.mubr.bf16.mxu0 0
        %9285 = vmatmul.mubr.bf16.gmra.mxu0 %v6090
        %v9286 = vpop.f32.mrf.mxu0
        %v9287 = vadd.f32 %v9204, %v9286
        %v9288 = vpop.f32.mrf.mxu0
        %v9289 = vadd.f32 %v9206, %v9288
        %v9290 = vpop.f32.mrf.mxu0
        %v9291 = vadd.f32 %v9208, %v9290
        %v9292 = vpop.f32.mrf.mxu0
        %v9293 = vadd.f32 %v9210, %v9292
        %9294 = vdwg.mxu0
        %v9295 = vmax.f32 %v9247, 0.0
        %v9296 = vmax.f32 %v9249, 0.0
        %v9297 = vmax.f32 %v9251, 0.0
        %v9298 = vmax.f32 %v9253, 0.0
        %v9299 = vmax.f32 %v9257, 0.0
        %v9300 = vmax.f32 %v9259, 0.0
        %v9301 = vmax.f32 %v9261, 0.0
        %v9302 = vmax.f32 %v9263, 0.0
        %v9303 = vmax.f32 %v9267, 0.0
        %v9304 = vmax.f32 %v9269, 0.0
        %v9305 = vmax.f32 %v9271, 0.0
        %v9306 = vmax.f32 %v9273, 0.0
        %v9307 = vmax.f32 %v9277, 0.0
        %v9308 = vmax.f32 %v9279, 0.0
        %v9309 = vmax.f32 %v9281, 0.0
        %v9310 = vmax.f32 %v9283, 0.0
        %v9311 = vmax.f32 %v9287, 0.0
        %v9312 = vmax.f32 %v9289, 0.0
        %v9313 = vmax.f32 %v9291, 0.0
        %v9314 = vmax.f32 %v9293, 0.0
        %vm9319 = vcmask 1044480
        %v9320 = vrot.slane %v9297, 3
        %v9321 = vrot.slane %v9299, 3
        %v9322 = vsel %vm9319, %v9320, %v9321
        %v9323 = vrot.slane %v9298, 3
        %v9324 = vrot.slane %v9300, 3
        %v9325 = vsel %vm9319, %v9323, %v9324
        %v9328 = vmax.f32 %v9295, %v9322
        %v9329 = vmax.f32 %v9296, %v9325
        %vm9332 = vcmask 1041408
        %v9333 = vrot.slane %v9299, 6
        %v9334 = vrot.slane %v9301, 6
        %v9335 = vsel %vm9332, %v9333, %v9334
        %v9336 = vrot.slane %v9300, 6
        %v9337 = vrot.slane %v9302, 6
        %v9338 = vsel %vm9332, %v9336, %v9337
        %v9341 = vmax.f32 %v9328, %v9335
        %v9342 = vmax.f32 %v9329, %v9338
        %v9345 = vrot.slane %v9303, 1
        %v9346 = vrot.slane %v9304, 1
        %v9349 = vmax.f32 %v9341, %v9345
        %v9350 = vmax.f32 %v9342, %v9346
        %vm9355 = vcmask 1043456
        %v9356 = vrot.slane %v9305, 4
        %v9357 = vrot.slane %v9307, 4
        %v9358 = vsel %vm9355, %v9356, %v9357
        %v9359 = vrot.slane %v9306, 4
        %v9360 = vrot.slane %v9308, 4
        %v9361 = vsel %vm9355, %v9359, %v9360
        %v9364 = vmax.f32 %v9349, %v9358
        %v9365 = vmax.f32 %v9350, %v9361
        %vm9368 = vcmask 1040384
        %v9369 = vrot.slane %v9307, 7
        %v9370 = vrot.slane %v9309, 7
        %v9371 = vsel %vm9368, %v9369, %v9370
        %v9372 = vrot.slane %v9308, 7
        %v9373 = vrot.slane %v9310, 7
        %v9374 = vsel %vm9368, %v9372, %v9373
        %v9377 = vmax.f32 %v9364, %v9371
        %v9378 = vmax.f32 %v9365, %v9374
        %vm9383 = vcmask 1045504
        %v9384 = vrot.slane %v9311, 2
        %v9385 = vrot.slane %v9313, 2
        %v9386 = vsel %vm9383, %v9384, %v9385
        %v9387 = vrot.slane %v9312, 2
        %v9388 = vrot.slane %v9314, 2
        %v9389 = vsel %vm9383, %v9387, %v9388
        %v9392 = vmax.f32 %v9377, %v9386
        %v9393 = vmax.f32 %v9378, %v9389
        %vm9394 = vcmask 1046528
        %v9395 = vsel %vm9394, %v9392, -inf
        %v9396 = vrot.slane %v9395, 4
        %v9397 = vmax.f32 %v9395, %v9396
        %v9398 = vrot.slane %v9397, 2
        %v9399 = vmax.f32 %v9397, %v9398
        %v9400 = vrot.slane %v9399, 1
        %v9401 = vmax.f32 %v9399, %v9400
        %v9402 = vsel %vm9394, %v9393, -inf
        %v9403 = vrot.slane %v9402, 4
        %v9404 = vmax.f32 %v9402, %v9403
        %v9405 = vrot.slane %v9404, 2
        %v9406 = vmax.f32 %v9404, %v9405
        %v9407 = vrot.slane %v9406, 1
        %v9408 = vmax.f32 %v9406, %v9407
        %v9411 = vcombine.low %v9401, %v9408
        %v9413 = vunpack.c.l.s4 1966171168
        %v9414 = vunpack.c.0.s8 %v9413
        %v9415 = vlaneseq
        %v9416 = vshrl.u32 %v9415, 7
        %v9417 = vsub.s32 %v9414, %v9416
        %v9418 = vrot.slane %v9411, %v9417
        %v9420 = vunpack.c.l.s4 1966171168
        %v9421 = vunpack.c.0.s8 %v9420
        %v9422 = vlaneseq
        %v9423 = vshrl.u32 %v9422, 7
        %v9424 = vsub.s32 %v9421, %v9423
        %v9425 = vrot.slane %v9418, %v9424
        %v9427 = vlaneseq
        %vm9428 = vcmp.ge.s32.totalorder %v9427, 0
        %vm9429 = vcmp.lt.s32.totalorder %v9427, 256
        %vm9430 = vmand %vm9428, %vm9429
        %9431 = vst.msk [vmem:[#allocation6] sm:$0x3] %vm9430, %v9425
        %v9432 = vld [vmem:[#allocation6] sm:$0x3]
        %v9433 = vld [vmem:[%s5] sm:$0xff]
        %v9434 = vld [vmem:[%s5 + $0x8] sm:$0xff]
        %v9435 = vld [vmem:[%s5 + $0x10] sm:$0xff]
        %v9436 = vld [vmem:[%s5 + $0x18] sm:$0xff]
        %v9437 = vld [vmem:[%s5 + $0x20] sm:$0xff]
        %v9438 = vld [vmem:[%s5 + $0x28] sm:$0xff]
        %v9439 = vld [vmem:[%s5 + $0x30] sm:$0xff]
        %v9440 = vld [vmem:[%s5 + $0x38] sm:$0xff]
        %v9441 = vld [vmem:[%s5 + $0x40] sm:$0xff]
        %v9442 = vld [vmem:[%s5 + $0x48] sm:$0xff]
        %v9443 = vld [vmem:[%s5 + $0x50] sm:$0xff]
        %v9444 = vld [vmem:[%s5 + $0x58] sm:$0xff]
        %v9445 = vld [vmem:[%s5 + $0x60] sm:$0xff]
        %v9446 = vld [vmem:[%s5 + $0x68] sm:$0xff]
        %v9447 = vld [vmem:[%s5 + $0x70] sm:$0xff]
        %v9448 = vld [vmem:[%s5 + $0x78] sm:$0xff]
        %v9449 = vld [vmem:[%s5 + $0x80] sm:$0xff]
        %v9450 = vld [vmem:[%s5 + $0x88] sm:$0xff]
        %v9451 = vld [vmem:[%s5 + $0x90] sm:$0xff]
        %v9452 = vld [vmem:[%s5 + $0x98] sm:$0xff]
        %v9453 = vld [vmem:[%s5 + $0xa0] sm:$0xff]
        %v9454 = vld [vmem:[%s5 + $0xa8] sm:$0xff]
        %v9455 = vld [vmem:[%s5 + $0xb0] sm:$0xff]
        %v9456 = vld [vmem:[%s5 + $0xb8] sm:$0xff]
        %v9457 = vld [vmem:[%s5 + $0xc0] sm:$0xff]
        %v9458 = vld [vmem:[%s5 + $0xc8] sm:$0xff]
        %v9459 = vld [vmem:[%s5 + $0xd0] sm:$0xff]
        %v9460 = vld [vmem:[%s5 + $0xd8] sm:$0xff]
        %v9461 = vld [vmem:[%s5 + $0xe0] sm:$0xff]
        %v9462 = vld [vmem:[%s5 + $0xe8] sm:$0xff]
        %v9463 = vld [vmem:[%s5 + $0xf0] sm:$0xff]
        %v9464 = vld [vmem:[%s5 + $0xf8] sm:$0xff]
        %v9465 = vld [vmem:[%s6] sm:$0x1]
        %v9467 = vlaneseq
        %v9468 = vshrl.u32 %v9467, 7
        %v9469 = vsub.s32 0, %v9468
        %v9470 = vrot.slane %v9432, %v9469
        %v9471 = vlaneseq
        %v9472 = vshrl.u32 %v9471, 7
        %v9473 = vsub.s32 1, %v9472
        %v9474 = vrot.slane %v9432, %v9473
        %9477 = vmatprep.subr.mxu0 0.0
        %9478 = vmatpush1.msra.mxu0 %v9448
        %9479 = vmatprep.subr.mxu0 0.0
        %9480 = vmatpush1.msra.mxu0 %v9447
        %9481 = vmatprep.subr.mxu0 0.0
        %9482 = vmatpush1.msra.mxu0 %v9446
        %9483 = vmatprep.subr.mxu0 0.0
        %9484 = vmatpush1.msra.mxu0 %v9445
        %9485 = vmatprep.subr.mxu0 0.0
        %9486 = vmatpush1.msra.mxu0 %v9444
        %9487 = vmatprep.subr.mxu0 0.0
        %9488 = vmatpush1.msra.mxu0 %v9443
        %9489 = vmatprep.subr.mxu0 0.0
        %9490 = vmatpush1.msra.mxu0 %v9442
        %9491 = vmatprep.subr.mxu0 0.0
        %9492 = vmatpush1.msra.mxu0 %v9441
        %9493 = vmatprep.subr.mxu0 0.0
        %9494 = vmatpush1.msra.mxu0 %v9440
        %9495 = vmatprep.subr.mxu0 0.0
        %9496 = vmatpush1.msra.mxu0 %v9439
        %9497 = vmatprep.subr.mxu0 0.0
        %9498 = vmatpush1.msra.mxu0 %v9438
        %9499 = vmatprep.subr.mxu0 0.0
        %9500 = vmatpush1.msra.mxu0 %v9437
        %9501 = vmatprep.subr.mxu0 0.0
        %9502 = vmatpush1.msra.mxu0 %v9436
        %9503 = vmatprep.subr.mxu0 0.0
        %9504 = vmatpush1.msra.mxu0 %v9435
        %9505 = vmatprep.subr.mxu0 0.0
        %9506 = vmatpush1.msra.mxu0 %v9434
        %9507 = vmatprep.subr.mxu0 0.0
        %9508 = vmatpush1.msra.mxu0 %v9433
        %9509 = vmatprep.subr.mxu0 0.0
        %9510 = vmatpush2.msra.mxu0 %v9464
        %9511 = vmatprep.subr.mxu0 0.0
        %9512 = vmatpush2.msra.mxu0 %v9463
        %9513 = vmatprep.subr.mxu0 0.0
        %9514 = vmatpush2.msra.mxu0 %v9462
        %9515 = vmatprep.subr.mxu0 0.0
        %9516 = vmatpush2.msra.mxu0 %v9461
        %9517 = vmatprep.subr.mxu0 0.0
        %9518 = vmatpush2.msra.mxu0 %v9460
        %9519 = vmatprep.subr.mxu0 0.0
        %9520 = vmatpush2.msra.mxu0 %v9459
        %9521 = vmatprep.subr.mxu0 0.0
        %9522 = vmatpush2.msra.mxu0 %v9458
        %9523 = vmatprep.subr.mxu0 0.0
        %9524 = vmatpush2.msra.mxu0 %v9457
        %9525 = vmatprep.subr.mxu0 0.0
        %9526 = vmatpush2.msra.mxu0 %v9456
        %9527 = vmatprep.subr.mxu0 0.0
        %9528 = vmatpush2.msra.mxu0 %v9455
        %9529 = vmatprep.subr.mxu0 0.0
        %9530 = vmatpush2.msra.mxu0 %v9454
        %9531 = vmatprep.subr.mxu0 0.0
        %9532 = vmatpush2.msra.mxu0 %v9453
        %9533 = vmatprep.subr.mxu0 0.0
        %9534 = vmatpush2.msra.mxu0 %v9452
        %9535 = vmatprep.subr.mxu0 0.0
        %9536 = vmatpush2.msra.mxu0 %v9451
        %9537 = vmatprep.subr.mxu0 0.0
        %9538 = vmatpush2.msra.mxu0 %v9450
        %9539 = vmatprep.subr.mxu0 0.0
        %9540 = vmatpush2.msra.mxu0 %v9449
        %9541 = vmatprep.mubr.f32.mxu0 %v9474
        %9542 = vmatmul.mubr.f32.gmra.mxu0 %v9470
        %v9543 = vpop.f32.mrf.mxu0
        %v9544 = vadd.f32 %v9465, %v9543
        %v9545 = vpop.f32.mrf.mxu0
        %9546 = vdwg.mxu0
        %9547 = vst [vmem:[%s270] sm:$0x1] %v9544
        %s9548 = sand.u32 %s181, 1
        %s9549 = scalar_lea.sflag [#allocation8], %s9548
        %s9550 = sand.u32 %s181, 1
        %s9551 = scalar_lea.vmem [#allocation7], %s9550
        // Predicated region
        $region49: #{model_forward.1} parent=47 // pred_check
          %p9552 = pneg %p191
        $region50: #{model_forward.1} parent=47 // pred_check_branch
          %9554 = sbr.rel (%p9552) target = $region52
        $region51: #{model_forward.1} parent=47 // pred_region
          %s9556 = ssub.s32 16, 16
          %9557 = vsyncadd %s9549, %s9556
          %s9558 = smul.addr %s21, 16
          %s9559 = scalar_lea.hbm %s7, %s9558
          %s9561 = sshll.u32 %s9551, 4
          %s9562 = int_to_ptr.vmem [resolvable:$true] %s9561
          %9564 = dma.vmem_to_hbm [thread:$0]  %s9562, 16, %s9559, %s9549
        $region52: #{model_forward.1} parent=47 // pred_fallthru
          _
      $region48: #{model_forward.1} parent=5 // pred_fallthru
        _
      %p9565 = scmp.le.s32.totalorder 2, %s16
      // Predicated region
      $region53: #{model_forward.1} parent=5 // pred_check
        %p9566 = pneg %p9565
      $region54: #{model_forward.1} parent=5 // pred_check_branch
        %9568 = sbr.rel (%p9566) target = $region56
      $region55: #{model_forward.1} parent=5 // pred_region
        %s9569 = ssub.s32 %s16, 2
        // Predicated region
        $region57: #{model_forward.1} parent=55 // pred_check
          %p9570 = pneg %p197
        $region58: #{model_forward.1} parent=55 // pred_check_branch
          %9572 = sbr.rel (%p9570) target = $region60
        $region59: #{model_forward.1} parent=55 // pred_region
          %s9573 = sand.u32 %s182, 1
          %s9574 = scalar_lea.sflag [#allocation8], %s9573
          %s9575 = sand.u32 %s182, 1
          %s9576 = scalar_lea.vmem [#allocation7], %s9575
          %9577 = dma.done %s9574, 16
        $region60: #{model_forward.1} parent=55 // pred_fallthru
          _
      $region56: #{model_forward.1} parent=5 // pred_fallthru
        _
    $region6: #{model_forward.1} parent=1 // loop_footer
      %s20 = sadd.s32 1, %s16
    $region7: #{model_forward.1} parent=1 // loop_footer_branch
      %15 = sbr.rel target = $region3
    $region8: #{model_forward.1} parent=1 // loop_exit
      _
    %9578 = vsyncpa [#allocation8], 1
    %s9579 = scalar_lea.sflag [#allocation8], 1
    %9580 = vsyncpa %s9579, 1

</llo_original>
